<compile_context>
chip_gen: v7x
topology: tpu7x:2x2x1
jax: 0.10.0
libtpu: 0.0.40
codegen_flags: <defaults>
</compile_context>

<pallas_src>
import functools
import math

import jax
import jax.numpy as jnp
from jax.experimental import pallas as pl
from jax.experimental.pallas import tpu as pltpu

COMPUTE_DTYPE = jnp.bfloat16
VMEM_LIMIT = 32 * 1024 * 1024                       # safe on v5e/v6e/v7x
NEG_INF_MASK = float(jnp.finfo(jnp.bfloat16).min)   # HF uses finfo(dtype).min


# --------------------------------------------------------------------------
# tiling helpers
# --------------------------------------------------------------------------

def _divisor_block(dim, cap, multiple=8):
    """Largest divisor of dim that is a multiple of `multiple` and <= cap
    (falls back to the full dim, which is always a legal block)."""
    if dim <= cap:
        return dim
    c = (cap // multiple) * multiple
    while c >= multiple:
        if dim % c == 0:
            return c
        c -= multiple
    return dim


def _lane_block(dim, cap):
    """Block size for a minormost (lane) dim: multiple of 128 or full dim."""
    if dim <= cap:
        return dim
    c = (cap // 128) * 128
    while c >= 128:
        if dim % c == 0:
            return c
        c -= 128
    return dim


# --------------------------------------------------------------------------
# exact GELU (erf via Abramowitz&Stegun 7.1.26, |err| <= 1.5e-7: f32-level
# accurate, uses only exp/mul/add so it always lowers in Mosaic)
# --------------------------------------------------------------------------

_SQRT_HALF = 0.7071067811865476


def _erf_f32(x):
    p = 0.3275911
    a1, a2, a3, a4, a5 = (0.254829592, -0.284496736, 1.421413741,
                          -1.453152027, 1.061405429)
    ax = jnp.abs(x)
    t = 1.0 / (1.0 + p * ax)
    poly = ((((a5 * t + a4) * t + a3) * t + a2) * t + a1) * t
    y = 1.0 - poly * jnp.exp(-ax * ax)
    return jnp.where(x < 0.0, -y, y)


def _gelu_exact(x):
    return 0.5 * x * (1.0 + _erf_f32(x * _SQRT_HALF))


# --------------------------------------------------------------------------
# fused, tiled matmul kernel: out = epilogue(x @ w)  with f32 accumulation
# epilogue options: +bias, exact GELU, residual + gate * (.)
# --------------------------------------------------------------------------

def _matmul_kernel(*refs, has_bias, has_residual, activation):
    x_ref, w_ref = refs[0], refs[1]
    idx = 2
    b_ref = r_ref = g_ref = None
    if has_bias:
        b_ref = refs[idx]
        idx += 1
    if has_residual:
        r_ref, g_ref = refs[idx], refs[idx + 1]
        idx += 2
    o_ref, acc_ref = refs[idx], refs[idx + 1]

    @pl.when(pl.program_id(2) == 0)
    def _init():
        acc_ref[...] = jnp.zeros_like(acc_ref)

    acc_ref[...] += jnp.dot(x_ref[...], w_ref[...],
                            preferred_element_type=jnp.float32)

    @pl.when(pl.program_id(2) == pl.num_programs(2) - 1)
    def _flush():
        acc = acc_ref[...]
        if has_bias:
            acc = acc + b_ref[...].astype(jnp.float32)
        if activation == "gelu":
            acc = _gelu_exact(acc)
        if has_residual:
            acc = r_ref[...].astype(jnp.float32) + g_ref[0] * acc
        o_ref[...] = acc.astype(o_ref.dtype)


def pallas_matmul(x2d, w, bias=None, residual=None, gate=None, activation=None,
                  out_dtype=None, tm_cap=256, tn_cap=256, tk_cap=256):
    """(M, K) @ (K, N) with tiled, pipelined grid and fused epilogue."""
    M, K = x2d.shape
    K2, N = w.shape
    assert K == K2
    out_dtype = out_dtype or x2d.dtype

    tm = _divisor_block(M, tm_cap, 8)
    tn = _lane_block(N, tn_cap)
    tk = _lane_block(K, tk_cap)
    grid = (M // tm, N // tn, K // tk)

    has_bias = bias is not None
    has_residual = residual is not None

    inputs = [x2d, w]
    in_specs = [pl.BlockSpec((tm, tk), lambda i, j, k: (i, k)),
                pl.BlockSpec((tk, tn), lambda i, j, k: (k, j))]
    if has_bias:
        inputs.append(bias.reshape(1, N).astype(jnp.float32))
        in_specs.append(pl.BlockSpec((1, tn), lambda i, j, k: (0, j)))
    if has_residual:
        if gate is None:
            gate = jnp.ones((1,), jnp.float32)
        inputs.append(residual)
        in_specs.append(pl.BlockSpec((tm, tn), lambda i, j, k: (i, j)))
        inputs.append(gate.reshape(1).astype(jnp.float32))
        in_specs.append(pl.BlockSpec(memory_space=pltpu.MemorySpace.SMEM))

    return pl.pallas_call(
        functools.partial(_matmul_kernel, has_bias=has_bias,
                          has_residual=has_residual, activation=activation),
        out_shape=jax.ShapeDtypeStruct((M, N), out_dtype),
        grid=grid,
        in_specs=in_specs,
        out_specs=pl.BlockSpec((tm, tn), lambda i, j, k: (i, j)),
        scratch_shapes=[pltpu.VMEM((tm, tn), jnp.float32)],
        compiler_params=pltpu.CompilerParams(
            dimension_semantics=("parallel", "parallel", "arbitrary"),
            vmem_limit_bytes=VMEM_LIMIT),
    )(*inputs)


# --------------------------------------------------------------------------
# row-tiled layernorm
# --------------------------------------------------------------------------

def _layernorm_kernel(x_ref, w_ref, b_ref, o_ref, *, eps):
    x = x_ref[...].astype(jnp.float32)
    mean = jnp.mean(x, axis=-1, keepdims=True)
    xc = x - mean
    var = jnp.mean(xc * xc, axis=-1, keepdims=True)
    y = xc * jax.lax.rsqrt(var + eps)
    o_ref[...] = (y * w_ref[...].astype(jnp.float32)
                  + b_ref[...].astype(jnp.float32)).astype(o_ref.dtype)


def pallas_layernorm(x2d, w, b, eps=1e-5, out_dtype=None, row_cap=256):
    M, D = x2d.shape
    out_dtype = out_dtype or x2d.dtype
    tr = _divisor_block(M, row_cap)
    pad = 0
    if tr > row_cap:                 # no clean divisor: pad rows, tile anyway
        tr = row_cap
        pad = (-M) % tr
        x2d = jnp.pad(x2d, ((0, pad), (0, 0)))
    Mp = M + pad
    w2 = w.reshape(1, D).astype(jnp.float32)
    b2 = b.reshape(1, D).astype(jnp.float32)
    out = pl.pallas_call(
        functools.partial(_layernorm_kernel, eps=eps),
        out_shape=jax.ShapeDtypeStruct((Mp, D), out_dtype),
        grid=(Mp // tr,),
        in_specs=[pl.BlockSpec((tr, D), lambda i: (i, 0)),
                  pl.BlockSpec((1, D), lambda i: (0, 0)),
                  pl.BlockSpec((1, D), lambda i: (0, 0))],
        out_specs=pl.BlockSpec((tr, D), lambda i: (i, 0)),
        compiler_params=pltpu.CompilerParams(
            dimension_semantics=("parallel",),
            vmem_limit_bytes=VMEM_LIMIT),
    )(x2d, w2, b2)
    return out[:M] if pad else out


# --------------------------------------------------------------------------
# flash-style SDPA with in-kernel aspect-ratio mask reconstruction
# --------------------------------------------------------------------------

def _flash_sdpa_kernel(tm_ref, q_ref, k_ref, v_ref, o_ref, m_sc, l_sc, acc_sc,
                       *, scale, q_block, kv_block, target_length, num_patches,
                       num_tiles, all_invalid):
    b = pl.program_id(0)
    qi = pl.program_id(2)
    ki = pl.program_id(3)

    @pl.when(ki == 0)
    def _init():
        m_sc[...] = jnp.full_like(m_sc, -jnp.inf)
        l_sc[...] = jnp.zeros_like(l_sc)
        acc_sc[...] = jnp.zeros_like(acc_sc)

    # scores for this (q_block, kv_block) pair, f32 accumulation on the MXU
    s = jax.lax.dot_general(
        q_ref[0], k_ref[0], (((1,), (1,)), ((), ())),
        preferred_element_type=jnp.float32) * scale

    # ---- rebuild the HF additive mask on the fly from O(T) data -----------
    # invalid[pos] = (pos is a padded patch of its tile) OR (its tile is off
    # in aspect_ratio_mask); HF only masks pairs where BOTH ends are invalid:
    #   additive = finfo.min * invalid_q * invalid_k
    q_pos = qi * q_block + jax.lax.broadcasted_iota(
        jnp.int32, (q_block, kv_block), 0)
    k_pos = ki * kv_block + jax.lax.broadcasted_iota(
        jnp.int32, (q_block, kv_block), 1)

    def invalid(pos):
        if all_invalid:   # HF "-0:" quirk: pad_patches == 0 zeroes the mask
            return jnp.ones(pos.shape, jnp.float32)
        inv = jnp.zeros(pos.shape, jnp.float32)
        for t in range(num_tiles):                 # num_tiles is tiny (<= 4)
            lo = t * target_length
            in_tile = (pos >= lo) & (pos < lo + target_length)
            is_pad = in_tile & (pos >= lo + num_patches)
            tile_off = 1.0 - tm_ref[b, t]          # scalar read from SMEM
            inv = jnp.maximum(inv, is_pad.astype(jnp.float32))
            inv = jnp.maximum(inv, jnp.where(in_tile, tile_off, 0.0))
        return inv

    s = s + NEG_INF_MASK * invalid(q_pos) * invalid(k_pos)

    # ---- online softmax update --------------------------------------------
    m_prev = m_sc[...]
    m_new = jnp.maximum(m_prev, jnp.max(s, axis=-1, keepdims=True))
    alpha = jnp.exp(m_prev - m_new)
    p = jnp.exp(s - m_new)
    l_sc[...] = alpha * l_sc[...] + jnp.sum(p, axis=-1, keepdims=True)
    acc_sc[...] = alpha * acc_sc[...] + jnp.dot(
        p.astype(v_ref.dtype), v_ref[0], preferred_element_type=jnp.float32)
    m_sc[...] = m_new

    @pl.when(ki == pl.num_programs(3) - 1)
    def _flush():
        o_ref[0] = (acc_sc[...] *
                    pl.reciprocal(l_sc[...], approx=True)).astype(o_ref.dtype)


def pallas_flash_sdpa(qkv, tilemask, *, heads, head_dim, target_length,
                      num_patches, num_tiles, all_invalid,
                      q_block_cap=128, kv_block_cap=128):
    """qkv: (BM, S, 3*heads*head_dim) packed [q|k|v]; tilemask: (BM, T) f32."""
    BM, S, threeD = qkv.shape
    D = heads * head_dim
    assert threeD == 3 * D
    scale = 1.0 / math.sqrt(head_dim)

    if head_dim % 128 == 0:
        # heads indexed through the BlockSpec last-dim block offset directly
        # inside the packed qkv tensor -> zero transposes / slices in HBM.
        q_arr = k_arr = v_arr = qkv
        hd = head_dim
        q_off, k_off, v_off = 0, heads, 2 * heads
    else:
        # Lane-align the head dim (e.g. 80 -> 128): zero-padding q/k leaves
        # the scores unchanged; padded v columns are sliced off afterwards.
        hd = ((head_dim + 127) // 128) * 128

        def split_pad(a):
            a = a.reshape(BM, S, heads, head_dim)
            a = jnp.pad(a, ((0, 0), (0, 0), (0, 0), (0, hd - head_dim)))
            return a.reshape(BM, S, heads * hd)

        q_arr = split_pad(qkv[..., :D])
        k_arr = split_pad(qkv[..., D:2 * D])
        v_arr = split_pad(qkv[..., 2 * D:])
        q_off = k_off = v_off = 0

    tq = _divisor_block(S, q_block_cap)
    tk = _divisor_block(S, kv_block_cap)
    grid = (BM, heads, S // tq, S // tk)

    out = pl.pallas_call(
        functools.partial(
            _flash_sdpa_kernel, scale=scale, q_block=tq, kv_block=tk,
            target_length=target_length, num_patches=num_patches,
            num_tiles=num_tiles, all_invalid=all_invalid),
        out_shape=jax.ShapeDtypeStruct((BM, S, heads * hd), qkv.dtype),
        grid=grid,
        in_specs=[
            pl.BlockSpec(memory_space=pltpu.MemorySpace.SMEM),   # (BM, T)
            pl.BlockSpec((1, tq, hd),
                         lambda b, h, qi, ki, o=q_off: (b, qi, h + o)),
            pl.BlockSpec((1, tk, hd),
                         lambda b, h, qi, ki, o=k_off: (b, ki, h + o)),
            pl.BlockSpec((1, tk, hd),
                         lambda b, h, qi, ki, o=v_off: (b, ki, h + o)),
        ],
        out_specs=pl.BlockSpec((1, tq, hd), lambda b, h, qi, ki: (b, qi, h)),
        scratch_shapes=[
            pltpu.VMEM((tq, 1), jnp.float32),     # running max
            pltpu.VMEM((tq, 1), jnp.float32),     # running denominator
            pltpu.VMEM((tq, hd), jnp.float32),    # running numerator
        ],
        compiler_params=pltpu.CompilerParams(
            dimension_semantics=("parallel", "parallel", "parallel",
                                 "arbitrary"),
            vmem_limit_bytes=VMEM_LIMIT),
    )(tilemask, q_arr, k_arr, v_arr)

    if hd != head_dim:
        out = out.reshape(BM, S, heads, hd)[..., :head_dim].reshape(BM, S, D)
    return out


# --------------------------------------------------------------------------
# model glue (plain JAX), mirroring MllamaVisionModel.forward
# --------------------------------------------------------------------------

def encoder_layer(h, tilemask, lp, cfg, is_gated, mask_meta):
    BM, S, D = h.shape
    heads = cfg["attention_heads"]
    hd = D // heads

    if is_gated:
        gate_attn = jnp.tanh(lp["gate_attn"]).reshape(1)
        gate_ffn = jnp.tanh(lp["gate_ffn"]).reshape(1)
    else:
        gate_attn = gate_ffn = None

    # --- self attention: LN -> qkv matmul -> flash SDPA -> fused
    #     o_proj + gate*(.) + residual ---
    residual = h.reshape(-1, D)
    h2 = pallas_layernorm(residual, lp["ln1_w"], lp["ln1_b"])
    qkv = pallas_matmul(h2, lp["w_qkv"]).reshape(BM, S, 3 * D)
    attn = pallas_flash_sdpa(
        qkv, tilemask, heads=heads, head_dim=hd,
        q_block_cap=cfg.get("attn_block_q", 128),
        kv_block_cap=cfg.get("attn_block_kv", 128),
        **mask_meta)
    h = pallas_matmul(attn.reshape(-1, D), lp["w_o"],
                      residual=residual, gate=gate_attn).reshape(BM, S, D)

    # --- MLP: LN -> fused fc1+bias+GELU -> fused fc2+bias+gate+residual ---
    residual = h.reshape(-1, D)
    h2 = pallas_layernorm(residual, lp["ln2_w"], lp["ln2_b"])
    f = pallas_matmul(h2, lp["fc1_w"], bias=lp["fc1_b"], activation="gelu")
    h = pallas_matmul(f, lp["fc2_w"], bias=lp["fc2_b"],
                      residual=residual, gate=gate_ffn).reshape(BM, S, D)
    return h


def run_encoder(h, tilemask, layers, cfg, is_gated, mask_meta):
    states = [h]
    for lp in layers:
        h = encoder_layer(h, tilemask, lp, cfg, is_gated, mask_meta)
        states.append(h)
    return h, states


def mllama_vision_forward(params, pixel_values, aspect_ratio_ids,
                          attention_mask, cfg):
    B, M, T, C, H, W = pixel_values.shape
    dim = cfg["hidden_size"]
    p = cfg["patch_size"]
    gh, gw = H // p, W // p
    np_spatial = gh * gw
    num_patches = np_spatial + 1
    cdt = COMPUTE_DTYPE

    px = pixel_values.reshape(B * M * T, C, H, W)
    ar_ids = aspect_ratio_ids.reshape(B * M, -1)

    # ---- patch embedding (stride==kernel Conv2d) = unfold + Pallas matmul ----
    patches = px.reshape(B * M * T, C, gh, p, gw, p)
    patches = patches.transpose(0, 2, 4, 1, 3, 5).reshape(
        B * M * T * np_spatial, C * p * p).astype(cdt)
    w_patch = params["patch_embedding"].reshape(dim, C * p * p).T
    # TODO(synk): pad the C*p*p contraction dim to a multiple of 128 for full
    # MXU occupancy at production sizes (588 -> 640); correctness unaffected.
    hidden = pallas_matmul(patches, w_patch, out_dtype=jnp.float32)
    hidden = hidden.reshape(B * M * T, np_spatial, dim)

    # ---- pre tile positional embedding ----
    hidden = hidden.reshape(B * M, T, np_spatial, dim)
    pre = params["pre_tile"]
    emb = pre["embedding"][ar_ids].reshape(-1, cfg["max_num_tiles"], 1, dim)
    hidden = hidden + emb * jnp.tanh(pre["gate"])

    # ---- class embedding ----
    hidden = hidden.reshape(B * M * T, np_spatial, dim)
    cls = jnp.broadcast_to(params["class_embedding"].reshape(1, 1, dim),
                           (B * M * T, 1, dim))
    hidden = jnp.concatenate([cls, hidden], axis=1)

    # ---- gated positional embedding ----
    hidden = hidden.reshape(B * M, T, num_patches, dim)
    gp = params["gated_pos"]
    gated_pos = (1.0 - jnp.tanh(gp["gate"])) * gp["embedding"]
    hidden = hidden + gated_pos.reshape(1, 1, num_patches, dim)
    tile_pos = gp["tile_embedding"][ar_ids].reshape(
        B * M, cfg["max_num_tiles"], num_patches, dim)
    hidden = hidden + jnp.tanh(gp["gate"]) * tile_pos

    # ---- layernorm_pre (row-tiled; casts activations to bf16) ----
    hidden = pallas_layernorm(
        hidden.reshape(-1, dim), params["layernorm_pre"]["weight"],
        params["layernorm_pre"]["bias"],
        out_dtype=cdt).reshape(B * M, T, num_patches, dim)

    # ---- pad the patch axis to a multiple of 8 ----
    num_padding = (8 - num_patches % 8) % 8
    hidden = jnp.pad(hidden, ((0, 0), (0, 0), (0, num_padding), (0, 0)))
    target_length = hidden.shape[2]

    # ---- attention mask metadata: rebuilt inside the SDPA kernel from this
    #      O(T) data, the SxS additive mask never touches HBM ----
    tilemask = attention_mask.reshape(B * M, T).astype(jnp.float32)
    mask_meta = dict(target_length=target_length, num_patches=num_patches,
                     num_tiles=T,
                     all_invalid=bool(target_length == num_patches))

    # ---- local transformer ----
    hidden = hidden.reshape(B * M, T * target_length, dim)
    hidden, all_states = run_encoder(hidden, tilemask, params["transformer"],
                                     cfg, False, mask_meta)
    inter = [s for i, s in enumerate(all_states)
             if i in cfg["intermediate_layers_indices"]]
    inter = jnp.stack(inter, axis=-1)             # (BM, S, dim, n_int)

    # ---- layernorm_post ----
    hidden = pallas_layernorm(
        hidden.reshape(-1, dim), params["layernorm_post"]["weight"],
        params["layernorm_post"]["bias"],
        out_dtype=cdt).reshape(B * M, T, target_length, dim)

    # ---- post tile positional embedding ----
    post = params["post_tile"]
    emb = post["embedding"][ar_ids].reshape(-1, cfg["max_num_tiles"], 1, dim)
    hidden = hidden + (emb * jnp.tanh(post["gate"])).astype(cdt)

    # ---- global transformer ----
    hidden = hidden.reshape(B * M, T * target_length, dim)
    hidden, _ = run_encoder(hidden, tilemask, params["global_transformer"],
                            cfg, True, mask_meta)

    # ---- final gathers ----
    hidden = hidden.reshape(B * M, T, target_length, dim)[:, :, :num_patches]
    hidden = hidden.reshape(B, M, T, num_patches, dim)

    n_int = inter.shape[-1]
    inter = inter.reshape(B * M, T, target_length,
                          dim * n_int)[:, :, :num_patches]
    inter = inter.reshape(B, M, T, num_patches, dim * n_int)

    return jnp.concatenate([hidden, inter], axis=-1)


# --------------------------------------------------------------------------
# deterministic parameter init
# --------------------------------------------------------------------------

def init_params(cfg, key):
    keys = iter(jax.random.split(key, 512))
    cdt = COMPUTE_DTYPE

    def nrm(shape, scale=0.02, dtype=jnp.float32):
        return (scale * jax.random.normal(next(keys), shape,
                                          dtype=jnp.float32)).astype(dtype)

    dim = cfg["hidden_size"]
    inter = cfg["intermediate_size"]
    np_full = (cfg["image_size"] // cfg["patch_size"]) ** 2 + 1
    n_ar = cfg["max_aspect_ratio_id"] + 1
    T = cfg["max_num_tiles"]
    C = cfg["num_channels"]
    p = cfg["patch_size"]

    def make_layer(is_gated):
        lp = {
            "ln1_w": jnp.ones((dim,)) + nrm((dim,)),
            "ln1_b": nrm((dim,)),
            "ln2_w": jnp.ones((dim,)) + nrm((dim,)),
            "ln2_b": nrm((dim,)),
            # matmul weights in bf16 (halved HBM traffic, 2x MXU rate);
            # in-kernel accumulation is f32.
            "w_qkv": nrm((dim, 3 * dim), dtype=cdt),   # columns [q | k | v]
            "w_o": nrm((dim, dim), dtype=cdt),
            "fc1_w": nrm((dim, inter), dtype=cdt),
            "fc1_b": nrm((inter,)),
            "fc2_w": nrm((inter, dim), dtype=cdt),
            "fc2_b": nrm((dim,)),
        }
        if is_gated:
            lp["gate_attn"] = nrm((), scale=1.0)
            lp["gate_ffn"] = nrm((), scale=1.0)
        return lp

    return {
        "patch_embedding": nrm((dim, C, p, p), dtype=cdt),
        "class_embedding": nrm((dim,)),
        "gated_pos": {
            "gate": nrm((), scale=1.0),
            "embedding": nrm((np_full, dim)),
            "tile_embedding": nrm((n_ar, T * np_full * dim)),
        },
        "pre_tile": {"gate": nrm((), scale=1.0),
                     "embedding": nrm((n_ar, T * dim))},
        "post_tile": {"gate": nrm((), scale=1.0),
                      "embedding": nrm((n_ar, T * dim))},
        "layernorm_pre": {"weight": jnp.ones((dim,)) + nrm((dim,)),
                          "bias": nrm((dim,))},
        "layernorm_post": {"weight": jnp.ones((dim,)) + nrm((dim,)),
                           "bias": nrm((dim,))},
        "transformer": [make_layer(False)
                        for _ in range(cfg["num_hidden_layers"])],
        "global_transformer": [make_layer(True)
                               for _ in range(cfg["num_global_layers"])],
    }


# --------------------------------------------------------------------------
# main
# --------------------------------------------------------------------------

if __name__ == "__main__":
    cfg = {
        "image_size": 32,
        "patch_size": 8,
        "max_num_tiles": 2,
        "hidden_size": 256,
        "num_channels": 3,
        "attention_heads": 2,        # head_dim = 128 (lane aligned)
        "intermediate_size": 512,
        "num_hidden_layers": 2,
        "num_global_layers": 1,
        "max_aspect_ratio_id": 3,
        "intermediate_layers_indices": [0, 1],
        "hidden_act": "gelu",
        # attention tile sizes: small so the toy S=48 exercises the
        # multi-block online-softmax path (use 128-256 at production sizes).
        "attn_block_q": 24,
        "attn_block_kv": 24,
    }

    key = jax.random.PRNGKey(0)
    k_param, k_px = jax.random.split(key)
    params = init_params(cfg, k_param)

    B, M, T = 1, 1, cfg["max_num_tiles"]
    C, H, W = cfg["num_channels"], cfg["image_size"], cfg["image_size"]
    pixel_values = jax.random.normal(k_px, (B, M, T, C, H, W),
                                     dtype=jnp.float32)
    aspect_ratio_ids = jnp.array([[1]], dtype=jnp.int32)        # (B, M)
    attention_mask = jnp.array([[[1, 0]]], dtype=jnp.int32)     # (B, M, T)

    fwd = jax.jit(functools.partial(mllama_vision_forward, cfg=cfg))
    out = fwd(params, pixel_values, aspect_ratio_ids, attention_mask)
    out = jax.block_until_ready(out)

    num_patches = (cfg["image_size"] // cfg["patch_size"]) ** 2 + 1
    n_int = len(cfg["intermediate_layers_indices"])
    expected = (B, M, T, num_patches, cfg["hidden_size"] * (1 + n_int))
    assert out.shape == expected, (out.shape, expected)
    assert bool(jnp.isfinite(out.astype(jnp.float32)).all())
    print("KERNEL_OK")
</pallas_src>

<mosaic_0001>
module attributes {stable_mosaic.version = 11 : i64} {
  func.func @_matmul_kernel(%arg0: i32, %arg1: i32, %arg2: i32, %arg3: memref<32x192xbf16, #tpu.memory_space<vmem>>, %arg4: memref<192x256xbf16, #tpu.memory_space<vmem>>, %arg5: memref<32x256xf32, #tpu.memory_space<vmem>>, %arg6: memref<32x256xf32, #tpu.memory_space<vmem>>) attributes {dimension_semantics = [#tpu.dimension_semantics<parallel>, #tpu.dimension_semantics<parallel>, #tpu.dimension_semantics<arbitrary>], iteration_bounds = array<i64: 1, 1, 1>, scalar_prefetch = 0 : i64, scratch_operands = 1 : i64, tpu.core_type = #tpu.core_type<tc>, window_params = [{transform_indices = @transform_0, window_bounds = array<i64: 32, 192>}, {transform_indices = @transform_1, window_bounds = array<i64: 192, 256>}, {transform_indices = @transform_2, window_bounds = array<i64: 32, 256>}]} {
    %c0_i32 = arith.constant 0 : i32
    %0 = arith.cmpi eq, %arg2, %c0_i32 : i32
    %1 = arith.extui %0 : i1 to i32
    %c0_i32_0 = arith.constant 0 : i32
    %2 = arith.cmpi ne, %1, %c0_i32_0 : i32
    scf.if %2 {
      %cst_10 = arith.constant 0.000000e+00 : f32
      %12 = vector.broadcast %cst_10 : f32 to vector<32x256xf32>
      %c0_11 = arith.constant 0 : index
      %c0_12 = arith.constant 0 : index
      %13 = vector.load %arg6[%c0_11, %c0_12] : memref<32x256xf32, #tpu.memory_space<vmem>>, vector<32x256xf32>
      tpu.vector_store %arg6[%c0_11, %c0_12], %12 {strides = array<i32>} : memref<32x256xf32, #tpu.memory_space<vmem>>, vector<32x256xf32>,
    } else {
    }
    %c0 = arith.constant 0 : index
    %c0_1 = arith.constant 0 : index
    %3 = vector.load %arg6[%c0, %c0_1] : memref<32x256xf32, #tpu.memory_space<vmem>>, vector<32x256xf32>
    %c0_2 = arith.constant 0 : index
    %c0_3 = arith.constant 0 : index
    %4 = vector.load %arg3[%c0_2, %c0_3] : memref<32x192xbf16, #tpu.memory_space<vmem>>, vector<32x192xbf16>
    %c0_4 = arith.constant 0 : index
    %c0_5 = arith.constant 0 : index
    %5 = vector.load %arg4[%c0_4, %c0_5] : memref<192x256xbf16, #tpu.memory_space<vmem>>, vector<192x256xbf16>
    %cst = arith.constant dense<0.000000e+00> : vector<32x256xf32>
    %6 = tpu.matmul %4, %5, %cst {dimension_numbers = #tpu.dot_dimension_numbers<[1], [0], [0], [1], [0, 0, 1, 1], [], []>} : vector<32x192xbf16>, vector<192x256xbf16>, vector<32x256xf32> -> vector<32x256xf32>
    %7 = arith.addf %3, %6 : vector<32x256xf32>
    %c0_6 = arith.constant 0 : index
    %c0_7 = arith.constant 0 : index
    %8 = vector.load %arg6[%c0_6, %c0_7] : memref<32x256xf32, #tpu.memory_space<vmem>>, vector<32x256xf32>
    tpu.vector_store %arg6[%c0_6, %c0_7], %7 {strides = array<i32>} : memref<32x256xf32, #tpu.memory_space<vmem>>, vector<32x256xf32>,
    %c0_i32_8 = arith.constant 0 : i32
    %9 = arith.cmpi eq, %arg2, %c0_i32_8 : i32
    %10 = arith.extui %9 : i1 to i32
    %c0_i32_9 = arith.constant 0 : i32
    %11 = arith.cmpi ne, %10, %c0_i32_9 : i32
    scf.if %11 {
      %c0_10 = arith.constant 0 : index
      %c0_11 = arith.constant 0 : index
      %12 = vector.load %arg6[%c0_10, %c0_11] : memref<32x256xf32, #tpu.memory_space<vmem>>, vector<32x256xf32>
      %c0_12 = arith.constant 0 : index
      %c0_13 = arith.constant 0 : index
      %13 = vector.load %arg5[%c0_12, %c0_13] : memref<32x256xf32, #tpu.memory_space<vmem>>, vector<32x256xf32>
      tpu.vector_store %arg5[%c0_12, %c0_13], %12 {strides = array<i32>} : memref<32x256xf32, #tpu.memory_space<vmem>>, vector<32x256xf32>,
    } else {
    }
    return
  }
  func.func @transform_0(%arg0: i32, %arg1: i32, %arg2: i32) -> (i32, i32) {
    %c0_i32 = arith.constant 0 : i32
    return %arg0, %arg2 : i32, i32
  }
  func.func @transform_1(%arg0: i32, %arg1: i32, %arg2: i32) -> (i32, i32) {
    %c0_i32 = arith.constant 0 : i32
    return %arg2, %arg1 : i32, i32
  }
  func.func @transform_2(%arg0: i32, %arg1: i32, %arg2: i32) -> (i32, i32) {
    %c0_i32 = arith.constant 0 : i32
    return %arg0, %arg1 : i32, i32
  }
}

module attributes {stable_mosaic.version = 11 : i64} {
  func.func @_layernorm_kernel(%arg0: i32, %arg1: memref<34x256xf32, #tpu.memory_space<vmem>>, %arg2: memref<1x256xf32, #tpu.memory_space<vmem>>, %arg3: memref<1x256xf32, #tpu.memory_space<vmem>>, %arg4: memref<34x256xbf16, #tpu.memory_space<vmem>>) attributes {dimension_semantics = [#tpu.dimension_semantics<parallel>], iteration_bounds = array<i64: 1>, scalar_prefetch = 0 : i64, scratch_operands = 0 : i64, tpu.core_type = #tpu.core_type<tc>, window_params = [{transform_indices = @transform_0, window_bounds = array<i64: 34, 256>}, {pipeline_mode = #tpu.pipeline_mode<synchronous>, transform_indices = @transform_1, window_bounds = array<i64: 1, 256>}, {pipeline_mode = #tpu.pipeline_mode<synchronous>, transform_indices = @transform_2, window_bounds = array<i64: 1, 256>}, {transform_indices = @transform_3, window_bounds = array<i64: 34, 256>}]} {
    %c0 = arith.constant 0 : index
    %c0_0 = arith.constant 0 : index
    %0 = vector.load %arg1[%c0, %c0_0] : memref<34x256xf32, #tpu.memory_space<vmem>>, vector<34x256xf32>
    %cst = arith.constant dense<0.000000e+00> : vector<34xf32>
    %1 = vector.multi_reduction <add>, %0, %cst [1] : vector<34x256xf32> to vector<34xf32>
    %2 = vector.shape_cast %1 : vector<34xf32> to vector<34x1xf32>
    %cst_1 = arith.constant 2.560000e+02 : f32
    %3 = vector.broadcast %cst_1 : f32 to vector<34x1xf32>
    %4 = arith.divf %2, %3 : vector<34x1xf32>
    %5 = vector.broadcast %4 : vector<34x1xf32> to vector<34x256xf32>
    %6 = arith.subf %0, %5 : vector<34x256xf32>
    %7 = arith.mulf %6, %6 : vector<34x256xf32>
    %cst_2 = arith.constant dense<0.000000e+00> : vector<34xf32>
    %8 = vector.multi_reduction <add>, %7, %cst_2 [1] : vector<34x256xf32> to vector<34xf32>
    %9 = vector.shape_cast %8 : vector<34xf32> to vector<34x1xf32>
    %cst_3 = arith.constant 2.560000e+02 : f32
    %10 = vector.broadcast %cst_3 : f32 to vector<34x1xf32>
    %11 = arith.divf %9, %10 : vector<34x1xf32>
    %cst_4 = arith.constant 9.99999974E-6 : f32
    %12 = vector.broadcast %cst_4 : f32 to vector<34x1xf32>
    %13 = arith.addf %11, %12 : vector<34x1xf32>
    %14 = math.rsqrt %13 : vector<34x1xf32>
    %15 = vector.broadcast %14 : vector<34x1xf32> to vector<34x256xf32>
    %16 = arith.mulf %6, %15 : vector<34x256xf32>
    %c0_5 = arith.constant 0 : index
    %c0_6 = arith.constant 0 : index
    %17 = vector.load %arg2[%c0_5, %c0_6] : memref<1x256xf32, #tpu.memory_space<vmem>>, vector<1x256xf32>
    %18 = vector.broadcast %17 : vector<1x256xf32> to vector<34x256xf32>
    %19 = arith.mulf %16, %18 : vector<34x256xf32>
    %c0_7 = arith.constant 0 : index
    %c0_8 = arith.constant 0 : index
    %20 = vector.load %arg3[%c0_7, %c0_8] : memref<1x256xf32, #tpu.memory_space<vmem>>, vector<1x256xf32>
    %21 = vector.broadcast %20 : vector<1x256xf32> to vector<34x256xf32>
    %22 = arith.addf %19, %21 : vector<34x256xf32>
    %23 = arith.truncf %22 : vector<34x256xf32> to vector<34x256xbf16>
    %c0_9 = arith.constant 0 : index
    %c0_10 = arith.constant 0 : index
    %24 = vector.load %arg4[%c0_9, %c0_10] : memref<34x256xbf16, #tpu.memory_space<vmem>>, vector<34x256xbf16>
    tpu.vector_store %arg4[%c0_9, %c0_10], %23 {strides = array<i32>} : memref<34x256xbf16, #tpu.memory_space<vmem>>, vector<34x256xbf16>,
    return
  }
  func.func @transform_0(%arg0: i32) -> (i32, i32) {
    %c0_i32 = arith.constant 0 : i32
    %c0_i32_0 = arith.constant 0 : i32
    return %arg0, %c0_i32 : i32, i32
  }
  func.func @transform_1(%arg0: i32) -> (i32, i32) {
    %c0_i32 = arith.constant 0 : i32
    %c0_i32_0 = arith.constant 0 : i32
    %c0_i32_1 = arith.constant 0 : i32
    return %c0_i32, %c0_i32_0 : i32, i32
  }
  func.func @transform_2(%arg0: i32) -> (i32, i32) {
    %c0_i32 = arith.constant 0 : i32
    %c0_i32_0 = arith.constant 0 : i32
    %c0_i32_1 = arith.constant 0 : i32
    return %c0_i32, %c0_i32_0 : i32, i32
  }
  func.func @transform_3(%arg0: i32) -> (i32, i32) {
    %c0_i32 = arith.constant 0 : i32
    %c0_i32_0 = arith.constant 0 : i32
    return %arg0, %c0_i32 : i32, i32
  }
}

module attributes {stable_mosaic.version = 11 : i64} {
  func.func @_layernorm_kernel(%arg0: i32, %arg1: memref<48x256xbf16, #tpu.memory_space<vmem>>, %arg2: memref<1x256xf32, #tpu.memory_space<vmem>>, %arg3: memref<1x256xf32, #tpu.memory_space<vmem>>, %arg4: memref<48x256xbf16, #tpu.memory_space<vmem>>) attributes {dimension_semantics = [#tpu.dimension_semantics<parallel>], iteration_bounds = array<i64: 1>, scalar_prefetch = 0 : i64, scratch_operands = 0 : i64, tpu.core_type = #tpu.core_type<tc>, window_params = [{transform_indices = @transform_0, window_bounds = array<i64: 48, 256>}, {pipeline_mode = #tpu.pipeline_mode<synchronous>, transform_indices = @transform_1, window_bounds = array<i64: 1, 256>}, {pipeline_mode = #tpu.pipeline_mode<synchronous>, transform_indices = @transform_2, window_bounds = array<i64: 1, 256>}, {transform_indices = @transform_3, window_bounds = array<i64: 48, 256>}]} {
    %c0 = arith.constant 0 : index
    %c0_0 = arith.constant 0 : index
    %0 = vector.load %arg1[%c0, %c0_0] : memref<48x256xbf16, #tpu.memory_space<vmem>>, vector<48x256xbf16>
    %1 = arith.extf %0 : vector<48x256xbf16> to vector<48x256xf32>
    %cst = arith.constant dense<0.000000e+00> : vector<48xf32>
    %2 = vector.multi_reduction <add>, %1, %cst [1] : vector<48x256xf32> to vector<48xf32>
    %3 = vector.shape_cast %2 : vector<48xf32> to vector<48x1xf32>
    %cst_1 = arith.constant 2.560000e+02 : f32
    %4 = vector.broadcast %cst_1 : f32 to vector<48x1xf32>
    %5 = arith.divf %3, %4 : vector<48x1xf32>
    %6 = vector.broadcast %5 : vector<48x1xf32> to vector<48x256xf32>
    %7 = arith.subf %1, %6 : vector<48x256xf32>
    %8 = arith.mulf %7, %7 : vector<48x256xf32>
    %cst_2 = arith.constant dense<0.000000e+00> : vector<48xf32>
    %9 = vector.multi_reduction <add>, %8, %cst_2 [1] : vector<48x256xf32> to vector<48xf32>
    %10 = vector.shape_cast %9 : vector<48xf32> to vector<48x1xf32>
    %cst_3 = arith.constant 2.560000e+02 : f32
    %11 = vector.broadcast %cst_3 : f32 to vector<48x1xf32>
    %12 = arith.divf %10, %11 : vector<48x1xf32>
    %cst_4 = arith.constant 9.99999974E-6 : f32
    %13 = vector.broadcast %cst_4 : f32 to vector<48x1xf32>
    %14 = arith.addf %12, %13 : vector<48x1xf32>
    %15 = math.rsqrt %14 : vector<48x1xf32>
    %16 = vector.broadcast %15 : vector<48x1xf32> to vector<48x256xf32>
    %17 = arith.mulf %7, %16 : vector<48x256xf32>
    %c0_5 = arith.constant 0 : index
    %c0_6 = arith.constant 0 : index
    %18 = vector.load %arg2[%c0_5, %c0_6] : memref<1x256xf32, #tpu.memory_space<vmem>>, vector<1x256xf32>
    %19 = vector.broadcast %18 : vector<1x256xf32> to vector<48x256xf32>
    %20 = arith.mulf %17, %19 : vector<48x256xf32>
    %c0_7 = arith.constant 0 : index
    %c0_8 = arith.constant 0 : index
    %21 = vector.load %arg3[%c0_7, %c0_8] : memref<1x256xf32, #tpu.memory_space<vmem>>, vector<1x256xf32>
    %22 = vector.broadcast %21 : vector<1x256xf32> to vector<48x256xf32>
    %23 = arith.addf %20, %22 : vector<48x256xf32>
    %24 = arith.truncf %23 : vector<48x256xf32> to vector<48x256xbf16>
    %c0_9 = arith.constant 0 : index
    %c0_10 = arith.constant 0 : index
    %25 = vector.load %arg4[%c0_9, %c0_10] : memref<48x256xbf16, #tpu.memory_space<vmem>>, vector<48x256xbf16>
    tpu.vector_store %arg4[%c0_9, %c0_10], %24 {strides = array<i32>} : memref<48x256xbf16, #tpu.memory_space<vmem>>, vector<48x256xbf16>,
    return
  }
  func.func @transform_0(%arg0: i32) -> (i32, i32) {
    %c0_i32 = arith.constant 0 : i32
    %c0_i32_0 = arith.constant 0 : i32
    return %arg0, %c0_i32 : i32, i32
  }
  func.func @transform_1(%arg0: i32) -> (i32, i32) {
    %c0_i32 = arith.constant 0 : i32
    %c0_i32_0 = arith.constant 0 : i32
    %c0_i32_1 = arith.constant 0 : i32
    return %c0_i32, %c0_i32_0 : i32, i32
  }
  func.func @transform_2(%arg0: i32) -> (i32, i32) {
    %c0_i32 = arith.constant 0 : i32
    %c0_i32_0 = arith.constant 0 : i32
    %c0_i32_1 = arith.constant 0 : i32
    return %c0_i32, %c0_i32_0 : i32, i32
  }
  func.func @transform_3(%arg0: i32) -> (i32, i32) {
    %c0_i32 = arith.constant 0 : i32
    %c0_i32_0 = arith.constant 0 : i32
    return %arg0, %c0_i32 : i32, i32
  }
}

module attributes {stable_mosaic.version = 11 : i64} {
  func.func @_matmul_kernel(%arg0: i32, %arg1: i32, %arg2: i32, %arg3: memref<48x256xbf16, #tpu.memory_space<vmem>>, %arg4: memref<256x256xbf16, #tpu.memory_space<vmem>>, %arg5: memref<48x256xbf16, #tpu.memory_space<vmem>>, %arg6: memref<48x256xf32, #tpu.memory_space<vmem>>) attributes {dimension_semantics = [#tpu.dimension_semantics<parallel>, #tpu.dimension_semantics<parallel>, #tpu.dimension_semantics<arbitrary>], iteration_bounds = array<i64: 1, 3, 1>, scalar_prefetch = 0 : i64, scratch_operands = 1 : i64, tpu.core_type = #tpu.core_type<tc>, window_params = [{transform_indices = @transform_0, window_bounds = array<i64: 48, 256>}, {transform_indices = @transform_1, window_bounds = array<i64: 256, 256>}, {transform_indices = @transform_2, window_bounds = array<i64: 48, 256>}]} {
    %c0_i32 = arith.constant 0 : i32
    %0 = arith.cmpi eq, %arg2, %c0_i32 : i32
    %1 = arith.extui %0 : i1 to i32
    %c0_i32_0 = arith.constant 0 : i32
    %2 = arith.cmpi ne, %1, %c0_i32_0 : i32
    scf.if %2 {
      %cst_10 = arith.constant 0.000000e+00 : f32
      %12 = vector.broadcast %cst_10 : f32 to vector<48x256xf32>
      %c0_11 = arith.constant 0 : index
      %c0_12 = arith.constant 0 : index
      %13 = vector.load %arg6[%c0_11, %c0_12] : memref<48x256xf32, #tpu.memory_space<vmem>>, vector<48x256xf32>
      tpu.vector_store %arg6[%c0_11, %c0_12], %12 {strides = array<i32>} : memref<48x256xf32, #tpu.memory_space<vmem>>, vector<48x256xf32>,
    } else {
    }
    %c0 = arith.constant 0 : index
    %c0_1 = arith.constant 0 : index
    %3 = vector.load %arg6[%c0, %c0_1] : memref<48x256xf32, #tpu.memory_space<vmem>>, vector<48x256xf32>
    %c0_2 = arith.constant 0 : index
    %c0_3 = arith.constant 0 : index
    %4 = vector.load %arg3[%c0_2, %c0_3] : memref<48x256xbf16, #tpu.memory_space<vmem>>, vector<48x256xbf16>
    %c0_4 = arith.constant 0 : index
    %c0_5 = arith.constant 0 : index
    %5 = vector.load %arg4[%c0_4, %c0_5] : memref<256x256xbf16, #tpu.memory_space<vmem>>, vector<256x256xbf16>
    %cst = arith.constant dense<0.000000e+00> : vector<48x256xf32>
    %6 = tpu.matmul %4, %5, %cst {dimension_numbers = #tpu.dot_dimension_numbers<[1], [0], [0], [1], [0, 0, 1, 1], [], []>} : vector<48x256xbf16>, vector<256x256xbf16>, vector<48x256xf32> -> vector<48x256xf32>
    %7 = arith.addf %3, %6 : vector<48x256xf32>
    %c0_6 = arith.constant 0 : index
    %c0_7 = arith.constant 0 : index
    %8 = vector.load %arg6[%c0_6, %c0_7] : memref<48x256xf32, #tpu.memory_space<vmem>>, vector<48x256xf32>
    tpu.vector_store %arg6[%c0_6, %c0_7], %7 {strides = array<i32>} : memref<48x256xf32, #tpu.memory_space<vmem>>, vector<48x256xf32>,
    %c0_i32_8 = arith.constant 0 : i32
    %9 = arith.cmpi eq, %arg2, %c0_i32_8 : i32
    %10 = arith.extui %9 : i1 to i32
    %c0_i32_9 = arith.constant 0 : i32
    %11 = arith.cmpi ne, %10, %c0_i32_9 : i32
    scf.if %11 {
      %c0_10 = arith.constant 0 : index
      %c0_11 = arith.constant 0 : index
      %12 = vector.load %arg6[%c0_10, %c0_11] : memref<48x256xf32, #tpu.memory_space<vmem>>, vector<48x256xf32>
      %13 = arith.truncf %12 : vector<48x256xf32> to vector<48x256xbf16>
      %c0_12 = arith.constant 0 : index
      %c0_13 = arith.constant 0 : index
      %14 = vector.load %arg5[%c0_12, %c0_13] : memref<48x256xbf16, #tpu.memory_space<vmem>>, vector<48x256xbf16>
      tpu.vector_store %arg5[%c0_12, %c0_13], %13 {strides = array<i32>} : memref<48x256xbf16, #tpu.memory_space<vmem>>, vector<48x256xbf16>,
    } else {
    }
    return
  }
  func.func @transform_0(%arg0: i32, %arg1: i32, %arg2: i32) -> (i32, i32) {
    %c0_i32 = arith.constant 0 : i32
    return %arg0, %arg2 : i32, i32
  }
  func.func @transform_1(%arg0: i32, %arg1: i32, %arg2: i32) -> (i32, i32) {
    %c0_i32 = arith.constant 0 : i32
    return %arg2, %arg1 : i32, i32
  }
  func.func @transform_2(%arg0: i32, %arg1: i32, %arg2: i32) -> (i32, i32) {
    %c0_i32 = arith.constant 0 : i32
    return %arg0, %arg1 : i32, i32
  }
}

module attributes {stable_mosaic.version = 11 : i64} {
  func.func @_flash_sdpa_kernel(%arg0: i32, %arg1: i32, %arg2: i32, %arg3: i32, %arg4: memref<1x2xf32, #tpu.memory_space<smem>>, %arg5: memref<1x24x128xbf16, #tpu.memory_space<vmem>>, %arg6: memref<1x24x128xbf16, #tpu.memory_space<vmem>>, %arg7: memref<1x24x128xbf16, #tpu.memory_space<vmem>>, %arg8: memref<1x24x128xbf16, #tpu.memory_space<vmem>>, %arg9: memref<24x1xf32, #tpu.memory_space<vmem>>, %arg10: memref<24x1xf32, #tpu.memory_space<vmem>>, %arg11: memref<24x128xf32, #tpu.memory_space<vmem>>) attributes {dimension_semantics = [#tpu.dimension_semantics<parallel>, #tpu.dimension_semantics<parallel>, #tpu.dimension_semantics<parallel>, #tpu.dimension_semantics<arbitrary>], iteration_bounds = array<i64: 1, 2, 2, 2>, scalar_prefetch = 0 : i64, scratch_operands = 3 : i64, tpu.core_type = #tpu.core_type<tc>, window_params = [{transform_indices = @transform_0, window_bounds = array<i64: 1, 2>}, {transform_indices = @transform_1, window_bounds = array<i64: 1, 24, 128>}, {transform_indices = @transform_2, window_bounds = array<i64: 1, 24, 128>}, {transform_indices = @transform_3, window_bounds = array<i64: 1, 24, 128>}, {transform_indices = @transform_4, window_bounds = array<i64: 1, 24, 128>}]} {
    %c0_i32 = arith.constant 0 : i32
    %0 = arith.cmpi eq, %arg3, %c0_i32 : i32
    %1 = arith.extui %0 : i1 to i32
    %c0_i32_0 = arith.constant 0 : i32
    %2 = arith.cmpi ne, %1, %c0_i32_0 : i32
    scf.if %2 {
      %cst_50 = arith.constant 0xFF800000 : f32
      %124 = vector.broadcast %cst_50 : f32 to vector<24x1xf32>
      %c0_51 = arith.constant 0 : index
      %c0_52 = arith.constant 0 : index
      %125 = vector.load %arg9[%c0_51, %c0_52] : memref<24x1xf32, #tpu.memory_space<vmem>>, vector<24x1xf32>
      tpu.vector_store %arg9[%c0_51, %c0_52], %124 {strides = array<i32>} : memref<24x1xf32, #tpu.memory_space<vmem>>, vector<24x1xf32>,
      %cst_53 = arith.constant 0.000000e+00 : f32
      %126 = vector.broadcast %cst_53 : f32 to vector<24x1xf32>
      %c0_54 = arith.constant 0 : index
      %c0_55 = arith.constant 0 : index
      %127 = vector.load %arg10[%c0_54, %c0_55] : memref<24x1xf32, #tpu.memory_space<vmem>>, vector<24x1xf32>
      tpu.vector_store %arg10[%c0_54, %c0_55], %126 {strides = array<i32>} : memref<24x1xf32, #tpu.memory_space<vmem>>, vector<24x1xf32>,
      %cst_56 = arith.constant 0.000000e+00 : f32
      %128 = vector.broadcast %cst_56 : f32 to vector<24x128xf32>
      %c0_57 = arith.constant 0 : index
      %c0_58 = arith.constant 0 : index
      %129 = vector.load %arg11[%c0_57, %c0_58] : memref<24x128xf32, #tpu.memory_space<vmem>>, vector<24x128xf32>
      tpu.vector_store %arg11[%c0_57, %c0_58], %128 {strides = array<i32>} : memref<24x128xf32, #tpu.memory_space<vmem>>, vector<24x128xf32>,
    } else {
    }
    %c0 = arith.constant 0 : index
    %c0_1 = arith.constant 0 : index
    %c0_2 = arith.constant 0 : index
    %3 = vector.load %arg5[%c0, %c0_1, %c0_2] : memref<1x24x128xbf16, #tpu.memory_space<vmem>>, vector<1x24x128xbf16>
    %4 = vector.shape_cast %3 : vector<1x24x128xbf16> to vector<24x128xbf16>
    %c0_3 = arith.constant 0 : index
    %c0_4 = arith.constant 0 : index
    %c0_5 = arith.constant 0 : index
    %5 = vector.load %arg6[%c0_3, %c0_4, %c0_5] : memref<1x24x128xbf16, #tpu.memory_space<vmem>>, vector<1x24x128xbf16>
    %6 = vector.shape_cast %5 : vector<1x24x128xbf16> to vector<24x128xbf16>
    %cst = arith.constant dense<0.000000e+00> : vector<24x24xf32>
    %7 = tpu.matmul %4, %6, %cst {dimension_numbers = #tpu.dot_dimension_numbers<[1], [1], [0], [0], [0, 0, 1, 0], [], []>} : vector<24x128xbf16>, vector<24x128xbf16>, vector<24x24xf32> -> vector<24x24xf32>
    %cst_6 = arith.constant 0.0883883461 : f32
    %8 = vector.broadcast %cst_6 : f32 to vector<24x24xf32>
    %9 = arith.mulf %7, %8 : vector<24x24xf32>
    %c24_i32 = arith.constant 24 : i32
    %10 = arith.muli %arg2, %c24_i32 : i32
    %11 = tpu.iota {dimensions = array<i32: 0>} : vector<24x24xi32>
    %12 = vector.broadcast %10 : i32 to vector<24x24xi32>
    %13 = arith.addi %12, %11 : vector<24x24xi32>
    %c24_i32_7 = arith.constant 24 : i32
    %14 = arith.muli %arg3, %c24_i32_7 : i32
    %15 = tpu.iota {dimensions = array<i32: 1>} : vector<24x24xi32>
    %16 = vector.broadcast %14 : i32 to vector<24x24xi32>
    %17 = arith.addi %16, %15 : vector<24x24xi32>
    %cst_8 = arith.constant 0.000000e+00 : f32
    %18 = vector.broadcast %cst_8 : f32 to vector<24x24xf32>
    %c0_i32_9 = arith.constant 0 : i32
    %19 = vector.broadcast %c0_i32_9 : i32 to vector<24x24xi32>
    %20 = arith.cmpi sge, %13, %19 : vector<24x24xi32>
    %c24_i32_10 = arith.constant 24 : i32
    %21 = vector.broadcast %c24_i32_10 : i32 to vector<24x24xi32>
    %22 = arith.cmpi slt, %13, %21 : vector<24x24xi32>
    %23 = arith.andi %20, %22 : vector<24x24xi1>
    %c17_i32 = arith.constant 17 : i32
    %24 = vector.broadcast %c17_i32 : i32 to vector<24x24xi32>
    %25 = arith.cmpi sge, %13, %24 : vector<24x24xi32>
    %26 = arith.andi %23, %25 : vector<24x24xi1>
    %27 = arith.index_cast %arg0 : i32 to index
    %c0_11 = arith.constant 0 : index
    %28 = memref.load %arg4[%27, %c0_11] : memref<1x2xf32, #tpu.memory_space<smem>>
    %cst_12 = arith.constant 1.000000e+00 : f32
    %29 = arith.subf %cst_12, %28 : f32
    %30 = arith.extui %26 : vector<24x24xi1> to vector<24x24xi32>
    %31 = arith.sitofp %30 : vector<24x24xi32> to vector<24x24xf32>
    %32 = arith.maximumf %18, %31 : vector<24x24xf32>
    %cst_13 = arith.constant 0.000000e+00 : f32
    %33 = vector.broadcast %29 : f32 to vector<24x24xf32>
    %34 = vector.broadcast %cst_13 : f32 to vector<24x24xf32>
    %35 = arith.select %23, %33, %34 : vector<24x24xi1>, vector<24x24xf32>
    %36 = arith.maximumf %32, %35 : vector<24x24xf32>
    %c24_i32_14 = arith.constant 24 : i32
    %37 = vector.broadcast %c24_i32_14 : i32 to vector<24x24xi32>
    %38 = arith.cmpi sge, %13, %37 : vector<24x24xi32>
    %c48_i32 = arith.constant 48 : i32
    %39 = vector.broadcast %c48_i32 : i32 to vector<24x24xi32>
    %40 = arith.cmpi slt, %13, %39 : vector<24x24xi32>
    %41 = arith.andi %38, %40 : vector<24x24xi1>
    %c41_i32 = arith.constant 41 : i32
    %42 = vector.broadcast %c41_i32 : i32 to vector<24x24xi32>
    %43 = arith.cmpi sge, %13, %42 : vector<24x24xi32>
    %44 = arith.andi %41, %43 : vector<24x24xi1>
    %45 = arith.index_cast %arg0 : i32 to index
    %c1 = arith.constant 1 : index
    %46 = memref.load %arg4[%45, %c1] : memref<1x2xf32, #tpu.memory_space<smem>>
    %cst_15 = arith.constant 1.000000e+00 : f32
    %47 = arith.subf %cst_15, %46 : f32
    %48 = arith.extui %44 : vector<24x24xi1> to vector<24x24xi32>
    %49 = arith.sitofp %48 : vector<24x24xi32> to vector<24x24xf32>
    %50 = arith.maximumf %36, %49 : vector<24x24xf32>
    %cst_16 = arith.constant 0.000000e+00 : f32
    %51 = vector.broadcast %47 : f32 to vector<24x24xf32>
    %52 = vector.broadcast %cst_16 : f32 to vector<24x24xf32>
    %53 = arith.select %41, %51, %52 : vector<24x24xi1>, vector<24x24xf32>
    %54 = arith.maximumf %50, %53 : vector<24x24xf32>
    %cst_17 = arith.constant -3.38953139E+38 : f32
    %55 = vector.broadcast %cst_17 : f32 to vector<24x24xf32>
    %56 = arith.mulf %55, %54 : vector<24x24xf32>
    %cst_18 = arith.constant 0.000000e+00 : f32
    %57 = vector.broadcast %cst_18 : f32 to vector<24x24xf32>
    %c0_i32_19 = arith.constant 0 : i32
    %58 = vector.broadcast %c0_i32_19 : i32 to vector<24x24xi32>
    %59 = arith.cmpi sge, %17, %58 : vector<24x24xi32>
    %c24_i32_20 = arith.constant 24 : i32
    %60 = vector.broadcast %c24_i32_20 : i32 to vector<24x24xi32>
    %61 = arith.cmpi slt, %17, %60 : vector<24x24xi32>
    %62 = arith.andi %59, %61 : vector<24x24xi1>
    %c17_i32_21 = arith.constant 17 : i32
    %63 = vector.broadcast %c17_i32_21 : i32 to vector<24x24xi32>
    %64 = arith.cmpi sge, %17, %63 : vector<24x24xi32>
    %65 = arith.andi %62, %64 : vector<24x24xi1>
    %66 = arith.index_cast %arg0 : i32 to index
    %c0_22 = arith.constant 0 : index
    %67 = memref.load %arg4[%66, %c0_22] : memref<1x2xf32, #tpu.memory_space<smem>>
    %cst_23 = arith.constant 1.000000e+00 : f32
    %68 = arith.subf %cst_23, %67 : f32
    %69 = arith.extui %65 : vector<24x24xi1> to vector<24x24xi32>
    %70 = arith.sitofp %69 : vector<24x24xi32> to vector<24x24xf32>
    %71 = arith.maximumf %57, %70 : vector<24x24xf32>
    %cst_24 = arith.constant 0.000000e+00 : f32
    %72 = vector.broadcast %68 : f32 to vector<24x24xf32>
    %73 = vector.broadcast %cst_24 : f32 to vector<24x24xf32>
    %74 = arith.select %62, %72, %73 : vector<24x24xi1>, vector<24x24xf32>
    %75 = arith.maximumf %71, %74 : vector<24x24xf32>
    %c24_i32_25 = arith.constant 24 : i32
    %76 = vector.broadcast %c24_i32_25 : i32 to vector<24x24xi32>
    %77 = arith.cmpi sge, %17, %76 : vector<24x24xi32>
    %c48_i32_26 = arith.constant 48 : i32
    %78 = vector.broadcast %c48_i32_26 : i32 to vector<24x24xi32>
    %79 = arith.cmpi slt, %17, %78 : vector<24x24xi32>
    %80 = arith.andi %77, %79 : vector<24x24xi1>
    %c41_i32_27 = arith.constant 41 : i32
    %81 = vector.broadcast %c41_i32_27 : i32 to vector<24x24xi32>
    %82 = arith.cmpi sge, %17, %81 : vector<24x24xi32>
    %83 = arith.andi %80, %82 : vector<24x24xi1>
    %84 = arith.index_cast %arg0 : i32 to index
    %c1_28 = arith.constant 1 : index
    %85 = memref.load %arg4[%84, %c1_28] : memref<1x2xf32, #tpu.memory_space<smem>>
    %cst_29 = arith.constant 1.000000e+00 : f32
    %86 = arith.subf %cst_29, %85 : f32
    %87 = arith.extui %83 : vector<24x24xi1> to vector<24x24xi32>
    %88 = arith.sitofp %87 : vector<24x24xi32> to vector<24x24xf32>
    %89 = arith.maximumf %75, %88 : vector<24x24xf32>
    %cst_30 = arith.constant 0.000000e+00 : f32
    %90 = vector.broadcast %86 : f32 to vector<24x24xf32>
    %91 = vector.broadcast %cst_30 : f32 to vector<24x24xf32>
    %92 = arith.select %80, %90, %91 : vector<24x24xi1>, vector<24x24xf32>
    %93 = arith.maximumf %89, %92 : vector<24x24xf32>
    %94 = arith.mulf %56, %93 : vector<24x24xf32>
    %95 = arith.addf %9, %94 : vector<24x24xf32>
    %c0_31 = arith.constant 0 : index
    %c0_32 = arith.constant 0 : index
    %96 = vector.load %arg9[%c0_31, %c0_32] : memref<24x1xf32, #tpu.memory_space<vmem>>, vector<24x1xf32>
    %cst_33 = arith.constant dense<0xFF800000> : vector<24xf32>
    %97 = vector.multi_reduction <maximumf>, %95, %cst_33 [1] : vector<24x24xf32> to vector<24xf32>
    %98 = vector.shape_cast %97 : vector<24xf32> to vector<24x1xf32>
    %99 = arith.maximumf %96, %98 : vector<24x1xf32>
    %100 = arith.subf %96, %99 : vector<24x1xf32>
    %101 = math.exp %100 : vector<24x1xf32>
    %102 = vector.broadcast %99 : vector<24x1xf32> to vector<24x24xf32>
    %103 = arith.subf %95, %102 : vector<24x24xf32>
    %104 = math.exp %103 : vector<24x24xf32>
    %c0_34 = arith.constant 0 : index
    %c0_35 = arith.constant 0 : index
    %105 = vector.load %arg10[%c0_34, %c0_35] : memref<24x1xf32, #tpu.memory_space<vmem>>, vector<24x1xf32>
    %106 = arith.mulf %101, %105 : vector<24x1xf32>
    %cst_36 = arith.constant dense<0.000000e+00> : vector<24xf32>
    %107 = vector.multi_reduction <add>, %104, %cst_36 [1] : vector<24x24xf32> to vector<24xf32>
    %108 = vector.shape_cast %107 : vector<24xf32> to vector<24x1xf32>
    %109 = arith.addf %106, %108 : vector<24x1xf32>
    %c0_37 = arith.constant 0 : index
    %c0_38 = arith.constant 0 : index
    %110 = vector.load %arg10[%c0_37, %c0_38] : memref<24x1xf32, #tpu.memory_space<vmem>>, vector<24x1xf32>
    tpu.vector_store %arg10[%c0_37, %c0_38], %109 {strides = array<i32>} : memref<24x1xf32, #tpu.memory_space<vmem>>, vector<24x1xf32>,
    %c0_39 = arith.constant 0 : index
    %c0_40 = arith.constant 0 : index
    %111 = vector.load %arg11[%c0_39, %c0_40] : memref<24x128xf32, #tpu.memory_space<vmem>>, vector<24x128xf32>
    %112 = vector.broadcast %101 : vector<24x1xf32> to vector<24x128xf32>
    %113 = arith.mulf %112, %111 : vector<24x128xf32>
    %114 = arith.truncf %104 : vector<24x24xf32> to vector<24x24xbf16>
    %c0_41 = arith.constant 0 : index
    %c0_42 = arith.constant 0 : index
    %c0_43 = arith.constant 0 : index
    %115 = vector.load %arg7[%c0_41, %c0_42, %c0_43] : memref<1x24x128xbf16, #tpu.memory_space<vmem>>, vector<1x24x128xbf16>
    %116 = vector.shape_cast %115 : vector<1x24x128xbf16> to vector<24x128xbf16>
    %cst_44 = arith.constant dense<0.000000e+00> : vector<24x128xf32>
    %117 = tpu.matmul %114, %116, %cst_44 {dimension_numbers = #tpu.dot_dimension_numbers<[1], [0], [0], [1], [0, 0, 1, 1], [], []>} : vector<24x24xbf16>, vector<24x128xbf16>, vector<24x128xf32> -> vector<24x128xf32>
    %118 = arith.addf %113, %117 : vector<24x128xf32>
    %c0_45 = arith.constant 0 : index
    %c0_46 = arith.constant 0 : index
    %119 = vector.load %arg11[%c0_45, %c0_46] : memref<24x128xf32, #tpu.memory_space<vmem>>, vector<24x128xf32>
    tpu.vector_store %arg11[%c0_45, %c0_46], %118 {strides = array<i32>} : memref<24x128xf32, #tpu.memory_space<vmem>>, vector<24x128xf32>,
    %c0_47 = arith.constant 0 : index
    %c0_48 = arith.constant 0 : index
    %120 = vector.load %arg9[%c0_47, %c0_48] : memref<24x1xf32, #tpu.memory_space<vmem>>, vector<24x1xf32>
    tpu.vector_store %arg9[%c0_47, %c0_48], %99 {strides = array<i32>} : memref<24x1xf32, #tpu.memory_space<vmem>>, vector<24x1xf32>,
    %c1_i32 = arith.constant 1 : i32
    %121 = arith.cmpi eq, %arg3, %c1_i32 : i32
    %122 = arith.extui %121 : i1 to i32
    %c0_i32_49 = arith.constant 0 : i32
    %123 = arith.cmpi ne, %122, %c0_i32_49 : i32
    scf.if %123 {
      %c0_50 = arith.constant 0 : index
      %c0_51 = arith.constant 0 : index
      %124 = vector.load %arg11[%c0_50, %c0_51] : memref<24x128xf32, #tpu.memory_space<vmem>>, vector<24x128xf32>
      %c0_52 = arith.constant 0 : index
      %c0_53 = arith.constant 0 : index
      %125 = vector.load %arg10[%c0_52, %c0_53] : memref<24x1xf32, #tpu.memory_space<vmem>>, vector<24x1xf32>
      %126 = tpu.reciprocal %125 {approx = true} : vector<24x1xf32> -> vector<24x1xf32>
      %127 = vector.broadcast %126 : vector<24x1xf32> to vector<24x128xf32>
      %128 = arith.mulf %124, %127 : vector<24x128xf32>
      %129 = arith.truncf %128 : vector<24x128xf32> to vector<24x128xbf16>
      %c0_54 = arith.constant 0 : index
      %c0_55 = arith.constant 0 : index
      %c0_56 = arith.constant 0 : index
      %130 = vector.load %arg8[%c0_54, %c0_55, %c0_56] : memref<1x24x128xbf16, #tpu.memory_space<vmem>>, vector<1x24x128xbf16>
      %131 = vector.shape_cast %130 : vector<1x24x128xbf16> to vector<24x128xbf16>
      %132 = vector.shape_cast %129 : vector<24x128xbf16> to vector<1x24x128xbf16>
      tpu.vector_store %arg8[%c0_54, %c0_55, %c0_56], %132 {strides = array<i32>} : memref<1x24x128xbf16, #tpu.memory_space<vmem>>, vector<1x24x128xbf16>,
    } else {
    }
    return
  }
  func.func @transform_0(%arg0: i32, %arg1: i32, %arg2: i32, %arg3: i32) -> (i32, i32) {
    %c0_i32 = arith.constant 0 : i32
    %c0_i32_0 = arith.constant 0 : i32
    %c0_i32_1 = arith.constant 0 : i32
    return %c0_i32, %c0_i32_0 : i32, i32
  }
  func.func @transform_1(%arg0: i32, %arg1: i32, %arg2: i32, %arg3: i32) -> (i32, i32, i32) {
    %c0_i32 = arith.constant 0 : i32
    %0 = arith.addi %arg1, %c0_i32 : i32
    %c0_i32_0 = arith.constant 0 : i32
    return %arg0, %arg2, %0 : i32, i32, i32
  }
  func.func @transform_2(%arg0: i32, %arg1: i32, %arg2: i32, %arg3: i32) -> (i32, i32, i32) {
    %c2_i32 = arith.constant 2 : i32
    %0 = arith.addi %arg1, %c2_i32 : i32
    %c0_i32 = arith.constant 0 : i32
    return %arg0, %arg3, %0 : i32, i32, i32
  }
  func.func @transform_3(%arg0: i32, %arg1: i32, %arg2: i32, %arg3: i32) -> (i32, i32, i32) {
    %c4_i32 = arith.constant 4 : i32
    %0 = arith.addi %arg1, %c4_i32 : i32
    %c0_i32 = arith.constant 0 : i32
    return %arg0, %arg3, %0 : i32, i32, i32
  }
  func.func @transform_4(%arg0: i32, %arg1: i32, %arg2: i32, %arg3: i32) -> (i32, i32, i32) {
    %c0_i32 = arith.constant 0 : i32
    return %arg0, %arg2, %arg1 : i32, i32, i32
  }
}

module attributes {stable_mosaic.version = 11 : i64} {
  func.func @_matmul_kernel(%arg0: i32, %arg1: i32, %arg2: i32, %arg3: memref<48x256xbf16, #tpu.memory_space<vmem>>, %arg4: memref<256x256xbf16, #tpu.memory_space<vmem>>, %arg5: memref<1x256xf32, #tpu.memory_space<vmem>>, %arg6: memref<48x256xbf16, #tpu.memory_space<vmem>>, %arg7: memref<48x256xf32, #tpu.memory_space<vmem>>) attributes {dimension_semantics = [#tpu.dimension_semantics<parallel>, #tpu.dimension_semantics<parallel>, #tpu.dimension_semantics<arbitrary>], iteration_bounds = array<i64: 1, 2, 1>, scalar_prefetch = 0 : i64, scratch_operands = 1 : i64, tpu.core_type = #tpu.core_type<tc>, window_params = [{transform_indices = @transform_0, window_bounds = array<i64: 48, 256>}, {transform_indices = @transform_1, window_bounds = array<i64: 256, 256>}, {transform_indices = @transform_2, window_bounds = array<i64: 1, 256>}, {transform_indices = @transform_3, window_bounds = array<i64: 48, 256>}]} {
    %c0_i32 = arith.constant 0 : i32
    %0 = arith.cmpi eq, %arg2, %c0_i32 : i32
    %1 = arith.extui %0 : i1 to i32
    %c0_i32_0 = arith.constant 0 : i32
    %2 = arith.cmpi ne, %1, %c0_i32_0 : i32
    scf.if %2 {
      %cst_10 = arith.constant 0.000000e+00 : f32
      %12 = vector.broadcast %cst_10 : f32 to vector<48x256xf32>
      %c0_11 = arith.constant 0 : index
      %c0_12 = arith.constant 0 : index
      %13 = vector.load %arg7[%c0_11, %c0_12] : memref<48x256xf32, #tpu.memory_space<vmem>>, vector<48x256xf32>
      tpu.vector_store %arg7[%c0_11, %c0_12], %12 {strides = array<i32>} : memref<48x256xf32, #tpu.memory_space<vmem>>, vector<48x256xf32>,
    } else {
    }
    %c0 = arith.constant 0 : index
    %c0_1 = arith.constant 0 : index
    %3 = vector.load %arg7[%c0, %c0_1] : memref<48x256xf32, #tpu.memory_space<vmem>>, vector<48x256xf32>
    %c0_2 = arith.constant 0 : index
    %c0_3 = arith.constant 0 : index
    %4 = vector.load %arg3[%c0_2, %c0_3] : memref<48x256xbf16, #tpu.memory_space<vmem>>, vector<48x256xbf16>
    %c0_4 = arith.constant 0 : index
    %c0_5 = arith.constant 0 : index
    %5 = vector.load %arg4[%c0_4, %c0_5] : memref<256x256xbf16, #tpu.memory_space<vmem>>, vector<256x256xbf16>
    %cst = arith.constant dense<0.000000e+00> : vector<48x256xf32>
    %6 = tpu.matmul %4, %5, %cst {dimension_numbers = #tpu.dot_dimension_numbers<[1], [0], [0], [1], [0, 0, 1, 1], [], []>} : vector<48x256xbf16>, vector<256x256xbf16>, vector<48x256xf32> -> vector<48x256xf32>
    %7 = arith.addf %3, %6 : vector<48x256xf32>
    %c0_6 = arith.constant 0 : index
    %c0_7 = arith.constant 0 : index
    %8 = vector.load %arg7[%c0_6, %c0_7] : memref<48x256xf32, #tpu.memory_space<vmem>>, vector<48x256xf32>
    tpu.vector_store %arg7[%c0_6, %c0_7], %7 {strides = array<i32>} : memref<48x256xf32, #tpu.memory_space<vmem>>, vector<48x256xf32>,
    %c0_i32_8 = arith.constant 0 : i32
    %9 = arith.cmpi eq, %arg2, %c0_i32_8 : i32
    %10 = arith.extui %9 : i1 to i32
    %c0_i32_9 = arith.constant 0 : i32
    %11 = arith.cmpi ne, %10, %c0_i32_9 : i32
    scf.if %11 {
      %c0_10 = arith.constant 0 : index
      %c0_11 = arith.constant 0 : index
      %12 = vector.load %arg7[%c0_10, %c0_11] : memref<48x256xf32, #tpu.memory_space<vmem>>, vector<48x256xf32>
      %c0_12 = arith.constant 0 : index
      %c0_13 = arith.constant 0 : index
      %13 = vector.load %arg5[%c0_12, %c0_13] : memref<1x256xf32, #tpu.memory_space<vmem>>, vector<1x256xf32>
      %14 = vector.broadcast %13 : vector<1x256xf32> to vector<48x256xf32>
      %15 = arith.addf %12, %14 : vector<48x256xf32>
      %cst_14 = arith.constant 5.000000e-01 : f32
      %16 = vector.broadcast %cst_14 : f32 to vector<48x256xf32>
      %17 = arith.mulf %16, %15 : vector<48x256xf32>
      %cst_15 = arith.constant 0.707106769 : f32
      %18 = vector.broadcast %cst_15 : f32 to vector<48x256xf32>
      %19 = arith.mulf %15, %18 : vector<48x256xf32>
      %20 = math.absf %19 : vector<48x256xf32>
      %cst_16 = arith.constant 0.327591091 : f32
      %21 = vector.broadcast %cst_16 : f32 to vector<48x256xf32>
      %22 = arith.mulf %21, %20 : vector<48x256xf32>
      %cst_17 = arith.constant 1.000000e+00 : f32
      %23 = vector.broadcast %cst_17 : f32 to vector<48x256xf32>
      %24 = arith.addf %23, %22 : vector<48x256xf32>
      %cst_18 = arith.constant 1.000000e+00 : f32
      %25 = vector.broadcast %cst_18 : f32 to vector<48x256xf32>
      %26 = arith.divf %25, %24 : vector<48x256xf32>
      %cst_19 = arith.constant 1.06140542 : f32
      %27 = vector.broadcast %cst_19 : f32 to vector<48x256xf32>
      %28 = arith.mulf %27, %26 : vector<48x256xf32>
      %cst_20 = arith.constant -1.45315206 : f32
      %29 = vector.broadcast %cst_20 : f32 to vector<48x256xf32>
      %30 = arith.addf %28, %29 : vector<48x256xf32>
      %31 = arith.mulf %30, %26 : vector<48x256xf32>
      %cst_21 = arith.constant 1.42141378 : f32
      %32 = vector.broadcast %cst_21 : f32 to vector<48x256xf32>
      %33 = arith.addf %31, %32 : vector<48x256xf32>
      %34 = arith.mulf %33, %26 : vector<48x256xf32>
      %cst_22 = arith.constant -0.284496725 : f32
      %35 = vector.broadcast %cst_22 : f32 to vector<48x256xf32>
      %36 = arith.addf %34, %35 : vector<48x256xf32>
      %37 = arith.mulf %36, %26 : vector<48x256xf32>
      %cst_23 = arith.constant 0.254829586 : f32
      %38 = vector.broadcast %cst_23 : f32 to vector<48x256xf32>
      %39 = arith.addf %37, %38 : vector<48x256xf32>
      %40 = arith.mulf %39, %26 : vector<48x256xf32>
      %cst_24 = arith.constant 0.000000e+00 : f32
      %41 = vector.broadcast %cst_24 : f32 to vector<48x256xf32>
      %42 = arith.subf %41, %20 : vector<48x256xf32>
      %43 = arith.mulf %42, %20 : vector<48x256xf32>
      %44 = math.exp %43 : vector<48x256xf32>
      %45 = arith.mulf %40, %44 : vector<48x256xf32>
      %cst_25 = arith.constant 1.000000e+00 : f32
      %46 = vector.broadcast %cst_25 : f32 to vector<48x256xf32>
      %47 = arith.subf %46, %45 : vector<48x256xf32>
      %cst_26 = arith.constant 0.000000e+00 : f32
      %48 = vector.broadcast %cst_26 : f32 to vector<48x256xf32>
      %49 = arith.cmpf olt, %19, %48 : vector<48x256xf32>
      %cst_27 = arith.constant 0.000000e+00 : f32
      %50 = vector.broadcast %cst_27 : f32 to vector<48x256xf32>
      %51 = arith.subf %50, %47 : vector<48x256xf32>
      %52 = arith.select %49, %51, %47 : vector<48x256xi1>, vector<48x256xf32>
      %cst_28 = arith.constant 1.000000e+00 : f32
      %53 = vector.broadcast %cst_28 : f32 to vector<48x256xf32>
      %54 = arith.addf %53, %52 : vector<48x256xf32>
      %55 = arith.mulf %17, %54 : vector<48x256xf32>
      %56 = arith.truncf %55 : vector<48x256xf32> to vector<48x256xbf16>
      %c0_29 = arith.constant 0 : index
      %c0_30 = arith.constant 0 : index
      %57 = vector.load %arg6[%c0_29, %c0_30] : memref<48x256xbf16, #tpu.memory_space<vmem>>, vector<48x256xbf16>
      tpu.vector_store %arg6[%c0_29, %c0_30], %56 {strides = array<i32>} : memref<48x256xbf16, #tpu.memory_space<vmem>>, vector<48x256xbf16>,
    } else {
    }
    return
  }
  func.func @transform_0(%arg0: i32, %arg1: i32, %arg2: i32) -> (i32, i32) {
    %c0_i32 = arith.constant 0 : i32
    return %arg0, %arg2 : i32, i32
  }
  func.func @transform_1(%arg0: i32, %arg1: i32, %arg2: i32) -> (i32, i32) {
    %c0_i32 = arith.constant 0 : i32
    return %arg2, %arg1 : i32, i32
  }
  func.func @transform_2(%arg0: i32, %arg1: i32, %arg2: i32) -> (i32, i32) {
    %c0_i32 = arith.constant 0 : i32
    %c0_i32_0 = arith.constant 0 : i32
    return %c0_i32, %arg1 : i32, i32
  }
  func.func @transform_3(%arg0: i32, %arg1: i32, %arg2: i32) -> (i32, i32) {
    %c0_i32 = arith.constant 0 : i32
    return %arg0, %arg1 : i32, i32
  }
}

module attributes {stable_mosaic.version = 11 : i64} {
  func.func @_matmul_kernel(%arg0: i32, %arg1: i32, %arg2: i32, %arg3: memref<48x256xbf16, #tpu.memory_space<vmem>>, %arg4: memref<256x256xbf16, #tpu.memory_space<vmem>>, %arg5: memref<48x256xbf16, #tpu.memory_space<vmem>>, %arg6: memref<1xf32, #tpu.memory_space<smem>>, %arg7: memref<48x256xbf16, #tpu.memory_space<vmem>>, %arg8: memref<48x256xf32, #tpu.memory_space<vmem>>) attributes {dimension_semantics = [#tpu.dimension_semantics<parallel>, #tpu.dimension_semantics<parallel>, #tpu.dimension_semantics<arbitrary>], iteration_bounds = array<i64: 1, 1, 1>, scalar_prefetch = 0 : i64, scratch_operands = 1 : i64, tpu.core_type = #tpu.core_type<tc>, window_params = [{transform_indices = @transform_0, window_bounds = array<i64: 48, 256>}, {transform_indices = @transform_1, window_bounds = array<i64: 256, 256>}, {transform_indices = @transform_2, window_bounds = array<i64: 48, 256>}, {transform_indices = @transform_3, window_bounds = array<i64: 1>}, {transform_indices = @transform_4, window_bounds = array<i64: 48, 256>}]} {
    %c0_i32 = arith.constant 0 : i32
    %0 = arith.cmpi eq, %arg2, %c0_i32 : i32
    %1 = arith.extui %0 : i1 to i32
    %c0_i32_0 = arith.constant 0 : i32
    %2 = arith.cmpi ne, %1, %c0_i32_0 : i32
    scf.if %2 {
      %cst_10 = arith.constant 0.000000e+00 : f32
      %12 = vector.broadcast %cst_10 : f32 to vector<48x256xf32>
      %c0_11 = arith.constant 0 : index
      %c0_12 = arith.constant 0 : index
      %13 = vector.load %arg8[%c0_11, %c0_12] : memref<48x256xf32, #tpu.memory_space<vmem>>, vector<48x256xf32>
      tpu.vector_store %arg8[%c0_11, %c0_12], %12 {strides = array<i32>} : memref<48x256xf32, #tpu.memory_space<vmem>>, vector<48x256xf32>,
    } else {
    }
    %c0 = arith.constant 0 : index
    %c0_1 = arith.constant 0 : index
    %3 = vector.load %arg8[%c0, %c0_1] : memref<48x256xf32, #tpu.memory_space<vmem>>, vector<48x256xf32>
    %c0_2 = arith.constant 0 : index
    %c0_3 = arith.constant 0 : index
    %4 = vector.load %arg3[%c0_2, %c0_3] : memref<48x256xbf16, #tpu.memory_space<vmem>>, vector<48x256xbf16>
    %c0_4 = arith.constant 0 : index
    %c0_5 = arith.constant 0 : index
    %5 = vector.load %arg4[%c0_4, %c0_5] : memref<256x256xbf16, #tpu.memory_space<vmem>>, vector<256x256xbf16>
    %cst = arith.constant dense<0.000000e+00> : vector<48x256xf32>
    %6 = tpu.matmul %4, %5, %cst {dimension_numbers = #tpu.dot_dimension_numbers<[1], [0], [0], [1], [0, 0, 1, 1], [], []>} : vector<48x256xbf16>, vector<256x256xbf16>, vector<48x256xf32> -> vector<48x256xf32>
    %7 = arith.addf %3, %6 : vector<48x256xf32>
    %c0_6 = arith.constant 0 : index
    %c0_7 = arith.constant 0 : index
    %8 = vector.load %arg8[%c0_6, %c0_7] : memref<48x256xf32, #tpu.memory_space<vmem>>, vector<48x256xf32>
    tpu.vector_store %arg8[%c0_6, %c0_7], %7 {strides = array<i32>} : memref<48x256xf32, #tpu.memory_space<vmem>>, vector<48x256xf32>,
    %c0_i32_8 = arith.constant 0 : i32
    %9 = arith.cmpi eq, %arg2, %c0_i32_8 : i32
    %10 = arith.extui %9 : i1 to i32
    %c0_i32_9 = arith.constant 0 : i32
    %11 = arith.cmpi ne, %10, %c0_i32_9 : i32
    scf.if %11 {
      %c0_10 = arith.constant 0 : index
      %c0_11 = arith.constant 0 : index
      %12 = vector.load %arg8[%c0_10, %c0_11] : memref<48x256xf32, #tpu.memory_space<vmem>>, vector<48x256xf32>
      %c0_12 = arith.constant 0 : index
      %c0_13 = arith.constant 0 : index
      %13 = vector.load %arg5[%c0_12, %c0_13] : memref<48x256xbf16, #tpu.memory_space<vmem>>, vector<48x256xbf16>
      %14 = arith.extf %13 : vector<48x256xbf16> to vector<48x256xf32>
      %c0_14 = arith.constant 0 : index
      %15 = memref.load %arg6[%c0_14] : memref<1xf32, #tpu.memory_space<smem>>
      %16 = vector.broadcast %15 : f32 to vector<48x256xf32>
      %17 = arith.mulf %16, %12 : vector<48x256xf32>
      %18 = arith.addf %14, %17 : vector<48x256xf32>
      %19 = arith.truncf %18 : vector<48x256xf32> to vector<48x256xbf16>
      %c0_15 = arith.constant 0 : index
      %c0_16 = arith.constant 0 : index
      %20 = vector.load %arg7[%c0_15, %c0_16] : memref<48x256xbf16, #tpu.memory_space<vmem>>, vector<48x256xbf16>
      tpu.vector_store %arg7[%c0_15, %c0_16], %19 {strides = array<i32>} : memref<48x256xbf16, #tpu.memory_space<vmem>>, vector<48x256xbf16>,
    } else {
    }
    return
  }
  func.func @transform_0(%arg0: i32, %arg1: i32, %arg2: i32) -> (i32, i32) {
    %c0_i32 = arith.constant 0 : i32
    return %arg0, %arg2 : i32, i32
  }
  func.func @transform_1(%arg0: i32, %arg1: i32, %arg2: i32) -> (i32, i32) {
    %c0_i32 = arith.constant 0 : i32
    return %arg2, %arg1 : i32, i32
  }
  func.func @transform_2(%arg0: i32, %arg1: i32, %arg2: i32) -> (i32, i32) {
    %c0_i32 = arith.constant 0 : i32
    return %arg0, %arg1 : i32, i32
  }
  func.func @transform_3(%arg0: i32, %arg1: i32, %arg2: i32) -> i32 {
    %c0_i32 = arith.constant 0 : i32
    %c0_i32_0 = arith.constant 0 : i32
    return %c0_i32 : i32
  }
  func.func @transform_4(%arg0: i32, %arg1: i32, %arg2: i32) -> (i32, i32) {
    %c0_i32 = arith.constant 0 : i32
    return %arg0, %arg1 : i32, i32
  }
}

module attributes {stable_mosaic.version = 11 : i64} {
  func.func @_matmul_kernel(%arg0: i32, %arg1: i32, %arg2: i32, %arg3: memref<48x256xbf16, #tpu.memory_space<vmem>>, %arg4: memref<256x256xbf16, #tpu.memory_space<vmem>>, %arg5: memref<1x256xf32, #tpu.memory_space<vmem>>, %arg6: memref<48x256xbf16, #tpu.memory_space<vmem>>, %arg7: memref<1xf32, #tpu.memory_space<smem>>, %arg8: memref<48x256xbf16, #tpu.memory_space<vmem>>, %arg9: memref<48x256xf32, #tpu.memory_space<vmem>>) attributes {dimension_semantics = [#tpu.dimension_semantics<parallel>, #tpu.dimension_semantics<parallel>, #tpu.dimension_semantics<arbitrary>], iteration_bounds = array<i64: 1, 1, 2>, scalar_prefetch = 0 : i64, scratch_operands = 1 : i64, tpu.core_type = #tpu.core_type<tc>, window_params = [{transform_indices = @transform_0, window_bounds = array<i64: 48, 256>}, {transform_indices = @transform_1, window_bounds = array<i64: 256, 256>}, {transform_indices = @transform_2, window_bounds = array<i64: 1, 256>}, {transform_indices = @transform_3, window_bounds = array<i64: 48, 256>}, {transform_indices = @transform_4, window_bounds = array<i64: 1>}, {transform_indices = @transform_5, window_bounds = array<i64: 48, 256>}]} {
    %c0_i32 = arith.constant 0 : i32
    %0 = arith.cmpi eq, %arg2, %c0_i32 : i32
    %1 = arith.extui %0 : i1 to i32
    %c0_i32_0 = arith.constant 0 : i32
    %2 = arith.cmpi ne, %1, %c0_i32_0 : i32
    scf.if %2 {
      %cst_9 = arith.constant 0.000000e+00 : f32
      %12 = vector.broadcast %cst_9 : f32 to vector<48x256xf32>
      %c0_10 = arith.constant 0 : index
      %c0_11 = arith.constant 0 : index
      %13 = vector.load %arg9[%c0_10, %c0_11] : memref<48x256xf32, #tpu.memory_space<vmem>>, vector<48x256xf32>
      tpu.vector_store %arg9[%c0_10, %c0_11], %12 {strides = array<i32>} : memref<48x256xf32, #tpu.memory_space<vmem>>, vector<48x256xf32>,
    } else {
    }
    %c0 = arith.constant 0 : index
    %c0_1 = arith.constant 0 : index
    %3 = vector.load %arg9[%c0, %c0_1] : memref<48x256xf32, #tpu.memory_space<vmem>>, vector<48x256xf32>
    %c0_2 = arith.constant 0 : index
    %c0_3 = arith.constant 0 : index
    %4 = vector.load %arg3[%c0_2, %c0_3] : memref<48x256xbf16, #tpu.memory_space<vmem>>, vector<48x256xbf16>
    %c0_4 = arith.constant 0 : index
    %c0_5 = arith.constant 0 : index
    %5 = vector.load %arg4[%c0_4, %c0_5] : memref<256x256xbf16, #tpu.memory_space<vmem>>, vector<256x256xbf16>
    %cst = arith.constant dense<0.000000e+00> : vector<48x256xf32>
    %6 = tpu.matmul %4, %5, %cst {dimension_numbers = #tpu.dot_dimension_numbers<[1], [0], [0], [1], [0, 0, 1, 1], [], []>} : vector<48x256xbf16>, vector<256x256xbf16>, vector<48x256xf32> -> vector<48x256xf32>
    %7 = arith.addf %3, %6 : vector<48x256xf32>
    %c0_6 = arith.constant 0 : index
    %c0_7 = arith.constant 0 : index
    %8 = vector.load %arg9[%c0_6, %c0_7] : memref<48x256xf32, #tpu.memory_space<vmem>>, vector<48x256xf32>
    tpu.vector_store %arg9[%c0_6, %c0_7], %7 {strides = array<i32>} : memref<48x256xf32, #tpu.memory_space<vmem>>, vector<48x256xf32>,
    %c1_i32 = arith.constant 1 : i32
    %9 = arith.cmpi eq, %arg2, %c1_i32 : i32
    %10 = arith.extui %9 : i1 to i32
    %c0_i32_8 = arith.constant 0 : i32
    %11 = arith.cmpi ne, %10, %c0_i32_8 : i32
    scf.if %11 {
      %c0_9 = arith.constant 0 : index
      %c0_10 = arith.constant 0 : index
      %12 = vector.load %arg9[%c0_9, %c0_10] : memref<48x256xf32, #tpu.memory_space<vmem>>, vector<48x256xf32>
      %c0_11 = arith.constant 0 : index
      %c0_12 = arith.constant 0 : index
      %13 = vector.load %arg5[%c0_11, %c0_12] : memref<1x256xf32, #tpu.memory_space<vmem>>, vector<1x256xf32>
      %14 = vector.broadcast %13 : vector<1x256xf32> to vector<48x256xf32>
      %15 = arith.addf %12, %14 : vector<48x256xf32>
      %c0_13 = arith.constant 0 : index
      %c0_14 = arith.constant 0 : index
      %16 = vector.load %arg6[%c0_13, %c0_14] : memref<48x256xbf16, #tpu.memory_space<vmem>>, vector<48x256xbf16>
      %17 = arith.extf %16 : vector<48x256xbf16> to vector<48x256xf32>
      %c0_15 = arith.constant 0 : index
      %18 = memref.load %arg7[%c0_15] : memref<1xf32, #tpu.memory_space<smem>>
      %19 = vector.broadcast %18 : f32 to vector<48x256xf32>
      %20 = arith.mulf %19, %15 : vector<48x256xf32>
      %21 = arith.addf %17, %20 : vector<48x256xf32>
      %22 = arith.truncf %21 : vector<48x256xf32> to vector<48x256xbf16>
      %c0_16 = arith.constant 0 : index
      %c0_17 = arith.constant 0 : index
      %23 = vector.load %arg8[%c0_16, %c0_17] : memref<48x256xbf16, #tpu.memory_space<vmem>>, vector<48x256xbf16>
      tpu.vector_store %arg8[%c0_16, %c0_17], %22 {strides = array<i32>} : memref<48x256xbf16, #tpu.memory_space<vmem>>, vector<48x256xbf16>,
    } else {
    }
    return
  }
  func.func @transform_0(%arg0: i32, %arg1: i32, %arg2: i32) -> (i32, i32) {
    %c0_i32 = arith.constant 0 : i32
    return %arg0, %arg2 : i32, i32
  }
  func.func @transform_1(%arg0: i32, %arg1: i32, %arg2: i32) -> (i32, i32) {
    %c0_i32 = arith.constant 0 : i32
    return %arg2, %arg1 : i32, i32
  }
  func.func @transform_2(%arg0: i32, %arg1: i32, %arg2: i32) -> (i32, i32) {
    %c0_i32 = arith.constant 0 : i32
    %c0_i32_0 = arith.constant 0 : i32
    return %c0_i32, %arg1 : i32, i32
  }
  func.func @transform_3(%arg0: i32, %arg1: i32, %arg2: i32) -> (i32, i32) {
    %c0_i32 = arith.constant 0 : i32
    return %arg0, %arg1 : i32, i32
  }
  func.func @transform_4(%arg0: i32, %arg1: i32, %arg2: i32) -> i32 {
    %c0_i32 = arith.constant 0 : i32
    %c0_i32_0 = arith.constant 0 : i32
    return %c0_i32 : i32
  }
  func.func @transform_5(%arg0: i32, %arg1: i32, %arg2: i32) -> (i32, i32) {
    %c0_i32 = arith.constant 0 : i32
    return %arg0, %arg1 : i32, i32
  }
}

</mosaic_0001>

<llo_original>
// kernel: mllama_vision_forward.24
$region0: #{mllama_vision_forward.24}
  #allocation0 [shape = 'u32[]', space=smem, size = 0x4, offset = 0x4, fixed_abs, tag = 'smem constant byte address 0x4 - core index']
  #allocation1 [shape = 'u32[144,128]{1,0:T(1,128)}', space=vmem, size = 0x12000, scoped, tag = 'internal scratch']
  #allocation2 [shape = 'f32[32,256]{1,0:T(8,128)}', space=vmem, size = 0x8000, scoped, tag = 'scratch operand']
  %s0 = inlined_call_operand.vmem [shape: bf16[32,192], index: 0, kind: input, shape index: {}]
  %s1 = inlined_call_operand.vmem [shape: bf16[192,256], index: 1, kind: input, shape index: {}]
  %s2 = inlined_call_operand.vmem [shape: f32[32,256], index: 2, kind: output, shape index: {}]
  %s3 = sld [smem:[#allocation0]]
  $region26: #{mllama_vision_forward.24} parent=0
    _
  %s5 = ssub.s32 1, %s3
  %s6 = scalar_select 0, %s5, %s3
  // Predicated region
  $region2: #{mllama_vision_forward.24} parent=0 // pred_check
    _
  $region3: #{mllama_vision_forward.24} parent=0 // pred_check_branch
    %8 = sbr.rel (0) target = $region5
  $region4: #{mllama_vision_forward.24} parent=0 // pred_region
    _
  $region5: #{mllama_vision_forward.24} parent=0 // pred_fallthru
    _
  // Predicated region
  $region6: #{mllama_vision_forward.24} parent=0 // pred_check
    _
  $region7: #{mllama_vision_forward.24} parent=0 // pred_check_branch
    %10 = sbr.rel (0) target = $region9
  $region8: #{mllama_vision_forward.24} parent=0 // pred_region
    _
  $region9: #{mllama_vision_forward.24} parent=0 // pred_fallthru
    _
  %p12 = scmp.eq.s32.totalorder 0, 0
  // Predicated region
  $region10: #{mllama_vision_forward.24} parent=0 // pred_check
    %p13 = pneg %p12
  $region11: #{mllama_vision_forward.24} parent=0 // pred_check_branch
    %15 = sbr.rel (%p13) target = $region13
  $region12: #{mllama_vision_forward.24} parent=0 // pred_region
    %16 = vst [vmem:[#allocation2] sm:$0xff] 0.0
    %17 = vst [vmem:[#allocation2 + $0x8] sm:$0xff] 0.0
    %18 = vst [vmem:[#allocation2 + $0x10] sm:$0xff] 0.0
    %19 = vst [vmem:[#allocation2 + $0x18] sm:$0xff] 0.0
    %20 = vst [vmem:[#allocation2 + $0x20] sm:$0xff] 0.0
    %21 = vst [vmem:[#allocation2 + $0x28] sm:$0xff] 0.0
    %22 = vst [vmem:[#allocation2 + $0x30] sm:$0xff] 0.0
    %23 = vst [vmem:[#allocation2 + $0x38] sm:$0xff] 0.0
  $region13: #{mllama_vision_forward.24} parent=0 // pred_fallthru
    _
  %v24 = vld [vmem:[#allocation2] sm:$0xff]
  %v25 = vld [vmem:[#allocation2 + $0x8] sm:$0xff]
  %v26 = vld [vmem:[#allocation2 + $0x10] sm:$0xff]
  %v27 = vld [vmem:[#allocation2 + $0x18] sm:$0xff]
  %v28 = vld [vmem:[#allocation2 + $0x20] sm:$0xff]
  %v29 = vld [vmem:[#allocation2 + $0x28] sm:$0xff]
  %v30 = vld [vmem:[#allocation2 + $0x30] sm:$0xff]
  %v31 = vld [vmem:[#allocation2 + $0x38] sm:$0xff]
  %v32 = vld [vmem:[%s0] sm:$0xff]
  %v33 = vld [vmem:[%s0 + $0x8] sm:$0xff]
  %v34 = vld [vmem:[%s0 + $0x10] sm:$0xff]
  %v35 = vld [vmem:[%s0 + $0x18] sm:$0xff]
  %v36 = vld [vmem:[%s1] sm:$0xff]
  %v37 = vld [vmem:[%s1 + $0x8] sm:$0xff]
  %v38 = vld [vmem:[%s1 + $0x10] sm:$0xff]
  %v39 = vld [vmem:[%s1 + $0x18] sm:$0xff]
  %v40 = vld [vmem:[%s1 + $0x20] sm:$0xff]
  %v41 = vld [vmem:[%s1 + $0x28] sm:$0xff]
  %v42 = vld [vmem:[%s1 + $0x30] sm:$0xff]
  %v43 = vld [vmem:[%s1 + $0x38] sm:$0xff]
  %v44 = vld [vmem:[%s1 + $0x40] sm:$0xff]
  %v45 = vld [vmem:[%s1 + $0x48] sm:$0xff]
  %v46 = vld [vmem:[%s1 + $0x50] sm:$0xff]
  %v47 = vld [vmem:[%s1 + $0x58] sm:$0xff]
  %v48 = vld [vmem:[%s1 + $0x60] sm:$0xff]
  %v49 = vld [vmem:[%s1 + $0x68] sm:$0xff]
  %v50 = vld [vmem:[%s1 + $0x70] sm:$0xff]
  %v51 = vld [vmem:[%s1 + $0x78] sm:$0xff]
  %v52 = vld [vmem:[%s1 + $0x80] sm:$0xff]
  %v53 = vld [vmem:[%s1 + $0x88] sm:$0xff]
  %v54 = vld [vmem:[%s1 + $0x90] sm:$0xff]
  %v55 = vld [vmem:[%s1 + $0x98] sm:$0xff]
  %v56 = vld [vmem:[%s1 + $0xa0] sm:$0xff]
  %v57 = vld [vmem:[%s1 + $0xa8] sm:$0xff]
  %v58 = vld [vmem:[%s1 + $0xb0] sm:$0xff]
  %v59 = vld [vmem:[%s1 + $0xb8] sm:$0xff]
  %v64 = vunpack.c.l.b16 %v32
  %v65 = vunpack.c.h.b16 %v32
  %v66 = vunpack.c.l.b16 %v33
  %v67 = vunpack.c.h.b16 %v33
  %v68 = vunpack.c.l.b16 %v34
  %v69 = vunpack.c.h.b16 %v34
  %v70 = vunpack.c.l.b16 %v35
  %v71 = vunpack.c.h.b16 %v35
  %v72 = vpack.c.b16 %v66, %v64
  %v73 = vpack.c.b16 %v67, %v65
  %v74 = vpack.c.b16 %v70, %v68
  %v75 = vpack.c.b16 %v71, %v69
  %v102 = vunpack.c.l.b16 %v36
  %v103 = vunpack.c.h.b16 %v36
  %v104 = vunpack.c.l.b16 %v37
  %v105 = vunpack.c.h.b16 %v37
  %v106 = vunpack.c.l.b16 %v38
  %v107 = vunpack.c.h.b16 %v38
  %v108 = vunpack.c.l.b16 %v39
  %v109 = vunpack.c.h.b16 %v39
  %v110 = vunpack.c.l.b16 %v40
  %v111 = vunpack.c.h.b16 %v40
  %v112 = vunpack.c.l.b16 %v41
  %v113 = vunpack.c.h.b16 %v41
  %v114 = vunpack.c.l.b16 %v42
  %v115 = vunpack.c.h.b16 %v42
  %v116 = vunpack.c.l.b16 %v43
  %v117 = vunpack.c.h.b16 %v43
  %v118 = vunpack.c.l.b16 %v44
  %v119 = vunpack.c.h.b16 %v44
  %v120 = vunpack.c.l.b16 %v45
  %v121 = vunpack.c.h.b16 %v45
  %v122 = vunpack.c.l.b16 %v46
  %v123 = vunpack.c.h.b16 %v46
  %v124 = vunpack.c.l.b16 %v47
  %v125 = vunpack.c.h.b16 %v47
  %v126 = vunpack.c.l.b16 %v48
  %v127 = vunpack.c.h.b16 %v48
  %v128 = vunpack.c.l.b16 %v49
  %v129 = vunpack.c.h.b16 %v49
  %v130 = vunpack.c.l.b16 %v50
  %v131 = vunpack.c.h.b16 %v50
  %v132 = vunpack.c.l.b16 %v51
  %v133 = vunpack.c.h.b16 %v51
  %v134 = vunpack.c.l.b16 %v52
  %v135 = vunpack.c.h.b16 %v52
  %v136 = vunpack.c.l.b16 %v53
  %v137 = vunpack.c.h.b16 %v53
  %v138 = vunpack.c.l.b16 %v54
  %v139 = vunpack.c.h.b16 %v54
  %v140 = vunpack.c.l.b16 %v55
  %v141 = vunpack.c.h.b16 %v55
  %v142 = vunpack.c.l.b16 %v56
  %v143 = vunpack.c.h.b16 %v56
  %v144 = vunpack.c.l.b16 %v57
  %v145 = vunpack.c.h.b16 %v57
  %v146 = vunpack.c.l.b16 %v58
  %v147 = vunpack.c.h.b16 %v58
  %v148 = vunpack.c.l.b16 %v59
  %v149 = vunpack.c.h.b16 %v59
  %v150 = vpack.c.b16 %v104, %v102
  %v151 = vpack.c.b16 %v105, %v103
  %v152 = vpack.c.b16 %v108, %v106
  %v153 = vpack.c.b16 %v109, %v107
  %v154 = vpack.c.b16 %v112, %v110
  %v155 = vpack.c.b16 %v113, %v111
  %v156 = vpack.c.b16 %v116, %v114
  %v157 = vpack.c.b16 %v117, %v115
  %v158 = vpack.c.b16 %v120, %v118
  %v159 = vpack.c.b16 %v121, %v119
  %v160 = vpack.c.b16 %v124, %v122
  %v161 = vpack.c.b16 %v125, %v123
  %v162 = vpack.c.b16 %v128, %v126
  %v163 = vpack.c.b16 %v129, %v127
  %v164 = vpack.c.b16 %v132, %v130
  %v165 = vpack.c.b16 %v133, %v131
  %v166 = vpack.c.b16 %v136, %v134
  %v167 = vpack.c.b16 %v137, %v135
  %v168 = vpack.c.b16 %v140, %v138
  %v169 = vpack.c.b16 %v141, %v139
  %v170 = vpack.c.b16 %v144, %v142
  %v171 = vpack.c.b16 %v145, %v143
  %v172 = vpack.c.b16 %v148, %v146
  %v173 = vpack.c.b16 %v149, %v147
  %vm198 = vcmask 523264
  %v200 = vsel %vm198, %v73, 0
  %v203 = vsel %vm198, %v75, 0
  %205 = vmatprep.subr.bf16.mxu0 %v151
  %206 = vmatpush1.bf16.msra.mxu0 %v150
  %207 = vmatprep.subr.bf16.mxu0 %v153
  %208 = vmatpush1.bf16.msra.mxu0 %v152
  %209 = vmatprep.subr.bf16.mxu0 %v155
  %210 = vmatpush1.bf16.msra.mxu0 %v154
  %211 = vmatprep.subr.bf16.mxu0 %v157
  %212 = vmatpush1.bf16.msra.mxu0 %v156
  %213 = vmatprep.subr.bf16.mxu0 %v159
  %214 = vmatpush1.bf16.msra.mxu0 %v158
  %215 = vmatprep.subr.bf16.mxu0 %v161
  %216 = vmatpush1.bf16.msra.mxu0 %v160
  %217 = vmatprep.subr.bf16.mxu0 %v163
  %218 = vmatpush1.bf16.msra.mxu0 %v162
  %219 = vmatprep.subr.bf16.mxu0 %v165
  %220 = vmatpush1.bf16.msra.mxu0 %v164
  %221 = vmatprep.subr.bf16.mxu0 %v167
  %222 = vmatpush1.bf16.msra.mxu0 %v166
  %223 = vmatprep.subr.bf16.mxu0 %v169
  %224 = vmatpush1.bf16.msra.mxu0 %v168
  %225 = vmatprep.subr.bf16.mxu0 %v171
  %226 = vmatpush1.bf16.msra.mxu0 %v170
  %227 = vmatprep.subr.bf16.mxu0 %v173
  %228 = vmatpush1.bf16.msra.mxu0 %v172
  %229 = vmatprep.subr.bf16.mxu0 0
  %230 = vmatpush1.bf16.msra.mxu0 0
  %231 = vmatprep.subr.bf16.mxu0 0
  %232 = vmatpush1.bf16.msra.mxu0 0
  %233 = vmatprep.subr.bf16.mxu0 0
  %234 = vmatpush1.bf16.msra.mxu0 0
  %235 = vmatprep.subr.bf16.mxu0 0
  %236 = vmatpush1.bf16.msra.mxu0 0
  %237 = vmatprep.mubr.bf16.mxu0 %v200
  %238 = vmatmul.mubr.bf16.gmra.mrb[0].mxu0 %v72
  %v239 = vpop.f32.mrb[0].mxu0
  %v240 = vadd.f32 0.0, %v239
  %v241 = vpop.f32.mrb[0].mxu0
  %v242 = vadd.f32 0.0, %v241
  %v243 = vpop.f32.mrb[0].mxu0
  %v244 = vadd.f32 0.0, %v243
  %v245 = vpop.f32.mrb[0].mxu0
  %v246 = vadd.f32 0.0, %v245
  %247 = vmatprep.mubr.bf16.mxu0 %v203
  %248 = vmatmul.mubr.bf16.gmra.mrb[0].mxu0 %v74
  %v249 = vpop.f32.mrb[0].mxu0
  %v250 = vadd.f32 0.0, %v249
  %v251 = vpop.f32.mrb[0].mxu0
  %v252 = vadd.f32 0.0, %v251
  %v253 = vpop.f32.mrb[0].mxu0
  %v254 = vadd.f32 0.0, %v253
  %v255 = vpop.f32.mrb[0].mxu0
  %v256 = vadd.f32 0.0, %v255
  %257 = vdwg.mxu0
  %v258 = vadd.f32 %v24, %v240
  %v259 = vadd.f32 %v25, %v242
  %v260 = vadd.f32 %v26, %v244
  %v261 = vadd.f32 %v27, %v246
  %v262 = vadd.f32 %v28, %v250
  %v263 = vadd.f32 %v29, %v252
  %v264 = vadd.f32 %v30, %v254
  %v265 = vadd.f32 %v31, %v256
  %266 = vst [vmem:[#allocation2] sm:$0xff] %v258
  %267 = vst [vmem:[#allocation2 + $0x8] sm:$0xff] %v259
  %268 = vst [vmem:[#allocation2 + $0x10] sm:$0xff] %v260
  %269 = vst [vmem:[#allocation2 + $0x18] sm:$0xff] %v261
  %270 = vst [vmem:[#allocation2 + $0x20] sm:$0xff] %v262
  %271 = vst [vmem:[#allocation2 + $0x28] sm:$0xff] %v263
  %272 = vst [vmem:[#allocation2 + $0x30] sm:$0xff] %v264
  %273 = vst [vmem:[#allocation2 + $0x38] sm:$0xff] %v265
  // Predicated region
  $region14: #{mllama_vision_forward.24} parent=0 // pred_check
    %p274 = pneg %p12
  $region15: #{mllama_vision_forward.24} parent=0 // pred_check_branch
    %276 = sbr.rel (%p274) target = $region17
  $region16: #{mllama_vision_forward.24} parent=0 // pred_region
    %v277 = vld [vmem:[#allocation2] sm:$0xff]
    %v278 = vld [vmem:[#allocation2 + $0x8] sm:$0xff]
    %v279 = vld [vmem:[#allocation2 + $0x10] sm:$0xff]
    %v280 = vld [vmem:[#allocation2 + $0x18] sm:$0xff]
    %v281 = vld [vmem:[#allocation2 + $0x20] sm:$0xff]
    %v282 = vld [vmem:[#allocation2 + $0x28] sm:$0xff]
    %v283 = vld [vmem:[#allocation2 + $0x30] sm:$0xff]
    %v284 = vld [vmem:[#allocation2 + $0x38] sm:$0xff]
    %285 = vst [vmem:[%s2] sm:$0xff] %v277
    %286 = vst [vmem:[%s2 + $0x8] sm:$0xff] %v278
    %287 = vst [vmem:[%s2 + $0x10] sm:$0xff] %v279
    %288 = vst [vmem:[%s2 + $0x18] sm:$0xff] %v280
    %289 = vst [vmem:[%s2 + $0x20] sm:$0xff] %v281
    %290 = vst [vmem:[%s2 + $0x28] sm:$0xff] %v282
    %291 = vst [vmem:[%s2 + $0x30] sm:$0xff] %v283
    %292 = vst [vmem:[%s2 + $0x38] sm:$0xff] %v284
  $region17: #{mllama_vision_forward.24} parent=0 // pred_fallthru
    _
  // Predicated region
  $region18: #{mllama_vision_forward.24} parent=0 // pred_check
    _
  $region19: #{mllama_vision_forward.24} parent=0 // pred_check_branch
    %294 = sbr.rel (0) target = $region21
  $region20: #{mllama_vision_forward.24} parent=0 // pred_region
    _
  $region21: #{mllama_vision_forward.24} parent=0 // pred_fallthru
    _
  // Predicated region
  $region22: #{mllama_vision_forward.24} parent=0 // pred_check
    _
  $region23: #{mllama_vision_forward.24} parent=0 // pred_check_branch
    %296 = sbr.rel (0) target = $region25
  $region24: #{mllama_vision_forward.24} parent=0 // pred_region
    _
  $region25: #{mllama_vision_forward.24} parent=0 // pred_fallthru
    _

// kernel: mllama_vision_forward.25
$region0: #{mllama_vision_forward.25}
  #allocation0 [shape = 'u32[]', space=smem, size = 0x4, offset = 0x4, fixed_abs, tag = 'smem constant byte address 0x4 - core index']
  #allocation1 [shape = 'u32[144,128]{1,0:T(1,128)}', space=vmem, size = 0x12000, scoped, tag = 'internal scratch']
  %s0 = inlined_call_operand.vmem [shape: f32[34,256], index: 0, kind: input, shape index: {}]
  %s1 = inlined_call_operand.vmem [shape: f32[1,256], index: 1, kind: input, shape index: {}]
  %s2 = inlined_call_operand.vmem [shape: f32[1,256], index: 2, kind: input, shape index: {}]
  %s3 = inlined_call_operand.vmem [shape: bf16[34,256], index: 3, kind: output, shape index: {}]
  %s4 = sld [smem:[#allocation0]]
  $region22: #{mllama_vision_forward.25} parent=0
    _
  %s6 = ssub.s32 1, %s4
  %s7 = scalar_select 0, %s6, %s4
  // Predicated region
  $region2: #{mllama_vision_forward.25} parent=0 // pred_check
    _
  $region3: #{mllama_vision_forward.25} parent=0 // pred_check_branch
    %9 = sbr.rel (0) target = $region5
  $region4: #{mllama_vision_forward.25} parent=0 // pred_region
    _
  $region5: #{mllama_vision_forward.25} parent=0 // pred_fallthru
    _
  // Predicated region
  $region6: #{mllama_vision_forward.25} parent=0 // pred_check
    _
  $region7: #{mllama_vision_forward.25} parent=0 // pred_check_branch
    %11 = sbr.rel (0) target = $region9
  $region8: #{mllama_vision_forward.25} parent=0 // pred_region
    _
  $region9: #{mllama_vision_forward.25} parent=0 // pred_fallthru
    _
  // Predicated region
  $region10: #{mllama_vision_forward.25} parent=0 // pred_check
    _
  $region11: #{mllama_vision_forward.25} parent=0 // pred_check_branch
    %13 = sbr.rel (0) target = $region13
  $region12: #{mllama_vision_forward.25} parent=0 // pred_region
    _
  $region13: #{mllama_vision_forward.25} parent=0 // pred_fallthru
    _
  %v14 = vld [vmem:[%s0] sm:$0xff]
  %v15 = vld [vmem:[%s0 + $0x8] sm:$0xff]
  %v16 = vld [vmem:[%s0 + $0x10] sm:$0xff]
  %v17 = vld [vmem:[%s0 + $0x18] sm:$0xff]
  %v18 = vld [vmem:[%s0 + $0x20] sm:$0xff]
  %v19 = vld [vmem:[%s0 + $0x28] sm:$0xff]
  %v20 = vld [vmem:[%s0 + $0x30] sm:$0xff]
  %v21 = vld [vmem:[%s0 + $0x38] sm:$0xff]
  %v22 = vld [vmem:[%s0 + $0x40] sm:$0x3]
  %v23 = vld [vmem:[%s0 + $0x48] sm:$0x3]
  %v24 = vadd.f32 %v14, %v15
  %25 = vadd.xlane.f32.xlu0 %v24
  %v26 = vpop.xlane.xlu0 %25
  %v27 = vadd.f32 %v16, %v17
  %28 = vadd.xlane.f32.xlu0 %v27
  %v29 = vpop.xlane.xlu0 %28
  %v30 = vadd.f32 %v18, %v19
  %31 = vadd.xlane.f32.xlu0 %v30
  %v32 = vpop.xlane.xlu0 %31
  %v33 = vadd.f32 %v20, %v21
  %34 = vadd.xlane.f32.xlu0 %v33
  %v35 = vpop.xlane.xlu0 %34
  %vm36 = vcmask 1041408
  %v37 = vsel %vm36, %v22, 0.0
  %v38 = vsel %vm36, %v23, 0.0
  %v39 = vadd.f32 %v37, %v38
  %40 = vadd.xlane.f32.xlu0 %v39
  %v41 = vpop.xlane.xlu0 %40
  %v42 = vrcp.pop 256.0
  %v43 = vmul.f32 %v26, %v42
  %v44 = vmul.f32 %v29, %v42
  %v45 = vmul.f32 %v32, %v42
  %v46 = vmul.f32 %v35, %v42
  %v47 = vmul.f32 %v41, %v42
  %v48 = vsub.f32 %v14, %v43
  %v49 = vsub.f32 %v15, %v43
  %v50 = vsub.f32 %v16, %v44
  %v51 = vsub.f32 %v17, %v44
  %v52 = vsub.f32 %v18, %v45
  %v53 = vsub.f32 %v19, %v45
  %v54 = vsub.f32 %v20, %v46
  %v55 = vsub.f32 %v21, %v46
  %v56 = vsub.f32 %v22, %v47
  %v57 = vsub.f32 %v23, %v47
  %v58 = vmul.f32 %v48, %v48
  %v59 = vmul.f32 %v49, %v49
  %v60 = vmul.f32 %v50, %v50
  %v61 = vmul.f32 %v51, %v51
  %v62 = vmul.f32 %v52, %v52
  %v63 = vmul.f32 %v53, %v53
  %v64 = vmul.f32 %v54, %v54
  %v65 = vmul.f32 %v55, %v55
  %v66 = vmul.f32 %v56, %v56
  %v67 = vmul.f32 %v57, %v57
  %v68 = vadd.f32 %v58, %v59
  %69 = vadd.xlane.f32.xlu0 %v68
  %v70 = vpop.xlane.xlu0 %69
  %v71 = vadd.f32 %v60, %v61
  %72 = vadd.xlane.f32.xlu0 %v71
  %v73 = vpop.xlane.xlu0 %72
  %v74 = vadd.f32 %v62, %v63
  %75 = vadd.xlane.f32.xlu0 %v74
  %v76 = vpop.xlane.xlu0 %75
  %v77 = vadd.f32 %v64, %v65
  %78 = vadd.xlane.f32.xlu0 %v77
  %v79 = vpop.xlane.xlu0 %78
  %v80 = vsel %vm36, %v66, 0.0
  %v81 = vsel %vm36, %v67, 0.0
  %v82 = vadd.f32 %v80, %v81
  %83 = vadd.xlane.f32.xlu0 %v82
  %v84 = vpop.xlane.xlu0 %83
  %v85 = vmul.f32 %v70, %v42
  %v86 = vmul.f32 %v73, %v42
  %v87 = vmul.f32 %v76, %v42
  %v88 = vmul.f32 %v79, %v42
  %v89 = vmul.f32 %v84, %v42
  %v90 = vadd.f32 %v85, 1e-05
  %v91 = vadd.f32 %v86, 1e-05
  %v92 = vadd.f32 %v87, 1e-05
  %v93 = vadd.f32 %v88, 1e-05
  %v94 = vadd.f32 %v89, 1e-05
  %v95 = vrsqrt.pop %v90
  %v96 = vrsqrt.pop %v91
  %v97 = vrsqrt.pop %v92
  %v98 = vrsqrt.pop %v93
  %v99 = vrsqrt.pop %v94
  %v100 = vmul.f32 %v48, %v95
  %v101 = vmul.f32 %v49, %v95
  %v102 = vmul.f32 %v50, %v96
  %v103 = vmul.f32 %v51, %v96
  %v104 = vmul.f32 %v52, %v97
  %v105 = vmul.f32 %v53, %v97
  %v106 = vmul.f32 %v54, %v98
  %v107 = vmul.f32 %v55, %v98
  %v108 = vmul.f32 %v56, %v99
  %v109 = vmul.f32 %v57, %v99
  %v110 = vld [vmem:[%s1] sm:$0x3]
  %v112 = vlaneseq
  %v113 = vshrl.u32 %v112, 7
  %v114 = vsub.s32 0, %v113
  %v115 = vrot.slane %v110, %v114
  %v116 = vlaneseq
  %v117 = vshrl.u32 %v116, 7
  %v118 = vsub.s32 1, %v117
  %v119 = vrot.slane %v110, %v118
  %v122 = vmul.f32 %v100, %v115
  %v123 = vmul.f32 %v101, %v119
  %v124 = vmul.f32 %v102, %v115
  %v125 = vmul.f32 %v103, %v119
  %v126 = vmul.f32 %v104, %v115
  %v127 = vmul.f32 %v105, %v119
  %v128 = vmul.f32 %v106, %v115
  %v129 = vmul.f32 %v107, %v119
  %v130 = vmul.f32 %v108, %v115
  %v131 = vmul.f32 %v109, %v119
  %v132 = vld [vmem:[%s2] sm:$0x3]
  %v134 = vlaneseq
  %v135 = vshrl.u32 %v134, 7
  %v136 = vsub.s32 0, %v135
  %v137 = vrot.slane %v132, %v136
  %v138 = vlaneseq
  %v139 = vshrl.u32 %v138, 7
  %v140 = vsub.s32 1, %v139
  %v141 = vrot.slane %v132, %v140
  %v144 = vadd.f32 %v122, %v137
  %v145 = vadd.f32 %v123, %v141
  %v146 = vadd.f32 %v124, %v137
  %v147 = vadd.f32 %v125, %v141
  %v148 = vadd.f32 %v126, %v137
  %v149 = vadd.f32 %v127, %v141
  %v150 = vadd.f32 %v128, %v137
  %v151 = vadd.f32 %v129, %v141
  %v152 = vadd.f32 %v130, %v137
  %v153 = vadd.f32 %v131, %v141
  %v154 = vpack.c.bf16 %v146, %v144
  %v155 = vpack.c.bf16 %v147, %v145
  %v156 = vpack.c.bf16 %v150, %v148
  %v157 = vpack.c.bf16 %v151, %v149
  %v158 = vpack.c.bf16 %v152, %v152
  %v159 = vpack.c.bf16 %v153, %v153
  %v166 = vunpack.c.l.b16 %v154
  %v167 = vunpack.c.l.b16 %v155
  %v168 = vunpack.c.h.b16 %v154
  %v169 = vunpack.c.h.b16 %v155
  %v170 = vunpack.c.l.b16 %v156
  %v171 = vunpack.c.l.b16 %v157
  %v172 = vunpack.c.h.b16 %v156
  %v173 = vunpack.c.h.b16 %v157
  %v174 = vunpack.c.l.b16 %v158
  %v175 = vunpack.c.l.b16 %v159
  %v176 = vpack.c.b16 %v167, %v166
  %v177 = vpack.c.b16 %v169, %v168
  %v178 = vpack.c.b16 %v171, %v170
  %v179 = vpack.c.b16 %v173, %v172
  %v180 = vpack.c.b16 %v175, %v174
  %186 = vst [vmem:[%s3] sm:$0xff] %v176
  %187 = vst [vmem:[%s3 + $0x8] sm:$0xff] %v177
  %188 = vst [vmem:[%s3 + $0x10] sm:$0xff] %v178
  %189 = vst [vmem:[%s3 + $0x18] sm:$0xff] %v179
  %190 = vst [vmem:[%s3 + $0x20] sm:$0x11] %v180
  // Predicated region
  $region14: #{mllama_vision_forward.25} parent=0 // pred_check
    _
  $region15: #{mllama_vision_forward.25} parent=0 // pred_check_branch
    %192 = sbr.rel (0) target = $region17
  $region16: #{mllama_vision_forward.25} parent=0 // pred_region
    _
  $region17: #{mllama_vision_forward.25} parent=0 // pred_fallthru
    _
  // Predicated region
  $region18: #{mllama_vision_forward.25} parent=0 // pred_check
    _
  $region19: #{mllama_vision_forward.25} parent=0 // pred_check_branch
    %194 = sbr.rel (0) target = $region21
  $region20: #{mllama_vision_forward.25} parent=0 // pred_region
    _
  $region21: #{mllama_vision_forward.25} parent=0 // pred_fallthru
    _

// kernel: mllama_vision_forward.26
$region0: #{mllama_vision_forward.26}
  #allocation0 [shape = 'u32[]', space=smem, size = 0x4, offset = 0x4, fixed_abs, tag = 'smem constant byte address 0x4 - core index']
  #allocation1 [shape = 'u32[144,128]{1,0:T(1,128)}', space=vmem, size = 0x12000, scoped, tag = 'internal scratch']
  %s0 = inlined_call_operand.vmem [shape: bf16[48,256], index: 0, kind: input, shape index: {}]
  %s1 = inlined_call_operand.vmem [shape: f32[1,256], index: 1, kind: input, shape index: {}]
  %s2 = inlined_call_operand.vmem [shape: f32[1,256], index: 2, kind: input, shape index: {}]
  %s3 = inlined_call_operand.vmem [shape: bf16[48,256], index: 3, kind: output, shape index: {}]
  %s4 = sld [smem:[#allocation0]]
  $region22: #{mllama_vision_forward.26} parent=0
    _
  %s6 = ssub.s32 1, %s4
  %s7 = scalar_select 0, %s6, %s4
  // Predicated region
  $region2: #{mllama_vision_forward.26} parent=0 // pred_check
    _
  $region3: #{mllama_vision_forward.26} parent=0 // pred_check_branch
    %9 = sbr.rel (0) target = $region5
  $region4: #{mllama_vision_forward.26} parent=0 // pred_region
    _
  $region5: #{mllama_vision_forward.26} parent=0 // pred_fallthru
    _
  // Predicated region
  $region6: #{mllama_vision_forward.26} parent=0 // pred_check
    _
  $region7: #{mllama_vision_forward.26} parent=0 // pred_check_branch
    %11 = sbr.rel (0) target = $region9
  $region8: #{mllama_vision_forward.26} parent=0 // pred_region
    _
  $region9: #{mllama_vision_forward.26} parent=0 // pred_fallthru
    _
  // Predicated region
  $region10: #{mllama_vision_forward.26} parent=0 // pred_check
    _
  $region11: #{mllama_vision_forward.26} parent=0 // pred_check_branch
    %13 = sbr.rel (0) target = $region13
  $region12: #{mllama_vision_forward.26} parent=0 // pred_region
    _
  $region13: #{mllama_vision_forward.26} parent=0 // pred_fallthru
    _
  %v14 = vld [vmem:[%s0] sm:$0xff]
  %v15 = vld [vmem:[%s0 + $0x8] sm:$0xff]
  %v16 = vld [vmem:[%s0 + $0x10] sm:$0xff]
  %v17 = vld [vmem:[%s0 + $0x18] sm:$0xff]
  %v18 = vld [vmem:[%s0 + $0x20] sm:$0xff]
  %v19 = vld [vmem:[%s0 + $0x28] sm:$0xff]
  %v20 = vunpack.c.l.bf16 %v14
  %v21 = vunpack.c.h.bf16 %v14
  %v22 = vunpack.c.l.bf16 %v15
  %v23 = vunpack.c.h.bf16 %v15
  %v24 = vunpack.c.l.bf16 %v16
  %v25 = vunpack.c.h.bf16 %v16
  %v26 = vunpack.c.l.bf16 %v17
  %v27 = vunpack.c.h.bf16 %v17
  %v28 = vunpack.c.l.bf16 %v18
  %v29 = vunpack.c.h.bf16 %v18
  %v30 = vunpack.c.l.bf16 %v19
  %v31 = vunpack.c.h.bf16 %v19
  %v32 = vadd.f32 %v20, %v21
  %33 = vadd.xlane.f32.xlu0 %v32
  %v34 = vpop.xlane.xlu0 %33
  %v35 = vadd.f32 %v22, %v23
  %36 = vadd.xlane.f32.xlu0 %v35
  %v37 = vpop.xlane.xlu0 %36
  %v38 = vadd.f32 %v24, %v25
  %39 = vadd.xlane.f32.xlu0 %v38
  %v40 = vpop.xlane.xlu0 %39
  %v41 = vadd.f32 %v26, %v27
  %42 = vadd.xlane.f32.xlu0 %v41
  %v43 = vpop.xlane.xlu0 %42
  %v44 = vadd.f32 %v28, %v29
  %45 = vadd.xlane.f32.xlu0 %v44
  %v46 = vpop.xlane.xlu0 %45
  %v47 = vadd.f32 %v30, %v31
  %48 = vadd.xlane.f32.xlu0 %v47
  %v49 = vpop.xlane.xlu0 %48
  %v50 = vrcp.pop 256.0
  %v51 = vmul.f32 %v34, %v50
  %v52 = vmul.f32 %v37, %v50
  %v53 = vmul.f32 %v40, %v50
  %v54 = vmul.f32 %v43, %v50
  %v55 = vmul.f32 %v46, %v50
  %v56 = vmul.f32 %v49, %v50
  %v57 = vsub.f32 %v20, %v51
  %v58 = vsub.f32 %v21, %v51
  %v59 = vsub.f32 %v22, %v52
  %v60 = vsub.f32 %v23, %v52
  %v61 = vsub.f32 %v24, %v53
  %v62 = vsub.f32 %v25, %v53
  %v63 = vsub.f32 %v26, %v54
  %v64 = vsub.f32 %v27, %v54
  %v65 = vsub.f32 %v28, %v55
  %v66 = vsub.f32 %v29, %v55
  %v67 = vsub.f32 %v30, %v56
  %v68 = vsub.f32 %v31, %v56
  %v69 = vmul.f32 %v57, %v57
  %v70 = vmul.f32 %v58, %v58
  %v71 = vmul.f32 %v59, %v59
  %v72 = vmul.f32 %v60, %v60
  %v73 = vmul.f32 %v61, %v61
  %v74 = vmul.f32 %v62, %v62
  %v75 = vmul.f32 %v63, %v63
  %v76 = vmul.f32 %v64, %v64
  %v77 = vmul.f32 %v65, %v65
  %v78 = vmul.f32 %v66, %v66
  %v79 = vmul.f32 %v67, %v67
  %v80 = vmul.f32 %v68, %v68
  %v81 = vadd.f32 %v69, %v70
  %82 = vadd.xlane.f32.xlu0 %v81
  %v83 = vpop.xlane.xlu0 %82
  %v84 = vadd.f32 %v71, %v72
  %85 = vadd.xlane.f32.xlu0 %v84
  %v86 = vpop.xlane.xlu0 %85
  %v87 = vadd.f32 %v73, %v74
  %88 = vadd.xlane.f32.xlu0 %v87
  %v89 = vpop.xlane.xlu0 %88
  %v90 = vadd.f32 %v75, %v76
  %91 = vadd.xlane.f32.xlu0 %v90
  %v92 = vpop.xlane.xlu0 %91
  %v93 = vadd.f32 %v77, %v78
  %94 = vadd.xlane.f32.xlu0 %v93
  %v95 = vpop.xlane.xlu0 %94
  %v96 = vadd.f32 %v79, %v80
  %97 = vadd.xlane.f32.xlu0 %v96
  %v98 = vpop.xlane.xlu0 %97
  %v99 = vmul.f32 %v83, %v50
  %v100 = vmul.f32 %v86, %v50
  %v101 = vmul.f32 %v89, %v50
  %v102 = vmul.f32 %v92, %v50
  %v103 = vmul.f32 %v95, %v50
  %v104 = vmul.f32 %v98, %v50
  %v105 = vadd.f32 %v99, 1e-05
  %v106 = vadd.f32 %v100, 1e-05
  %v107 = vadd.f32 %v101, 1e-05
  %v108 = vadd.f32 %v102, 1e-05
  %v109 = vadd.f32 %v103, 1e-05
  %v110 = vadd.f32 %v104, 1e-05
  %v111 = vrsqrt.pop %v105
  %v112 = vrsqrt.pop %v106
  %v113 = vrsqrt.pop %v107
  %v114 = vrsqrt.pop %v108
  %v115 = vrsqrt.pop %v109
  %v116 = vrsqrt.pop %v110
  %v117 = vmul.f32 %v57, %v111
  %v118 = vmul.f32 %v58, %v111
  %v119 = vmul.f32 %v59, %v112
  %v120 = vmul.f32 %v60, %v112
  %v121 = vmul.f32 %v61, %v113
  %v122 = vmul.f32 %v62, %v113
  %v123 = vmul.f32 %v63, %v114
  %v124 = vmul.f32 %v64, %v114
  %v125 = vmul.f32 %v65, %v115
  %v126 = vmul.f32 %v66, %v115
  %v127 = vmul.f32 %v67, %v116
  %v128 = vmul.f32 %v68, %v116
  %v129 = vld [vmem:[%s1] sm:$0x3]
  %v131 = vlaneseq
  %v132 = vshrl.u32 %v131, 7
  %v133 = vsub.s32 0, %v132
  %v134 = vrot.slane %v129, %v133
  %v135 = vlaneseq
  %v136 = vshrl.u32 %v135, 7
  %v137 = vsub.s32 1, %v136
  %v138 = vrot.slane %v129, %v137
  %v141 = vmul.f32 %v117, %v134
  %v142 = vmul.f32 %v118, %v138
  %v143 = vmul.f32 %v119, %v134
  %v144 = vmul.f32 %v120, %v138
  %v145 = vmul.f32 %v121, %v134
  %v146 = vmul.f32 %v122, %v138
  %v147 = vmul.f32 %v123, %v134
  %v148 = vmul.f32 %v124, %v138
  %v149 = vmul.f32 %v125, %v134
  %v150 = vmul.f32 %v126, %v138
  %v151 = vmul.f32 %v127, %v134
  %v152 = vmul.f32 %v128, %v138
  %v153 = vld [vmem:[%s2] sm:$0x3]
  %v155 = vlaneseq
  %v156 = vshrl.u32 %v155, 7
  %v157 = vsub.s32 0, %v156
  %v158 = vrot.slane %v153, %v157
  %v159 = vlaneseq
  %v160 = vshrl.u32 %v159, 7
  %v161 = vsub.s32 1, %v160
  %v162 = vrot.slane %v153, %v161
  %v165 = vadd.f32 %v141, %v158
  %v166 = vadd.f32 %v142, %v162
  %v167 = vadd.f32 %v143, %v158
  %v168 = vadd.f32 %v144, %v162
  %v169 = vadd.f32 %v145, %v158
  %v170 = vadd.f32 %v146, %v162
  %v171 = vadd.f32 %v147, %v158
  %v172 = vadd.f32 %v148, %v162
  %v173 = vadd.f32 %v149, %v158
  %v174 = vadd.f32 %v150, %v162
  %v175 = vadd.f32 %v151, %v158
  %v176 = vadd.f32 %v152, %v162
  %v177 = vpack.c.bf16 %v167, %v165
  %v178 = vpack.c.bf16 %v168, %v166
  %v179 = vpack.c.bf16 %v171, %v169
  %v180 = vpack.c.bf16 %v172, %v170
  %v181 = vpack.c.bf16 %v175, %v173
  %v182 = vpack.c.bf16 %v176, %v174
  %v189 = vunpack.c.l.b16 %v177
  %v190 = vunpack.c.l.b16 %v178
  %v191 = vunpack.c.h.b16 %v177
  %v192 = vunpack.c.h.b16 %v178
  %v193 = vunpack.c.l.b16 %v179
  %v194 = vunpack.c.l.b16 %v180
  %v195 = vunpack.c.h.b16 %v179
  %v196 = vunpack.c.h.b16 %v180
  %v197 = vunpack.c.l.b16 %v181
  %v198 = vunpack.c.l.b16 %v182
  %v199 = vunpack.c.h.b16 %v181
  %v200 = vunpack.c.h.b16 %v182
  %v201 = vpack.c.b16 %v190, %v189
  %v202 = vpack.c.b16 %v192, %v191
  %v203 = vpack.c.b16 %v194, %v193
  %v204 = vpack.c.b16 %v196, %v195
  %v205 = vpack.c.b16 %v198, %v197
  %v206 = vpack.c.b16 %v200, %v199
  %213 = vst [vmem:[%s3] sm:$0xff] %v201
  %214 = vst [vmem:[%s3 + $0x8] sm:$0xff] %v202
  %215 = vst [vmem:[%s3 + $0x10] sm:$0xff] %v203
  %216 = vst [vmem:[%s3 + $0x18] sm:$0xff] %v204
  %217 = vst [vmem:[%s3 + $0x20] sm:$0xff] %v205
  %218 = vst [vmem:[%s3 + $0x28] sm:$0xff] %v206
  // Predicated region
  $region14: #{mllama_vision_forward.26} parent=0 // pred_check
    _
  $region15: #{mllama_vision_forward.26} parent=0 // pred_check_branch
    %220 = sbr.rel (0) target = $region17
  $region16: #{mllama_vision_forward.26} parent=0 // pred_region
    _
  $region17: #{mllama_vision_forward.26} parent=0 // pred_fallthru
    _
  // Predicated region
  $region18: #{mllama_vision_forward.26} parent=0 // pred_check
    _
  $region19: #{mllama_vision_forward.26} parent=0 // pred_check_branch
    %222 = sbr.rel (0) target = $region21
  $region20: #{mllama_vision_forward.26} parent=0 // pred_region
    _
  $region21: #{mllama_vision_forward.26} parent=0 // pred_fallthru
    _

// kernel: mllama_vision_forward.27
$region0: #{mllama_vision_forward.27}
  #allocation0 [shape = 'u32[]', space=smem, size = 0x4, offset = 0x4, fixed_abs, tag = 'smem constant byte address 0x4 - core index']
  #allocation1 [shape = 'u32[144,128]{1,0:T(1,128)}', space=vmem, size = 0x12000, scoped, tag = 'internal scratch']
  #allocation2 [shape = 'f32[48,256]{1,0:T(8,128)}', space=vmem, size = 0xc000, scoped, tag = 'scratch operand']
  %s0 = inlined_call_operand.vmem [shape: bf16[48,256], index: 0, kind: input, shape index: {}]
  %s1 = inlined_call_operand.vmem [shape: bf16[256,768], index: 1, kind: input, shape index: {}]
  %s2 = inlined_call_operand.vmem [shape: bf16[48,768], index: 2, kind: output, shape index: {}]
  %s3 = sld [smem:[#allocation0]]
  $region121: #{mllama_vision_forward.27} parent=0
    _
  %s5 = ssub.s32 1, %s3
  %s6 = scalar_select 0, %s5, %s3
  $region1: #{mllama_vision_forward.27} parent=0
    #allocation3 [shape = 'u8[262144]{0}', space=vmem, size = 0x40000, scoped, tag = 'input window, operand 1']
    #allocation4 [shape = 'u8[49152]{0}', space=vmem, size = 0xc000, scoped, tag = 'output window, operand 0']
    loop: start=0, step=1, limit=5
    $region2: #{mllama_vision_forward.27} parent=1 // loop_pre_header
      _
    $region3: #{mllama_vision_forward.27} parent=1 // loop_header
      %s8 = sphi 0, %s12
      %p9 = scmp.ge.s32.totalorder %s8, 5
      %s15 = sphi 0, %s34
      %s16 = sphi 0, %s30
      %s17 = sphi 0, %s26
      %s18 = sphi 0, %s15
      %s19 = sphi 0, %s16
      %s20 = sphi 0, %s17
      %s21 = sphi 0, %s18
      %s22 = sphi 0, %s19
      %s23 = sphi 0, %s20
      %s39 = sphi 0, %s41
      %s42 = sphi 0, %s39
      %s43 = sphi 0, %s42
      %s59 = sphi 0, %s43
      %s67 = sphi 0, %s69
      %s70 = sphi 0, %s67
      %s71 = sphi 0, %s70
      %s87 = sphi 0, %s71
      %s95 = sphi 0, %s97
      %s98 = sphi 0, %s95
      %s99 = sphi 0, %s98
      %s115 = sphi 0, %s99
    $region4: #{mllama_vision_forward.27} parent=1 // loop_header_branch
      %11 = sbr.rel (%p9) target = $region8
    $region5: #{mllama_vision_forward.27} parent=1 // loop_body
      %s13 = ssub.s32 %s8, 1
      %s14 = ssub.s32 %s8, 2
      %s24 = sadd.s32 1, %s17
      %p25 = scmp.ge.s32.totalorder %s24, 1
      %s26 = scalar_select %p25, 0, %s24
      %s27 = sadd.s32 1, %s16
      %s28 = scalar_select %p25, %s27, %s16
      %p29 = scmp.ge.s32.totalorder %s28, 3
      %s30 = scalar_select %p29, 0, %s28
      %s31 = sadd.s32 1, %s15
      %s32 = scalar_select %p29, %s31, %s15
      %p33 = scmp.ge.s32.totalorder %s32, 1
      %s34 = scalar_select %p33, 0, %s32
      %s35 = ssub.s32 %s15, %s34
      %s36 = ssub.s32 %s17, %s26
      %s37 = sor.u32 %s35, %s36
      %p38 = scmp.eq.s32.totalorder %s37, 0
      %s40 = sadd.s32 %s39, 1
      %s41 = scalar_select %p38, %s39, %s40
      %p44 = pneg %p38
      %p45 = scmp.eq.s32.totalorder %s8, 2
      %p46 = por %p44, %p45
      %p47 = scmp.ne.s32.totalorder %s39, %s42
      %p48 = scmp.eq.s32.totalorder %s8, 0
      %p49 = por %p47, %p48
      %p50 = scmp.ne.s32.totalorder %s39, %s42
      %p51 = scmp.eq.s32.totalorder %s13, 2
      %p52 = por %p50, %p51
      %p53 = scmp.ne.s32.totalorder %s42, %s43
      %p54 = scmp.eq.s32.totalorder %s13, 0
      %p55 = por %p53, %p54
      %p56 = scmp.ne.s32.totalorder %s42, %s43
      %p57 = scmp.eq.s32.totalorder %s14, 2
      %p58 = por %p56, %p57
      %p60 = scmp.ne.s32.totalorder %s43, %s59
      %p61 = scmp.eq.s32.totalorder %s14, 0
      %p62 = por %p60, %p61
      %s63 = ssub.s32 %s17, %s26
      %s64 = ssub.s32 %s16, %s30
      %s65 = sor.u32 %s63, %s64
      %p66 = scmp.eq.s32.totalorder %s65, 0
      %s68 = sadd.s32 %s67, 1
      %s69 = scalar_select %p66, %s67, %s68
      %p72 = pneg %p66
      %p73 = scmp.eq.s32.totalorder %s8, 2
      %p74 = por %p72, %p73
      %p75 = scmp.ne.s32.totalorder %s67, %s70
      %p76 = scmp.eq.s32.totalorder %s8, 0
      %p77 = por %p75, %p76
      %p78 = scmp.ne.s32.totalorder %s67, %s70
      %p79 = scmp.eq.s32.totalorder %s13, 2
      %p80 = por %p78, %p79
      %p81 = scmp.ne.s32.totalorder %s70, %s71
      %p82 = scmp.eq.s32.totalorder %s13, 0
      %p83 = por %p81, %p82
      %p84 = scmp.ne.s32.totalorder %s70, %s71
      %p85 = scmp.eq.s32.totalorder %s14, 2
      %p86 = por %p84, %p85
      %p88 = scmp.ne.s32.totalorder %s71, %s87
      %p89 = scmp.eq.s32.totalorder %s14, 0
      %p90 = por %p88, %p89
      %s91 = ssub.s32 %s15, %s34
      %s92 = ssub.s32 %s16, %s30
      %s93 = sor.u32 %s91, %s92
      %p94 = scmp.eq.s32.totalorder %s93, 0
      %s96 = sadd.s32 %s95, 1
      %s97 = scalar_select %p94, %s95, %s96
      %p100 = pneg %p94
      %p101 = scmp.eq.s32.totalorder %s8, 2
      %p102 = por %p100, %p101
      %p103 = scmp.ne.s32.totalorder %s95, %s98
      %p104 = scmp.eq.s32.totalorder %s8, 0
      %p105 = por %p103, %p104
      %p106 = scmp.ne.s32.totalorder %s95, %s98
      %p107 = scmp.eq.s32.totalorder %s13, 2
      %p108 = por %p106, %p107
      %p109 = scmp.ne.s32.totalorder %s98, %s99
      %p110 = scmp.eq.s32.totalorder %s13, 0
      %p111 = por %p109, %p110
      %p112 = scmp.ne.s32.totalorder %s98, %s99
      %p113 = scmp.eq.s32.totalorder %s14, 2
      %p114 = por %p112, %p113
      %p116 = scmp.ne.s32.totalorder %s99, %s115
      %p117 = scmp.eq.s32.totalorder %s14, 0
      %p118 = por %p116, %p117
      %p119 = scmp.le.s32.totalorder 1, %s8
      %p120 = scmp.lt.s32.totalorder %s8, 4
      %p121 = pnand %p119, %p120
      %p122 = pneg %p121
      // Predicated region
      $region9: #{mllama_vision_forward.27} parent=5 // pred_check
        _
      $region10: #{mllama_vision_forward.27} parent=5 // pred_check_branch
        %124 = sbr.rel (%p121) target = $region12
      $region11: #{mllama_vision_forward.27} parent=5 // pred_region
        %s125 = ssub.s32 %s8, 1
        // Predicated region
        $region13: #{mllama_vision_forward.27} parent=11 // pred_check
          %p126 = pneg %p55
        $region14: #{mllama_vision_forward.27} parent=11 // pred_check_branch
          %128 = sbr.rel (%p126) target = $region16
        $region15: #{mllama_vision_forward.27} parent=11 // pred_region
          %s129 = smul.u32 6, %s18
          %s130 = smul.u32 2, %s20
          %p131 = scmp.lt.s32.totalorder %s129, 5
          %s132 = scalar_select %p131, %s129, 5
          %p133 = scmp.lt.s32.totalorder %s130, 1
          %s134 = scalar_select %p133, %s130, 1
          %s135 = smul.addr %s132, 2
          %s136 = sadd.s32 %s134, %s135
          %s137 = smul.addr %s136, 4
          %s138 = scalar_lea.vmem %s0, %s137
          %s139 = smul.u32 6, %s18
          %s140 = smul.u32 2, %s20
        $region16: #{mllama_vision_forward.27} parent=11 // pred_fallthru
          _
      $region12: #{mllama_vision_forward.27} parent=5 // pred_fallthru
        _
      %p141 = scmp.lt.s32.totalorder %s8, 3
      // Predicated region
      $region17: #{mllama_vision_forward.27} parent=5 // pred_check
        %p142 = pneg %p141
      $region18: #{mllama_vision_forward.27} parent=5 // pred_check_branch
        %144 = sbr.rel (%p142) target = $region20
      $region19: #{mllama_vision_forward.27} parent=5 // pred_region
        // Predicated region
        $region21: #{mllama_vision_forward.27} parent=19 // pred_check
          %p145 = pneg %p77
        $region22: #{mllama_vision_forward.27} parent=19 // pred_check_branch
          %147 = sbr.rel (%p145) target = $region24
        $region23: #{mllama_vision_forward.27} parent=19 // pred_region
          %s148 = sand.u32 %s67, 1
          %s149 = sand.u32 %s67, 1
          %s150 = smul.addr %s149, 256
          %s151 = scalar_lea.vmem [#allocation3], %s150
          %s152 = smul.u32 32, %s17
          %s153 = smul.u32 2, %s16
          %s154 = smul.addr %s152, 6
          %s155 = sadd.s32 %s153, %s154
          %s156 = smul.addr %s155, 4
          %s157 = scalar_lea.vmem %s1, %s156
          // Predicated region
          $region25: #{mllama_vision_forward.27} parent=23 // pred_check
            _
          $region26: #{mllama_vision_forward.27} parent=23 // pred_check_branch
            %159 = sbr.rel (0) target = $region28
          $region27: #{mllama_vision_forward.27} parent=23 // pred_region
            // Predicated region
            $region29: #{mllama_vision_forward.27} parent=27 // pred_check
              _
            $region30: #{mllama_vision_forward.27} parent=27 // pred_check_branch
              %161 = sbr.rel (0) target = $region32
            $region31: #{mllama_vision_forward.27} parent=27 // pred_region
              // Predicated region
              $region44: #{mllama_vision_forward.27} parent=31 // pred_check
                _
              $region45: #{mllama_vision_forward.27} parent=31 // pred_check_branch
                %238 = sbr.rel (0) target = $region47
              $region46: #{mllama_vision_forward.27} parent=31 // pred_region
                loop: start=0, step=1, limit=1
                $region48: #{mllama_vision_forward.27} parent=46 // loop_pre_header
                  _
                $region49: #{mllama_vision_forward.27} parent=46 // loop_header
                  %s240 = sphi 0, %s244
                  %p241 = scmp.ge.s32.totalorder %s240, 1
                  %s245 = sphi %s157, %s157
                  %s246 = sphi %s151, %s151
                $region50: #{mllama_vision_forward.27} parent=46 // loop_header_branch
                  %243 = sbr.rel (%p241) target = $region54
                $region51: #{mllama_vision_forward.27} parent=46 // loop_body
                  %v247 = vld [vmem:[%s245] sm:$0xff]
                  %248 = vst [vmem:[%s246] sm:$0xff] %v247
                  %v249 = vld [vmem:[%s245 + $0x18] sm:$0xff]
                  %250 = vst [vmem:[%s246 + $0x8] sm:$0xff] %v249
                  %v251 = vld [vmem:[%s245 + $0x30] sm:$0xff]
                  %252 = vst [vmem:[%s246 + $0x10] sm:$0xff] %v251
                  %v253 = vld [vmem:[%s245 + $0x48] sm:$0xff]
                  %254 = vst [vmem:[%s246 + $0x18] sm:$0xff] %v253
                  %v255 = vld [vmem:[%s245 + $0x60] sm:$0xff]
                  %256 = vst [vmem:[%s246 + $0x20] sm:$0xff] %v255
                  %v257 = vld [vmem:[%s245 + $0x78] sm:$0xff]
                  %258 = vst [vmem:[%s246 + $0x28] sm:$0xff] %v257
                  %v259 = vld [vmem:[%s245 + $0x90] sm:$0xff]
                  %260 = vst [vmem:[%s246 + $0x30] sm:$0xff] %v259
                  %v261 = vld [vmem:[%s245 + $0xa8] sm:$0xff]
                  %262 = vst [vmem:[%s246 + $0x38] sm:$0xff] %v261
                  %v263 = vld [vmem:[%s245 + $0xc0] sm:$0xff]
                  %264 = vst [vmem:[%s246 + $0x40] sm:$0xff] %v263
                  %v265 = vld [vmem:[%s245 + $0xd8] sm:$0xff]
                  %266 = vst [vmem:[%s246 + $0x48] sm:$0xff] %v265
                  %v267 = vld [vmem:[%s245 + $0xf0] sm:$0xff]
                  %268 = vst [vmem:[%s246 + $0x50] sm:$0xff] %v267
                  %v269 = vld [vmem:[%s245 + $0x108] sm:$0xff]
                  %270 = vst [vmem:[%s246 + $0x58] sm:$0xff] %v269
                  %v271 = vld [vmem:[%s245 + $0x120] sm:$0xff]
                  %272 = vst [vmem:[%s246 + $0x60] sm:$0xff] %v271
                  %v273 = vld [vmem:[%s245 + $0x138] sm:$0xff]
                  %274 = vst [vmem:[%s246 + $0x68] sm:$0xff] %v273
                  %v275 = vld [vmem:[%s245 + $0x150] sm:$0xff]
                  %276 = vst [vmem:[%s246 + $0x70] sm:$0xff] %v275
                  %v277 = vld [vmem:[%s245 + $0x168] sm:$0xff]
                  %278 = vst [vmem:[%s246 + $0x78] sm:$0xff] %v277
                  %v279 = vld [vmem:[%s245 + $0x180] sm:$0xff]
                  %280 = vst [vmem:[%s246 + $0x80] sm:$0xff] %v279
                  %v281 = vld [vmem:[%s245 + $0x198] sm:$0xff]
                  %282 = vst [vmem:[%s246 + $0x88] sm:$0xff] %v281
                  %v283 = vld [vmem:[%s245 + $0x1b0] sm:$0xff]
                  %284 = vst [vmem:[%s246 + $0x90] sm:$0xff] %v283
                  %v285 = vld [vmem:[%s245 + $0x1c8] sm:$0xff]
                  %286 = vst [vmem:[%s246 + $0x98] sm:$0xff] %v285
                  %v287 = vld [vmem:[%s245 + $0x1e0] sm:$0xff]
                  %288 = vst [vmem:[%s246 + $0xa0] sm:$0xff] %v287
                  %v289 = vld [vmem:[%s245 + $0x1f8] sm:$0xff]
                  %290 = vst [vmem:[%s246 + $0xa8] sm:$0xff] %v289
                  %v291 = vld [vmem:[%s245 + $0x210] sm:$0xff]
                  %292 = vst [vmem:[%s246 + $0xb0] sm:$0xff] %v291
                  %v293 = vld [vmem:[%s245 + $0x228] sm:$0xff]
                  %294 = vst [vmem:[%s246 + $0xb8] sm:$0xff] %v293
                  %v295 = vld [vmem:[%s245 + $0x240] sm:$0xff]
                  %296 = vst [vmem:[%s246 + $0xc0] sm:$0xff] %v295
                  %v297 = vld [vmem:[%s245 + $0x258] sm:$0xff]
                  %298 = vst [vmem:[%s246 + $0xc8] sm:$0xff] %v297
                  %v299 = vld [vmem:[%s245 + $0x270] sm:$0xff]
                  %300 = vst [vmem:[%s246 + $0xd0] sm:$0xff] %v299
                  %v301 = vld [vmem:[%s245 + $0x288] sm:$0xff]
                  %302 = vst [vmem:[%s246 + $0xd8] sm:$0xff] %v301
                  %v303 = vld [vmem:[%s245 + $0x2a0] sm:$0xff]
                  %304 = vst [vmem:[%s246 + $0xe0] sm:$0xff] %v303
                  %v305 = vld [vmem:[%s245 + $0x2b8] sm:$0xff]
                  %306 = vst [vmem:[%s246 + $0xe8] sm:$0xff] %v305
                  %v307 = vld [vmem:[%s245 + $0x2d0] sm:$0xff]
                  %308 = vst [vmem:[%s246 + $0xf0] sm:$0xff] %v307
                  %v309 = vld [vmem:[%s245 + $0x2e8] sm:$0xff]
                  %310 = vst [vmem:[%s246 + $0xf8] sm:$0xff] %v309
                $region52: #{mllama_vision_forward.27} parent=46 // loop_footer
                  %s244 = sadd.s32 1, %s240
                $region53: #{mllama_vision_forward.27} parent=46 // loop_footer_branch
                  %239 = sbr.rel target = $region49
                $region54: #{mllama_vision_forward.27} parent=46 // loop_exit
                  _
              $region47: #{mllama_vision_forward.27} parent=31 // pred_fallthru
                _
              // Predicated region
              $region55: #{mllama_vision_forward.27} parent=31 // pred_check
                _
              $region56: #{mllama_vision_forward.27} parent=31 // pred_check_branch
                %312 = sbr.rel target = $region58
              $region57: #{mllama_vision_forward.27} parent=31 // pred_region
                _
              $region58: #{mllama_vision_forward.27} parent=31 // pred_fallthru
                _
            $region32: #{mllama_vision_forward.27} parent=27 // pred_fallthru
              _
            // Predicated region
            $region33: #{mllama_vision_forward.27} parent=27 // pred_check
              _
            $region34: #{mllama_vision_forward.27} parent=27 // pred_check_branch
              %163 = sbr.rel target = $region36
            $region35: #{mllama_vision_forward.27} parent=27 // pred_region
              loop: start=0, step=1, limit=1
              $region37: #{mllama_vision_forward.27} parent=35 // loop_pre_header
                _
              $region38: #{mllama_vision_forward.27} parent=35 // loop_header
                %s166 = sphi 0, %s170
                %p167 = scmp.ge.s32.totalorder %s166, 1
                %s171 = sphi %s157, %s157
                %s172 = sphi %s151, %s151
              $region39: #{mllama_vision_forward.27} parent=35 // loop_header_branch
                %169 = sbr.rel (%p167) target = $region43
              $region40: #{mllama_vision_forward.27} parent=35 // loop_body
                %v173 = vld [vmem:[%s171] sm:$0xff]
                %174 = vst [vmem:[%s172] sm:$0xff] %v173
                %v175 = vld [vmem:[%s171 + $0x18] sm:$0xff]
                %176 = vst [vmem:[%s172 + $0x8] sm:$0xff] %v175
                %v177 = vld [vmem:[%s171 + $0x30] sm:$0xff]
                %178 = vst [vmem:[%s172 + $0x10] sm:$0xff] %v177
                %v179 = vld [vmem:[%s171 + $0x48] sm:$0xff]
                %180 = vst [vmem:[%s172 + $0x18] sm:$0xff] %v179
                %v181 = vld [vmem:[%s171 + $0x60] sm:$0xff]
                %182 = vst [vmem:[%s172 + $0x20] sm:$0xff] %v181
                %v183 = vld [vmem:[%s171 + $0x78] sm:$0xff]
                %184 = vst [vmem:[%s172 + $0x28] sm:$0xff] %v183
                %v185 = vld [vmem:[%s171 + $0x90] sm:$0xff]
                %186 = vst [vmem:[%s172 + $0x30] sm:$0xff] %v185
                %v187 = vld [vmem:[%s171 + $0xa8] sm:$0xff]
                %188 = vst [vmem:[%s172 + $0x38] sm:$0xff] %v187
                %v189 = vld [vmem:[%s171 + $0xc0] sm:$0xff]
                %190 = vst [vmem:[%s172 + $0x40] sm:$0xff] %v189
                %v191 = vld [vmem:[%s171 + $0xd8] sm:$0xff]
                %192 = vst [vmem:[%s172 + $0x48] sm:$0xff] %v191
                %v193 = vld [vmem:[%s171 + $0xf0] sm:$0xff]
                %194 = vst [vmem:[%s172 + $0x50] sm:$0xff] %v193
                %v195 = vld [vmem:[%s171 + $0x108] sm:$0xff]
                %196 = vst [vmem:[%s172 + $0x58] sm:$0xff] %v195
                %v197 = vld [vmem:[%s171 + $0x120] sm:$0xff]
                %198 = vst [vmem:[%s172 + $0x60] sm:$0xff] %v197
                %v199 = vld [vmem:[%s171 + $0x138] sm:$0xff]
                %200 = vst [vmem:[%s172 + $0x68] sm:$0xff] %v199
                %v201 = vld [vmem:[%s171 + $0x150] sm:$0xff]
                %202 = vst [vmem:[%s172 + $0x70] sm:$0xff] %v201
                %v203 = vld [vmem:[%s171 + $0x168] sm:$0xff]
                %204 = vst [vmem:[%s172 + $0x78] sm:$0xff] %v203
                %v205 = vld [vmem:[%s171 + $0x180] sm:$0xff]
                %206 = vst [vmem:[%s172 + $0x80] sm:$0xff] %v205
                %v207 = vld [vmem:[%s171 + $0x198] sm:$0xff]
                %208 = vst [vmem:[%s172 + $0x88] sm:$0xff] %v207
                %v209 = vld [vmem:[%s171 + $0x1b0] sm:$0xff]
                %210 = vst [vmem:[%s172 + $0x90] sm:$0xff] %v209
                %v211 = vld [vmem:[%s171 + $0x1c8] sm:$0xff]
                %212 = vst [vmem:[%s172 + $0x98] sm:$0xff] %v211
                %v213 = vld [vmem:[%s171 + $0x1e0] sm:$0xff]
                %214 = vst [vmem:[%s172 + $0xa0] sm:$0xff] %v213
                %v215 = vld [vmem:[%s171 + $0x1f8] sm:$0xff]
                %216 = vst [vmem:[%s172 + $0xa8] sm:$0xff] %v215
                %v217 = vld [vmem:[%s171 + $0x210] sm:$0xff]
                %218 = vst [vmem:[%s172 + $0xb0] sm:$0xff] %v217
                %v219 = vld [vmem:[%s171 + $0x228] sm:$0xff]
                %220 = vst [vmem:[%s172 + $0xb8] sm:$0xff] %v219
                %v221 = vld [vmem:[%s171 + $0x240] sm:$0xff]
                %222 = vst [vmem:[%s172 + $0xc0] sm:$0xff] %v221
                %v223 = vld [vmem:[%s171 + $0x258] sm:$0xff]
                %224 = vst [vmem:[%s172 + $0xc8] sm:$0xff] %v223
                %v225 = vld [vmem:[%s171 + $0x270] sm:$0xff]
                %226 = vst [vmem:[%s172 + $0xd0] sm:$0xff] %v225
                %v227 = vld [vmem:[%s171 + $0x288] sm:$0xff]
                %228 = vst [vmem:[%s172 + $0xd8] sm:$0xff] %v227
                %v229 = vld [vmem:[%s171 + $0x2a0] sm:$0xff]
                %230 = vst [vmem:[%s172 + $0xe0] sm:$0xff] %v229
                %v231 = vld [vmem:[%s171 + $0x2b8] sm:$0xff]
                %232 = vst [vmem:[%s172 + $0xe8] sm:$0xff] %v231
                %v233 = vld [vmem:[%s171 + $0x2d0] sm:$0xff]
                %234 = vst [vmem:[%s172 + $0xf0] sm:$0xff] %v233
                %v235 = vld [vmem:[%s171 + $0x2e8] sm:$0xff]
                %236 = vst [vmem:[%s172 + $0xf8] sm:$0xff] %v235
              $region41: #{mllama_vision_forward.27} parent=35 // loop_footer
                %s170 = sadd.s32 1, %s166
              $region42: #{mllama_vision_forward.27} parent=35 // loop_footer_branch
                %165 = sbr.rel target = $region38
              $region43: #{mllama_vision_forward.27} parent=35 // loop_exit
                _
            $region36: #{mllama_vision_forward.27} parent=27 // pred_fallthru
              _
          $region28: #{mllama_vision_forward.27} parent=23 // pred_fallthru
            _
          %313 = vnop
        $region24: #{mllama_vision_forward.27} parent=19 // pred_fallthru
          _
      $region20: #{mllama_vision_forward.27} parent=5 // pred_fallthru
        _
      %p314 = scmp.le.s32.totalorder 1, %s8
      %p315 = scmp.lt.s32.totalorder %s8, 4
      %p316 = pnand %p314, %p315
      %p317 = pneg %p316
      // Predicated region
      $region59: #{mllama_vision_forward.27} parent=5 // pred_check
        _
      $region60: #{mllama_vision_forward.27} parent=5 // pred_check_branch
        %319 = sbr.rel (%p316) target = $region62
      $region61: #{mllama_vision_forward.27} parent=5 // pred_region
        %s320 = ssub.s32 %s8, 1
        %s321 = sand.u32 %s70, 1
        %s322 = sand.u32 %s70, 1
        %s323 = smul.addr %s322, 256
        %s324 = scalar_lea.vmem [#allocation3], %s323
        // Predicated region
        $region63: #{mllama_vision_forward.27} parent=61 // pred_check
          %p325 = pneg %p83
        $region64: #{mllama_vision_forward.27} parent=61 // pred_check_branch
          %327 = sbr.rel (%p325) target = $region66
        $region65: #{mllama_vision_forward.27} parent=61 // pred_region
          _
        $region66: #{mllama_vision_forward.27} parent=61 // pred_fallthru
          _
        %s328 = smul.u32 6, %s18
        %s329 = smul.u32 2, %s20
        %p330 = scmp.lt.s32.totalorder %s328, 5
        %s331 = scalar_select %p330, %s328, 5
        %p332 = scmp.lt.s32.totalorder %s329, 1
        %s333 = scalar_select %p332, %s329, 1
        %s334 = smul.addr %s331, 2
        %s335 = sadd.s32 %s333, %s334
        %s336 = smul.addr %s335, 4
        %s337 = scalar_lea.vmem %s0, %s336
        %p338 = pneg %p55
        %p339 = pneg %p52
        %s340 = sand.u32 %s70, 1
        %s341 = sand.u32 %s70, 1
        %s342 = smul.addr %s341, 256
        %s343 = scalar_lea.vmem [#allocation3], %s342
        %p344 = pneg %p83
        %p345 = pneg %p80
        %p346 = pneg %p111
        %p347 = pneg %p108
        %s348 = sand.u32 %s98, 1
        %s349 = sand.u32 %s98, 1
        %s350 = smul.addr %s349, 48
        %s351 = scalar_lea.vmem [#allocation4], %s350
        %s352 = smul.u32 6, %s18
        %s353 = smul.u32 2, %s20
        %p354 = scmp.lt.s32.totalorder %s352, 5
        %s355 = scalar_select %p354, %s352, 5
        %p356 = scmp.lt.s32.totalorder %s353, 1
        %s357 = scalar_select %p356, %s353, 1
        %s358 = smul.addr %s355, 2
        %s359 = sadd.s32 %s357, %s358
        %s360 = smul.addr %s359, 4
        %s361 = scalar_lea.vmem %s0, %s360
        %s362 = smul.u32 6, %s18
        %s363 = smul.u32 2, %s20
        %s364 = smul.u32 32, %s20
        %s365 = smul.u32 2, %s19
        %s366 = smul.u32 6, %s18
        %s367 = smul.u32 2, %s19
        %p368 = scmp.eq.s32.totalorder %s20, 0
        // Predicated region
        $region67: #{mllama_vision_forward.27} parent=61 // pred_check
          %p369 = pneg %p368
        $region68: #{mllama_vision_forward.27} parent=61 // pred_check_branch
          %371 = sbr.rel (%p369) target = $region70
        $region69: #{mllama_vision_forward.27} parent=61 // pred_region
          %372 = vst [vmem:[#allocation2] sm:$0xff] 0.0
          %373 = vst [vmem:[#allocation2 + $0x8] sm:$0xff] 0.0
          %374 = vst [vmem:[#allocation2 + $0x10] sm:$0xff] 0.0
          %375 = vst [vmem:[#allocation2 + $0x18] sm:$0xff] 0.0
          %376 = vst [vmem:[#allocation2 + $0x20] sm:$0xff] 0.0
          %377 = vst [vmem:[#allocation2 + $0x28] sm:$0xff] 0.0
          %378 = vst [vmem:[#allocation2 + $0x30] sm:$0xff] 0.0
          %379 = vst [vmem:[#allocation2 + $0x38] sm:$0xff] 0.0
          %380 = vst [vmem:[#allocation2 + $0x40] sm:$0xff] 0.0
          %381 = vst [vmem:[#allocation2 + $0x48] sm:$0xff] 0.0
          %382 = vst [vmem:[#allocation2 + $0x50] sm:$0xff] 0.0
          %383 = vst [vmem:[#allocation2 + $0x58] sm:$0xff] 0.0
        $region70: #{mllama_vision_forward.27} parent=61 // pred_fallthru
          _
        %v384 = vld [vmem:[#allocation2] sm:$0xff]
        %v385 = vld [vmem:[#allocation2 + $0x8] sm:$0xff]
        %v386 = vld [vmem:[#allocation2 + $0x10] sm:$0xff]
        %v387 = vld [vmem:[#allocation2 + $0x18] sm:$0xff]
        %v388 = vld [vmem:[#allocation2 + $0x20] sm:$0xff]
        %v389 = vld [vmem:[#allocation2 + $0x28] sm:$0xff]
        %v390 = vld [vmem:[#allocation2 + $0x30] sm:$0xff]
        %v391 = vld [vmem:[#allocation2 + $0x38] sm:$0xff]
        %v392 = vld [vmem:[#allocation2 + $0x40] sm:$0xff]
        %v393 = vld [vmem:[#allocation2 + $0x48] sm:$0xff]
        %v394 = vld [vmem:[#allocation2 + $0x50] sm:$0xff]
        %v395 = vld [vmem:[#allocation2 + $0x58] sm:$0xff]
        %v396 = vld [vmem:[%s361] sm:$0xff]
        %v397 = vld [vmem:[%s361 + $0x8] sm:$0xff]
        %v398 = vld [vmem:[%s361 + $0x10] sm:$0xff]
        %v399 = vld [vmem:[%s361 + $0x18] sm:$0xff]
        %v400 = vld [vmem:[%s361 + $0x20] sm:$0xff]
        %v401 = vld [vmem:[%s361 + $0x28] sm:$0xff]
        %v402 = vld [vmem:[%s324] sm:$0xff]
        %v403 = vld [vmem:[%s324 + $0x8] sm:$0xff]
        %v404 = vld [vmem:[%s324 + $0x10] sm:$0xff]
        %v405 = vld [vmem:[%s324 + $0x18] sm:$0xff]
        %v406 = vld [vmem:[%s324 + $0x20] sm:$0xff]
        %v407 = vld [vmem:[%s324 + $0x28] sm:$0xff]
        %v408 = vld [vmem:[%s324 + $0x30] sm:$0xff]
        %v409 = vld [vmem:[%s324 + $0x38] sm:$0xff]
        %v410 = vld [vmem:[%s324 + $0x40] sm:$0xff]
        %v411 = vld [vmem:[%s324 + $0x48] sm:$0xff]
        %v412 = vld [vmem:[%s324 + $0x50] sm:$0xff]
        %v413 = vld [vmem:[%s324 + $0x58] sm:$0xff]
        %v414 = vld [vmem:[%s324 + $0x60] sm:$0xff]
        %v415 = vld [vmem:[%s324 + $0x68] sm:$0xff]
        %v416 = vld [vmem:[%s324 + $0x70] sm:$0xff]
        %v417 = vld [vmem:[%s324 + $0x78] sm:$0xff]
        %v418 = vld [vmem:[%s324 + $0x80] sm:$0xff]
        %v419 = vld [vmem:[%s324 + $0x88] sm:$0xff]
        %v420 = vld [vmem:[%s324 + $0x90] sm:$0xff]
        %v421 = vld [vmem:[%s324 + $0x98] sm:$0xff]
        %v422 = vld [vmem:[%s324 + $0xa0] sm:$0xff]
        %v423 = vld [vmem:[%s324 + $0xa8] sm:$0xff]
        %v424 = vld [vmem:[%s324 + $0xb0] sm:$0xff]
        %v425 = vld [vmem:[%s324 + $0xb8] sm:$0xff]
        %v426 = vld [vmem:[%s324 + $0xc0] sm:$0xff]
        %v427 = vld [vmem:[%s324 + $0xc8] sm:$0xff]
        %v428 = vld [vmem:[%s324 + $0xd0] sm:$0xff]
        %v429 = vld [vmem:[%s324 + $0xd8] sm:$0xff]
        %v430 = vld [vmem:[%s324 + $0xe0] sm:$0xff]
        %v431 = vld [vmem:[%s324 + $0xe8] sm:$0xff]
        %v432 = vld [vmem:[%s324 + $0xf0] sm:$0xff]
        %v433 = vld [vmem:[%s324 + $0xf8] sm:$0xff]
        %v440 = vunpack.c.l.b16 %v396
        %v441 = vunpack.c.h.b16 %v396
        %v442 = vunpack.c.l.b16 %v397
        %v443 = vunpack.c.h.b16 %v397
        %v444 = vunpack.c.l.b16 %v398
        %v445 = vunpack.c.h.b16 %v398
        %v446 = vunpack.c.l.b16 %v399
        %v447 = vunpack.c.h.b16 %v399
        %v448 = vunpack.c.l.b16 %v400
        %v449 = vunpack.c.h.b16 %v400
        %v450 = vunpack.c.l.b16 %v401
        %v451 = vunpack.c.h.b16 %v401
        %v452 = vpack.c.b16 %v442, %v440
        %v453 = vpack.c.b16 %v443, %v441
        %v454 = vpack.c.b16 %v446, %v444
        %v455 = vpack.c.b16 %v447, %v445
        %v456 = vpack.c.b16 %v450, %v448
        %v457 = vpack.c.b16 %v451, %v449
        %v496 = vunpack.c.l.b16 %v402
        %v497 = vunpack.c.h.b16 %v402
        %v498 = vunpack.c.l.b16 %v403
        %v499 = vunpack.c.h.b16 %v403
        %v500 = vunpack.c.l.b16 %v404
        %v501 = vunpack.c.h.b16 %v404
        %v502 = vunpack.c.l.b16 %v405
        %v503 = vunpack.c.h.b16 %v405
        %v504 = vunpack.c.l.b16 %v406
        %v505 = vunpack.c.h.b16 %v406
        %v506 = vunpack.c.l.b16 %v407
        %v507 = vunpack.c.h.b16 %v407
        %v508 = vunpack.c.l.b16 %v408
        %v509 = vunpack.c.h.b16 %v408
        %v510 = vunpack.c.l.b16 %v409
        %v511 = vunpack.c.h.b16 %v409
        %v512 = vunpack.c.l.b16 %v410
        %v513 = vunpack.c.h.b16 %v410
        %v514 = vunpack.c.l.b16 %v411
        %v515 = vunpack.c.h.b16 %v411
        %v516 = vunpack.c.l.b16 %v412
        %v517 = vunpack.c.h.b16 %v412
        %v518 = vunpack.c.l.b16 %v413
        %v519 = vunpack.c.h.b16 %v413
        %v520 = vunpack.c.l.b16 %v414
        %v521 = vunpack.c.h.b16 %v414
        %v522 = vunpack.c.l.b16 %v415
        %v523 = vunpack.c.h.b16 %v415
        %v524 = vunpack.c.l.b16 %v416
        %v525 = vunpack.c.h.b16 %v416
        %v526 = vunpack.c.l.b16 %v417
        %v527 = vunpack.c.h.b16 %v417
        %v528 = vunpack.c.l.b16 %v418
        %v529 = vunpack.c.h.b16 %v418
        %v530 = vunpack.c.l.b16 %v419
        %v531 = vunpack.c.h.b16 %v419
        %v532 = vunpack.c.l.b16 %v420
        %v533 = vunpack.c.h.b16 %v420
        %v534 = vunpack.c.l.b16 %v421
        %v535 = vunpack.c.h.b16 %v421
        %v536 = vunpack.c.l.b16 %v422
        %v537 = vunpack.c.h.b16 %v422
        %v538 = vunpack.c.l.b16 %v423
        %v539 = vunpack.c.h.b16 %v423
        %v540 = vunpack.c.l.b16 %v424
        %v541 = vunpack.c.h.b16 %v424
        %v542 = vunpack.c.l.b16 %v425
        %v543 = vunpack.c.h.b16 %v425
        %v544 = vunpack.c.l.b16 %v426
        %v545 = vunpack.c.h.b16 %v426
        %v546 = vunpack.c.l.b16 %v427
        %v547 = vunpack.c.h.b16 %v427
        %v548 = vunpack.c.l.b16 %v428
        %v549 = vunpack.c.h.b16 %v428
        %v550 = vunpack.c.l.b16 %v429
        %v551 = vunpack.c.h.b16 %v429
        %v552 = vunpack.c.l.b16 %v430
        %v553 = vunpack.c.h.b16 %v430
        %v554 = vunpack.c.l.b16 %v431
        %v555 = vunpack.c.h.b16 %v431
        %v556 = vunpack.c.l.b16 %v432
        %v557 = vunpack.c.h.b16 %v432
        %v558 = vunpack.c.l.b16 %v433
        %v559 = vunpack.c.h.b16 %v433
        %v560 = vpack.c.b16 %v498, %v496
        %v561 = vpack.c.b16 %v499, %v497
        %v562 = vpack.c.b16 %v502, %v500
        %v563 = vpack.c.b16 %v503, %v501
        %v564 = vpack.c.b16 %v506, %v504
        %v565 = vpack.c.b16 %v507, %v505
        %v566 = vpack.c.b16 %v510, %v508
        %v567 = vpack.c.b16 %v511, %v509
        %v568 = vpack.c.b16 %v514, %v512
        %v569 = vpack.c.b16 %v515, %v513
        %v570 = vpack.c.b16 %v518, %v516
        %v571 = vpack.c.b16 %v519, %v517
        %v572 = vpack.c.b16 %v522, %v520
        %v573 = vpack.c.b16 %v523, %v521
        %v574 = vpack.c.b16 %v526, %v524
        %v575 = vpack.c.b16 %v527, %v525
        %v576 = vpack.c.b16 %v530, %v528
        %v577 = vpack.c.b16 %v531, %v529
        %v578 = vpack.c.b16 %v534, %v532
        %v579 = vpack.c.b16 %v535, %v533
        %v580 = vpack.c.b16 %v538, %v536
        %v581 = vpack.c.b16 %v539, %v537
        %v582 = vpack.c.b16 %v542, %v540
        %v583 = vpack.c.b16 %v543, %v541
        %v584 = vpack.c.b16 %v546, %v544
        %v585 = vpack.c.b16 %v547, %v545
        %v586 = vpack.c.b16 %v550, %v548
        %v587 = vpack.c.b16 %v551, %v549
        %v588 = vpack.c.b16 %v554, %v552
        %v589 = vpack.c.b16 %v555, %v553
        %v590 = vpack.c.b16 %v558, %v556
        %v591 = vpack.c.b16 %v559, %v557
        %624 = vmatprep.subr.bf16.mxu0 %v561
        %625 = vmatpush1.bf16.msra.mxu0 %v560
        %626 = vmatprep.subr.bf16.mxu0 %v563
        %627 = vmatpush1.bf16.msra.mxu0 %v562
        %628 = vmatprep.subr.bf16.mxu0 %v565
        %629 = vmatpush1.bf16.msra.mxu0 %v564
        %630 = vmatprep.subr.bf16.mxu0 %v567
        %631 = vmatpush1.bf16.msra.mxu0 %v566
        %632 = vmatprep.subr.bf16.mxu0 %v569
        %633 = vmatpush1.bf16.msra.mxu0 %v568
        %634 = vmatprep.subr.bf16.mxu0 %v571
        %635 = vmatpush1.bf16.msra.mxu0 %v570
        %636 = vmatprep.subr.bf16.mxu0 %v573
        %637 = vmatpush1.bf16.msra.mxu0 %v572
        %638 = vmatprep.subr.bf16.mxu0 %v575
        %639 = vmatpush1.bf16.msra.mxu0 %v574
        %640 = vmatprep.subr.bf16.mxu0 %v577
        %641 = vmatpush1.bf16.msra.mxu0 %v576
        %642 = vmatprep.subr.bf16.mxu0 %v579
        %643 = vmatpush1.bf16.msra.mxu0 %v578
        %644 = vmatprep.subr.bf16.mxu0 %v581
        %645 = vmatpush1.bf16.msra.mxu0 %v580
        %646 = vmatprep.subr.bf16.mxu0 %v583
        %647 = vmatpush1.bf16.msra.mxu0 %v582
        %648 = vmatprep.subr.bf16.mxu0 %v585
        %649 = vmatpush1.bf16.msra.mxu0 %v584
        %650 = vmatprep.subr.bf16.mxu0 %v587
        %651 = vmatpush1.bf16.msra.mxu0 %v586
        %652 = vmatprep.subr.bf16.mxu0 %v589
        %653 = vmatpush1.bf16.msra.mxu0 %v588
        %654 = vmatprep.subr.bf16.mxu0 %v591
        %655 = vmatpush1.bf16.msra.mxu0 %v590
        %656 = vmatprep.mubr.bf16.mxu0 %v453
        %657 = vmatmul.mubr.bf16.gmra.mrb[0].mxu0 %v452
        %v658 = vpop.f32.mrb[0].mxu0
        %v659 = vadd.f32 0.0, %v658
        %v660 = vpop.f32.mrb[0].mxu0
        %v661 = vadd.f32 0.0, %v660
        %v662 = vpop.f32.mrb[0].mxu0
        %v663 = vadd.f32 0.0, %v662
        %v664 = vpop.f32.mrb[0].mxu0
        %v665 = vadd.f32 0.0, %v664
        %666 = vmatprep.mubr.bf16.mxu0 %v455
        %667 = vmatmul.mubr.bf16.gmra.mrb[0].mxu0 %v454
        %v668 = vpop.f32.mrb[0].mxu0
        %v669 = vadd.f32 0.0, %v668
        %v670 = vpop.f32.mrb[0].mxu0
        %v671 = vadd.f32 0.0, %v670
        %v672 = vpop.f32.mrb[0].mxu0
        %v673 = vadd.f32 0.0, %v672
        %v674 = vpop.f32.mrb[0].mxu0
        %v675 = vadd.f32 0.0, %v674
        %676 = vmatprep.mubr.bf16.mxu0 %v457
        %677 = vmatmul.mubr.bf16.gmra.mrb[0].mxu0 %v456
        %v678 = vpop.f32.mrb[0].mxu0
        %v679 = vadd.f32 0.0, %v678
        %v680 = vpop.f32.mrb[0].mxu0
        %v681 = vadd.f32 0.0, %v680
        %v682 = vpop.f32.mrb[0].mxu0
        %v683 = vadd.f32 0.0, %v682
        %v684 = vpop.f32.mrb[0].mxu0
        %v685 = vadd.f32 0.0, %v684
        %686 = vdwg.mxu0
        %v687 = vadd.f32 %v384, %v659
        %v688 = vadd.f32 %v385, %v661
        %v689 = vadd.f32 %v386, %v663
        %v690 = vadd.f32 %v387, %v665
        %v691 = vadd.f32 %v388, %v669
        %v692 = vadd.f32 %v389, %v671
        %v693 = vadd.f32 %v390, %v673
        %v694 = vadd.f32 %v391, %v675
        %v695 = vadd.f32 %v392, %v679
        %v696 = vadd.f32 %v393, %v681
        %v697 = vadd.f32 %v394, %v683
        %v698 = vadd.f32 %v395, %v685
        %699 = vst [vmem:[#allocation2] sm:$0xff] %v687
        %700 = vst [vmem:[#allocation2 + $0x8] sm:$0xff] %v688
        %701 = vst [vmem:[#allocation2 + $0x10] sm:$0xff] %v689
        %702 = vst [vmem:[#allocation2 + $0x18] sm:$0xff] %v690
        %703 = vst [vmem:[#allocation2 + $0x20] sm:$0xff] %v691
        %704 = vst [vmem:[#allocation2 + $0x28] sm:$0xff] %v692
        %705 = vst [vmem:[#allocation2 + $0x30] sm:$0xff] %v693
        %706 = vst [vmem:[#allocation2 + $0x38] sm:$0xff] %v694
        %707 = vst [vmem:[#allocation2 + $0x40] sm:$0xff] %v695
        %708 = vst [vmem:[#allocation2 + $0x48] sm:$0xff] %v696
        %709 = vst [vmem:[#allocation2 + $0x50] sm:$0xff] %v697
        %710 = vst [vmem:[#allocation2 + $0x58] sm:$0xff] %v698
        // Predicated region
        $region71: #{mllama_vision_forward.27} parent=61 // pred_check
          %p711 = pneg %p368
        $region72: #{mllama_vision_forward.27} parent=61 // pred_check_branch
          %713 = sbr.rel (%p711) target = $region74
        $region73: #{mllama_vision_forward.27} parent=61 // pred_region
          %v714 = vld [vmem:[#allocation2] sm:$0xff]
          %v715 = vld [vmem:[#allocation2 + $0x8] sm:$0xff]
          %v716 = vld [vmem:[#allocation2 + $0x10] sm:$0xff]
          %v717 = vld [vmem:[#allocation2 + $0x18] sm:$0xff]
          %v718 = vld [vmem:[#allocation2 + $0x20] sm:$0xff]
          %v719 = vld [vmem:[#allocation2 + $0x28] sm:$0xff]
          %v720 = vld [vmem:[#allocation2 + $0x30] sm:$0xff]
          %v721 = vld [vmem:[#allocation2 + $0x38] sm:$0xff]
          %v722 = vld [vmem:[#allocation2 + $0x40] sm:$0xff]
          %v723 = vld [vmem:[#allocation2 + $0x48] sm:$0xff]
          %v724 = vld [vmem:[#allocation2 + $0x50] sm:$0xff]
          %v725 = vld [vmem:[#allocation2 + $0x58] sm:$0xff]
          %v726 = vpack.c.bf16 %v716, %v714
          %v727 = vpack.c.bf16 %v717, %v715
          %v728 = vpack.c.bf16 %v720, %v718
          %v729 = vpack.c.bf16 %v721, %v719
          %v730 = vpack.c.bf16 %v724, %v722
          %v731 = vpack.c.bf16 %v725, %v723
          %v738 = vunpack.c.l.b16 %v726
          %v739 = vunpack.c.l.b16 %v727
          %v740 = vunpack.c.h.b16 %v726
          %v741 = vunpack.c.h.b16 %v727
          %v742 = vunpack.c.l.b16 %v728
          %v743 = vunpack.c.l.b16 %v729
          %v744 = vunpack.c.h.b16 %v728
          %v745 = vunpack.c.h.b16 %v729
          %v746 = vunpack.c.l.b16 %v730
          %v747 = vunpack.c.l.b16 %v731
          %v748 = vunpack.c.h.b16 %v730
          %v749 = vunpack.c.h.b16 %v731
          %v750 = vpack.c.b16 %v739, %v738
          %v751 = vpack.c.b16 %v741, %v740
          %v752 = vpack.c.b16 %v743, %v742
          %v753 = vpack.c.b16 %v745, %v744
          %v754 = vpack.c.b16 %v747, %v746
          %v755 = vpack.c.b16 %v749, %v748
          %762 = vst [vmem:[%s351] sm:$0xff] %v750
          %763 = vst [vmem:[%s351 + $0x8] sm:$0xff] %v751
          %764 = vst [vmem:[%s351 + $0x10] sm:$0xff] %v752
          %765 = vst [vmem:[%s351 + $0x18] sm:$0xff] %v753
          %766 = vst [vmem:[%s351 + $0x20] sm:$0xff] %v754
          %767 = vst [vmem:[%s351 + $0x28] sm:$0xff] %v755
        $region74: #{mllama_vision_forward.27} parent=61 // pred_fallthru
          _
        %s768 = sand.u32 %s98, 1
        %s769 = sand.u32 %s98, 1
        %s770 = smul.addr %s769, 48
        %s771 = scalar_lea.vmem [#allocation4], %s770
        // Predicated region
        $region75: #{mllama_vision_forward.27} parent=61 // pred_check
          %p772 = pneg %p108
        $region76: #{mllama_vision_forward.27} parent=61 // pred_check_branch
          %774 = sbr.rel (%p772) target = $region78
        $region77: #{mllama_vision_forward.27} parent=61 // pred_region
          %s775 = smul.u32 6, %s18
          %s776 = smul.u32 2, %s19
          %s777 = smul.addr %s775, 6
          %s778 = sadd.s32 %s776, %s777
          %s779 = smul.addr %s778, 4
          %s780 = scalar_lea.vmem %s2, %s779
          // Predicated region
          $region79: #{mllama_vision_forward.27} parent=77 // pred_check
            _
          $region80: #{mllama_vision_forward.27} parent=77 // pred_check_branch
            %782 = sbr.rel (0) target = $region82
          $region81: #{mllama_vision_forward.27} parent=77 // pred_region
            // Predicated region
            $region83: #{mllama_vision_forward.27} parent=81 // pred_check
              _
            $region84: #{mllama_vision_forward.27} parent=81 // pred_check_branch
              %784 = sbr.rel (0) target = $region86
            $region85: #{mllama_vision_forward.27} parent=81 // pred_region
              // Predicated region
              $region98: #{mllama_vision_forward.27} parent=85 // pred_check
                _
              $region99: #{mllama_vision_forward.27} parent=85 // pred_check_branch
                %809 = sbr.rel (0) target = $region101
              $region100: #{mllama_vision_forward.27} parent=85 // pred_region
                loop: start=0, step=1, limit=1
                $region102: #{mllama_vision_forward.27} parent=100 // loop_pre_header
                  _
                $region103: #{mllama_vision_forward.27} parent=100 // loop_header
                  %s811 = sphi 0, %s815
                  %p812 = scmp.ge.s32.totalorder %s811, 1
                  %s816 = sphi %s771, %s771
                  %s817 = sphi %s780, %s780
                $region104: #{mllama_vision_forward.27} parent=100 // loop_header_branch
                  %814 = sbr.rel (%p812) target = $region108
                $region105: #{mllama_vision_forward.27} parent=100 // loop_body
                  %v818 = vld [vmem:[%s816] sm:$0xff]
                  %819 = vst [vmem:[%s817] sm:$0xff] %v818
                  %v820 = vld [vmem:[%s816 + $0x8] sm:$0xff]
                  %821 = vst [vmem:[%s817 + $0x18] sm:$0xff] %v820
                  %v822 = vld [vmem:[%s816 + $0x10] sm:$0xff]
                  %823 = vst [vmem:[%s817 + $0x30] sm:$0xff] %v822
                  %v824 = vld [vmem:[%s816 + $0x18] sm:$0xff]
                  %825 = vst [vmem:[%s817 + $0x48] sm:$0xff] %v824
                  %v826 = vld [vmem:[%s816 + $0x20] sm:$0xff]
                  %827 = vst [vmem:[%s817 + $0x60] sm:$0xff] %v826
                  %v828 = vld [vmem:[%s816 + $0x28] sm:$0xff]
                  %829 = vst [vmem:[%s817 + $0x78] sm:$0xff] %v828
                $region106: #{mllama_vision_forward.27} parent=100 // loop_footer
                  %s815 = sadd.s32 1, %s811
                $region107: #{mllama_vision_forward.27} parent=100 // loop_footer_branch
                  %810 = sbr.rel target = $region103
                $region108: #{mllama_vision_forward.27} parent=100 // loop_exit
                  _
              $region101: #{mllama_vision_forward.27} parent=85 // pred_fallthru
                _
              // Predicated region
              $region109: #{mllama_vision_forward.27} parent=85 // pred_check
                _
              $region110: #{mllama_vision_forward.27} parent=85 // pred_check_branch
                %831 = sbr.rel target = $region112
              $region111: #{mllama_vision_forward.27} parent=85 // pred_region
                _
              $region112: #{mllama_vision_forward.27} parent=85 // pred_fallthru
                _
            $region86: #{mllama_vision_forward.27} parent=81 // pred_fallthru
              _
            // Predicated region
            $region87: #{mllama_vision_forward.27} parent=81 // pred_check
              _
            $region88: #{mllama_vision_forward.27} parent=81 // pred_check_branch
              %786 = sbr.rel target = $region90
            $region89: #{mllama_vision_forward.27} parent=81 // pred_region
              loop: start=0, step=1, limit=1
              $region91: #{mllama_vision_forward.27} parent=89 // loop_pre_header
                _
              $region92: #{mllama_vision_forward.27} parent=89 // loop_header
                %s789 = sphi 0, %s793
                %p790 = scmp.ge.s32.totalorder %s789, 1
                %s794 = sphi %s771, %s771
                %s795 = sphi %s780, %s780
              $region93: #{mllama_vision_forward.27} parent=89 // loop_header_branch
                %792 = sbr.rel (%p790) target = $region97
              $region94: #{mllama_vision_forward.27} parent=89 // loop_body
                %v796 = vld [vmem:[%s794] sm:$0xff]
                %797 = vst [vmem:[%s795] sm:$0xff] %v796
                %v798 = vld [vmem:[%s794 + $0x8] sm:$0xff]
                %799 = vst [vmem:[%s795 + $0x18] sm:$0xff] %v798
                %v800 = vld [vmem:[%s794 + $0x10] sm:$0xff]
                %801 = vst [vmem:[%s795 + $0x30] sm:$0xff] %v800
                %v802 = vld [vmem:[%s794 + $0x18] sm:$0xff]
                %803 = vst [vmem:[%s795 + $0x48] sm:$0xff] %v802
                %v804 = vld [vmem:[%s794 + $0x20] sm:$0xff]
                %805 = vst [vmem:[%s795 + $0x60] sm:$0xff] %v804
                %v806 = vld [vmem:[%s794 + $0x28] sm:$0xff]
                %807 = vst [vmem:[%s795 + $0x78] sm:$0xff] %v806
              $region95: #{mllama_vision_forward.27} parent=89 // loop_footer
                %s793 = sadd.s32 1, %s789
              $region96: #{mllama_vision_forward.27} parent=89 // loop_footer_branch
                %788 = sbr.rel target = $region92
              $region97: #{mllama_vision_forward.27} parent=89 // loop_exit
                _
            $region90: #{mllama_vision_forward.27} parent=81 // pred_fallthru
              _
          $region82: #{mllama_vision_forward.27} parent=77 // pred_fallthru
            _
          %832 = vnop
        $region78: #{mllama_vision_forward.27} parent=61 // pred_fallthru
          _
      $region62: #{mllama_vision_forward.27} parent=5 // pred_fallthru
        _
      %p833 = scmp.le.s32.totalorder 2, %s8
      // Predicated region
      $region113: #{mllama_vision_forward.27} parent=5 // pred_check
        %p834 = pneg %p833
      $region114: #{mllama_vision_forward.27} parent=5 // pred_check_branch
        %836 = sbr.rel (%p834) target = $region116
      $region115: #{mllama_vision_forward.27} parent=5 // pred_region
        %s837 = ssub.s32 %s8, 2
        // Predicated region
        $region117: #{mllama_vision_forward.27} parent=115 // pred_check
          %p838 = pneg %p114
        $region118: #{mllama_vision_forward.27} parent=115 // pred_check_branch
          %840 = sbr.rel (%p838) target = $region120
        $region119: #{mllama_vision_forward.27} parent=115 // pred_region
          %s841 = sand.u32 %s99, 1
          %s842 = sand.u32 %s99, 1
          %s843 = smul.addr %s842, 48
          %s844 = scalar_lea.vmem [#allocation4], %s843
        $region120: #{mllama_vision_forward.27} parent=115 // pred_fallthru
          _
      $region116: #{mllama_vision_forward.27} parent=5 // pred_fallthru
        _
    $region6: #{mllama_vision_forward.27} parent=1 // loop_footer
      %s12 = sadd.s32 1, %s8
    $region7: #{mllama_vision_forward.27} parent=1 // loop_footer_branch
      %7 = sbr.rel target = $region3
    $region8: #{mllama_vision_forward.27} parent=1 // loop_exit
      _

// kernel: mllama_vision_forward.29
$region0: #{mllama_vision_forward.29}
  #allocation0 [shape = 'u32[]', space=smem, size = 0x4, offset = 0x4, fixed_abs, tag = 'smem constant byte address 0x4 - core index']
  #allocation1 [shape = 'u32[144,128]{1,0:T(1,128)}', space=vmem, size = 0x12000, scoped, tag = 'internal scratch']
  #allocation2 [shape = 'f32[48,256]{1,0:T(8,128)}', space=vmem, size = 0xc000, scoped, tag = 'scratch operand']
  #allocation3 [shape = 'f32[1]{0:T(128)S(6)}', space=smem, size = 0x200, scoped, tag = 'scoped memory for mllama_vision_forward.29']
  %s0 = inlined_call_operand.vmem [shape: bf16[48,256], index: 0, kind: input, shape index: {}]
  %s1 = inlined_call_operand.vmem [shape: bf16[256,256], index: 1, kind: input, shape index: {}]
  %s2 = inlined_call_operand.vmem [shape: bf16[48,256], index: 2, kind: input, shape index: {}]
  %s3 = inlined_call_operand.<no memory space> [shape: f32[1], index: 3, kind: input, shape index: {}]
  %s4 = inlined_call_operand.vmem [shape: bf16[48,256], index: 4, kind: output, shape index: {}]
  %s5 = sld [smem:[#allocation0]]
  $region34: #{mllama_vision_forward.29} parent=0
    _
  %s7 = ssub.s32 1, %s5
  %s8 = scalar_select 0, %s7, %s5
  %9 = sst [smem:[#allocation3]] %s3
  // Predicated region
  $region2: #{mllama_vision_forward.29} parent=0 // pred_check
    _
  $region3: #{mllama_vision_forward.29} parent=0 // pred_check_branch
    %11 = sbr.rel (0) target = $region5
  $region4: #{mllama_vision_forward.29} parent=0 // pred_region
    _
  $region5: #{mllama_vision_forward.29} parent=0 // pred_fallthru
    _
  // Predicated region
  $region6: #{mllama_vision_forward.29} parent=0 // pred_check
    _
  $region7: #{mllama_vision_forward.29} parent=0 // pred_check_branch
    %13 = sbr.rel (0) target = $region9
  $region8: #{mllama_vision_forward.29} parent=0 // pred_region
    _
  $region9: #{mllama_vision_forward.29} parent=0 // pred_fallthru
    _
  // Predicated region
  $region10: #{mllama_vision_forward.29} parent=0 // pred_check
    _
  $region11: #{mllama_vision_forward.29} parent=0 // pred_check_branch
    %15 = sbr.rel (0) target = $region13
  $region12: #{mllama_vision_forward.29} parent=0 // pred_region
    _
  $region13: #{mllama_vision_forward.29} parent=0 // pred_fallthru
    _
  // Predicated region
  $region14: #{mllama_vision_forward.29} parent=0 // pred_check
    _
  $region15: #{mllama_vision_forward.29} parent=0 // pred_check_branch
    %17 = sbr.rel (0) target = $region17
  $region16: #{mllama_vision_forward.29} parent=0 // pred_region
    _
  $region17: #{mllama_vision_forward.29} parent=0 // pred_fallthru
    _
  %p18 = scmp.eq.s32.totalorder 0, 0
  // Predicated region
  $region18: #{mllama_vision_forward.29} parent=0 // pred_check
    %p19 = pneg %p18
  $region19: #{mllama_vision_forward.29} parent=0 // pred_check_branch
    %21 = sbr.rel (%p19) target = $region21
  $region20: #{mllama_vision_forward.29} parent=0 // pred_region
    %22 = vst [vmem:[#allocation2] sm:$0xff] 0.0
    %23 = vst [vmem:[#allocation2 + $0x8] sm:$0xff] 0.0
    %24 = vst [vmem:[#allocation2 + $0x10] sm:$0xff] 0.0
    %25 = vst [vmem:[#allocation2 + $0x18] sm:$0xff] 0.0
    %26 = vst [vmem:[#allocation2 + $0x20] sm:$0xff] 0.0
    %27 = vst [vmem:[#allocation2 + $0x28] sm:$0xff] 0.0
    %28 = vst [vmem:[#allocation2 + $0x30] sm:$0xff] 0.0
    %29 = vst [vmem:[#allocation2 + $0x38] sm:$0xff] 0.0
    %30 = vst [vmem:[#allocation2 + $0x40] sm:$0xff] 0.0
    %31 = vst [vmem:[#allocation2 + $0x48] sm:$0xff] 0.0
    %32 = vst [vmem:[#allocation2 + $0x50] sm:$0xff] 0.0
    %33 = vst [vmem:[#allocation2 + $0x58] sm:$0xff] 0.0
  $region21: #{mllama_vision_forward.29} parent=0 // pred_fallthru
    _
  %v34 = vld [vmem:[#allocation2] sm:$0xff]
  %v35 = vld [vmem:[#allocation2 + $0x8] sm:$0xff]
  %v36 = vld [vmem:[#allocation2 + $0x10] sm:$0xff]
  %v37 = vld [vmem:[#allocation2 + $0x18] sm:$0xff]
  %v38 = vld [vmem:[#allocation2 + $0x20] sm:$0xff]
  %v39 = vld [vmem:[#allocation2 + $0x28] sm:$0xff]
  %v40 = vld [vmem:[#allocation2 + $0x30] sm:$0xff]
  %v41 = vld [vmem:[#allocation2 + $0x38] sm:$0xff]
  %v42 = vld [vmem:[#allocation2 + $0x40] sm:$0xff]
  %v43 = vld [vmem:[#allocation2 + $0x48] sm:$0xff]
  %v44 = vld [vmem:[#allocation2 + $0x50] sm:$0xff]
  %v45 = vld [vmem:[#allocation2 + $0x58] sm:$0xff]
  %v46 = vld [vmem:[%s0] sm:$0xff]
  %v47 = vld [vmem:[%s0 + $0x8] sm:$0xff]
  %v48 = vld [vmem:[%s0 + $0x10] sm:$0xff]
  %v49 = vld [vmem:[%s0 + $0x18] sm:$0xff]
  %v50 = vld [vmem:[%s0 + $0x20] sm:$0xff]
  %v51 = vld [vmem:[%s0 + $0x28] sm:$0xff]
  %v52 = vld [vmem:[%s1] sm:$0xff]
  %v53 = vld [vmem:[%s1 + $0x8] sm:$0xff]
  %v54 = vld [vmem:[%s1 + $0x10] sm:$0xff]
  %v55 = vld [vmem:[%s1 + $0x18] sm:$0xff]
  %v56 = vld [vmem:[%s1 + $0x20] sm:$0xff]
  %v57 = vld [vmem:[%s1 + $0x28] sm:$0xff]
  %v58 = vld [vmem:[%s1 + $0x30] sm:$0xff]
  %v59 = vld [vmem:[%s1 + $0x38] sm:$0xff]
  %v60 = vld [vmem:[%s1 + $0x40] sm:$0xff]
  %v61 = vld [vmem:[%s1 + $0x48] sm:$0xff]
  %v62 = vld [vmem:[%s1 + $0x50] sm:$0xff]
  %v63 = vld [vmem:[%s1 + $0x58] sm:$0xff]
  %v64 = vld [vmem:[%s1 + $0x60] sm:$0xff]
  %v65 = vld [vmem:[%s1 + $0x68] sm:$0xff]
  %v66 = vld [vmem:[%s1 + $0x70] sm:$0xff]
  %v67 = vld [vmem:[%s1 + $0x78] sm:$0xff]
  %v68 = vld [vmem:[%s1 + $0x80] sm:$0xff]
  %v69 = vld [vmem:[%s1 + $0x88] sm:$0xff]
  %v70 = vld [vmem:[%s1 + $0x90] sm:$0xff]
  %v71 = vld [vmem:[%s1 + $0x98] sm:$0xff]
  %v72 = vld [vmem:[%s1 + $0xa0] sm:$0xff]
  %v73 = vld [vmem:[%s1 + $0xa8] sm:$0xff]
  %v74 = vld [vmem:[%s1 + $0xb0] sm:$0xff]
  %v75 = vld [vmem:[%s1 + $0xb8] sm:$0xff]
  %v76 = vld [vmem:[%s1 + $0xc0] sm:$0xff]
  %v77 = vld [vmem:[%s1 + $0xc8] sm:$0xff]
  %v78 = vld [vmem:[%s1 + $0xd0] sm:$0xff]
  %v79 = vld [vmem:[%s1 + $0xd8] sm:$0xff]
  %v80 = vld [vmem:[%s1 + $0xe0] sm:$0xff]
  %v81 = vld [vmem:[%s1 + $0xe8] sm:$0xff]
  %v82 = vld [vmem:[%s1 + $0xf0] sm:$0xff]
  %v83 = vld [vmem:[%s1 + $0xf8] sm:$0xff]
  %v90 = vunpack.c.l.b16 %v46
  %v91 = vunpack.c.h.b16 %v46
  %v92 = vunpack.c.l.b16 %v47
  %v93 = vunpack.c.h.b16 %v47
  %v94 = vunpack.c.l.b16 %v48
  %v95 = vunpack.c.h.b16 %v48
  %v96 = vunpack.c.l.b16 %v49
  %v97 = vunpack.c.h.b16 %v49
  %v98 = vunpack.c.l.b16 %v50
  %v99 = vunpack.c.h.b16 %v50
  %v100 = vunpack.c.l.b16 %v51
  %v101 = vunpack.c.h.b16 %v51
  %v102 = vpack.c.b16 %v92, %v90
  %v103 = vpack.c.b16 %v93, %v91
  %v104 = vpack.c.b16 %v96, %v94
  %v105 = vpack.c.b16 %v97, %v95
  %v106 = vpack.c.b16 %v100, %v98
  %v107 = vpack.c.b16 %v101, %v99
  %v146 = vunpack.c.l.b16 %v52
  %v147 = vunpack.c.h.b16 %v52
  %v148 = vunpack.c.l.b16 %v53
  %v149 = vunpack.c.h.b16 %v53
  %v150 = vunpack.c.l.b16 %v54
  %v151 = vunpack.c.h.b16 %v54
  %v152 = vunpack.c.l.b16 %v55
  %v153 = vunpack.c.h.b16 %v55
  %v154 = vunpack.c.l.b16 %v56
  %v155 = vunpack.c.h.b16 %v56
  %v156 = vunpack.c.l.b16 %v57
  %v157 = vunpack.c.h.b16 %v57
  %v158 = vunpack.c.l.b16 %v58
  %v159 = vunpack.c.h.b16 %v58
  %v160 = vunpack.c.l.b16 %v59
  %v161 = vunpack.c.h.b16 %v59
  %v162 = vunpack.c.l.b16 %v60
  %v163 = vunpack.c.h.b16 %v60
  %v164 = vunpack.c.l.b16 %v61
  %v165 = vunpack.c.h.b16 %v61
  %v166 = vunpack.c.l.b16 %v62
  %v167 = vunpack.c.h.b16 %v62
  %v168 = vunpack.c.l.b16 %v63
  %v169 = vunpack.c.h.b16 %v63
  %v170 = vunpack.c.l.b16 %v64
  %v171 = vunpack.c.h.b16 %v64
  %v172 = vunpack.c.l.b16 %v65
  %v173 = vunpack.c.h.b16 %v65
  %v174 = vunpack.c.l.b16 %v66
  %v175 = vunpack.c.h.b16 %v66
  %v176 = vunpack.c.l.b16 %v67
  %v177 = vunpack.c.h.b16 %v67
  %v178 = vunpack.c.l.b16 %v68
  %v179 = vunpack.c.h.b16 %v68
  %v180 = vunpack.c.l.b16 %v69
  %v181 = vunpack.c.h.b16 %v69
  %v182 = vunpack.c.l.b16 %v70
  %v183 = vunpack.c.h.b16 %v70
  %v184 = vunpack.c.l.b16 %v71
  %v185 = vunpack.c.h.b16 %v71
  %v186 = vunpack.c.l.b16 %v72
  %v187 = vunpack.c.h.b16 %v72
  %v188 = vunpack.c.l.b16 %v73
  %v189 = vunpack.c.h.b16 %v73
  %v190 = vunpack.c.l.b16 %v74
  %v191 = vunpack.c.h.b16 %v74
  %v192 = vunpack.c.l.b16 %v75
  %v193 = vunpack.c.h.b16 %v75
  %v194 = vunpack.c.l.b16 %v76
  %v195 = vunpack.c.h.b16 %v76
  %v196 = vunpack.c.l.b16 %v77
  %v197 = vunpack.c.h.b16 %v77
  %v198 = vunpack.c.l.b16 %v78
  %v199 = vunpack.c.h.b16 %v78
  %v200 = vunpack.c.l.b16 %v79
  %v201 = vunpack.c.h.b16 %v79
  %v202 = vunpack.c.l.b16 %v80
  %v203 = vunpack.c.h.b16 %v80
  %v204 = vunpack.c.l.b16 %v81
  %v205 = vunpack.c.h.b16 %v81
  %v206 = vunpack.c.l.b16 %v82
  %v207 = vunpack.c.h.b16 %v82
  %v208 = vunpack.c.l.b16 %v83
  %v209 = vunpack.c.h.b16 %v83
  %v210 = vpack.c.b16 %v148, %v146
  %v211 = vpack.c.b16 %v149, %v147
  %v212 = vpack.c.b16 %v152, %v150
  %v213 = vpack.c.b16 %v153, %v151
  %v214 = vpack.c.b16 %v156, %v154
  %v215 = vpack.c.b16 %v157, %v155
  %v216 = vpack.c.b16 %v160, %v158
  %v217 = vpack.c.b16 %v161, %v159
  %v218 = vpack.c.b16 %v164, %v162
  %v219 = vpack.c.b16 %v165, %v163
  %v220 = vpack.c.b16 %v168, %v166
  %v221 = vpack.c.b16 %v169, %v167
  %v222 = vpack.c.b16 %v172, %v170
  %v223 = vpack.c.b16 %v173, %v171
  %v224 = vpack.c.b16 %v176, %v174
  %v225 = vpack.c.b16 %v177, %v175
  %v226 = vpack.c.b16 %v180, %v178
  %v227 = vpack.c.b16 %v181, %v179
  %v228 = vpack.c.b16 %v184, %v182
  %v229 = vpack.c.b16 %v185, %v183
  %v230 = vpack.c.b16 %v188, %v186
  %v231 = vpack.c.b16 %v189, %v187
  %v232 = vpack.c.b16 %v192, %v190
  %v233 = vpack.c.b16 %v193, %v191
  %v234 = vpack.c.b16 %v196, %v194
  %v235 = vpack.c.b16 %v197, %v195
  %v236 = vpack.c.b16 %v200, %v198
  %v237 = vpack.c.b16 %v201, %v199
  %v238 = vpack.c.b16 %v204, %v202
  %v239 = vpack.c.b16 %v205, %v203
  %v240 = vpack.c.b16 %v208, %v206
  %v241 = vpack.c.b16 %v209, %v207
  %274 = vmatprep.subr.bf16.mxu0 %v211
  %275 = vmatpush1.bf16.msra.mxu0 %v210
  %276 = vmatprep.subr.bf16.mxu0 %v213
  %277 = vmatpush1.bf16.msra.mxu0 %v212
  %278 = vmatprep.subr.bf16.mxu0 %v215
  %279 = vmatpush1.bf16.msra.mxu0 %v214
  %280 = vmatprep.subr.bf16.mxu0 %v217
  %281 = vmatpush1.bf16.msra.mxu0 %v216
  %282 = vmatprep.subr.bf16.mxu0 %v219
  %283 = vmatpush1.bf16.msra.mxu0 %v218
  %284 = vmatprep.subr.bf16.mxu0 %v221
  %285 = vmatpush1.bf16.msra.mxu0 %v220
  %286 = vmatprep.subr.bf16.mxu0 %v223
  %287 = vmatpush1.bf16.msra.mxu0 %v222
  %288 = vmatprep.subr.bf16.mxu0 %v225
  %289 = vmatpush1.bf16.msra.mxu0 %v224
  %290 = vmatprep.subr.bf16.mxu0 %v227
  %291 = vmatpush1.bf16.msra.mxu0 %v226
  %292 = vmatprep.subr.bf16.mxu0 %v229
  %293 = vmatpush1.bf16.msra.mxu0 %v228
  %294 = vmatprep.subr.bf16.mxu0 %v231
  %295 = vmatpush1.bf16.msra.mxu0 %v230
  %296 = vmatprep.subr.bf16.mxu0 %v233
  %297 = vmatpush1.bf16.msra.mxu0 %v232
  %298 = vmatprep.subr.bf16.mxu0 %v235
  %299 = vmatpush1.bf16.msra.mxu0 %v234
  %300 = vmatprep.subr.bf16.mxu0 %v237
  %301 = vmatpush1.bf16.msra.mxu0 %v236
  %302 = vmatprep.subr.bf16.mxu0 %v239
  %303 = vmatpush1.bf16.msra.mxu0 %v238
  %304 = vmatprep.subr.bf16.mxu0 %v241
  %305 = vmatpush1.bf16.msra.mxu0 %v240
  %306 = vmatprep.mubr.bf16.mxu0 %v103
  %307 = vmatmul.mubr.bf16.gmra.mrb[0].mxu0 %v102
  %v308 = vpop.f32.mrb[0].mxu0
  %v309 = vadd.f32 0.0, %v308
  %v310 = vpop.f32.mrb[0].mxu0
  %v311 = vadd.f32 0.0, %v310
  %v312 = vpop.f32.mrb[0].mxu0
  %v313 = vadd.f32 0.0, %v312
  %v314 = vpop.f32.mrb[0].mxu0
  %v315 = vadd.f32 0.0, %v314
  %316 = vmatprep.mubr.bf16.mxu0 %v105
  %317 = vmatmul.mubr.bf16.gmra.mrb[0].mxu0 %v104
  %v318 = vpop.f32.mrb[0].mxu0
  %v319 = vadd.f32 0.0, %v318
  %v320 = vpop.f32.mrb[0].mxu0
  %v321 = vadd.f32 0.0, %v320
  %v322 = vpop.f32.mrb[0].mxu0
  %v323 = vadd.f32 0.0, %v322
  %v324 = vpop.f32.mrb[0].mxu0
  %v325 = vadd.f32 0.0, %v324
  %326 = vmatprep.mubr.bf16.mxu0 %v107
  %327 = vmatmul.mubr.bf16.gmra.mrb[0].mxu0 %v106
  %v328 = vpop.f32.mrb[0].mxu0
  %v329 = vadd.f32 0.0, %v328
  %v330 = vpop.f32.mrb[0].mxu0
  %v331 = vadd.f32 0.0, %v330
  %v332 = vpop.f32.mrb[0].mxu0
  %v333 = vadd.f32 0.0, %v332
  %v334 = vpop.f32.mrb[0].mxu0
  %v335 = vadd.f32 0.0, %v334
  %336 = vdwg.mxu0
  %v337 = vadd.f32 %v34, %v309
  %v338 = vadd.f32 %v35, %v311
  %v339 = vadd.f32 %v36, %v313
  %v340 = vadd.f32 %v37, %v315
  %v341 = vadd.f32 %v38, %v319
  %v342 = vadd.f32 %v39, %v321
  %v343 = vadd.f32 %v40, %v323
  %v344 = vadd.f32 %v41, %v325
  %v345 = vadd.f32 %v42, %v329
  %v346 = vadd.f32 %v43, %v331
  %v347 = vadd.f32 %v44, %v333
  %v348 = vadd.f32 %v45, %v335
  %349 = vst [vmem:[#allocation2] sm:$0xff] %v337
  %350 = vst [vmem:[#allocation2 + $0x8] sm:$0xff] %v338
  %351 = vst [vmem:[#allocation2 + $0x10] sm:$0xff] %v339
  %352 = vst [vmem:[#allocation2 + $0x18] sm:$0xff] %v340
  %353 = vst [vmem:[#allocation2 + $0x20] sm:$0xff] %v341
  %354 = vst [vmem:[#allocation2 + $0x28] sm:$0xff] %v342
  %355 = vst [vmem:[#allocation2 + $0x30] sm:$0xff] %v343
  %356 = vst [vmem:[#allocation2 + $0x38] sm:$0xff] %v344
  %357 = vst [vmem:[#allocation2 + $0x40] sm:$0xff] %v345
  %358 = vst [vmem:[#allocation2 + $0x48] sm:$0xff] %v346
  %359 = vst [vmem:[#allocation2 + $0x50] sm:$0xff] %v347
  %360 = vst [vmem:[#allocation2 + $0x58] sm:$0xff] %v348
  // Predicated region
  $region22: #{mllama_vision_forward.29} parent=0 // pred_check
    %p361 = pneg %p18
  $region23: #{mllama_vision_forward.29} parent=0 // pred_check_branch
    %363 = sbr.rel (%p361) target = $region25
  $region24: #{mllama_vision_forward.29} parent=0 // pred_region
    %v364 = vld [vmem:[#allocation2] sm:$0xff]
    %v365 = vld [vmem:[#allocation2 + $0x8] sm:$0xff]
    %v366 = vld [vmem:[#allocation2 + $0x10] sm:$0xff]
    %v367 = vld [vmem:[#allocation2 + $0x18] sm:$0xff]
    %v368 = vld [vmem:[#allocation2 + $0x20] sm:$0xff]
    %v369 = vld [vmem:[#allocation2 + $0x28] sm:$0xff]
    %v370 = vld [vmem:[#allocation2 + $0x30] sm:$0xff]
    %v371 = vld [vmem:[#allocation2 + $0x38] sm:$0xff]
    %v372 = vld [vmem:[#allocation2 + $0x40] sm:$0xff]
    %v373 = vld [vmem:[#allocation2 + $0x48] sm:$0xff]
    %v374 = vld [vmem:[#allocation2 + $0x50] sm:$0xff]
    %v375 = vld [vmem:[#allocation2 + $0x58] sm:$0xff]
    %v376 = vld [vmem:[%s2] sm:$0xff]
    %v377 = vld [vmem:[%s2 + $0x8] sm:$0xff]
    %v378 = vld [vmem:[%s2 + $0x10] sm:$0xff]
    %v379 = vld [vmem:[%s2 + $0x18] sm:$0xff]
    %v380 = vld [vmem:[%s2 + $0x20] sm:$0xff]
    %v381 = vld [vmem:[%s2 + $0x28] sm:$0xff]
    %v382 = vunpack.c.l.bf16 %v376
    %v383 = vunpack.c.h.bf16 %v376
    %v384 = vunpack.c.l.bf16 %v377
    %v385 = vunpack.c.h.bf16 %v377
    %v386 = vunpack.c.l.bf16 %v378
    %v387 = vunpack.c.h.bf16 %v378
    %v388 = vunpack.c.l.bf16 %v379
    %v389 = vunpack.c.h.bf16 %v379
    %v390 = vunpack.c.l.bf16 %v380
    %v391 = vunpack.c.h.bf16 %v380
    %v392 = vunpack.c.l.bf16 %v381
    %v393 = vunpack.c.h.bf16 %v381
    %s394 = sld [smem:[#allocation3]]
    %v395 = vstv %s394
    %v396 = vmul.f32 %v395, %v364
    %v397 = vmul.f32 %v395, %v365
    %v398 = vmul.f32 %v395, %v366
    %v399 = vmul.f32 %v395, %v367
    %v400 = vmul.f32 %v395, %v368
    %v401 = vmul.f32 %v395, %v369
    %v402 = vmul.f32 %v395, %v370
    %v403 = vmul.f32 %v395, %v371
    %v404 = vmul.f32 %v395, %v372
    %v405 = vmul.f32 %v395, %v373
    %v406 = vmul.f32 %v395, %v374
    %v407 = vmul.f32 %v395, %v375
    %v408 = vadd.f32 %v382, %v396
    %v409 = vadd.f32 %v383, %v397
    %v410 = vadd.f32 %v384, %v398
    %v411 = vadd.f32 %v385, %v399
    %v412 = vadd.f32 %v386, %v400
    %v413 = vadd.f32 %v387, %v401
    %v414 = vadd.f32 %v388, %v402
    %v415 = vadd.f32 %v389, %v403
    %v416 = vadd.f32 %v390, %v404
    %v417 = vadd.f32 %v391, %v405
    %v418 = vadd.f32 %v392, %v406
    %v419 = vadd.f32 %v393, %v407
    %v420 = vpack.c.bf16 %v410, %v408
    %v421 = vpack.c.bf16 %v411, %v409
    %v422 = vpack.c.bf16 %v414, %v412
    %v423 = vpack.c.bf16 %v415, %v413
    %v424 = vpack.c.bf16 %v418, %v416
    %v425 = vpack.c.bf16 %v419, %v417
    %v432 = vunpack.c.l.b16 %v420
    %v433 = vunpack.c.l.b16 %v421
    %v434 = vunpack.c.h.b16 %v420
    %v435 = vunpack.c.h.b16 %v421
    %v436 = vunpack.c.l.b16 %v422
    %v437 = vunpack.c.l.b16 %v423
    %v438 = vunpack.c.h.b16 %v422
    %v439 = vunpack.c.h.b16 %v423
    %v440 = vunpack.c.l.b16 %v424
    %v441 = vunpack.c.l.b16 %v425
    %v442 = vunpack.c.h.b16 %v424
    %v443 = vunpack.c.h.b16 %v425
    %v444 = vpack.c.b16 %v433, %v432
    %v445 = vpack.c.b16 %v435, %v434
    %v446 = vpack.c.b16 %v437, %v436
    %v447 = vpack.c.b16 %v439, %v438
    %v448 = vpack.c.b16 %v441, %v440
    %v449 = vpack.c.b16 %v443, %v442
    %456 = vst [vmem:[%s4] sm:$0xff] %v444
    %457 = vst [vmem:[%s4 + $0x8] sm:$0xff] %v445
    %458 = vst [vmem:[%s4 + $0x10] sm:$0xff] %v446
    %459 = vst [vmem:[%s4 + $0x18] sm:$0xff] %v447
    %460 = vst [vmem:[%s4 + $0x20] sm:$0xff] %v448
    %461 = vst [vmem:[%s4 + $0x28] sm:$0xff] %v449
  $region25: #{mllama_vision_forward.29} parent=0 // pred_fallthru
    _
  // Predicated region
  $region26: #{mllama_vision_forward.29} parent=0 // pred_check
    _
  $region27: #{mllama_vision_forward.29} parent=0 // pred_check_branch
    %463 = sbr.rel (0) target = $region29
  $region28: #{mllama_vision_forward.29} parent=0 // pred_region
    _
  $region29: #{mllama_vision_forward.29} parent=0 // pred_fallthru
    _
  // Predicated region
  $region30: #{mllama_vision_forward.29} parent=0 // pred_check
    _
  $region31: #{mllama_vision_forward.29} parent=0 // pred_check_branch
    %465 = sbr.rel (0) target = $region33
  $region32: #{mllama_vision_forward.29} parent=0 // pred_region
    _
  $region33: #{mllama_vision_forward.29} parent=0 // pred_fallthru
    _

// kernel: mllama_vision_forward.28
$region0: #{mllama_vision_forward.28}
  #allocation0 [shape = 'u32[]', space=smem, size = 0x4, offset = 0x4, fixed_abs, tag = 'smem constant byte address 0x4 - core index']
  #allocation1 [shape = 'u32[144,128]{1,0:T(1,128)}', space=vmem, size = 0x12000, scoped, tag = 'internal scratch']
  #allocation2 [shape = 'f32[24,1]{1,0:T(8,128)}', space=vmem, size = 0x3000, scoped, tag = 'scratch operand']
  #allocation3 [shape = 'f32[24,1]{1,0:T(8,128)}', space=vmem, size = 0x3000, scoped, tag = 'scratch operand']
  #allocation4 [shape = 'f32[24,128]{1,0:T(8,128)}', space=vmem, size = 0x3000, scoped, tag = 'scratch operand']
  %s0 = inlined_call_operand.vmem [shape: f32[1,2], index: 0, kind: input, shape index: {}]
  %s1 = inlined_call_operand.vmem [shape: bf16[1,48,768], index: 1, kind: input, shape index: {}, may-alias: {1,2,3}]
  %s2 = inlined_call_operand.vmem [shape: bf16[1,48,768], index: 2, kind: input, shape index: {}, may-alias: {1,2,3}]
  %s3 = inlined_call_operand.vmem [shape: bf16[1,48,768], index: 3, kind: input, shape index: {}, may-alias: {1,2,3}]
  %s4 = inlined_call_operand.vmem [shape: bf16[1,48,256], index: 4, kind: output, shape index: {}]
  %s5 = sld [smem:[#allocation0]]
  $region221: #{mllama_vision_forward.28} parent=0
    _
  %s7 = ssub.s32 1, %s5
  %s8 = scalar_select 0, %s7, %s5
  $region1: #{mllama_vision_forward.28} parent=0
    #allocation5 [shape = 'u8[512]{0}', space=smem, size = 0x200, scoped, tag = 'input window, operand 0, single buffered']
    #allocation6 [shape = 's32[2]{0}', space=sflag, size = 0x8, scoped, tag = 'scoped memory for mllama_vision_forward.28']
    #allocation7 [shape = 'u8[12288]{0}', space=vmem, size = 0x3000, scoped, tag = 'input window, operand 1']
    #allocation8 [shape = 'u8[12288]{0}', space=vmem, size = 0x3000, scoped, tag = 'input window, operand 2']
    #allocation9 [shape = 'u8[12288]{0}', space=vmem, size = 0x3000, scoped, tag = 'input window, operand 3']
    #allocation10 [shape = 'u8[12288]{0}', space=vmem, size = 0x3000, scoped, tag = 'output window, operand 0']
    %9 = vsyncpa [#allocation6], 0
    loop: start=0, step=1, limit=10
    $region2: #{mllama_vision_forward.28} parent=1 // loop_pre_header
      _
    $region3: #{mllama_vision_forward.28} parent=1 // loop_header
      %s11 = sphi 0, %s15
      %p12 = scmp.ge.s32.totalorder %s11, 10
      %s18 = sphi 0, %s44
      %s19 = sphi 0, %s40
      %s20 = sphi 0, %s36
      %s21 = sphi 0, %s32
      %s22 = sphi 0, %s18
      %s23 = sphi 0, %s19
      %s24 = sphi 0, %s20
      %s25 = sphi 0, %s21
      %s26 = sphi 0, %s22
      %s27 = sphi 0, %s23
      %s28 = sphi 0, %s24
      %s29 = sphi 0, %s25
      %s45 = sphi 0, %s45
      %s47 = sphi 0, %s45
      %s48 = sphi 0, %s47
      %s62 = sphi 0, %s48
      %s72 = sphi 0, %s74
      %s75 = sphi 0, %s72
      %s76 = sphi 0, %s75
      %s92 = sphi 0, %s76
      %s104 = sphi 0, %s106
      %s107 = sphi 0, %s104
      %s108 = sphi 0, %s107
      %s124 = sphi 0, %s108
      %s136 = sphi 0, %s138
      %s139 = sphi 0, %s136
      %s140 = sphi 0, %s139
      %s156 = sphi 0, %s140
      %s166 = sphi 0, %s168
      %s169 = sphi 0, %s166
      %s170 = sphi 0, %s169
      %s186 = sphi 0, %s170
    $region4: #{mllama_vision_forward.28} parent=1 // loop_header_branch
      %14 = sbr.rel (%p12) target = $region8
    $region5: #{mllama_vision_forward.28} parent=1 // loop_body
      %s16 = ssub.s32 %s11, 1
      %s17 = ssub.s32 %s11, 2
      %s30 = sadd.s32 1, %s21
      %p31 = scmp.ge.s32.totalorder %s30, 2
      %s32 = scalar_select %p31, 0, %s30
      %s33 = sadd.s32 1, %s20
      %s34 = scalar_select %p31, %s33, %s20
      %p35 = scmp.ge.s32.totalorder %s34, 2
      %s36 = scalar_select %p35, 0, %s34
      %s37 = sadd.s32 1, %s19
      %s38 = scalar_select %p35, %s37, %s19
      %p39 = scmp.ge.s32.totalorder %s38, 2
      %s40 = scalar_select %p39, 0, %s38
      %s41 = sadd.s32 1, %s18
      %s42 = scalar_select %p39, %s41, %s18
      %p43 = scmp.ge.s32.totalorder %s42, 1
      %s44 = scalar_select %p43, 0, %s42
      %s46 = sadd.s32 %s45, 1
      %p49 = scmp.eq.s32.totalorder %s11, 7
      %p50 = scmp.ne.s32.totalorder %s45, %s47
      %p51 = scmp.eq.s32.totalorder %s11, 0
      %p52 = por %p50, %p51
      %p53 = scmp.ne.s32.totalorder %s45, %s47
      %p54 = scmp.eq.s32.totalorder %s16, 7
      %p55 = por %p53, %p54
      %p56 = scmp.ne.s32.totalorder %s47, %s48
      %p57 = scmp.eq.s32.totalorder %s16, 0
      %p58 = por %p56, %p57
      %p59 = scmp.ne.s32.totalorder %s47, %s48
      %p60 = scmp.eq.s32.totalorder %s17, 7
      %p61 = por %p59, %p60
      %p63 = scmp.ne.s32.totalorder %s48, %s62
      %p64 = scmp.eq.s32.totalorder %s17, 0
      %p65 = por %p63, %p64
      %s66 = ssub.s32 %s18, %s44
      %s67 = ssub.s32 %s20, %s36
      %s68 = sor.u32 %s66, %s67
      %s69 = ssub.s32 %s19, %s40
      %s70 = sor.u32 %s68, %s69
      %p71 = scmp.eq.s32.totalorder %s70, 0
      %s73 = sadd.s32 %s72, 1
      %s74 = scalar_select %p71, %s72, %s73
      %p77 = pneg %p71
      %p78 = scmp.eq.s32.totalorder %s11, 7
      %p79 = por %p77, %p78
      %p80 = scmp.ne.s32.totalorder %s72, %s75
      %p81 = scmp.eq.s32.totalorder %s11, 0
      %p82 = por %p80, %p81
      %p83 = scmp.ne.s32.totalorder %s72, %s75
      %p84 = scmp.eq.s32.totalorder %s16, 7
      %p85 = por %p83, %p84
      %p86 = scmp.ne.s32.totalorder %s75, %s76
      %p87 = scmp.eq.s32.totalorder %s16, 0
      %p88 = por %p86, %p87
      %p89 = scmp.ne.s32.totalorder %s75, %s76
      %p90 = scmp.eq.s32.totalorder %s17, 7
      %p91 = por %p89, %p90
      %p93 = scmp.ne.s32.totalorder %s76, %s92
      %p94 = scmp.eq.s32.totalorder %s17, 0
      %p95 = por %p93, %p94
      %s96 = sadd.s32 %s19, 2
      %s97 = sadd.s32 %s40, 2
      %s98 = ssub.s32 %s18, %s44
      %s99 = ssub.s32 %s21, %s32
      %s100 = sor.u32 %s98, %s99
      %s101 = ssub.s32 %s96, %s97
      %s102 = sor.u32 %s100, %s101
      %p103 = scmp.eq.s32.totalorder %s102, 0
      %s105 = sadd.s32 %s104, 1
      %s106 = scalar_select %p103, %s104, %s105
      %p109 = pneg %p103
      %p110 = scmp.eq.s32.totalorder %s11, 7
      %p111 = por %p109, %p110
      %p112 = scmp.ne.s32.totalorder %s104, %s107
      %p113 = scmp.eq.s32.totalorder %s11, 0
      %p114 = por %p112, %p113
      %p115 = scmp.ne.s32.totalorder %s104, %s107
      %p116 = scmp.eq.s32.totalorder %s16, 7
      %p117 = por %p115, %p116
      %p118 = scmp.ne.s32.totalorder %s107, %s108
      %p119 = scmp.eq.s32.totalorder %s16, 0
      %p120 = por %p118, %p119
      %p121 = scmp.ne.s32.totalorder %s107, %s108
      %p122 = scmp.eq.s32.totalorder %s17, 7
      %p123 = por %p121, %p122
      %p125 = scmp.ne.s32.totalorder %s108, %s124
      %p126 = scmp.eq.s32.totalorder %s17, 0
      %p127 = por %p125, %p126
      %s128 = sadd.s32 %s19, 4
      %s129 = sadd.s32 %s40, 4
      %s130 = ssub.s32 %s18, %s44
      %s131 = ssub.s32 %s21, %s32
      %s132 = sor.u32 %s130, %s131
      %s133 = ssub.s32 %s128, %s129
      %s134 = sor.u32 %s132, %s133
      %p135 = scmp.eq.s32.totalorder %s134, 0
      %s137 = sadd.s32 %s136, 1
      %s138 = scalar_select %p135, %s136, %s137
      %p141 = pneg %p135
      %p142 = scmp.eq.s32.totalorder %s11, 7
      %p143 = por %p141, %p142
      %p144 = scmp.ne.s32.totalorder %s136, %s139
      %p145 = scmp.eq.s32.totalorder %s11, 0
      %p146 = por %p144, %p145
      %p147 = scmp.ne.s32.totalorder %s136, %s139
      %p148 = scmp.eq.s32.totalorder %s16, 7
      %p149 = por %p147, %p148
      %p150 = scmp.ne.s32.totalorder %s139, %s140
      %p151 = scmp.eq.s32.totalorder %s16, 0
      %p152 = por %p150, %p151
      %p153 = scmp.ne.s32.totalorder %s139, %s140
      %p154 = scmp.eq.s32.totalorder %s17, 7
      %p155 = por %p153, %p154
      %p157 = scmp.ne.s32.totalorder %s140, %s156
      %p158 = scmp.eq.s32.totalorder %s17, 0
      %p159 = por %p157, %p158
      %s160 = ssub.s32 %s18, %s44
      %s161 = ssub.s32 %s20, %s36
      %s162 = sor.u32 %s160, %s161
      %s163 = ssub.s32 %s19, %s40
      %s164 = sor.u32 %s162, %s163
      %p165 = scmp.eq.s32.totalorder %s164, 0
      %s167 = sadd.s32 %s166, 1
      %s168 = scalar_select %p165, %s166, %s167
      %p171 = pneg %p165
      %p172 = scmp.eq.s32.totalorder %s11, 7
      %p173 = por %p171, %p172
      %p174 = scmp.ne.s32.totalorder %s166, %s169
      %p175 = scmp.eq.s32.totalorder %s11, 0
      %p176 = por %p174, %p175
      %p177 = scmp.ne.s32.totalorder %s166, %s169
      %p178 = scmp.eq.s32.totalorder %s16, 7
      %p179 = por %p177, %p178
      %p180 = scmp.ne.s32.totalorder %s169, %s170
      %p181 = scmp.eq.s32.totalorder %s16, 0
      %p182 = por %p180, %p181
      %p183 = scmp.ne.s32.totalorder %s169, %s170
      %p184 = scmp.eq.s32.totalorder %s17, 7
      %p185 = por %p183, %p184
      %p187 = scmp.ne.s32.totalorder %s170, %s186
      %p188 = scmp.eq.s32.totalorder %s17, 0
      %p189 = por %p187, %p188
      %p190 = scmp.le.s32.totalorder 1, %s11
      %p191 = scmp.lt.s32.totalorder %s11, 9
      %p192 = pnand %p190, %p191
      %p193 = pneg %p192
      // Predicated region
      $region9: #{mllama_vision_forward.28} parent=5 // pred_check
        _
      $region10: #{mllama_vision_forward.28} parent=5 // pred_check_branch
        %195 = sbr.rel (%p192) target = $region12
      $region11: #{mllama_vision_forward.28} parent=5 // pred_region
        %s196 = ssub.s32 %s11, 1
        // Predicated region
        $region13: #{mllama_vision_forward.28} parent=11 // pred_check
          %p197 = pneg %p58
        $region14: #{mllama_vision_forward.28} parent=11 // pred_check_branch
          %199 = sbr.rel (%p197) target = $region16
        $region15: #{mllama_vision_forward.28} parent=11 // pred_region
          %s201 = ssub.s32 16, 16
          %202 = vsyncadd [#allocation6], %s201
          %s204 = sshll.u32 %s0, 4
          %s205 = int_to_ptr.vmem [resolvable:$true] %s204
          %207 = dma.vmem_to_smem %s205, 16, [#allocation5], [#allocation6]
        $region16: #{mllama_vision_forward.28} parent=11 // pred_fallthru
          _
      $region12: #{mllama_vision_forward.28} parent=5 // pred_fallthru
        _
      %p208 = scmp.lt.s32.totalorder %s11, 8
      // Predicated region
      $region17: #{mllama_vision_forward.28} parent=5 // pred_check
        %p209 = pneg %p208
      $region18: #{mllama_vision_forward.28} parent=5 // pred_check_branch
        %211 = sbr.rel (%p209) target = $region20
      $region19: #{mllama_vision_forward.28} parent=5 // pred_region
        // Predicated region
        $region21: #{mllama_vision_forward.28} parent=19 // pred_check
          %p212 = pneg %p82
        $region22: #{mllama_vision_forward.28} parent=19 // pred_check_branch
          %214 = sbr.rel (%p212) target = $region24
        $region23: #{mllama_vision_forward.28} parent=19 // pred_region
          %s215 = sand.u32 %s72, 1
          %s216 = sand.u32 %s72, 1
          %s217 = smul.addr %s216, 12
          %s218 = scalar_lea.vmem [#allocation7], %s217
          %s219 = smul.u32 3, %s20
          %s220 = smul.addr %s219, 6
          %s221 = sadd.s32 %s19, %s220
          %s222 = smul.addr %s18, 36
          %s223 = sadd.s32 %s221, %s222
          %s224 = smul.addr %s223, 4
          %s225 = scalar_lea.vmem %s1, %s224
          // Predicated region
          $region25: #{mllama_vision_forward.28} parent=23 // pred_check
            _
          $region26: #{mllama_vision_forward.28} parent=23 // pred_check_branch
            %227 = sbr.rel (0) target = $region28
          $region27: #{mllama_vision_forward.28} parent=23 // pred_region
            // Predicated region
            $region29: #{mllama_vision_forward.28} parent=27 // pred_check
              _
            $region30: #{mllama_vision_forward.28} parent=27 // pred_check_branch
              %229 = sbr.rel target = $region32
            $region31: #{mllama_vision_forward.28} parent=27 // pred_region
              // Predicated region
              $region44: #{mllama_vision_forward.28} parent=31 // pred_check
                _
              $region45: #{mllama_vision_forward.28} parent=31 // pred_check_branch
                %248 = sbr.rel (0) target = $region47
              $region46: #{mllama_vision_forward.28} parent=31 // pred_region
                loop: start=0, step=1, limit=1
                $region48: #{mllama_vision_forward.28} parent=46 // loop_pre_header
                  _
                $region49: #{mllama_vision_forward.28} parent=46 // loop_header
                  %s250 = sphi 0, %s254
                  %p251 = scmp.ge.s32.totalorder %s250, 1
                  %s255 = sphi %s225, %s225
                  %s256 = sphi %s218, %s218
                $region50: #{mllama_vision_forward.28} parent=46 // loop_header_branch
                  %253 = sbr.rel (%p251) target = $region54
                $region51: #{mllama_vision_forward.28} parent=46 // loop_body
                  _
                $region52: #{mllama_vision_forward.28} parent=46 // loop_footer
                  %s254 = sadd.s32 1, %s250
                $region53: #{mllama_vision_forward.28} parent=46 // loop_footer_branch
                  %249 = sbr.rel target = $region49
                $region54: #{mllama_vision_forward.28} parent=46 // loop_exit
                  _
                loop: start=0, step=1, limit=1
                $region55: #{mllama_vision_forward.28} parent=46 // loop_pre_header
                  _
                $region56: #{mllama_vision_forward.28} parent=46 // loop_header
                  %s259 = sphi 0, %s263
                  %p260 = scmp.ge.s32.totalorder %s259, 1
                  %s264 = sphi %s225, %s225
                  %s265 = sphi %s218, %s218
                $region57: #{mllama_vision_forward.28} parent=46 // loop_header_branch
                  %262 = sbr.rel (%p260) target = $region61
                $region58: #{mllama_vision_forward.28} parent=46 // loop_body
                  %v266 = vld [vmem:[%s264] sm:$0xf]
                  %267 = vst [vmem:[%s265] sm:$0xf] %v266
                  %v268 = vld [vmem:[%s264 + $0x18] sm:$0xf]
                  %269 = vst [vmem:[%s265 + $0x4] sm:$0xf] %v268
                  %v270 = vld [vmem:[%s264 + $0x30] sm:$0xf]
                  %271 = vst [vmem:[%s265 + $0x8] sm:$0xf] %v270
                $region59: #{mllama_vision_forward.28} parent=46 // loop_footer
                  %s263 = sadd.s32 1, %s259
                $region60: #{mllama_vision_forward.28} parent=46 // loop_footer_branch
                  %258 = sbr.rel target = $region56
                $region61: #{mllama_vision_forward.28} parent=46 // loop_exit
                  _
              $region47: #{mllama_vision_forward.28} parent=31 // pred_fallthru
                _
            $region32: #{mllama_vision_forward.28} parent=27 // pred_fallthru
              _
            // Predicated region
            $region33: #{mllama_vision_forward.28} parent=27 // pred_check
              _
            $region34: #{mllama_vision_forward.28} parent=27 // pred_check_branch
              %231 = sbr.rel (0) target = $region36
            $region35: #{mllama_vision_forward.28} parent=27 // pred_region
              loop: start=0, step=1, limit=1
              $region37: #{mllama_vision_forward.28} parent=35 // loop_pre_header
                _
              $region38: #{mllama_vision_forward.28} parent=35 // loop_header
                %s234 = sphi 0, %s238
                %p235 = scmp.ge.s32.totalorder %s234, 1
                %s239 = sphi %s225, %s225
                %s240 = sphi %s218, %s218
              $region39: #{mllama_vision_forward.28} parent=35 // loop_header_branch
                %237 = sbr.rel (%p235) target = $region43
              $region40: #{mllama_vision_forward.28} parent=35 // loop_body
                %v241 = vld [vmem:[%s239] sm:$0xf]
                %242 = vst [vmem:[%s240] sm:$0xf] %v241
                %v243 = vld [vmem:[%s239 + $0x18] sm:$0xf]
                %244 = vst [vmem:[%s240 + $0x4] sm:$0xf] %v243
                %v245 = vld [vmem:[%s239 + $0x30] sm:$0xf]
                %246 = vst [vmem:[%s240 + $0x8] sm:$0xf] %v245
              $region41: #{mllama_vision_forward.28} parent=35 // loop_footer
                %s238 = sadd.s32 1, %s234
              $region42: #{mllama_vision_forward.28} parent=35 // loop_footer_branch
                %233 = sbr.rel target = $region38
              $region43: #{mllama_vision_forward.28} parent=35 // loop_exit
                _
            $region36: #{mllama_vision_forward.28} parent=27 // pred_fallthru
              _
          $region28: #{mllama_vision_forward.28} parent=23 // pred_fallthru
            _
          %272 = vnop
        $region24: #{mllama_vision_forward.28} parent=19 // pred_fallthru
          _
        // Predicated region
        $region62: #{mllama_vision_forward.28} parent=19 // pred_check
          %p273 = pneg %p114
        $region63: #{mllama_vision_forward.28} parent=19 // pred_check_branch
          %275 = sbr.rel (%p273) target = $region65
        $region64: #{mllama_vision_forward.28} parent=19 // pred_region
          %s276 = sand.u32 %s104, 1
          %s277 = sand.u32 %s104, 1
          %s278 = smul.addr %s277, 12
          %s279 = scalar_lea.vmem [#allocation8], %s278
          %s280 = sadd.s32 %s19, 2
          %s281 = smul.u32 3, %s21
          %s282 = smul.addr %s281, 6
          %s283 = sadd.s32 %s280, %s282
          %s284 = smul.addr %s18, 36
          %s285 = sadd.s32 %s283, %s284
          %s286 = smul.addr %s285, 4
          %s287 = scalar_lea.vmem %s2, %s286
          // Predicated region
          $region66: #{mllama_vision_forward.28} parent=64 // pred_check
            _
          $region67: #{mllama_vision_forward.28} parent=64 // pred_check_branch
            %289 = sbr.rel (0) target = $region69
          $region68: #{mllama_vision_forward.28} parent=64 // pred_region
            // Predicated region
            $region70: #{mllama_vision_forward.28} parent=68 // pred_check
              _
            $region71: #{mllama_vision_forward.28} parent=68 // pred_check_branch
              %291 = sbr.rel target = $region73
            $region72: #{mllama_vision_forward.28} parent=68 // pred_region
              // Predicated region
              $region85: #{mllama_vision_forward.28} parent=72 // pred_check
                _
              $region86: #{mllama_vision_forward.28} parent=72 // pred_check_branch
                %310 = sbr.rel (0) target = $region88
              $region87: #{mllama_vision_forward.28} parent=72 // pred_region
                loop: start=0, step=1, limit=1
                $region89: #{mllama_vision_forward.28} parent=87 // loop_pre_header
                  _
                $region90: #{mllama_vision_forward.28} parent=87 // loop_header
                  %s312 = sphi 0, %s316
                  %p313 = scmp.ge.s32.totalorder %s312, 1
                  %s317 = sphi %s287, %s287
                  %s318 = sphi %s279, %s279
                $region91: #{mllama_vision_forward.28} parent=87 // loop_header_branch
                  %315 = sbr.rel (%p313) target = $region95
                $region92: #{mllama_vision_forward.28} parent=87 // loop_body
                  _
                $region93: #{mllama_vision_forward.28} parent=87 // loop_footer
                  %s316 = sadd.s32 1, %s312
                $region94: #{mllama_vision_forward.28} parent=87 // loop_footer_branch
                  %311 = sbr.rel target = $region90
                $region95: #{mllama_vision_forward.28} parent=87 // loop_exit
                  _
                loop: start=0, step=1, limit=1
                $region96: #{mllama_vision_forward.28} parent=87 // loop_pre_header
                  _
                $region97: #{mllama_vision_forward.28} parent=87 // loop_header
                  %s321 = sphi 0, %s325
                  %p322 = scmp.ge.s32.totalorder %s321, 1
                  %s326 = sphi %s287, %s287
                  %s327 = sphi %s279, %s279
                $region98: #{mllama_vision_forward.28} parent=87 // loop_header_branch
                  %324 = sbr.rel (%p322) target = $region102
                $region99: #{mllama_vision_forward.28} parent=87 // loop_body
                  %v328 = vld [vmem:[%s326] sm:$0xf]
                  %329 = vst [vmem:[%s327] sm:$0xf] %v328
                  %v330 = vld [vmem:[%s326 + $0x18] sm:$0xf]
                  %331 = vst [vmem:[%s327 + $0x4] sm:$0xf] %v330
                  %v332 = vld [vmem:[%s326 + $0x30] sm:$0xf]
                  %333 = vst [vmem:[%s327 + $0x8] sm:$0xf] %v332
                $region100: #{mllama_vision_forward.28} parent=87 // loop_footer
                  %s325 = sadd.s32 1, %s321
                $region101: #{mllama_vision_forward.28} parent=87 // loop_footer_branch
                  %320 = sbr.rel target = $region97
                $region102: #{mllama_vision_forward.28} parent=87 // loop_exit
                  _
              $region88: #{mllama_vision_forward.28} parent=72 // pred_fallthru
                _
            $region73: #{mllama_vision_forward.28} parent=68 // pred_fallthru
              _
            // Predicated region
            $region74: #{mllama_vision_forward.28} parent=68 // pred_check
              _
            $region75: #{mllama_vision_forward.28} parent=68 // pred_check_branch
              %293 = sbr.rel (0) target = $region77
            $region76: #{mllama_vision_forward.28} parent=68 // pred_region
              loop: start=0, step=1, limit=1
              $region78: #{mllama_vision_forward.28} parent=76 // loop_pre_header
                _
              $region79: #{mllama_vision_forward.28} parent=76 // loop_header
                %s296 = sphi 0, %s300
                %p297 = scmp.ge.s32.totalorder %s296, 1
                %s301 = sphi %s287, %s287
                %s302 = sphi %s279, %s279
              $region80: #{mllama_vision_forward.28} parent=76 // loop_header_branch
                %299 = sbr.rel (%p297) target = $region84
              $region81: #{mllama_vision_forward.28} parent=76 // loop_body
                %v303 = vld [vmem:[%s301] sm:$0xf]
                %304 = vst [vmem:[%s302] sm:$0xf] %v303
                %v305 = vld [vmem:[%s301 + $0x18] sm:$0xf]
                %306 = vst [vmem:[%s302 + $0x4] sm:$0xf] %v305
                %v307 = vld [vmem:[%s301 + $0x30] sm:$0xf]
                %308 = vst [vmem:[%s302 + $0x8] sm:$0xf] %v307
              $region82: #{mllama_vision_forward.28} parent=76 // loop_footer
                %s300 = sadd.s32 1, %s296
              $region83: #{mllama_vision_forward.28} parent=76 // loop_footer_branch
                %295 = sbr.rel target = $region79
              $region84: #{mllama_vision_forward.28} parent=76 // loop_exit
                _
            $region77: #{mllama_vision_forward.28} parent=68 // pred_fallthru
              _
          $region69: #{mllama_vision_forward.28} parent=64 // pred_fallthru
            _
          %334 = vnop
        $region65: #{mllama_vision_forward.28} parent=19 // pred_fallthru
          _
        // Predicated region
        $region103: #{mllama_vision_forward.28} parent=19 // pred_check
          %p335 = pneg %p146
        $region104: #{mllama_vision_forward.28} parent=19 // pred_check_branch
          %337 = sbr.rel (%p335) target = $region106
        $region105: #{mllama_vision_forward.28} parent=19 // pred_region
          %s338 = sand.u32 %s136, 1
          %s339 = sand.u32 %s136, 1
          %s340 = smul.addr %s339, 12
          %s341 = scalar_lea.vmem [#allocation9], %s340
          %s342 = sadd.s32 %s19, 4
          %s343 = smul.u32 3, %s21
          %s344 = smul.addr %s343, 6
          %s345 = sadd.s32 %s342, %s344
          %s346 = smul.addr %s18, 36
          %s347 = sadd.s32 %s345, %s346
          %s348 = smul.addr %s347, 4
          %s349 = scalar_lea.vmem %s3, %s348
          // Predicated region
          $region107: #{mllama_vision_forward.28} parent=105 // pred_check
            _
          $region108: #{mllama_vision_forward.28} parent=105 // pred_check_branch
            %351 = sbr.rel (0) target = $region110
          $region109: #{mllama_vision_forward.28} parent=105 // pred_region
            // Predicated region
            $region111: #{mllama_vision_forward.28} parent=109 // pred_check
              _
            $region112: #{mllama_vision_forward.28} parent=109 // pred_check_branch
              %353 = sbr.rel target = $region114
            $region113: #{mllama_vision_forward.28} parent=109 // pred_region
              // Predicated region
              $region126: #{mllama_vision_forward.28} parent=113 // pred_check
                _
              $region127: #{mllama_vision_forward.28} parent=113 // pred_check_branch
                %372 = sbr.rel (0) target = $region129
              $region128: #{mllama_vision_forward.28} parent=113 // pred_region
                loop: start=0, step=1, limit=1
                $region130: #{mllama_vision_forward.28} parent=128 // loop_pre_header
                  _
                $region131: #{mllama_vision_forward.28} parent=128 // loop_header
                  %s374 = sphi 0, %s378
                  %p375 = scmp.ge.s32.totalorder %s374, 1
                  %s379 = sphi %s349, %s349
                  %s380 = sphi %s341, %s341
                $region132: #{mllama_vision_forward.28} parent=128 // loop_header_branch
                  %377 = sbr.rel (%p375) target = $region136
                $region133: #{mllama_vision_forward.28} parent=128 // loop_body
                  _
                $region134: #{mllama_vision_forward.28} parent=128 // loop_footer
                  %s378 = sadd.s32 1, %s374
                $region135: #{mllama_vision_forward.28} parent=128 // loop_footer_branch
                  %373 = sbr.rel target = $region131
                $region136: #{mllama_vision_forward.28} parent=128 // loop_exit
                  _
                loop: start=0, step=1, limit=1
                $region137: #{mllama_vision_forward.28} parent=128 // loop_pre_header
                  _
                $region138: #{mllama_vision_forward.28} parent=128 // loop_header
                  %s383 = sphi 0, %s387
                  %p384 = scmp.ge.s32.totalorder %s383, 1
                  %s388 = sphi %s349, %s349
                  %s389 = sphi %s341, %s341
                $region139: #{mllama_vision_forward.28} parent=128 // loop_header_branch
                  %386 = sbr.rel (%p384) target = $region143
                $region140: #{mllama_vision_forward.28} parent=128 // loop_body
                  %v390 = vld [vmem:[%s388] sm:$0xf]
                  %391 = vst [vmem:[%s389] sm:$0xf] %v390
                  %v392 = vld [vmem:[%s388 + $0x18] sm:$0xf]
                  %393 = vst [vmem:[%s389 + $0x4] sm:$0xf] %v392
                  %v394 = vld [vmem:[%s388 + $0x30] sm:$0xf]
                  %395 = vst [vmem:[%s389 + $0x8] sm:$0xf] %v394
                $region141: #{mllama_vision_forward.28} parent=128 // loop_footer
                  %s387 = sadd.s32 1, %s383
                $region142: #{mllama_vision_forward.28} parent=128 // loop_footer_branch
                  %382 = sbr.rel target = $region138
                $region143: #{mllama_vision_forward.28} parent=128 // loop_exit
                  _
              $region129: #{mllama_vision_forward.28} parent=113 // pred_fallthru
                _
            $region114: #{mllama_vision_forward.28} parent=109 // pred_fallthru
              _
            // Predicated region
            $region115: #{mllama_vision_forward.28} parent=109 // pred_check
              _
            $region116: #{mllama_vision_forward.28} parent=109 // pred_check_branch
              %355 = sbr.rel (0) target = $region118
            $region117: #{mllama_vision_forward.28} parent=109 // pred_region
              loop: start=0, step=1, limit=1
              $region119: #{mllama_vision_forward.28} parent=117 // loop_pre_header
                _
              $region120: #{mllama_vision_forward.28} parent=117 // loop_header
                %s358 = sphi 0, %s362
                %p359 = scmp.ge.s32.totalorder %s358, 1
                %s363 = sphi %s349, %s349
                %s364 = sphi %s341, %s341
              $region121: #{mllama_vision_forward.28} parent=117 // loop_header_branch
                %361 = sbr.rel (%p359) target = $region125
              $region122: #{mllama_vision_forward.28} parent=117 // loop_body
                %v365 = vld [vmem:[%s363] sm:$0xf]
                %366 = vst [vmem:[%s364] sm:$0xf] %v365
                %v367 = vld [vmem:[%s363 + $0x18] sm:$0xf]
                %368 = vst [vmem:[%s364 + $0x4] sm:$0xf] %v367
                %v369 = vld [vmem:[%s363 + $0x30] sm:$0xf]
                %370 = vst [vmem:[%s364 + $0x8] sm:$0xf] %v369
              $region123: #{mllama_vision_forward.28} parent=117 // loop_footer
                %s362 = sadd.s32 1, %s358
              $region124: #{mllama_vision_forward.28} parent=117 // loop_footer_branch
                %357 = sbr.rel target = $region120
              $region125: #{mllama_vision_forward.28} parent=117 // loop_exit
                _
            $region118: #{mllama_vision_forward.28} parent=109 // pred_fallthru
              _
          $region110: #{mllama_vision_forward.28} parent=105 // pred_fallthru
            _
          %396 = vnop
        $region106: #{mllama_vision_forward.28} parent=19 // pred_fallthru
          _
      $region20: #{mllama_vision_forward.28} parent=5 // pred_fallthru
        _
      %p397 = scmp.le.s32.totalorder 1, %s11
      %p398 = scmp.lt.s32.totalorder %s11, 9
      %p399 = pnand %p397, %p398
      %p400 = pneg %p399
      // Predicated region
      $region144: #{mllama_vision_forward.28} parent=5 // pred_check
        _
      $region145: #{mllama_vision_forward.28} parent=5 // pred_check_branch
        %402 = sbr.rel (%p399) target = $region147
      $region146: #{mllama_vision_forward.28} parent=5 // pred_region
        %s403 = ssub.s32 %s11, 1
        // Predicated region
        $region148: #{mllama_vision_forward.28} parent=146 // pred_check
          %p404 = pneg %p58
        $region149: #{mllama_vision_forward.28} parent=146 // pred_check_branch
          %406 = sbr.rel (%p404) target = $region151
        $region150: #{mllama_vision_forward.28} parent=146 // pred_region
          %407 = dma.done [#allocation6], 16
        $region151: #{mllama_vision_forward.28} parent=146 // pred_fallthru
          _
        %s408 = sand.u32 %s75, 1
        %s409 = sand.u32 %s75, 1
        %s410 = smul.addr %s409, 12
        %s411 = scalar_lea.vmem [#allocation7], %s410
        // Predicated region
        $region152: #{mllama_vision_forward.28} parent=146 // pred_check
          %p412 = pneg %p88
        $region153: #{mllama_vision_forward.28} parent=146 // pred_check_branch
          %414 = sbr.rel (%p412) target = $region155
        $region154: #{mllama_vision_forward.28} parent=146 // pred_region
          _
        $region155: #{mllama_vision_forward.28} parent=146 // pred_fallthru
          _
        %s415 = sand.u32 %s107, 1
        %s416 = sand.u32 %s107, 1
        %s417 = smul.addr %s416, 12
        %s418 = scalar_lea.vmem [#allocation8], %s417
        // Predicated region
        $region156: #{mllama_vision_forward.28} parent=146 // pred_check
          %p419 = pneg %p120
        $region157: #{mllama_vision_forward.28} parent=146 // pred_check_branch
          %421 = sbr.rel (%p419) target = $region159
        $region158: #{mllama_vision_forward.28} parent=146 // pred_region
          _
        $region159: #{mllama_vision_forward.28} parent=146 // pred_fallthru
          _
        %s422 = sand.u32 %s139, 1
        %s423 = sand.u32 %s139, 1
        %s424 = smul.addr %s423, 12
        %s425 = scalar_lea.vmem [#allocation9], %s424
        // Predicated region
        $region160: #{mllama_vision_forward.28} parent=146 // pred_check
          %p426 = pneg %p152
        $region161: #{mllama_vision_forward.28} parent=146 // pred_check_branch
          %428 = sbr.rel (%p426) target = $region163
        $region162: #{mllama_vision_forward.28} parent=146 // pred_region
          _
        $region163: #{mllama_vision_forward.28} parent=146 // pred_fallthru
          _
        %429 = sfence
        %p430 = pneg %p58
        %p431 = pneg %p55
        %s432 = sand.u32 %s75, 1
        %s433 = sand.u32 %s75, 1
        %s434 = smul.addr %s433, 12
        %s435 = scalar_lea.vmem [#allocation7], %s434
        %p436 = pneg %p88
        %p437 = pneg %p85
        %s438 = sand.u32 %s107, 1
        %s439 = sand.u32 %s107, 1
        %s440 = smul.addr %s439, 12
        %s441 = scalar_lea.vmem [#allocation8], %s440
        %p442 = pneg %p120
        %p443 = pneg %p117
        %s444 = sand.u32 %s139, 1
        %s445 = sand.u32 %s139, 1
        %s446 = smul.addr %s445, 12
        %s447 = scalar_lea.vmem [#allocation9], %s446
        %p448 = pneg %p152
        %p449 = pneg %p149
        %p450 = pneg %p182
        %p451 = pneg %p179
        %s452 = sand.u32 %s169, 1
        %s453 = sand.u32 %s169, 1
        %s454 = smul.addr %s453, 12
        %s455 = scalar_lea.vmem [#allocation10], %s454
        %s456 = smul.u32 3, %s24
        %s457 = sadd.s32 %s23, 2
        %s458 = smul.u32 3, %s25
        %s459 = sadd.s32 %s23, 4
        %s460 = smul.u32 3, %s25
        %s461 = smul.u32 3, %s24
        %p463 = scmp.eq.s32.totalorder %s25, 0
        // Predicated region
        $region164: #{mllama_vision_forward.28} parent=146 // pred_check
          %p464 = pneg %p463
        $region165: #{mllama_vision_forward.28} parent=146 // pred_check_branch
          %466 = sbr.rel (%p464) target = $region167
        $region166: #{mllama_vision_forward.28} parent=146 // pred_region
          %vm467 = vcmask 7168
          %468 = vst.msk [vmem:[#allocation2] sm:$0xff] %vm467, -inf
          %469 = vst.msk [vmem:[#allocation2 + $0x8] sm:$0xff] %vm467, -inf
          %470 = vst.msk [vmem:[#allocation2 + $0x10] sm:$0xff] %vm467, -inf
          %471 = vst.msk [vmem:[#allocation3] sm:$0xff] %vm467, 0.0
          %472 = vst.msk [vmem:[#allocation3 + $0x8] sm:$0xff] %vm467, 0.0
          %473 = vst.msk [vmem:[#allocation3 + $0x10] sm:$0xff] %vm467, 0.0
          %474 = vst [vmem:[#allocation4] sm:$0xff] 0.0
          %475 = vst [vmem:[#allocation4 + $0x8] sm:$0xff] 0.0
          %476 = vst [vmem:[#allocation4 + $0x10] sm:$0xff] 0.0
        $region167: #{mllama_vision_forward.28} parent=146 // pred_fallthru
          _
        %v477 = vld [vmem:[%s411] sm:$0xf]
        %v478 = vld [vmem:[%s411 + $0x4] sm:$0xf]
        %v479 = vld [vmem:[%s411 + $0x8] sm:$0xf]
        %v480 = vld [vmem:[%s418] sm:$0xf]
        %v481 = vld [vmem:[%s418 + $0x4] sm:$0xf]
        %v482 = vld [vmem:[%s418 + $0x8] sm:$0xf]
        %v486 = vunpack.c.l.b16 %v477
        %v487 = vunpack.c.l.b16 %v478
        %v488 = vunpack.c.l.b16 %v479
        %v489 = vpack.c.b16 %v487, %v486
        %v490 = vpack.c.b16 %v488, %v488
        %v496 = vunpack.c.l.b16 %v480
        %v497 = vunpack.c.l.b16 %v481
        %v498 = vunpack.c.l.b16 %v482
        %v499 = vpack.c.b16 %v497, %v496
        %v500 = vpack.c.b16 %v498, %v498
        %503 = vmatprep.subr.bf16.mxu0 0
        %504 = vmatpush1.bf16.xpose.msra.mxu0 %v499
        %505 = vmatprep.subr.bf16.mxu0 0
        %506 = vmatpush1.bf16.xpose.msra.mxu0 %v500
        %507 = vmatprep.subr.bf16.mxu0 0
        %508 = vmatpush1.bf16.xpose.msra.mxu0 0
        %509 = vmatprep.subr.bf16.mxu0 0
        %510 = vmatpush1.bf16.xpose.msra.mxu0 0
        %511 = vmatprep.subr.bf16.mxu0 0
        %512 = vmatpush1.bf16.xpose.msra.mxu0 0
        %513 = vmatprep.subr.bf16.mxu0 0
        %514 = vmatpush1.bf16.xpose.msra.mxu0 0
        %515 = vmatprep.subr.bf16.mxu0 0
        %516 = vmatpush1.bf16.xpose.msra.mxu0 0
        %517 = vmatprep.subr.bf16.mxu0 0
        %518 = vmatpush1.bf16.xpose.msra.mxu0 0
        %519 = vmatprep.subr.bf16.mxu0 0
        %520 = vmatpush1.bf16.xpose.msra.mxu0 0
        %521 = vmatprep.subr.bf16.mxu0 0
        %522 = vmatpush1.bf16.xpose.msra.mxu0 0
        %523 = vmatprep.subr.bf16.mxu0 0
        %524 = vmatpush1.bf16.xpose.msra.mxu0 0
        %525 = vmatprep.subr.bf16.mxu0 0
        %526 = vmatpush1.bf16.xpose.msra.mxu0 0
        %527 = vmatprep.subr.bf16.mxu0 0
        %528 = vmatpush1.bf16.xpose.msra.mxu0 0
        %529 = vmatprep.subr.bf16.mxu0 0
        %530 = vmatpush1.bf16.xpose.msra.mxu0 0
        %531 = vmatprep.subr.bf16.mxu0 0
        %532 = vmatpush1.bf16.xpose.msra.mxu0 0
        %533 = vmatprep.subr.bf16.mxu0 0
        %534 = vmatpush1.bf16.xpose.msra.mxu0 0
        %535 = vmatprep.mubr.bf16.mxu0 0
        %536 = vmatmul.mubr.bf16.gmra.mrb[0].mxu0 %v489
        %v537 = vpop.f32.mrb[0].mxu0
        %v538 = vadd.f32 0.0, %v537
        %v539 = vpop.f32.mrb[0].mxu0
        %v540 = vpop.f32.mrb[0].mxu0
        %v541 = vadd.f32 0.0, %v540
        %v542 = vpop.f32.mrb[0].mxu0
        %543 = vmatprep.mubr.bf16.mxu0 0
        %544 = vmatmul.mubr.bf16.gmra.mrb[0].mxu0 %v490
        %v545 = vpop.f32.mrb[0].mxu0
        %v546 = vadd.f32 0.0, %v545
        %v547 = vpop.f32.mrb[0].mxu0
        %v548 = vpop.f32.mrb[0].mxu0
        %v549 = vpop.f32.mrb[0].mxu0
        %550 = vdwg.mxu0
        %v551 = vmul.f32 %v538, 0.088388346
        %v552 = vmul.f32 %v541, 0.088388346
        %v553 = vmul.f32 %v546, 0.088388346
        %s554 = smul.u32 %s24, 24
        %v555 = vlaneseq
        %v556 = vshrl.u32 %v555, 7
        %v557 = vadd.s32 %v556, 8
        %v558 = vadd.s32 %v556, 16
        %v559 = vstv %s554
        %v560 = vadd.s32 %v559, %v556
        %v561 = vadd.s32 %v559, %v557
        %v562 = vadd.s32 %v559, %v558
        %s563 = smul.u32 %s25, 24
        %v564 = vlaneseq
        %v565 = vand.u32 %v564, 127
        %v566 = vstv %s563
        %v567 = vadd.s32 %v566, %v565
        %vm568 = vcmp.ge.s32.totalorder %v560, 0
        %vm569 = vcmp.ge.s32.totalorder %v561, 0
        %vm570 = vcmp.ge.s32.totalorder %v562, 0
        %vm571 = vcmp.lt.s32.totalorder %v560, 24
        %vm572 = vcmp.lt.s32.totalorder %v561, 24
        %vm573 = vcmp.lt.s32.totalorder %v562, 24
        %vm574 = vmand %vm568, %vm571
        %vm575 = vmand %vm569, %vm572
        %vm576 = vmand %vm570, %vm573
        %vm577 = vcmp.ge.s32.totalorder %v560, 17
        %vm578 = vcmp.ge.s32.totalorder %v561, 17
        %vm579 = vcmp.ge.s32.totalorder %v562, 17
        %vm580 = vmand %vm574, %vm577
        %vm581 = vmand %vm575, %vm578
        %vm582 = vmand %vm576, %vm579
        %s583 = smul.u32 %s22, 128
        %s584 = sld [smem:[#allocation5 + %s583]]
        %s585 = ssub.f32 1.0, %s584
        %v586 = vsel %vm580, 1, 0
        %v587 = vsel %vm581, 1, 0
        %v588 = vsel %vm582, 1, 0
        %v589 = vcvt.s32.f32 %v586
        %v590 = vcvt.s32.f32 %v587
        %v591 = vcvt.s32.f32 %v588
        %v592 = vmax.f32 %v589, 0.0
        %v593 = vmax.f32 %v590, 0.0
        %v594 = vmax.f32 %v591, 0.0
        %v595 = vstv %s585
        %v596 = vsel %vm574, %v595, 0.0
        %v597 = vsel %vm575, %v595, 0.0
        %v598 = vsel %vm576, %v595, 0.0
        %v599 = vmax.f32 %v592, %v596
        %v600 = vmax.f32 %v593, %v597
        %v601 = vmax.f32 %v594, %v598
        %vm602 = vcmp.ge.s32.totalorder %v560, 24
        %vm603 = vcmp.ge.s32.totalorder %v561, 24
        %vm604 = vcmp.ge.s32.totalorder %v562, 24
        %vm605 = vcmp.lt.s32.totalorder %v560, 48
        %vm606 = vcmp.lt.s32.totalorder %v561, 48
        %vm607 = vcmp.lt.s32.totalorder %v562, 48
        %vm608 = vmand %vm602, %vm605
        %vm609 = vmand %vm603, %vm606
        %vm610 = vmand %vm604, %vm607
        %vm611 = vcmp.ge.s32.totalorder %v560, 41
        %vm612 = vcmp.ge.s32.totalorder %v561, 41
        %vm613 = vcmp.ge.s32.totalorder %v562, 41
        %vm614 = vmand %vm608, %vm611
        %vm615 = vmand %vm609, %vm612
        %vm616 = vmand %vm610, %vm613
        %s617 = sadd.s32 %s583, 1
        %s618 = sld [smem:[#allocation5 + %s617]]
        %s619 = ssub.f32 1.0, %s618
        %v620 = vsel %vm614, 1, 0
        %v621 = vsel %vm615, 1, 0
        %v622 = vsel %vm616, 1, 0
        %v623 = vcvt.s32.f32 %v620
        %v624 = vcvt.s32.f32 %v621
        %v625 = vcvt.s32.f32 %v622
        %v626 = vmax.f32 %v599, %v623
        %v627 = vmax.f32 %v600, %v624
        %v628 = vmax.f32 %v601, %v625
        %v629 = vstv %s619
        %v630 = vsel %vm608, %v629, 0.0
        %v631 = vsel %vm609, %v629, 0.0
        %v632 = vsel %vm610, %v629, 0.0
        %v633 = vmax.f32 %v626, %v630
        %v634 = vmax.f32 %v627, %v631
        %v635 = vmax.f32 %v628, %v632
        %v636 = vmul.f32 %v633, -3.3895314e+38
        %v637 = vmul.f32 %v634, -3.3895314e+38
        %v638 = vmul.f32 %v635, -3.3895314e+38
        %vm639 = vcmp.ge.s32.totalorder %v567, 0
        %vm640 = vcmp.lt.s32.totalorder %v567, 24
        %vm641 = vmand %vm639, %vm640
        %vm642 = vcmp.ge.s32.totalorder %v567, 17
        %vm643 = vmand %vm641, %vm642
        %v644 = vsel %vm643, 1, 0
        %v645 = vcvt.s32.f32 %v644
        %v646 = vmax.f32 %v645, 0.0
        %v647 = vsel %vm641, %v595, 0.0
        %v648 = vmax.f32 %v646, %v647
        %vm649 = vcmp.ge.s32.totalorder %v567, 24
        %vm650 = vcmp.lt.s32.totalorder %v567, 48
        %vm651 = vmand %vm649, %vm650
        %vm652 = vcmp.ge.s32.totalorder %v567, 41
        %vm653 = vmand %vm651, %vm652
        %v654 = vsel %vm653, 1, 0
        %v655 = vcvt.s32.f32 %v654
        %v656 = vmax.f32 %v648, %v655
        %v657 = vsel %vm651, %v629, 0.0
        %v658 = vmax.f32 %v656, %v657
        %v659 = vmul.f32 %v636, %v658
        %v660 = vmul.f32 %v637, %v658
        %v661 = vmul.f32 %v638, %v658
        %v662 = vadd.f32 %v551, %v659
        %v663 = vadd.f32 %v552, %v660
        %v664 = vadd.f32 %v553, %v661
        %v665 = vld [vmem:[#allocation2] sm:$0xff]
        %v666 = vld [vmem:[#allocation2 + $0x8] sm:$0xff]
        %v667 = vld [vmem:[#allocation2 + $0x10] sm:$0xff]
        %vm668 = vcmask 195584
        %v669 = vsel %vm668, %v662, -inf
        %670 = vmax.xlane.f32.xlu0 %v669
        %v671 = vpop.xlane.xlu0 %670
        %v672 = vsel %vm668, %v663, -inf
        %673 = vmax.xlane.f32.xlu0 %v672
        %v674 = vpop.xlane.xlu0 %673
        %v675 = vsel %vm668, %v664, -inf
        %676 = vmax.xlane.f32.xlu0 %v675
        %v677 = vpop.xlane.xlu0 %676
        %v678 = vmax.f32 %v665, %v671
        %v679 = vmax.f32 %v666, %v674
        %v680 = vmax.f32 %v667, %v677
        %v681 = vsub.f32 %v665, %v678
        %v682 = vsub.f32 %v666, %v679
        %v683 = vsub.f32 %v667, %v680
        %v684 = vmul.f32 %v681, 1.442695
        %v685 = vpow.pop %v684
        %v686 = vmul.f32 %v682, 1.442695
        %v687 = vpow.pop %v686
        %v688 = vmul.f32 %v683, 1.442695
        %v689 = vpow.pop %v688
        %691 = vset.pattern.permute.xlu0 0
        %692 = vperm.xlu0 %691, %v678
        %v693 = vpop.permute.xlu0 %692
        %696 = vset.pattern.permute.xlu0 0
        %697 = vperm.xlu0 %696, %v679
        %v698 = vpop.permute.xlu0 %697
        %701 = vset.pattern.permute.xlu0 0
        %702 = vperm.xlu0 %701, %v680
        %v703 = vpop.permute.xlu0 %702
        %v705 = vsub.f32 %v662, %v693
        %v706 = vsub.f32 %v663, %v698
        %v707 = vsub.f32 %v664, %v703
        %v708 = vmul.f32 %v705, 1.442695
        %v709 = vpow.pop %v708
        %v710 = vmul.f32 %v706, 1.442695
        %v711 = vpow.pop %v710
        %v712 = vmul.f32 %v707, 1.442695
        %v713 = vpow.pop %v712
        %v714 = vld [vmem:[#allocation3] sm:$0xff]
        %v715 = vld [vmem:[#allocation3 + $0x8] sm:$0xff]
        %v716 = vld [vmem:[#allocation3 + $0x10] sm:$0xff]
        %v717 = vmul.f32 %v685, %v714
        %v718 = vmul.f32 %v687, %v715
        %v719 = vmul.f32 %v689, %v716
        %v720 = vsel %vm668, %v709, 0.0
        %721 = vadd.xlane.f32.xlu0 %v720
        %v722 = vpop.xlane.xlu0 %721
        %v723 = vsel %vm668, %v711, 0.0
        %724 = vadd.xlane.f32.xlu0 %v723
        %v725 = vpop.xlane.xlu0 %724
        %v726 = vsel %vm668, %v713, 0.0
        %727 = vadd.xlane.f32.xlu0 %v726
        %v728 = vpop.xlane.xlu0 %727
        %v729 = vadd.f32 %v717, %v722
        %v730 = vadd.f32 %v718, %v725
        %v731 = vadd.f32 %v719, %v728
        %vm732 = vcmask 7168
        %733 = vst.msk [vmem:[#allocation3] sm:$0xff] %vm732, %v729
        %734 = vst.msk [vmem:[#allocation3 + $0x8] sm:$0xff] %vm732, %v730
        %735 = vst.msk [vmem:[#allocation3 + $0x10] sm:$0xff] %vm732, %v731
        %v736 = vld [vmem:[#allocation4] sm:$0xff]
        %v737 = vld [vmem:[#allocation4 + $0x8] sm:$0xff]
        %v738 = vld [vmem:[#allocation4 + $0x10] sm:$0xff]
        %740 = vset.pattern.permute.xlu0 0
        %741 = vperm.xlu0 %740, %v685
        %v742 = vpop.permute.xlu0 %741
        %745 = vset.pattern.permute.xlu0 0
        %746 = vperm.xlu0 %745, %v687
        %v747 = vpop.permute.xlu0 %746
        %750 = vset.pattern.permute.xlu0 0
        %751 = vperm.xlu0 %750, %v689
        %v752 = vpop.permute.xlu0 %751
        %v754 = vmul.f32 %v742, %v736
        %v755 = vmul.f32 %v747, %v737
        %v756 = vmul.f32 %v752, %v738
        %v757 = vpack.c.bf16 %v711, %v709
        %v758 = vpack.c.bf16 %v713, %v713
        %v759 = vld [vmem:[%s425] sm:$0xf]
        %v760 = vld [vmem:[%s425 + $0x4] sm:$0xf]
        %v761 = vld [vmem:[%s425 + $0x8] sm:$0xf]
        %v765 = vunpack.c.l.b16 %v759
        %v766 = vunpack.c.l.b16 %v760
        %v767 = vunpack.c.l.b16 %v761
        %v768 = vpack.c.b16 %v766, %v765
        %v769 = vpack.c.b16 %v767, %v767
        %v772 = vsel %vm668, %v757, 0
        %v775 = vsel %vm668, %v758, 0
        %vm777 = vcmask 1043456
        %v779 = vsel %vm777, %v769, 0
        %781 = vmatprep.subr.bf16.mxu0 0
        %782 = vmatpush1.bf16.msra.mxu0 %v768
        %783 = vmatprep.subr.bf16.mxu0 0
        %784 = vmatpush1.bf16.msra.mxu0 %v779
        %785 = vmatprep.subr.bf16.mxu0 0
        %786 = vmatpush1.bf16.msra.mxu0 0
        %787 = vmatprep.subr.bf16.mxu0 0
        %788 = vmatpush1.bf16.msra.mxu0 0
        %789 = vmatprep.subr.bf16.mxu0 0
        %790 = vmatpush1.bf16.msra.mxu0 0
        %791 = vmatprep.subr.bf16.mxu0 0
        %792 = vmatpush1.bf16.msra.mxu0 0
        %793 = vmatprep.subr.bf16.mxu0 0
        %794 = vmatpush1.bf16.msra.mxu0 0
        %795 = vmatprep.subr.bf16.mxu0 0
        %796 = vmatpush1.bf16.msra.mxu0 0
        %797 = vmatprep.subr.bf16.mxu0 0
        %798 = vmatpush1.bf16.msra.mxu0 0
        %799 = vmatprep.subr.bf16.mxu0 0
        %800 = vmatpush1.bf16.msra.mxu0 0
        %801 = vmatprep.subr.bf16.mxu0 0
        %802 = vmatpush1.bf16.msra.mxu0 0
        %803 = vmatprep.subr.bf16.mxu0 0
        %804 = vmatpush1.bf16.msra.mxu0 0
        %805 = vmatprep.subr.bf16.mxu0 0
        %806 = vmatpush1.bf16.msra.mxu0 0
        %807 = vmatprep.subr.bf16.mxu0 0
        %808 = vmatpush1.bf16.msra.mxu0 0
        %809 = vmatprep.subr.bf16.mxu0 0
        %810 = vmatpush1.bf16.msra.mxu0 0
        %811 = vmatprep.subr.bf16.mxu0 0
        %812 = vmatpush1.bf16.msra.mxu0 0
        %813 = vmatprep.mubr.bf16.mxu0 0
        %814 = vmatmul.mubr.bf16.gmra.mrb[0].mxu0 %v772
        %v815 = vpop.f32.mrb[0].mxu0
        %v816 = vadd.f32 0.0, %v815
        %v817 = vpop.f32.mrb[0].mxu0
        %v818 = vpop.f32.mrb[0].mxu0
        %v819 = vadd.f32 0.0, %v818
        %v820 = vpop.f32.mrb[0].mxu0
        %821 = vmatprep.mubr.bf16.mxu0 0
        %822 = vmatmul.mubr.bf16.gmra.mrb[0].mxu0 %v775
        %v823 = vpop.f32.mrb[0].mxu0
        %v824 = vadd.f32 0.0, %v823
        %v825 = vpop.f32.mrb[0].mxu0
        %v826 = vpop.f32.mrb[0].mxu0
        %v827 = vpop.f32.mrb[0].mxu0
        %828 = vdwg.mxu0
        %v829 = vadd.f32 %v754, %v816
        %v830 = vadd.f32 %v755, %v819
        %v831 = vadd.f32 %v756, %v824
        %832 = vst [vmem:[#allocation4] sm:$0xff] %v829
        %833 = vst [vmem:[#allocation4 + $0x8] sm:$0xff] %v830
        %834 = vst [vmem:[#allocation4 + $0x10] sm:$0xff] %v831
        %835 = vst.msk [vmem:[#allocation2] sm:$0xff] %vm732, %v678
        %836 = vst.msk [vmem:[#allocation2 + $0x8] sm:$0xff] %vm732, %v679
        %837 = vst.msk [vmem:[#allocation2 + $0x10] sm:$0xff] %vm732, %v680
        %p838 = scmp.eq.s32.totalorder %s25, 1
        // Predicated region
        $region168: #{mllama_vision_forward.28} parent=146 // pred_check
          %p839 = pneg %p838
        $region169: #{mllama_vision_forward.28} parent=146 // pred_check_branch
          %841 = sbr.rel (%p839) target = $region171
        $region170: #{mllama_vision_forward.28} parent=146 // pred_region
          %v842 = vld [vmem:[#allocation4] sm:$0xff]
          %v843 = vld [vmem:[#allocation4 + $0x8] sm:$0xff]
          %v844 = vld [vmem:[#allocation4 + $0x10] sm:$0xff]
          %v845 = vld [vmem:[#allocation3] sm:$0xff]
          %v846 = vld [vmem:[#allocation3 + $0x8] sm:$0xff]
          %v847 = vld [vmem:[#allocation3 + $0x10] sm:$0xff]
          %v848 = vrcp.pop %v845
          %v849 = vrcp.pop %v846
          %v850 = vrcp.pop %v847
          %852 = vset.pattern.permute.xlu0 0
          %853 = vperm.xlu0 %852, %v848
          %v854 = vpop.permute.xlu0 %853
          %857 = vset.pattern.permute.xlu0 0
          %858 = vperm.xlu0 %857, %v849
          %v859 = vpop.permute.xlu0 %858
          %862 = vset.pattern.permute.xlu0 0
          %863 = vperm.xlu0 %862, %v850
          %v864 = vpop.permute.xlu0 %863
          %v866 = vmul.f32 %v842, %v854
          %v867 = vmul.f32 %v843, %v859
          %v868 = vmul.f32 %v844, %v864
          %v869 = vpack.c.bf16 %v867, %v866
          %v870 = vpack.c.bf16 %v868, %v868
          %v873 = vunpack.c.l.b16 %v869
          %v874 = vunpack.c.h.b16 %v869
          %v875 = vunpack.c.l.b16 %v870
          %v876 = vpack.c.b16 %v873, %v873
          %v877 = vpack.c.b16 %v874, %v874
          %v878 = vpack.c.b16 %v875, %v875
          %882 = vst [vmem:[%s455] sm:$0xf] %v876
          %883 = vst [vmem:[%s455 + $0x4] sm:$0xf] %v877
          %884 = vst [vmem:[%s455 + $0x8] sm:$0xf] %v878
        $region171: #{mllama_vision_forward.28} parent=146 // pred_fallthru
          _
        %s885 = sand.u32 %s169, 1
        %s886 = sand.u32 %s169, 1
        %s887 = smul.addr %s886, 12
        %s888 = scalar_lea.vmem [#allocation10], %s887
        // Predicated region
        $region172: #{mllama_vision_forward.28} parent=146 // pred_check
          %p889 = pneg %p179
        $region173: #{mllama_vision_forward.28} parent=146 // pred_check_branch
          %891 = sbr.rel (%p889) target = $region175
        $region174: #{mllama_vision_forward.28} parent=146 // pred_region
          %s892 = smul.u32 3, %s24
          %s893 = smul.addr %s892, 2
          %s894 = sadd.s32 %s23, %s893
          %s895 = smul.addr %s22, 12
          %s896 = sadd.s32 %s894, %s895
          %s897 = smul.addr %s896, 4
          %s898 = scalar_lea.vmem %s4, %s897
          // Predicated region
          $region176: #{mllama_vision_forward.28} parent=174 // pred_check
            _
          $region177: #{mllama_vision_forward.28} parent=174 // pred_check_branch
            %900 = sbr.rel (0) target = $region179
          $region178: #{mllama_vision_forward.28} parent=174 // pred_region
            // Predicated region
            $region180: #{mllama_vision_forward.28} parent=178 // pred_check
              _
            $region181: #{mllama_vision_forward.28} parent=178 // pred_check_branch
              %902 = sbr.rel target = $region183
            $region182: #{mllama_vision_forward.28} parent=178 // pred_region
              // Predicated region
              $region195: #{mllama_vision_forward.28} parent=182 // pred_check
                _
              $region196: #{mllama_vision_forward.28} parent=182 // pred_check_branch
                %921 = sbr.rel (0) target = $region198
              $region197: #{mllama_vision_forward.28} parent=182 // pred_region
                loop: start=0, step=1, limit=1
                $region199: #{mllama_vision_forward.28} parent=197 // loop_pre_header
                  _
                $region200: #{mllama_vision_forward.28} parent=197 // loop_header
                  %s923 = sphi 0, %s927
                  %p924 = scmp.ge.s32.totalorder %s923, 1
                  %s928 = sphi %s888, %s888
                  %s929 = sphi %s898, %s898
                $region201: #{mllama_vision_forward.28} parent=197 // loop_header_branch
                  %926 = sbr.rel (%p924) target = $region205
                $region202: #{mllama_vision_forward.28} parent=197 // loop_body
                  _
                $region203: #{mllama_vision_forward.28} parent=197 // loop_footer
                  %s927 = sadd.s32 1, %s923
                $region204: #{mllama_vision_forward.28} parent=197 // loop_footer_branch
                  %922 = sbr.rel target = $region200
                $region205: #{mllama_vision_forward.28} parent=197 // loop_exit
                  _
                loop: start=0, step=1, limit=1
                $region206: #{mllama_vision_forward.28} parent=197 // loop_pre_header
                  _
                $region207: #{mllama_vision_forward.28} parent=197 // loop_header
                  %s932 = sphi 0, %s936
                  %p933 = scmp.ge.s32.totalorder %s932, 1
                  %s937 = sphi %s888, %s888
                  %s938 = sphi %s898, %s898
                $region208: #{mllama_vision_forward.28} parent=197 // loop_header_branch
                  %935 = sbr.rel (%p933) target = $region212
                $region209: #{mllama_vision_forward.28} parent=197 // loop_body
                  %v939 = vld [vmem:[%s937] sm:$0xf]
                  %940 = vst [vmem:[%s938] sm:$0xf] %v939
                  %v941 = vld [vmem:[%s937 + $0x4] sm:$0xf]
                  %942 = vst [vmem:[%s938 + $0x8] sm:$0xf] %v941
                  %v943 = vld [vmem:[%s937 + $0x8] sm:$0xf]
                  %944 = vst [vmem:[%s938 + $0x10] sm:$0xf] %v943
                $region210: #{mllama_vision_forward.28} parent=197 // loop_footer
                  %s936 = sadd.s32 1, %s932
                $region211: #{mllama_vision_forward.28} parent=197 // loop_footer_branch
                  %931 = sbr.rel target = $region207
                $region212: #{mllama_vision_forward.28} parent=197 // loop_exit
                  _
              $region198: #{mllama_vision_forward.28} parent=182 // pred_fallthru
                _
            $region183: #{mllama_vision_forward.28} parent=178 // pred_fallthru
              _
            // Predicated region
            $region184: #{mllama_vision_forward.28} parent=178 // pred_check
              _
            $region185: #{mllama_vision_forward.28} parent=178 // pred_check_branch
              %904 = sbr.rel (0) target = $region187
            $region186: #{mllama_vision_forward.28} parent=178 // pred_region
              loop: start=0, step=1, limit=1
              $region188: #{mllama_vision_forward.28} parent=186 // loop_pre_header
                _
              $region189: #{mllama_vision_forward.28} parent=186 // loop_header
                %s907 = sphi 0, %s911
                %p908 = scmp.ge.s32.totalorder %s907, 1
                %s912 = sphi %s888, %s888
                %s913 = sphi %s898, %s898
              $region190: #{mllama_vision_forward.28} parent=186 // loop_header_branch
                %910 = sbr.rel (%p908) target = $region194
              $region191: #{mllama_vision_forward.28} parent=186 // loop_body
                %v914 = vld [vmem:[%s912] sm:$0xf]
                %915 = vst [vmem:[%s913] sm:$0xf] %v914
                %v916 = vld [vmem:[%s912 + $0x4] sm:$0xf]
                %917 = vst [vmem:[%s913 + $0x8] sm:$0xf] %v916
                %v918 = vld [vmem:[%s912 + $0x8] sm:$0xf]
                %919 = vst [vmem:[%s913 + $0x10] sm:$0xf] %v918
              $region192: #{mllama_vision_forward.28} parent=186 // loop_footer
                %s911 = sadd.s32 1, %s907
              $region193: #{mllama_vision_forward.28} parent=186 // loop_footer_branch
                %906 = sbr.rel target = $region189
              $region194: #{mllama_vision_forward.28} parent=186 // loop_exit
                _
            $region187: #{mllama_vision_forward.28} parent=178 // pred_fallthru
              _
          $region179: #{mllama_vision_forward.28} parent=174 // pred_fallthru
            _
          %945 = vnop
        $region175: #{mllama_vision_forward.28} parent=146 // pred_fallthru
          _
      $region147: #{mllama_vision_forward.28} parent=5 // pred_fallthru
        _
      %p946 = scmp.le.s32.totalorder 2, %s11
      // Predicated region
      $region213: #{mllama_vision_forward.28} parent=5 // pred_check
        %p947 = pneg %p946
      $region214: #{mllama_vision_forward.28} parent=5 // pred_check_branch
        %949 = sbr.rel (%p947) target = $region216
      $region215: #{mllama_vision_forward.28} parent=5 // pred_region
        %s950 = ssub.s32 %s11, 2
        // Predicated region
        $region217: #{mllama_vision_forward.28} parent=215 // pred_check
          %p951 = pneg %p185
        $region218: #{mllama_vision_forward.28} parent=215 // pred_check_branch
          %953 = sbr.rel (%p951) target = $region220
        $region219: #{mllama_vision_forward.28} parent=215 // pred_region
          %s954 = sand.u32 %s170, 1
          %s955 = sand.u32 %s170, 1
          %s956 = smul.addr %s955, 12
          %s957 = scalar_lea.vmem [#allocation10], %s956
        $region220: #{mllama_vision_forward.28} parent=215 // pred_fallthru
          _
      $region216: #{mllama_vision_forward.28} parent=5 // pred_fallthru
        _
    $region6: #{mllama_vision_forward.28} parent=1 // loop_footer
      %s15 = sadd.s32 1, %s11
    $region7: #{mllama_vision_forward.28} parent=1 // loop_footer_branch
      %10 = sbr.rel target = $region3
    $region8: #{mllama_vision_forward.28} parent=1 // loop_exit
      _
    %958 = vsyncpa [#allocation6], 1
    %s959 = scalar_lea.sflag [#allocation6], 1
    %960 = vsyncpa %s959, 1

// kernel: mllama_vision_forward.31
$region0: #{mllama_vision_forward.31}
  #allocation0 [shape = 'u32[]', space=smem, size = 0x4, offset = 0x4, fixed_abs, tag = 'smem constant byte address 0x4 - core index']
  #allocation1 [shape = 'u32[144,128]{1,0:T(1,128)}', space=vmem, size = 0x12000, scoped, tag = 'internal scratch']
  #allocation2 [shape = 'f32[48,256]{1,0:T(8,128)}', space=vmem, size = 0xc000, scoped, tag = 'scratch operand']
  %s0 = inlined_call_operand.vmem [shape: bf16[48,256], index: 0, kind: input, shape index: {}]
  %s1 = inlined_call_operand.vmem [shape: bf16[256,512], index: 1, kind: input, shape index: {}]
  %s2 = inlined_call_operand.vmem [shape: f32[1,512], index: 2, kind: input, shape index: {}]
  %s3 = inlined_call_operand.vmem [shape: bf16[48,512], index: 3, kind: output, shape index: {}]
  %s4 = sld [smem:[#allocation0]]
  $region125: #{mllama_vision_forward.31} parent=0
    _
  %s6 = ssub.s32 1, %s4
  %s7 = scalar_select 0, %s6, %s4
  $region1: #{mllama_vision_forward.31} parent=0
    #allocation3 [shape = 'u8[262144]{0}', space=vmem, size = 0x40000, scoped, tag = 'input window, operand 1']
    #allocation4 [shape = 'u8[49152]{0}', space=vmem, size = 0xc000, scoped, tag = 'output window, operand 0']
    loop: start=0, step=1, limit=4
    $region2: #{mllama_vision_forward.31} parent=1 // loop_pre_header
      _
    $region3: #{mllama_vision_forward.31} parent=1 // loop_header
      %s9 = sphi 0, %s13
      %p10 = scmp.ge.s32.totalorder %s9, 4
      %s16 = sphi 0, %s35
      %s17 = sphi 0, %s31
      %s18 = sphi 0, %s27
      %s19 = sphi 0, %s16
      %s20 = sphi 0, %s17
      %s21 = sphi 0, %s18
      %s22 = sphi 0, %s19
      %s23 = sphi 0, %s20
      %s24 = sphi 0, %s21
      %s40 = sphi 0, %s42
      %s43 = sphi 0, %s40
      %s44 = sphi 0, %s43
      %s60 = sphi 0, %s44
      %s68 = sphi 0, %s70
      %s71 = sphi 0, %s68
      %s72 = sphi 0, %s71
      %s88 = sphi 0, %s72
      %s94 = sphi 0, %s96
      %s97 = sphi 0, %s94
      %s98 = sphi 0, %s97
      %s114 = sphi 0, %s98
      %s122 = sphi 0, %s124
      %s125 = sphi 0, %s122
      %s126 = sphi 0, %s125
      %s142 = sphi 0, %s126
    $region4: #{mllama_vision_forward.31} parent=1 // loop_header_branch
      %12 = sbr.rel (%p10) target = $region8
    $region5: #{mllama_vision_forward.31} parent=1 // loop_body
      %s14 = ssub.s32 %s9, 1
      %s15 = ssub.s32 %s9, 2
      %s25 = sadd.s32 1, %s18
      %p26 = scmp.ge.s32.totalorder %s25, 1
      %s27 = scalar_select %p26, 0, %s25
      %s28 = sadd.s32 1, %s17
      %s29 = scalar_select %p26, %s28, %s17
      %p30 = scmp.ge.s32.totalorder %s29, 2
      %s31 = scalar_select %p30, 0, %s29
      %s32 = sadd.s32 1, %s16
      %s33 = scalar_select %p30, %s32, %s16
      %p34 = scmp.ge.s32.totalorder %s33, 1
      %s35 = scalar_select %p34, 0, %s33
      %s36 = ssub.s32 %s16, %s35
      %s37 = ssub.s32 %s18, %s27
      %s38 = sor.u32 %s36, %s37
      %p39 = scmp.eq.s32.totalorder %s38, 0
      %s41 = sadd.s32 %s40, 1
      %s42 = scalar_select %p39, %s40, %s41
      %p45 = pneg %p39
      %p46 = scmp.eq.s32.totalorder %s9, 1
      %p47 = por %p45, %p46
      %p48 = scmp.ne.s32.totalorder %s40, %s43
      %p49 = scmp.eq.s32.totalorder %s9, 0
      %p50 = por %p48, %p49
      %p51 = scmp.ne.s32.totalorder %s40, %s43
      %p52 = scmp.eq.s32.totalorder %s14, 1
      %p53 = por %p51, %p52
      %p54 = scmp.ne.s32.totalorder %s43, %s44
      %p55 = scmp.eq.s32.totalorder %s14, 0
      %p56 = por %p54, %p55
      %p57 = scmp.ne.s32.totalorder %s43, %s44
      %p58 = scmp.eq.s32.totalorder %s15, 1
      %p59 = por %p57, %p58
      %p61 = scmp.ne.s32.totalorder %s44, %s60
      %p62 = scmp.eq.s32.totalorder %s15, 0
      %p63 = por %p61, %p62
      %s64 = ssub.s32 %s18, %s27
      %s65 = ssub.s32 %s17, %s31
      %s66 = sor.u32 %s64, %s65
      %p67 = scmp.eq.s32.totalorder %s66, 0
      %s69 = sadd.s32 %s68, 1
      %s70 = scalar_select %p67, %s68, %s69
      %p73 = pneg %p67
      %p74 = scmp.eq.s32.totalorder %s9, 1
      %p75 = por %p73, %p74
      %p76 = scmp.ne.s32.totalorder %s68, %s71
      %p77 = scmp.eq.s32.totalorder %s9, 0
      %p78 = por %p76, %p77
      %p79 = scmp.ne.s32.totalorder %s68, %s71
      %p80 = scmp.eq.s32.totalorder %s14, 1
      %p81 = por %p79, %p80
      %p82 = scmp.ne.s32.totalorder %s71, %s72
      %p83 = scmp.eq.s32.totalorder %s14, 0
      %p84 = por %p82, %p83
      %p85 = scmp.ne.s32.totalorder %s71, %s72
      %p86 = scmp.eq.s32.totalorder %s15, 1
      %p87 = por %p85, %p86
      %p89 = scmp.ne.s32.totalorder %s72, %s88
      %p90 = scmp.eq.s32.totalorder %s15, 0
      %p91 = por %p89, %p90
      %s92 = ssub.s32 %s17, %s31
      %p93 = scmp.eq.s32.totalorder %s92, 0
      %s95 = sadd.s32 %s94, 1
      %s96 = scalar_select %p93, %s94, %s95
      %p99 = pneg %p93
      %p100 = scmp.eq.s32.totalorder %s9, 1
      %p101 = por %p99, %p100
      %p102 = scmp.ne.s32.totalorder %s94, %s97
      %p103 = scmp.eq.s32.totalorder %s9, 0
      %p104 = por %p102, %p103
      %p105 = scmp.ne.s32.totalorder %s94, %s97
      %p106 = scmp.eq.s32.totalorder %s14, 1
      %p107 = por %p105, %p106
      %p108 = scmp.ne.s32.totalorder %s97, %s98
      %p109 = scmp.eq.s32.totalorder %s14, 0
      %p110 = por %p108, %p109
      %p111 = scmp.ne.s32.totalorder %s97, %s98
      %p112 = scmp.eq.s32.totalorder %s15, 1
      %p113 = por %p111, %p112
      %p115 = scmp.ne.s32.totalorder %s98, %s114
      %p116 = scmp.eq.s32.totalorder %s15, 0
      %p117 = por %p115, %p116
      %s118 = ssub.s32 %s16, %s35
      %s119 = ssub.s32 %s17, %s31
      %s120 = sor.u32 %s118, %s119
      %p121 = scmp.eq.s32.totalorder %s120, 0
      %s123 = sadd.s32 %s122, 1
      %s124 = scalar_select %p121, %s122, %s123
      %p127 = pneg %p121
      %p128 = scmp.eq.s32.totalorder %s9, 1
      %p129 = por %p127, %p128
      %p130 = scmp.ne.s32.totalorder %s122, %s125
      %p131 = scmp.eq.s32.totalorder %s9, 0
      %p132 = por %p130, %p131
      %p133 = scmp.ne.s32.totalorder %s122, %s125
      %p134 = scmp.eq.s32.totalorder %s14, 1
      %p135 = por %p133, %p134
      %p136 = scmp.ne.s32.totalorder %s125, %s126
      %p137 = scmp.eq.s32.totalorder %s14, 0
      %p138 = por %p136, %p137
      %p139 = scmp.ne.s32.totalorder %s125, %s126
      %p140 = scmp.eq.s32.totalorder %s15, 1
      %p141 = por %p139, %p140
      %p143 = scmp.ne.s32.totalorder %s126, %s142
      %p144 = scmp.eq.s32.totalorder %s15, 0
      %p145 = por %p143, %p144
      %p146 = scmp.le.s32.totalorder 1, %s9
      %p147 = scmp.lt.s32.totalorder %s9, 3
      %p148 = pnand %p146, %p147
      %p149 = pneg %p148
      // Predicated region
      $region9: #{mllama_vision_forward.31} parent=5 // pred_check
        _
      $region10: #{mllama_vision_forward.31} parent=5 // pred_check_branch
        %151 = sbr.rel (%p148) target = $region12
      $region11: #{mllama_vision_forward.31} parent=5 // pred_region
        %s152 = ssub.s32 %s9, 1
        // Predicated region
        $region13: #{mllama_vision_forward.31} parent=11 // pred_check
          %p153 = pneg %p56
        $region14: #{mllama_vision_forward.31} parent=11 // pred_check_branch
          %155 = sbr.rel (%p153) target = $region16
        $region15: #{mllama_vision_forward.31} parent=11 // pred_region
          %s156 = smul.u32 6, %s19
          %s157 = smul.u32 2, %s21
          %p158 = scmp.lt.s32.totalorder %s156, 5
          %s159 = scalar_select %p158, %s156, 5
          %p160 = scmp.lt.s32.totalorder %s157, 1
          %s161 = scalar_select %p160, %s157, 1
          %s162 = smul.addr %s159, 2
          %s163 = sadd.s32 %s161, %s162
          %s164 = smul.addr %s163, 4
          %s165 = scalar_lea.vmem %s0, %s164
          %s166 = smul.u32 6, %s19
          %s167 = smul.u32 2, %s21
        $region16: #{mllama_vision_forward.31} parent=11 // pred_fallthru
          _
      $region12: #{mllama_vision_forward.31} parent=5 // pred_fallthru
        _
      %p168 = scmp.lt.s32.totalorder %s9, 2
      // Predicated region
      $region17: #{mllama_vision_forward.31} parent=5 // pred_check
        %p169 = pneg %p168
      $region18: #{mllama_vision_forward.31} parent=5 // pred_check_branch
        %171 = sbr.rel (%p169) target = $region20
      $region19: #{mllama_vision_forward.31} parent=5 // pred_region
        // Predicated region
        $region21: #{mllama_vision_forward.31} parent=19 // pred_check
          %p172 = pneg %p78
        $region22: #{mllama_vision_forward.31} parent=19 // pred_check_branch
          %174 = sbr.rel (%p172) target = $region24
        $region23: #{mllama_vision_forward.31} parent=19 // pred_region
          %s175 = sand.u32 %s68, 1
          %s176 = sand.u32 %s68, 1
          %s177 = smul.addr %s176, 256
          %s178 = scalar_lea.vmem [#allocation3], %s177
          %s179 = smul.u32 32, %s18
          %s180 = smul.u32 2, %s17
          %s181 = smul.addr %s179, 4
          %s182 = sadd.s32 %s180, %s181
          %s183 = smul.addr %s182, 4
          %s184 = scalar_lea.vmem %s1, %s183
          // Predicated region
          $region25: #{mllama_vision_forward.31} parent=23 // pred_check
            _
          $region26: #{mllama_vision_forward.31} parent=23 // pred_check_branch
            %186 = sbr.rel (0) target = $region28
          $region27: #{mllama_vision_forward.31} parent=23 // pred_region
            // Predicated region
            $region29: #{mllama_vision_forward.31} parent=27 // pred_check
              _
            $region30: #{mllama_vision_forward.31} parent=27 // pred_check_branch
              %188 = sbr.rel (0) target = $region32
            $region31: #{mllama_vision_forward.31} parent=27 // pred_region
              // Predicated region
              $region44: #{mllama_vision_forward.31} parent=31 // pred_check
                _
              $region45: #{mllama_vision_forward.31} parent=31 // pred_check_branch
                %265 = sbr.rel (0) target = $region47
              $region46: #{mllama_vision_forward.31} parent=31 // pred_region
                loop: start=0, step=1, limit=1
                $region48: #{mllama_vision_forward.31} parent=46 // loop_pre_header
                  _
                $region49: #{mllama_vision_forward.31} parent=46 // loop_header
                  %s267 = sphi 0, %s271
                  %p268 = scmp.ge.s32.totalorder %s267, 1
                  %s272 = sphi %s184, %s184
                  %s273 = sphi %s178, %s178
                $region50: #{mllama_vision_forward.31} parent=46 // loop_header_branch
                  %270 = sbr.rel (%p268) target = $region54
                $region51: #{mllama_vision_forward.31} parent=46 // loop_body
                  %v274 = vld [vmem:[%s272] sm:$0xff]
                  %275 = vst [vmem:[%s273] sm:$0xff] %v274
                  %v276 = vld [vmem:[%s272 + $0x10] sm:$0xff]
                  %277 = vst [vmem:[%s273 + $0x8] sm:$0xff] %v276
                  %v278 = vld [vmem:[%s272 + $0x20] sm:$0xff]
                  %279 = vst [vmem:[%s273 + $0x10] sm:$0xff] %v278
                  %v280 = vld [vmem:[%s272 + $0x30] sm:$0xff]
                  %281 = vst [vmem:[%s273 + $0x18] sm:$0xff] %v280
                  %v282 = vld [vmem:[%s272 + $0x40] sm:$0xff]
                  %283 = vst [vmem:[%s273 + $0x20] sm:$0xff] %v282
                  %v284 = vld [vmem:[%s272 + $0x50] sm:$0xff]
                  %285 = vst [vmem:[%s273 + $0x28] sm:$0xff] %v284
                  %v286 = vld [vmem:[%s272 + $0x60] sm:$0xff]
                  %287 = vst [vmem:[%s273 + $0x30] sm:$0xff] %v286
                  %v288 = vld [vmem:[%s272 + $0x70] sm:$0xff]
                  %289 = vst [vmem:[%s273 + $0x38] sm:$0xff] %v288
                  %v290 = vld [vmem:[%s272 + $0x80] sm:$0xff]
                  %291 = vst [vmem:[%s273 + $0x40] sm:$0xff] %v290
                  %v292 = vld [vmem:[%s272 + $0x90] sm:$0xff]
                  %293 = vst [vmem:[%s273 + $0x48] sm:$0xff] %v292
                  %v294 = vld [vmem:[%s272 + $0xa0] sm:$0xff]
                  %295 = vst [vmem:[%s273 + $0x50] sm:$0xff] %v294
                  %v296 = vld [vmem:[%s272 + $0xb0] sm:$0xff]
                  %297 = vst [vmem:[%s273 + $0x58] sm:$0xff] %v296
                  %v298 = vld [vmem:[%s272 + $0xc0] sm:$0xff]
                  %299 = vst [vmem:[%s273 + $0x60] sm:$0xff] %v298
                  %v300 = vld [vmem:[%s272 + $0xd0] sm:$0xff]
                  %301 = vst [vmem:[%s273 + $0x68] sm:$0xff] %v300
                  %v302 = vld [vmem:[%s272 + $0xe0] sm:$0xff]
                  %303 = vst [vmem:[%s273 + $0x70] sm:$0xff] %v302
                  %v304 = vld [vmem:[%s272 + $0xf0] sm:$0xff]
                  %305 = vst [vmem:[%s273 + $0x78] sm:$0xff] %v304
                  %v306 = vld [vmem:[%s272 + $0x100] sm:$0xff]
                  %307 = vst [vmem:[%s273 + $0x80] sm:$0xff] %v306
                  %v308 = vld [vmem:[%s272 + $0x110] sm:$0xff]
                  %309 = vst [vmem:[%s273 + $0x88] sm:$0xff] %v308
                  %v310 = vld [vmem:[%s272 + $0x120] sm:$0xff]
                  %311 = vst [vmem:[%s273 + $0x90] sm:$0xff] %v310
                  %v312 = vld [vmem:[%s272 + $0x130] sm:$0xff]
                  %313 = vst [vmem:[%s273 + $0x98] sm:$0xff] %v312
                  %v314 = vld [vmem:[%s272 + $0x140] sm:$0xff]
                  %315 = vst [vmem:[%s273 + $0xa0] sm:$0xff] %v314
                  %v316 = vld [vmem:[%s272 + $0x150] sm:$0xff]
                  %317 = vst [vmem:[%s273 + $0xa8] sm:$0xff] %v316
                  %v318 = vld [vmem:[%s272 + $0x160] sm:$0xff]
                  %319 = vst [vmem:[%s273 + $0xb0] sm:$0xff] %v318
                  %v320 = vld [vmem:[%s272 + $0x170] sm:$0xff]
                  %321 = vst [vmem:[%s273 + $0xb8] sm:$0xff] %v320
                  %v322 = vld [vmem:[%s272 + $0x180] sm:$0xff]
                  %323 = vst [vmem:[%s273 + $0xc0] sm:$0xff] %v322
                  %v324 = vld [vmem:[%s272 + $0x190] sm:$0xff]
                  %325 = vst [vmem:[%s273 + $0xc8] sm:$0xff] %v324
                  %v326 = vld [vmem:[%s272 + $0x1a0] sm:$0xff]
                  %327 = vst [vmem:[%s273 + $0xd0] sm:$0xff] %v326
                  %v328 = vld [vmem:[%s272 + $0x1b0] sm:$0xff]
                  %329 = vst [vmem:[%s273 + $0xd8] sm:$0xff] %v328
                  %v330 = vld [vmem:[%s272 + $0x1c0] sm:$0xff]
                  %331 = vst [vmem:[%s273 + $0xe0] sm:$0xff] %v330
                  %v332 = vld [vmem:[%s272 + $0x1d0] sm:$0xff]
                  %333 = vst [vmem:[%s273 + $0xe8] sm:$0xff] %v332
                  %v334 = vld [vmem:[%s272 + $0x1e0] sm:$0xff]
                  %335 = vst [vmem:[%s273 + $0xf0] sm:$0xff] %v334
                  %v336 = vld [vmem:[%s272 + $0x1f0] sm:$0xff]
                  %337 = vst [vmem:[%s273 + $0xf8] sm:$0xff] %v336
                $region52: #{mllama_vision_forward.31} parent=46 // loop_footer
                  %s271 = sadd.s32 1, %s267
                $region53: #{mllama_vision_forward.31} parent=46 // loop_footer_branch
                  %266 = sbr.rel target = $region49
                $region54: #{mllama_vision_forward.31} parent=46 // loop_exit
                  _
              $region47: #{mllama_vision_forward.31} parent=31 // pred_fallthru
                _
              // Predicated region
              $region55: #{mllama_vision_forward.31} parent=31 // pred_check
                _
              $region56: #{mllama_vision_forward.31} parent=31 // pred_check_branch
                %339 = sbr.rel target = $region58
              $region57: #{mllama_vision_forward.31} parent=31 // pred_region
                _
              $region58: #{mllama_vision_forward.31} parent=31 // pred_fallthru
                _
            $region32: #{mllama_vision_forward.31} parent=27 // pred_fallthru
              _
            // Predicated region
            $region33: #{mllama_vision_forward.31} parent=27 // pred_check
              _
            $region34: #{mllama_vision_forward.31} parent=27 // pred_check_branch
              %190 = sbr.rel target = $region36
            $region35: #{mllama_vision_forward.31} parent=27 // pred_region
              loop: start=0, step=1, limit=1
              $region37: #{mllama_vision_forward.31} parent=35 // loop_pre_header
                _
              $region38: #{mllama_vision_forward.31} parent=35 // loop_header
                %s193 = sphi 0, %s197
                %p194 = scmp.ge.s32.totalorder %s193, 1
                %s198 = sphi %s184, %s184
                %s199 = sphi %s178, %s178
              $region39: #{mllama_vision_forward.31} parent=35 // loop_header_branch
                %196 = sbr.rel (%p194) target = $region43
              $region40: #{mllama_vision_forward.31} parent=35 // loop_body
                %v200 = vld [vmem:[%s198] sm:$0xff]
                %201 = vst [vmem:[%s199] sm:$0xff] %v200
                %v202 = vld [vmem:[%s198 + $0x10] sm:$0xff]
                %203 = vst [vmem:[%s199 + $0x8] sm:$0xff] %v202
                %v204 = vld [vmem:[%s198 + $0x20] sm:$0xff]
                %205 = vst [vmem:[%s199 + $0x10] sm:$0xff] %v204
                %v206 = vld [vmem:[%s198 + $0x30] sm:$0xff]
                %207 = vst [vmem:[%s199 + $0x18] sm:$0xff] %v206
                %v208 = vld [vmem:[%s198 + $0x40] sm:$0xff]
                %209 = vst [vmem:[%s199 + $0x20] sm:$0xff] %v208
                %v210 = vld [vmem:[%s198 + $0x50] sm:$0xff]
                %211 = vst [vmem:[%s199 + $0x28] sm:$0xff] %v210
                %v212 = vld [vmem:[%s198 + $0x60] sm:$0xff]
                %213 = vst [vmem:[%s199 + $0x30] sm:$0xff] %v212
                %v214 = vld [vmem:[%s198 + $0x70] sm:$0xff]
                %215 = vst [vmem:[%s199 + $0x38] sm:$0xff] %v214
                %v216 = vld [vmem:[%s198 + $0x80] sm:$0xff]
                %217 = vst [vmem:[%s199 + $0x40] sm:$0xff] %v216
                %v218 = vld [vmem:[%s198 + $0x90] sm:$0xff]
                %219 = vst [vmem:[%s199 + $0x48] sm:$0xff] %v218
                %v220 = vld [vmem:[%s198 + $0xa0] sm:$0xff]
                %221 = vst [vmem:[%s199 + $0x50] sm:$0xff] %v220
                %v222 = vld [vmem:[%s198 + $0xb0] sm:$0xff]
                %223 = vst [vmem:[%s199 + $0x58] sm:$0xff] %v222
                %v224 = vld [vmem:[%s198 + $0xc0] sm:$0xff]
                %225 = vst [vmem:[%s199 + $0x60] sm:$0xff] %v224
                %v226 = vld [vmem:[%s198 + $0xd0] sm:$0xff]
                %227 = vst [vmem:[%s199 + $0x68] sm:$0xff] %v226
                %v228 = vld [vmem:[%s198 + $0xe0] sm:$0xff]
                %229 = vst [vmem:[%s199 + $0x70] sm:$0xff] %v228
                %v230 = vld [vmem:[%s198 + $0xf0] sm:$0xff]
                %231 = vst [vmem:[%s199 + $0x78] sm:$0xff] %v230
                %v232 = vld [vmem:[%s198 + $0x100] sm:$0xff]
                %233 = vst [vmem:[%s199 + $0x80] sm:$0xff] %v232
                %v234 = vld [vmem:[%s198 + $0x110] sm:$0xff]
                %235 = vst [vmem:[%s199 + $0x88] sm:$0xff] %v234
                %v236 = vld [vmem:[%s198 + $0x120] sm:$0xff]
                %237 = vst [vmem:[%s199 + $0x90] sm:$0xff] %v236
                %v238 = vld [vmem:[%s198 + $0x130] sm:$0xff]
                %239 = vst [vmem:[%s199 + $0x98] sm:$0xff] %v238
                %v240 = vld [vmem:[%s198 + $0x140] sm:$0xff]
                %241 = vst [vmem:[%s199 + $0xa0] sm:$0xff] %v240
                %v242 = vld [vmem:[%s198 + $0x150] sm:$0xff]
                %243 = vst [vmem:[%s199 + $0xa8] sm:$0xff] %v242
                %v244 = vld [vmem:[%s198 + $0x160] sm:$0xff]
                %245 = vst [vmem:[%s199 + $0xb0] sm:$0xff] %v244
                %v246 = vld [vmem:[%s198 + $0x170] sm:$0xff]
                %247 = vst [vmem:[%s199 + $0xb8] sm:$0xff] %v246
                %v248 = vld [vmem:[%s198 + $0x180] sm:$0xff]
                %249 = vst [vmem:[%s199 + $0xc0] sm:$0xff] %v248
                %v250 = vld [vmem:[%s198 + $0x190] sm:$0xff]
                %251 = vst [vmem:[%s199 + $0xc8] sm:$0xff] %v250
                %v252 = vld [vmem:[%s198 + $0x1a0] sm:$0xff]
                %253 = vst [vmem:[%s199 + $0xd0] sm:$0xff] %v252
                %v254 = vld [vmem:[%s198 + $0x1b0] sm:$0xff]
                %255 = vst [vmem:[%s199 + $0xd8] sm:$0xff] %v254
                %v256 = vld [vmem:[%s198 + $0x1c0] sm:$0xff]
                %257 = vst [vmem:[%s199 + $0xe0] sm:$0xff] %v256
                %v258 = vld [vmem:[%s198 + $0x1d0] sm:$0xff]
                %259 = vst [vmem:[%s199 + $0xe8] sm:$0xff] %v258
                %v260 = vld [vmem:[%s198 + $0x1e0] sm:$0xff]
                %261 = vst [vmem:[%s199 + $0xf0] sm:$0xff] %v260
                %v262 = vld [vmem:[%s198 + $0x1f0] sm:$0xff]
                %263 = vst [vmem:[%s199 + $0xf8] sm:$0xff] %v262
              $region41: #{mllama_vision_forward.31} parent=35 // loop_footer
                %s197 = sadd.s32 1, %s193
              $region42: #{mllama_vision_forward.31} parent=35 // loop_footer_branch
                %192 = sbr.rel target = $region38
              $region43: #{mllama_vision_forward.31} parent=35 // loop_exit
                _
            $region36: #{mllama_vision_forward.31} parent=27 // pred_fallthru
              _
          $region28: #{mllama_vision_forward.31} parent=23 // pred_fallthru
            _
          %340 = vnop
        $region24: #{mllama_vision_forward.31} parent=19 // pred_fallthru
          _
        // Predicated region
        $region59: #{mllama_vision_forward.31} parent=19 // pred_check
          %p341 = pneg %p104
        $region60: #{mllama_vision_forward.31} parent=19 // pred_check_branch
          %343 = sbr.rel (%p341) target = $region62
        $region61: #{mllama_vision_forward.31} parent=19 // pred_region
          %s344 = smul.u32 2, %s17
          %p345 = scmp.lt.s32.totalorder %s344, 3
          %s346 = scalar_select %p345, %s344, 3
          %s347 = scalar_lea.vmem %s2, %s346
          %s348 = smul.u32 2, %s17
        $region62: #{mllama_vision_forward.31} parent=19 // pred_fallthru
          _
      $region20: #{mllama_vision_forward.31} parent=5 // pred_fallthru
        _
      %p349 = scmp.le.s32.totalorder 1, %s9
      %p350 = scmp.lt.s32.totalorder %s9, 3
      %p351 = pnand %p349, %p350
      %p352 = pneg %p351
      // Predicated region
      $region63: #{mllama_vision_forward.31} parent=5 // pred_check
        _
      $region64: #{mllama_vision_forward.31} parent=5 // pred_check_branch
        %354 = sbr.rel (%p351) target = $region66
      $region65: #{mllama_vision_forward.31} parent=5 // pred_region
        %s355 = ssub.s32 %s9, 1
        %s356 = sand.u32 %s71, 1
        %s357 = sand.u32 %s71, 1
        %s358 = smul.addr %s357, 256
        %s359 = scalar_lea.vmem [#allocation3], %s358
        // Predicated region
        $region67: #{mllama_vision_forward.31} parent=65 // pred_check
          %p360 = pneg %p84
        $region68: #{mllama_vision_forward.31} parent=65 // pred_check_branch
          %362 = sbr.rel (%p360) target = $region70
        $region69: #{mllama_vision_forward.31} parent=65 // pred_region
          _
        $region70: #{mllama_vision_forward.31} parent=65 // pred_fallthru
          _
        %s363 = smul.u32 6, %s19
        %s364 = smul.u32 2, %s21
        %p365 = scmp.lt.s32.totalorder %s363, 5
        %s366 = scalar_select %p365, %s363, 5
        %p367 = scmp.lt.s32.totalorder %s364, 1
        %s368 = scalar_select %p367, %s364, 1
        %s369 = smul.addr %s366, 2
        %s370 = sadd.s32 %s368, %s369
        %s371 = smul.addr %s370, 4
        %s372 = scalar_lea.vmem %s0, %s371
        %p373 = pneg %p56
        %p374 = pneg %p53
        %s375 = sand.u32 %s71, 1
        %s376 = sand.u32 %s71, 1
        %s377 = smul.addr %s376, 256
        %s378 = scalar_lea.vmem [#allocation3], %s377
        %p379 = pneg %p84
        %p380 = pneg %p81
        %s381 = smul.u32 2, %s20
        %p382 = scmp.lt.s32.totalorder %s381, 3
        %s383 = scalar_select %p382, %s381, 3
        %s384 = scalar_lea.vmem %s2, %s383
        %p385 = pneg %p110
        %p386 = pneg %p107
        %p387 = pneg %p138
        %p388 = pneg %p135
        %s389 = sand.u32 %s125, 1
        %s390 = sand.u32 %s125, 1
        %s391 = smul.addr %s390, 48
        %s392 = scalar_lea.vmem [#allocation4], %s391
        %s393 = smul.u32 6, %s19
        %s394 = smul.u32 2, %s21
        %p395 = scmp.lt.s32.totalorder %s393, 5
        %s396 = scalar_select %p395, %s393, 5
        %p397 = scmp.lt.s32.totalorder %s394, 1
        %s398 = scalar_select %p397, %s394, 1
        %s399 = smul.addr %s396, 2
        %s400 = sadd.s32 %s398, %s399
        %s401 = smul.addr %s400, 4
        %s402 = scalar_lea.vmem %s0, %s401
        %s403 = smul.u32 6, %s19
        %s404 = smul.u32 2, %s21
        %s405 = smul.u32 32, %s21
        %s406 = smul.u32 2, %s20
        %s407 = smul.u32 2, %s20
        %p408 = scmp.lt.s32.totalorder %s407, 3
        %s409 = scalar_select %p408, %s407, 3
        %s410 = scalar_lea.vmem %s2, %s409
        %s411 = smul.u32 2, %s20
        %s412 = smul.u32 6, %s19
        %s413 = smul.u32 2, %s20
        %p414 = scmp.eq.s32.totalorder %s21, 0
        // Predicated region
        $region71: #{mllama_vision_forward.31} parent=65 // pred_check
          %p415 = pneg %p414
        $region72: #{mllama_vision_forward.31} parent=65 // pred_check_branch
          %417 = sbr.rel (%p415) target = $region74
        $region73: #{mllama_vision_forward.31} parent=65 // pred_region
          %418 = vst [vmem:[#allocation2] sm:$0xff] 0.0
          %419 = vst [vmem:[#allocation2 + $0x8] sm:$0xff] 0.0
          %420 = vst [vmem:[#allocation2 + $0x10] sm:$0xff] 0.0
          %421 = vst [vmem:[#allocation2 + $0x18] sm:$0xff] 0.0
          %422 = vst [vmem:[#allocation2 + $0x20] sm:$0xff] 0.0
          %423 = vst [vmem:[#allocation2 + $0x28] sm:$0xff] 0.0
          %424 = vst [vmem:[#allocation2 + $0x30] sm:$0xff] 0.0
          %425 = vst [vmem:[#allocation2 + $0x38] sm:$0xff] 0.0
          %426 = vst [vmem:[#allocation2 + $0x40] sm:$0xff] 0.0
          %427 = vst [vmem:[#allocation2 + $0x48] sm:$0xff] 0.0
          %428 = vst [vmem:[#allocation2 + $0x50] sm:$0xff] 0.0
          %429 = vst [vmem:[#allocation2 + $0x58] sm:$0xff] 0.0
        $region74: #{mllama_vision_forward.31} parent=65 // pred_fallthru
          _
        %v430 = vld [vmem:[#allocation2] sm:$0xff]
        %v431 = vld [vmem:[#allocation2 + $0x8] sm:$0xff]
        %v432 = vld [vmem:[#allocation2 + $0x10] sm:$0xff]
        %v433 = vld [vmem:[#allocation2 + $0x18] sm:$0xff]
        %v434 = vld [vmem:[#allocation2 + $0x20] sm:$0xff]
        %v435 = vld [vmem:[#allocation2 + $0x28] sm:$0xff]
        %v436 = vld [vmem:[#allocation2 + $0x30] sm:$0xff]
        %v437 = vld [vmem:[#allocation2 + $0x38] sm:$0xff]
        %v438 = vld [vmem:[#allocation2 + $0x40] sm:$0xff]
        %v439 = vld [vmem:[#allocation2 + $0x48] sm:$0xff]
        %v440 = vld [vmem:[#allocation2 + $0x50] sm:$0xff]
        %v441 = vld [vmem:[#allocation2 + $0x58] sm:$0xff]
        %v442 = vld [vmem:[%s402] sm:$0xff]
        %v443 = vld [vmem:[%s402 + $0x8] sm:$0xff]
        %v444 = vld [vmem:[%s402 + $0x10] sm:$0xff]
        %v445 = vld [vmem:[%s402 + $0x18] sm:$0xff]
        %v446 = vld [vmem:[%s402 + $0x20] sm:$0xff]
        %v447 = vld [vmem:[%s402 + $0x28] sm:$0xff]
        %v448 = vld [vmem:[%s359] sm:$0xff]
        %v449 = vld [vmem:[%s359 + $0x8] sm:$0xff]
        %v450 = vld [vmem:[%s359 + $0x10] sm:$0xff]
        %v451 = vld [vmem:[%s359 + $0x18] sm:$0xff]
        %v452 = vld [vmem:[%s359 + $0x20] sm:$0xff]
        %v453 = vld [vmem:[%s359 + $0x28] sm:$0xff]
        %v454 = vld [vmem:[%s359 + $0x30] sm:$0xff]
        %v455 = vld [vmem:[%s359 + $0x38] sm:$0xff]
        %v456 = vld [vmem:[%s359 + $0x40] sm:$0xff]
        %v457 = vld [vmem:[%s359 + $0x48] sm:$0xff]
        %v458 = vld [vmem:[%s359 + $0x50] sm:$0xff]
        %v459 = vld [vmem:[%s359 + $0x58] sm:$0xff]
        %v460 = vld [vmem:[%s359 + $0x60] sm:$0xff]
        %v461 = vld [vmem:[%s359 + $0x68] sm:$0xff]
        %v462 = vld [vmem:[%s359 + $0x70] sm:$0xff]
        %v463 = vld [vmem:[%s359 + $0x78] sm:$0xff]
        %v464 = vld [vmem:[%s359 + $0x80] sm:$0xff]
        %v465 = vld [vmem:[%s359 + $0x88] sm:$0xff]
        %v466 = vld [vmem:[%s359 + $0x90] sm:$0xff]
        %v467 = vld [vmem:[%s359 + $0x98] sm:$0xff]
        %v468 = vld [vmem:[%s359 + $0xa0] sm:$0xff]
        %v469 = vld [vmem:[%s359 + $0xa8] sm:$0xff]
        %v470 = vld [vmem:[%s359 + $0xb0] sm:$0xff]
        %v471 = vld [vmem:[%s359 + $0xb8] sm:$0xff]
        %v472 = vld [vmem:[%s359 + $0xc0] sm:$0xff]
        %v473 = vld [vmem:[%s359 + $0xc8] sm:$0xff]
        %v474 = vld [vmem:[%s359 + $0xd0] sm:$0xff]
        %v475 = vld [vmem:[%s359 + $0xd8] sm:$0xff]
        %v476 = vld [vmem:[%s359 + $0xe0] sm:$0xff]
        %v477 = vld [vmem:[%s359 + $0xe8] sm:$0xff]
        %v478 = vld [vmem:[%s359 + $0xf0] sm:$0xff]
        %v479 = vld [vmem:[%s359 + $0xf8] sm:$0xff]
        %v486 = vunpack.c.l.b16 %v442
        %v487 = vunpack.c.h.b16 %v442
        %v488 = vunpack.c.l.b16 %v443
        %v489 = vunpack.c.h.b16 %v443
        %v490 = vunpack.c.l.b16 %v444
        %v491 = vunpack.c.h.b16 %v444
        %v492 = vunpack.c.l.b16 %v445
        %v493 = vunpack.c.h.b16 %v445
        %v494 = vunpack.c.l.b16 %v446
        %v495 = vunpack.c.h.b16 %v446
        %v496 = vunpack.c.l.b16 %v447
        %v497 = vunpack.c.h.b16 %v447
        %v498 = vpack.c.b16 %v488, %v486
        %v499 = vpack.c.b16 %v489, %v487
        %v500 = vpack.c.b16 %v492, %v490
        %v501 = vpack.c.b16 %v493, %v491
        %v502 = vpack.c.b16 %v496, %v494
        %v503 = vpack.c.b16 %v497, %v495
        %v542 = vunpack.c.l.b16 %v448
        %v543 = vunpack.c.h.b16 %v448
        %v544 = vunpack.c.l.b16 %v449
        %v545 = vunpack.c.h.b16 %v449
        %v546 = vunpack.c.l.b16 %v450
        %v547 = vunpack.c.h.b16 %v450
        %v548 = vunpack.c.l.b16 %v451
        %v549 = vunpack.c.h.b16 %v451
        %v550 = vunpack.c.l.b16 %v452
        %v551 = vunpack.c.h.b16 %v452
        %v552 = vunpack.c.l.b16 %v453
        %v553 = vunpack.c.h.b16 %v453
        %v554 = vunpack.c.l.b16 %v454
        %v555 = vunpack.c.h.b16 %v454
        %v556 = vunpack.c.l.b16 %v455
        %v557 = vunpack.c.h.b16 %v455
        %v558 = vunpack.c.l.b16 %v456
        %v559 = vunpack.c.h.b16 %v456
        %v560 = vunpack.c.l.b16 %v457
        %v561 = vunpack.c.h.b16 %v457
        %v562 = vunpack.c.l.b16 %v458
        %v563 = vunpack.c.h.b16 %v458
        %v564 = vunpack.c.l.b16 %v459
        %v565 = vunpack.c.h.b16 %v459
        %v566 = vunpack.c.l.b16 %v460
        %v567 = vunpack.c.h.b16 %v460
        %v568 = vunpack.c.l.b16 %v461
        %v569 = vunpack.c.h.b16 %v461
        %v570 = vunpack.c.l.b16 %v462
        %v571 = vunpack.c.h.b16 %v462
        %v572 = vunpack.c.l.b16 %v463
        %v573 = vunpack.c.h.b16 %v463
        %v574 = vunpack.c.l.b16 %v464
        %v575 = vunpack.c.h.b16 %v464
        %v576 = vunpack.c.l.b16 %v465
        %v577 = vunpack.c.h.b16 %v465
        %v578 = vunpack.c.l.b16 %v466
        %v579 = vunpack.c.h.b16 %v466
        %v580 = vunpack.c.l.b16 %v467
        %v581 = vunpack.c.h.b16 %v467
        %v582 = vunpack.c.l.b16 %v468
        %v583 = vunpack.c.h.b16 %v468
        %v584 = vunpack.c.l.b16 %v469
        %v585 = vunpack.c.h.b16 %v469
        %v586 = vunpack.c.l.b16 %v470
        %v587 = vunpack.c.h.b16 %v470
        %v588 = vunpack.c.l.b16 %v471
        %v589 = vunpack.c.h.b16 %v471
        %v590 = vunpack.c.l.b16 %v472
        %v591 = vunpack.c.h.b16 %v472
        %v592 = vunpack.c.l.b16 %v473
        %v593 = vunpack.c.h.b16 %v473
        %v594 = vunpack.c.l.b16 %v474
        %v595 = vunpack.c.h.b16 %v474
        %v596 = vunpack.c.l.b16 %v475
        %v597 = vunpack.c.h.b16 %v475
        %v598 = vunpack.c.l.b16 %v476
        %v599 = vunpack.c.h.b16 %v476
        %v600 = vunpack.c.l.b16 %v477
        %v601 = vunpack.c.h.b16 %v477
        %v602 = vunpack.c.l.b16 %v478
        %v603 = vunpack.c.h.b16 %v478
        %v604 = vunpack.c.l.b16 %v479
        %v605 = vunpack.c.h.b16 %v479
        %v606 = vpack.c.b16 %v544, %v542
        %v607 = vpack.c.b16 %v545, %v543
        %v608 = vpack.c.b16 %v548, %v546
        %v609 = vpack.c.b16 %v549, %v547
        %v610 = vpack.c.b16 %v552, %v550
        %v611 = vpack.c.b16 %v553, %v551
        %v612 = vpack.c.b16 %v556, %v554
        %v613 = vpack.c.b16 %v557, %v555
        %v614 = vpack.c.b16 %v560, %v558
        %v615 = vpack.c.b16 %v561, %v559
        %v616 = vpack.c.b16 %v564, %v562
        %v617 = vpack.c.b16 %v565, %v563
        %v618 = vpack.c.b16 %v568, %v566
        %v619 = vpack.c.b16 %v569, %v567
        %v620 = vpack.c.b16 %v572, %v570
        %v621 = vpack.c.b16 %v573, %v571
        %v622 = vpack.c.b16 %v576, %v574
        %v623 = vpack.c.b16 %v577, %v575
        %v624 = vpack.c.b16 %v580, %v578
        %v625 = vpack.c.b16 %v581, %v579
        %v626 = vpack.c.b16 %v584, %v582
        %v627 = vpack.c.b16 %v585, %v583
        %v628 = vpack.c.b16 %v588, %v586
        %v629 = vpack.c.b16 %v589, %v587
        %v630 = vpack.c.b16 %v592, %v590
        %v631 = vpack.c.b16 %v593, %v591
        %v632 = vpack.c.b16 %v596, %v594
        %v633 = vpack.c.b16 %v597, %v595
        %v634 = vpack.c.b16 %v600, %v598
        %v635 = vpack.c.b16 %v601, %v599
        %v636 = vpack.c.b16 %v604, %v602
        %v637 = vpack.c.b16 %v605, %v603
        %670 = vmatprep.subr.bf16.mxu0 %v607
        %671 = vmatpush1.bf16.msra.mxu0 %v606
        %672 = vmatprep.subr.bf16.mxu0 %v609
        %673 = vmatpush1.bf16.msra.mxu0 %v608
        %674 = vmatprep.subr.bf16.mxu0 %v611
        %675 = vmatpush1.bf16.msra.mxu0 %v610
        %676 = vmatprep.subr.bf16.mxu0 %v613
        %677 = vmatpush1.bf16.msra.mxu0 %v612
        %678 = vmatprep.subr.bf16.mxu0 %v615
        %679 = vmatpush1.bf16.msra.mxu0 %v614
        %680 = vmatprep.subr.bf16.mxu0 %v617
        %681 = vmatpush1.bf16.msra.mxu0 %v616
        %682 = vmatprep.subr.bf16.mxu0 %v619
        %683 = vmatpush1.bf16.msra.mxu0 %v618
        %684 = vmatprep.subr.bf16.mxu0 %v621
        %685 = vmatpush1.bf16.msra.mxu0 %v620
        %686 = vmatprep.subr.bf16.mxu0 %v623
        %687 = vmatpush1.bf16.msra.mxu0 %v622
        %688 = vmatprep.subr.bf16.mxu0 %v625
        %689 = vmatpush1.bf16.msra.mxu0 %v624
        %690 = vmatprep.subr.bf16.mxu0 %v627
        %691 = vmatpush1.bf16.msra.mxu0 %v626
        %692 = vmatprep.subr.bf16.mxu0 %v629
        %693 = vmatpush1.bf16.msra.mxu0 %v628
        %694 = vmatprep.subr.bf16.mxu0 %v631
        %695 = vmatpush1.bf16.msra.mxu0 %v630
        %696 = vmatprep.subr.bf16.mxu0 %v633
        %697 = vmatpush1.bf16.msra.mxu0 %v632
        %698 = vmatprep.subr.bf16.mxu0 %v635
        %699 = vmatpush1.bf16.msra.mxu0 %v634
        %700 = vmatprep.subr.bf16.mxu0 %v637
        %701 = vmatpush1.bf16.msra.mxu0 %v636
        %702 = vmatprep.mubr.bf16.mxu0 %v499
        %703 = vmatmul.mubr.bf16.gmra.mrb[0].mxu0 %v498
        %v704 = vpop.f32.mrb[0].mxu0
        %v705 = vadd.f32 0.0, %v704
        %v706 = vpop.f32.mrb[0].mxu0
        %v707 = vadd.f32 0.0, %v706
        %v708 = vpop.f32.mrb[0].mxu0
        %v709 = vadd.f32 0.0, %v708
        %v710 = vpop.f32.mrb[0].mxu0
        %v711 = vadd.f32 0.0, %v710
        %712 = vmatprep.mubr.bf16.mxu0 %v501
        %713 = vmatmul.mubr.bf16.gmra.mrb[0].mxu0 %v500
        %v714 = vpop.f32.mrb[0].mxu0
        %v715 = vadd.f32 0.0, %v714
        %v716 = vpop.f32.mrb[0].mxu0
        %v717 = vadd.f32 0.0, %v716
        %v718 = vpop.f32.mrb[0].mxu0
        %v719 = vadd.f32 0.0, %v718
        %v720 = vpop.f32.mrb[0].mxu0
        %v721 = vadd.f32 0.0, %v720
        %722 = vmatprep.mubr.bf16.mxu0 %v503
        %723 = vmatmul.mubr.bf16.gmra.mrb[0].mxu0 %v502
        %v724 = vpop.f32.mrb[0].mxu0
        %v725 = vadd.f32 0.0, %v724
        %v726 = vpop.f32.mrb[0].mxu0
        %v727 = vadd.f32 0.0, %v726
        %v728 = vpop.f32.mrb[0].mxu0
        %v729 = vadd.f32 0.0, %v728
        %v730 = vpop.f32.mrb[0].mxu0
        %v731 = vadd.f32 0.0, %v730
        %732 = vdwg.mxu0
        %v733 = vadd.f32 %v430, %v705
        %v734 = vadd.f32 %v431, %v707
        %v735 = vadd.f32 %v432, %v709
        %v736 = vadd.f32 %v433, %v711
        %v737 = vadd.f32 %v434, %v715
        %v738 = vadd.f32 %v435, %v717
        %v739 = vadd.f32 %v436, %v719
        %v740 = vadd.f32 %v437, %v721
        %v741 = vadd.f32 %v438, %v725
        %v742 = vadd.f32 %v439, %v727
        %v743 = vadd.f32 %v440, %v729
        %v744 = vadd.f32 %v441, %v731
        %745 = vst [vmem:[#allocation2] sm:$0xff] %v733
        %746 = vst [vmem:[#allocation2 + $0x8] sm:$0xff] %v734
        %747 = vst [vmem:[#allocation2 + $0x10] sm:$0xff] %v735
        %748 = vst [vmem:[#allocation2 + $0x18] sm:$0xff] %v736
        %749 = vst [vmem:[#allocation2 + $0x20] sm:$0xff] %v737
        %750 = vst [vmem:[#allocation2 + $0x28] sm:$0xff] %v738
        %751 = vst [vmem:[#allocation2 + $0x30] sm:$0xff] %v739
        %752 = vst [vmem:[#allocation2 + $0x38] sm:$0xff] %v740
        %753 = vst [vmem:[#allocation2 + $0x40] sm:$0xff] %v741
        %754 = vst [vmem:[#allocation2 + $0x48] sm:$0xff] %v742
        %755 = vst [vmem:[#allocation2 + $0x50] sm:$0xff] %v743
        %756 = vst [vmem:[#allocation2 + $0x58] sm:$0xff] %v744
        // Predicated region
        $region75: #{mllama_vision_forward.31} parent=65 // pred_check
          %p757 = pneg %p414
        $region76: #{mllama_vision_forward.31} parent=65 // pred_check_branch
          %759 = sbr.rel (%p757) target = $region78
        $region77: #{mllama_vision_forward.31} parent=65 // pred_region
          %v760 = vld [vmem:[#allocation2] sm:$0xff]
          %v761 = vld [vmem:[#allocation2 + $0x8] sm:$0xff]
          %v762 = vld [vmem:[#allocation2 + $0x10] sm:$0xff]
          %v763 = vld [vmem:[#allocation2 + $0x18] sm:$0xff]
          %v764 = vld [vmem:[#allocation2 + $0x20] sm:$0xff]
          %v765 = vld [vmem:[#allocation2 + $0x28] sm:$0xff]
          %v766 = vld [vmem:[#allocation2 + $0x30] sm:$0xff]
          %v767 = vld [vmem:[#allocation2 + $0x38] sm:$0xff]
          %v768 = vld [vmem:[#allocation2 + $0x40] sm:$0xff]
          %v769 = vld [vmem:[#allocation2 + $0x48] sm:$0xff]
          %v770 = vld [vmem:[#allocation2 + $0x50] sm:$0xff]
          %v771 = vld [vmem:[#allocation2 + $0x58] sm:$0xff]
          %v772 = vld [vmem:[%s410] sm:$0x3]
          %v774 = vlaneseq
          %v775 = vshrl.u32 %v774, 7
          %v776 = vsub.s32 0, %v775
          %v777 = vrot.slane %v772, %v776
          %v778 = vlaneseq
          %v779 = vshrl.u32 %v778, 7
          %v780 = vsub.s32 1, %v779
          %v781 = vrot.slane %v772, %v780
          %v784 = vadd.f32 %v760, %v777
          %v785 = vadd.f32 %v761, %v781
          %v786 = vadd.f32 %v762, %v777
          %v787 = vadd.f32 %v763, %v781
          %v788 = vadd.f32 %v764, %v777
          %v789 = vadd.f32 %v765, %v781
          %v790 = vadd.f32 %v766, %v777
          %v791 = vadd.f32 %v767, %v781
          %v792 = vadd.f32 %v768, %v777
          %v793 = vadd.f32 %v769, %v781
          %v794 = vadd.f32 %v770, %v777
          %v795 = vadd.f32 %v771, %v781
          %v796 = vmul.f32 %v784, 0.5
          %v797 = vmul.f32 %v785, 0.5
          %v798 = vmul.f32 %v786, 0.5
          %v799 = vmul.f32 %v787, 0.5
          %v800 = vmul.f32 %v788, 0.5
          %v801 = vmul.f32 %v789, 0.5
          %v802 = vmul.f32 %v790, 0.5
          %v803 = vmul.f32 %v791, 0.5
          %v804 = vmul.f32 %v792, 0.5
          %v805 = vmul.f32 %v793, 0.5
          %v806 = vmul.f32 %v794, 0.5
          %v807 = vmul.f32 %v795, 0.5
          %v808 = vmul.f32 %v784, 0.70710677
          %v809 = vmul.f32 %v785, 0.70710677
          %v810 = vmul.f32 %v786, 0.70710677
          %v811 = vmul.f32 %v787, 0.70710677
          %v812 = vmul.f32 %v788, 0.70710677
          %v813 = vmul.f32 %v789, 0.70710677
          %v814 = vmul.f32 %v790, 0.70710677
          %v815 = vmul.f32 %v791, 0.70710677
          %v816 = vmul.f32 %v792, 0.70710677
          %v817 = vmul.f32 %v793, 0.70710677
          %v818 = vmul.f32 %v794, 0.70710677
          %v819 = vmul.f32 %v795, 0.70710677
          %v820 = vand.u32 2147483647, %v808
          %v821 = vand.u32 2147483647, %v809
          %v822 = vand.u32 2147483647, %v810
          %v823 = vand.u32 2147483647, %v811
          %v824 = vand.u32 2147483647, %v812
          %v825 = vand.u32 2147483647, %v813
          %v826 = vand.u32 2147483647, %v814
          %v827 = vand.u32 2147483647, %v815
          %v828 = vand.u32 2147483647, %v816
          %v829 = vand.u32 2147483647, %v817
          %v830 = vand.u32 2147483647, %v818
          %v831 = vand.u32 2147483647, %v819
          %v832 = vmul.f32 %v820, 0.3275911
          %v833 = vmul.f32 %v821, 0.3275911
          %v834 = vmul.f32 %v822, 0.3275911
          %v835 = vmul.f32 %v823, 0.3275911
          %v836 = vmul.f32 %v824, 0.3275911
          %v837 = vmul.f32 %v825, 0.3275911
          %v838 = vmul.f32 %v826, 0.3275911
          %v839 = vmul.f32 %v827, 0.3275911
          %v840 = vmul.f32 %v828, 0.3275911
          %v841 = vmul.f32 %v829, 0.3275911
          %v842 = vmul.f32 %v830, 0.3275911
          %v843 = vmul.f32 %v831, 0.3275911
          %v844 = vadd.f32 %v832, 1.0
          %v845 = vadd.f32 %v833, 1.0
          %v846 = vadd.f32 %v834, 1.0
          %v847 = vadd.f32 %v835, 1.0
          %v848 = vadd.f32 %v836, 1.0
          %v849 = vadd.f32 %v837, 1.0
          %v850 = vadd.f32 %v838, 1.0
          %v851 = vadd.f32 %v839, 1.0
          %v852 = vadd.f32 %v840, 1.0
          %v853 = vadd.f32 %v841, 1.0
          %v854 = vadd.f32 %v842, 1.0
          %v855 = vadd.f32 %v843, 1.0
          %v856 = vrcp.pop %v844
          %v857 = vmul.f32 1.0, %v856
          %v858 = vrcp.pop %v845
          %v859 = vmul.f32 1.0, %v858
          %v860 = vrcp.pop %v846
          %v861 = vmul.f32 1.0, %v860
          %v862 = vrcp.pop %v847
          %v863 = vmul.f32 1.0, %v862
          %v864 = vrcp.pop %v848
          %v865 = vmul.f32 1.0, %v864
          %v866 = vrcp.pop %v849
          %v867 = vmul.f32 1.0, %v866
          %v868 = vrcp.pop %v850
          %v869 = vmul.f32 1.0, %v868
          %v870 = vrcp.pop %v851
          %v871 = vmul.f32 1.0, %v870
          %v872 = vrcp.pop %v852
          %v873 = vmul.f32 1.0, %v872
          %v874 = vrcp.pop %v853
          %v875 = vmul.f32 1.0, %v874
          %v876 = vrcp.pop %v854
          %v877 = vmul.f32 1.0, %v876
          %v878 = vrcp.pop %v855
          %v879 = vmul.f32 1.0, %v878
          %v880 = vmul.f32 %v857, 1.0614054
          %v881 = vmul.f32 %v859, 1.0614054
          %v882 = vmul.f32 %v861, 1.0614054
          %v883 = vmul.f32 %v863, 1.0614054
          %v884 = vmul.f32 %v865, 1.0614054
          %v885 = vmul.f32 %v867, 1.0614054
          %v886 = vmul.f32 %v869, 1.0614054
          %v887 = vmul.f32 %v871, 1.0614054
          %v888 = vmul.f32 %v873, 1.0614054
          %v889 = vmul.f32 %v875, 1.0614054
          %v890 = vmul.f32 %v877, 1.0614054
          %v891 = vmul.f32 %v879, 1.0614054
          %v892 = vadd.f32 %v880, -1.4531521
          %v893 = vadd.f32 %v881, -1.4531521
          %v894 = vadd.f32 %v882, -1.4531521
          %v895 = vadd.f32 %v883, -1.4531521
          %v896 = vadd.f32 %v884, -1.4531521
          %v897 = vadd.f32 %v885, -1.4531521
          %v898 = vadd.f32 %v886, -1.4531521
          %v899 = vadd.f32 %v887, -1.4531521
          %v900 = vadd.f32 %v888, -1.4531521
          %v901 = vadd.f32 %v889, -1.4531521
          %v902 = vadd.f32 %v890, -1.4531521
          %v903 = vadd.f32 %v891, -1.4531521
          %v904 = vmul.f32 %v892, %v857
          %v905 = vmul.f32 %v893, %v859
          %v906 = vmul.f32 %v894, %v861
          %v907 = vmul.f32 %v895, %v863
          %v908 = vmul.f32 %v896, %v865
          %v909 = vmul.f32 %v897, %v867
          %v910 = vmul.f32 %v898, %v869
          %v911 = vmul.f32 %v899, %v871
          %v912 = vmul.f32 %v900, %v873
          %v913 = vmul.f32 %v901, %v875
          %v914 = vmul.f32 %v902, %v877
          %v915 = vmul.f32 %v903, %v879
          %v916 = vadd.f32 %v904, 1.4214138
          %v917 = vadd.f32 %v905, 1.4214138
          %v918 = vadd.f32 %v906, 1.4214138
          %v919 = vadd.f32 %v907, 1.4214138
          %v920 = vadd.f32 %v908, 1.4214138
          %v921 = vadd.f32 %v909, 1.4214138
          %v922 = vadd.f32 %v910, 1.4214138
          %v923 = vadd.f32 %v911, 1.4214138
          %v924 = vadd.f32 %v912, 1.4214138
          %v925 = vadd.f32 %v913, 1.4214138
          %v926 = vadd.f32 %v914, 1.4214138
          %v927 = vadd.f32 %v915, 1.4214138
          %v928 = vmul.f32 %v916, %v857
          %v929 = vmul.f32 %v917, %v859
          %v930 = vmul.f32 %v918, %v861
          %v931 = vmul.f32 %v919, %v863
          %v932 = vmul.f32 %v920, %v865
          %v933 = vmul.f32 %v921, %v867
          %v934 = vmul.f32 %v922, %v869
          %v935 = vmul.f32 %v923, %v871
          %v936 = vmul.f32 %v924, %v873
          %v937 = vmul.f32 %v925, %v875
          %v938 = vmul.f32 %v926, %v877
          %v939 = vmul.f32 %v927, %v879
          %v940 = vadd.f32 %v928, -0.28449672
          %v941 = vadd.f32 %v929, -0.28449672
          %v942 = vadd.f32 %v930, -0.28449672
          %v943 = vadd.f32 %v931, -0.28449672
          %v944 = vadd.f32 %v932, -0.28449672
          %v945 = vadd.f32 %v933, -0.28449672
          %v946 = vadd.f32 %v934, -0.28449672
          %v947 = vadd.f32 %v935, -0.28449672
          %v948 = vadd.f32 %v936, -0.28449672
          %v949 = vadd.f32 %v937, -0.28449672
          %v950 = vadd.f32 %v938, -0.28449672
          %v951 = vadd.f32 %v939, -0.28449672
          %v952 = vmul.f32 %v940, %v857
          %v953 = vmul.f32 %v941, %v859
          %v954 = vmul.f32 %v942, %v861
          %v955 = vmul.f32 %v943, %v863
          %v956 = vmul.f32 %v944, %v865
          %v957 = vmul.f32 %v945, %v867
          %v958 = vmul.f32 %v946, %v869
          %v959 = vmul.f32 %v947, %v871
          %v960 = vmul.f32 %v948, %v873
          %v961 = vmul.f32 %v949, %v875
          %v962 = vmul.f32 %v950, %v877
          %v963 = vmul.f32 %v951, %v879
          %v964 = vadd.f32 %v952, 0.2548296
          %v965 = vadd.f32 %v953, 0.2548296
          %v966 = vadd.f32 %v954, 0.2548296
          %v967 = vadd.f32 %v955, 0.2548296
          %v968 = vadd.f32 %v956, 0.2548296
          %v969 = vadd.f32 %v957, 0.2548296
          %v970 = vadd.f32 %v958, 0.2548296
          %v971 = vadd.f32 %v959, 0.2548296
          %v972 = vadd.f32 %v960, 0.2548296
          %v973 = vadd.f32 %v961, 0.2548296
          %v974 = vadd.f32 %v962, 0.2548296
          %v975 = vadd.f32 %v963, 0.2548296
          %v976 = vmul.f32 %v964, %v857
          %v977 = vmul.f32 %v965, %v859
          %v978 = vmul.f32 %v966, %v861
          %v979 = vmul.f32 %v967, %v863
          %v980 = vmul.f32 %v968, %v865
          %v981 = vmul.f32 %v969, %v867
          %v982 = vmul.f32 %v970, %v869
          %v983 = vmul.f32 %v971, %v871
          %v984 = vmul.f32 %v972, %v873
          %v985 = vmul.f32 %v973, %v875
          %v986 = vmul.f32 %v974, %v877
          %v987 = vmul.f32 %v975, %v879
          %v988 = vsub.f32 0.0, %v820
          %v989 = vsub.f32 0.0, %v821
          %v990 = vsub.f32 0.0, %v822
          %v991 = vsub.f32 0.0, %v823
          %v992 = vsub.f32 0.0, %v824
          %v993 = vsub.f32 0.0, %v825
          %v994 = vsub.f32 0.0, %v826
          %v995 = vsub.f32 0.0, %v827
          %v996 = vsub.f32 0.0, %v828
          %v997 = vsub.f32 0.0, %v829
          %v998 = vsub.f32 0.0, %v830
          %v999 = vsub.f32 0.0, %v831
          %v1000 = vmul.f32 %v988, %v820
          %v1001 = vmul.f32 %v989, %v821
          %v1002 = vmul.f32 %v990, %v822
          %v1003 = vmul.f32 %v991, %v823
          %v1004 = vmul.f32 %v992, %v824
          %v1005 = vmul.f32 %v993, %v825
          %v1006 = vmul.f32 %v994, %v826
          %v1007 = vmul.f32 %v995, %v827
          %v1008 = vmul.f32 %v996, %v828
          %v1009 = vmul.f32 %v997, %v829
          %v1010 = vmul.f32 %v998, %v830
          %v1011 = vmul.f32 %v999, %v831
          %v1012 = vmul.f32 %v1000, 1.442695
          %v1013 = vpow.pop %v1012
          %v1014 = vmul.f32 %v1001, 1.442695
          %v1015 = vpow.pop %v1014
          %v1016 = vmul.f32 %v1002, 1.442695
          %v1017 = vpow.pop %v1016
          %v1018 = vmul.f32 %v1003, 1.442695
          %v1019 = vpow.pop %v1018
          %v1020 = vmul.f32 %v1004, 1.442695
          %v1021 = vpow.pop %v1020
          %v1022 = vmul.f32 %v1005, 1.442695
          %v1023 = vpow.pop %v1022
          %v1024 = vmul.f32 %v1006, 1.442695
          %v1025 = vpow.pop %v1024
          %v1026 = vmul.f32 %v1007, 1.442695
          %v1027 = vpow.pop %v1026
          %v1028 = vmul.f32 %v1008, 1.442695
          %v1029 = vpow.pop %v1028
          %v1030 = vmul.f32 %v1009, 1.442695
          %v1031 = vpow.pop %v1030
          %v1032 = vmul.f32 %v1010, 1.442695
          %v1033 = vpow.pop %v1032
          %v1034 = vmul.f32 %v1011, 1.442695
          %v1035 = vpow.pop %v1034
          %v1036 = vmul.f32 %v976, %v1013
          %v1037 = vmul.f32 %v977, %v1015
          %v1038 = vmul.f32 %v978, %v1017
          %v1039 = vmul.f32 %v979, %v1019
          %v1040 = vmul.f32 %v980, %v1021
          %v1041 = vmul.f32 %v981, %v1023
          %v1042 = vmul.f32 %v982, %v1025
          %v1043 = vmul.f32 %v983, %v1027
          %v1044 = vmul.f32 %v984, %v1029
          %v1045 = vmul.f32 %v985, %v1031
          %v1046 = vmul.f32 %v986, %v1033
          %v1047 = vmul.f32 %v987, %v1035
          %v1048 = vsub.f32 1.0, %v1036
          %v1049 = vsub.f32 1.0, %v1037
          %v1050 = vsub.f32 1.0, %v1038
          %v1051 = vsub.f32 1.0, %v1039
          %v1052 = vsub.f32 1.0, %v1040
          %v1053 = vsub.f32 1.0, %v1041
          %v1054 = vsub.f32 1.0, %v1042
          %v1055 = vsub.f32 1.0, %v1043
          %v1056 = vsub.f32 1.0, %v1044
          %v1057 = vsub.f32 1.0, %v1045
          %v1058 = vsub.f32 1.0, %v1046
          %v1059 = vsub.f32 1.0, %v1047
          %vm1060 = vcmp.lt.f32.partialorder %v808, 0.0
          %vm1061 = vcmp.lt.f32.partialorder %v809, 0.0
          %vm1062 = vcmp.lt.f32.partialorder %v810, 0.0
          %vm1063 = vcmp.lt.f32.partialorder %v811, 0.0
          %vm1064 = vcmp.lt.f32.partialorder %v812, 0.0
          %vm1065 = vcmp.lt.f32.partialorder %v813, 0.0
          %vm1066 = vcmp.lt.f32.partialorder %v814, 0.0
          %vm1067 = vcmp.lt.f32.partialorder %v815, 0.0
          %vm1068 = vcmp.lt.f32.partialorder %v816, 0.0
          %vm1069 = vcmp.lt.f32.partialorder %v817, 0.0
          %vm1070 = vcmp.lt.f32.partialorder %v818, 0.0
          %vm1071 = vcmp.lt.f32.partialorder %v819, 0.0
          %v1072 = vsub.f32 0.0, %v1048
          %v1073 = vsub.f32 0.0, %v1049
          %v1074 = vsub.f32 0.0, %v1050
          %v1075 = vsub.f32 0.0, %v1051
          %v1076 = vsub.f32 0.0, %v1052
          %v1077 = vsub.f32 0.0, %v1053
          %v1078 = vsub.f32 0.0, %v1054
          %v1079 = vsub.f32 0.0, %v1055
          %v1080 = vsub.f32 0.0, %v1056
          %v1081 = vsub.f32 0.0, %v1057
          %v1082 = vsub.f32 0.0, %v1058
          %v1083 = vsub.f32 0.0, %v1059
          %v1084 = vsel %vm1060, %v1072, %v1048
          %v1085 = vsel %vm1061, %v1073, %v1049
          %v1086 = vsel %vm1062, %v1074, %v1050
          %v1087 = vsel %vm1063, %v1075, %v1051
          %v1088 = vsel %vm1064, %v1076, %v1052
          %v1089 = vsel %vm1065, %v1077, %v1053
          %v1090 = vsel %vm1066, %v1078, %v1054
          %v1091 = vsel %vm1067, %v1079, %v1055
          %v1092 = vsel %vm1068, %v1080, %v1056
          %v1093 = vsel %vm1069, %v1081, %v1057
          %v1094 = vsel %vm1070, %v1082, %v1058
          %v1095 = vsel %vm1071, %v1083, %v1059
          %v1096 = vadd.f32 %v1084, 1.0
          %v1097 = vadd.f32 %v1085, 1.0
          %v1098 = vadd.f32 %v1086, 1.0
          %v1099 = vadd.f32 %v1087, 1.0
          %v1100 = vadd.f32 %v1088, 1.0
          %v1101 = vadd.f32 %v1089, 1.0
          %v1102 = vadd.f32 %v1090, 1.0
          %v1103 = vadd.f32 %v1091, 1.0
          %v1104 = vadd.f32 %v1092, 1.0
          %v1105 = vadd.f32 %v1093, 1.0
          %v1106 = vadd.f32 %v1094, 1.0
          %v1107 = vadd.f32 %v1095, 1.0
          %v1108 = vmul.f32 %v796, %v1096
          %v1109 = vmul.f32 %v797, %v1097
          %v1110 = vmul.f32 %v798, %v1098
          %v1111 = vmul.f32 %v799, %v1099
          %v1112 = vmul.f32 %v800, %v1100
          %v1113 = vmul.f32 %v801, %v1101
          %v1114 = vmul.f32 %v802, %v1102
          %v1115 = vmul.f32 %v803, %v1103
          %v1116 = vmul.f32 %v804, %v1104
          %v1117 = vmul.f32 %v805, %v1105
          %v1118 = vmul.f32 %v806, %v1106
          %v1119 = vmul.f32 %v807, %v1107
          %v1120 = vpack.c.bf16 %v1110, %v1108
          %v1121 = vpack.c.bf16 %v1111, %v1109
          %v1122 = vpack.c.bf16 %v1114, %v1112
          %v1123 = vpack.c.bf16 %v1115, %v1113
          %v1124 = vpack.c.bf16 %v1118, %v1116
          %v1125 = vpack.c.bf16 %v1119, %v1117
          %v1132 = vunpack.c.l.b16 %v1120
          %v1133 = vunpack.c.l.b16 %v1121
          %v1134 = vunpack.c.h.b16 %v1120
          %v1135 = vunpack.c.h.b16 %v1121
          %v1136 = vunpack.c.l.b16 %v1122
          %v1137 = vunpack.c.l.b16 %v1123
          %v1138 = vunpack.c.h.b16 %v1122
          %v1139 = vunpack.c.h.b16 %v1123
          %v1140 = vunpack.c.l.b16 %v1124
          %v1141 = vunpack.c.l.b16 %v1125
          %v1142 = vunpack.c.h.b16 %v1124
          %v1143 = vunpack.c.h.b16 %v1125
          %v1144 = vpack.c.b16 %v1133, %v1132
          %v1145 = vpack.c.b16 %v1135, %v1134
          %v1146 = vpack.c.b16 %v1137, %v1136
          %v1147 = vpack.c.b16 %v1139, %v1138
          %v1148 = vpack.c.b16 %v1141, %v1140
          %v1149 = vpack.c.b16 %v1143, %v1142
          %1156 = vst [vmem:[%s392] sm:$0xff] %v1144
          %1157 = vst [vmem:[%s392 + $0x8] sm:$0xff] %v1145
          %1158 = vst [vmem:[%s392 + $0x10] sm:$0xff] %v1146
          %1159 = vst [vmem:[%s392 + $0x18] sm:$0xff] %v1147
          %1160 = vst [vmem:[%s392 + $0x20] sm:$0xff] %v1148
          %1161 = vst [vmem:[%s392 + $0x28] sm:$0xff] %v1149
        $region78: #{mllama_vision_forward.31} parent=65 // pred_fallthru
          _
        %s1162 = sand.u32 %s125, 1
        %s1163 = sand.u32 %s125, 1
        %s1164 = smul.addr %s1163, 48
        %s1165 = scalar_lea.vmem [#allocation4], %s1164
        // Predicated region
        $region79: #{mllama_vision_forward.31} parent=65 // pred_check
          %p1166 = pneg %p135
        $region80: #{mllama_vision_forward.31} parent=65 // pred_check_branch
          %1168 = sbr.rel (%p1166) target = $region82
        $region81: #{mllama_vision_forward.31} parent=65 // pred_region
          %s1169 = smul.u32 6, %s19
          %s1170 = smul.u32 2, %s20
          %s1171 = smul.addr %s1169, 4
          %s1172 = sadd.s32 %s1170, %s1171
          %s1173 = smul.addr %s1172, 4
          %s1174 = scalar_lea.vmem %s3, %s1173
          // Predicated region
          $region83: #{mllama_vision_forward.31} parent=81 // pred_check
            _
          $region84: #{mllama_vision_forward.31} parent=81 // pred_check_branch
            %1176 = sbr.rel (0) target = $region86
          $region85: #{mllama_vision_forward.31} parent=81 // pred_region
            // Predicated region
            $region87: #{mllama_vision_forward.31} parent=85 // pred_check
              _
            $region88: #{mllama_vision_forward.31} parent=85 // pred_check_branch
              %1178 = sbr.rel (0) target = $region90
            $region89: #{mllama_vision_forward.31} parent=85 // pred_region
              // Predicated region
              $region102: #{mllama_vision_forward.31} parent=89 // pred_check
                _
              $region103: #{mllama_vision_forward.31} parent=89 // pred_check_branch
                %1203 = sbr.rel (0) target = $region105
              $region104: #{mllama_vision_forward.31} parent=89 // pred_region
                loop: start=0, step=1, limit=1
                $region106: #{mllama_vision_forward.31} parent=104 // loop_pre_header
                  _
                $region107: #{mllama_vision_forward.31} parent=104 // loop_header
                  %s1205 = sphi 0, %s1209
                  %p1206 = scmp.ge.s32.totalorder %s1205, 1
                  %s1210 = sphi %s1165, %s1165
                  %s1211 = sphi %s1174, %s1174
                $region108: #{mllama_vision_forward.31} parent=104 // loop_header_branch
                  %1208 = sbr.rel (%p1206) target = $region112
                $region109: #{mllama_vision_forward.31} parent=104 // loop_body
                  %v1212 = vld [vmem:[%s1210] sm:$0xff]
                  %1213 = vst [vmem:[%s1211] sm:$0xff] %v1212
                  %v1214 = vld [vmem:[%s1210 + $0x8] sm:$0xff]
                  %1215 = vst [vmem:[%s1211 + $0x10] sm:$0xff] %v1214
                  %v1216 = vld [vmem:[%s1210 + $0x10] sm:$0xff]
                  %1217 = vst [vmem:[%s1211 + $0x20] sm:$0xff] %v1216
                  %v1218 = vld [vmem:[%s1210 + $0x18] sm:$0xff]
                  %1219 = vst [vmem:[%s1211 + $0x30] sm:$0xff] %v1218
                  %v1220 = vld [vmem:[%s1210 + $0x20] sm:$0xff]
                  %1221 = vst [vmem:[%s1211 + $0x40] sm:$0xff] %v1220
                  %v1222 = vld [vmem:[%s1210 + $0x28] sm:$0xff]
                  %1223 = vst [vmem:[%s1211 + $0x50] sm:$0xff] %v1222
                $region110: #{mllama_vision_forward.31} parent=104 // loop_footer
                  %s1209 = sadd.s32 1, %s1205
                $region111: #{mllama_vision_forward.31} parent=104 // loop_footer_branch
                  %1204 = sbr.rel target = $region107
                $region112: #{mllama_vision_forward.31} parent=104 // loop_exit
                  _
              $region105: #{mllama_vision_forward.31} parent=89 // pred_fallthru
                _
              // Predicated region
              $region113: #{mllama_vision_forward.31} parent=89 // pred_check
                _
              $region114: #{mllama_vision_forward.31} parent=89 // pred_check_branch
                %1225 = sbr.rel target = $region116
              $region115: #{mllama_vision_forward.31} parent=89 // pred_region
                _
              $region116: #{mllama_vision_forward.31} parent=89 // pred_fallthru
                _
            $region90: #{mllama_vision_forward.31} parent=85 // pred_fallthru
              _
            // Predicated region
            $region91: #{mllama_vision_forward.31} parent=85 // pred_check
              _
            $region92: #{mllama_vision_forward.31} parent=85 // pred_check_branch
              %1180 = sbr.rel target = $region94
            $region93: #{mllama_vision_forward.31} parent=85 // pred_region
              loop: start=0, step=1, limit=1
              $region95: #{mllama_vision_forward.31} parent=93 // loop_pre_header
                _
              $region96: #{mllama_vision_forward.31} parent=93 // loop_header
                %s1183 = sphi 0, %s1187
                %p1184 = scmp.ge.s32.totalorder %s1183, 1
                %s1188 = sphi %s1165, %s1165
                %s1189 = sphi %s1174, %s1174
              $region97: #{mllama_vision_forward.31} parent=93 // loop_header_branch
                %1186 = sbr.rel (%p1184) target = $region101
              $region98: #{mllama_vision_forward.31} parent=93 // loop_body
                %v1190 = vld [vmem:[%s1188] sm:$0xff]
                %1191 = vst [vmem:[%s1189] sm:$0xff] %v1190
                %v1192 = vld [vmem:[%s1188 + $0x8] sm:$0xff]
                %1193 = vst [vmem:[%s1189 + $0x10] sm:$0xff] %v1192
                %v1194 = vld [vmem:[%s1188 + $0x10] sm:$0xff]
                %1195 = vst [vmem:[%s1189 + $0x20] sm:$0xff] %v1194
                %v1196 = vld [vmem:[%s1188 + $0x18] sm:$0xff]
                %1197 = vst [vmem:[%s1189 + $0x30] sm:$0xff] %v1196
                %v1198 = vld [vmem:[%s1188 + $0x20] sm:$0xff]
                %1199 = vst [vmem:[%s1189 + $0x40] sm:$0xff] %v1198
                %v1200 = vld [vmem:[%s1188 + $0x28] sm:$0xff]
                %1201 = vst [vmem:[%s1189 + $0x50] sm:$0xff] %v1200
              $region99: #{mllama_vision_forward.31} parent=93 // loop_footer
                %s1187 = sadd.s32 1, %s1183
              $region100: #{mllama_vision_forward.31} parent=93 // loop_footer_branch
                %1182 = sbr.rel target = $region96
              $region101: #{mllama_vision_forward.31} parent=93 // loop_exit
                _
            $region94: #{mllama_vision_forward.31} parent=85 // pred_fallthru
              _
          $region86: #{mllama_vision_forward.31} parent=81 // pred_fallthru
            _
          %1226 = vnop
        $region82: #{mllama_vision_forward.31} parent=65 // pred_fallthru
          _
      $region66: #{mllama_vision_forward.31} parent=5 // pred_fallthru
        _
      %p1227 = scmp.le.s32.totalorder 2, %s9
      // Predicated region
      $region117: #{mllama_vision_forward.31} parent=5 // pred_check
        %p1228 = pneg %p1227
      $region118: #{mllama_vision_forward.31} parent=5 // pred_check_branch
        %1230 = sbr.rel (%p1228) target = $region120
      $region119: #{mllama_vision_forward.31} parent=5 // pred_region
        %s1231 = ssub.s32 %s9, 2
        // Predicated region
        $region121: #{mllama_vision_forward.31} parent=119 // pred_check
          %p1232 = pneg %p141
        $region122: #{mllama_vision_forward.31} parent=119 // pred_check_branch
          %1234 = sbr.rel (%p1232) target = $region124
        $region123: #{mllama_vision_forward.31} parent=119 // pred_region
          %s1235 = sand.u32 %s126, 1
          %s1236 = sand.u32 %s126, 1
          %s1237 = smul.addr %s1236, 48
          %s1238 = scalar_lea.vmem [#allocation4], %s1237
        $region124: #{mllama_vision_forward.31} parent=119 // pred_fallthru
          _
      $region120: #{mllama_vision_forward.31} parent=5 // pred_fallthru
        _
    $region6: #{mllama_vision_forward.31} parent=1 // loop_footer
      %s13 = sadd.s32 1, %s9
    $region7: #{mllama_vision_forward.31} parent=1 // loop_footer_branch
      %8 = sbr.rel target = $region3
    $region8: #{mllama_vision_forward.31} parent=1 // loop_exit
      _

// kernel: mllama_vision_forward.32
$region0: #{mllama_vision_forward.32}
  #allocation0 [shape = 'u32[]', space=smem, size = 0x4, offset = 0x4, fixed_abs, tag = 'smem constant byte address 0x4 - core index']
  #allocation1 [shape = 'u32[144,128]{1,0:T(1,128)}', space=vmem, size = 0x12000, scoped, tag = 'internal scratch']
  #allocation2 [shape = 'f32[48,256]{1,0:T(8,128)}', space=vmem, size = 0xc000, scoped, tag = 'scratch operand']
  #allocation3 [shape = 'f32[1]{0:T(128)S(6)}', space=smem, size = 0x200, scoped, tag = 'scoped memory for mllama_vision_forward.32']
  %s0 = inlined_call_operand.vmem [shape: bf16[48,512], index: 0, kind: input, shape index: {}]
  %s1 = inlined_call_operand.vmem [shape: bf16[512,256], index: 1, kind: input, shape index: {}]
  %s2 = inlined_call_operand.vmem [shape: f32[1,256], index: 2, kind: input, shape index: {}]
  %s3 = inlined_call_operand.vmem [shape: bf16[48,256], index: 3, kind: input, shape index: {}]
  %s4 = inlined_call_operand.<no memory space> [shape: f32[1], index: 4, kind: input, shape index: {}]
  %s5 = inlined_call_operand.vmem [shape: bf16[48,256], index: 5, kind: output, shape index: {}]
  %s6 = sld [smem:[#allocation0]]
  $region99: #{mllama_vision_forward.32} parent=0
    _
  %s8 = ssub.s32 1, %s6
  %s9 = scalar_select 0, %s8, %s6
  %10 = sst [smem:[#allocation3]] %s4
  $region1: #{mllama_vision_forward.32} parent=0
    #allocation4 [shape = 'u8[49152]{0}', space=vmem, size = 0xc000, scoped, tag = 'input window, operand 0']
    loop: start=0, step=1, limit=4
    $region2: #{mllama_vision_forward.32} parent=1 // loop_pre_header
      _
    $region3: #{mllama_vision_forward.32} parent=1 // loop_header
      %s12 = sphi 0, %s16
      %p13 = scmp.ge.s32.totalorder %s12, 4
      %s19 = sphi 0, %s38
      %s20 = sphi 0, %s34
      %s21 = sphi 0, %s30
      %s22 = sphi 0, %s19
      %s23 = sphi 0, %s20
      %s24 = sphi 0, %s21
      %s25 = sphi 0, %s22
      %s26 = sphi 0, %s23
      %s27 = sphi 0, %s24
      %s43 = sphi 0, %s45
      %s46 = sphi 0, %s43
      %s47 = sphi 0, %s46
      %s63 = sphi 0, %s47
      %s71 = sphi 0, %s73
      %s74 = sphi 0, %s71
      %s75 = sphi 0, %s74
      %s91 = sphi 0, %s75
      %s97 = sphi 0, %s99
      %s100 = sphi 0, %s97
      %s101 = sphi 0, %s100
      %s117 = sphi 0, %s101
      %s125 = sphi 0, %s127
      %s128 = sphi 0, %s125
      %s129 = sphi 0, %s128
      %s145 = sphi 0, %s129
      %s149 = sphi 0, %s149
      %s151 = sphi 0, %s149
      %s152 = sphi 0, %s151
      %s166 = sphi 0, %s152
      %s174 = sphi 0, %s176
      %s177 = sphi 0, %s174
      %s178 = sphi 0, %s177
      %s194 = sphi 0, %s178
    $region4: #{mllama_vision_forward.32} parent=1 // loop_header_branch
      %15 = sbr.rel (%p13) target = $region8
    $region5: #{mllama_vision_forward.32} parent=1 // loop_body
      %s17 = ssub.s32 %s12, 1
      %s18 = ssub.s32 %s12, 2
      %s28 = sadd.s32 1, %s21
      %p29 = scmp.ge.s32.totalorder %s28, 2
      %s30 = scalar_select %p29, 0, %s28
      %s31 = sadd.s32 1, %s20
      %s32 = scalar_select %p29, %s31, %s20
      %p33 = scmp.ge.s32.totalorder %s32, 1
      %s34 = scalar_select %p33, 0, %s32
      %s35 = sadd.s32 1, %s19
      %s36 = scalar_select %p33, %s35, %s19
      %p37 = scmp.ge.s32.totalorder %s36, 1
      %s38 = scalar_select %p37, 0, %s36
      %s39 = ssub.s32 %s19, %s38
      %s40 = ssub.s32 %s21, %s30
      %s41 = sor.u32 %s39, %s40
      %p42 = scmp.eq.s32.totalorder %s41, 0
      %s44 = sadd.s32 %s43, 1
      %s45 = scalar_select %p42, %s43, %s44
      %p48 = pneg %p42
      %p49 = scmp.eq.s32.totalorder %s12, 1
      %p50 = por %p48, %p49
      %p51 = scmp.ne.s32.totalorder %s43, %s46
      %p52 = scmp.eq.s32.totalorder %s12, 0
      %p53 = por %p51, %p52
      %p54 = scmp.ne.s32.totalorder %s43, %s46
      %p55 = scmp.eq.s32.totalorder %s17, 1
      %p56 = por %p54, %p55
      %p57 = scmp.ne.s32.totalorder %s46, %s47
      %p58 = scmp.eq.s32.totalorder %s17, 0
      %p59 = por %p57, %p58
      %p60 = scmp.ne.s32.totalorder %s46, %s47
      %p61 = scmp.eq.s32.totalorder %s18, 1
      %p62 = por %p60, %p61
      %p64 = scmp.ne.s32.totalorder %s47, %s63
      %p65 = scmp.eq.s32.totalorder %s18, 0
      %p66 = por %p64, %p65
      %s67 = ssub.s32 %s21, %s30
      %s68 = ssub.s32 %s20, %s34
      %s69 = sor.u32 %s67, %s68
      %p70 = scmp.eq.s32.totalorder %s69, 0
      %s72 = sadd.s32 %s71, 1
      %s73 = scalar_select %p70, %s71, %s72
      %p76 = pneg %p70
      %p77 = scmp.eq.s32.totalorder %s12, 1
      %p78 = por %p76, %p77
      %p79 = scmp.ne.s32.totalorder %s71, %s74
      %p80 = scmp.eq.s32.totalorder %s12, 0
      %p81 = por %p79, %p80
      %p82 = scmp.ne.s32.totalorder %s71, %s74
      %p83 = scmp.eq.s32.totalorder %s17, 1
      %p84 = por %p82, %p83
      %p85 = scmp.ne.s32.totalorder %s74, %s75
      %p86 = scmp.eq.s32.totalorder %s17, 0
      %p87 = por %p85, %p86
      %p88 = scmp.ne.s32.totalorder %s74, %s75
      %p89 = scmp.eq.s32.totalorder %s18, 1
      %p90 = por %p88, %p89
      %p92 = scmp.ne.s32.totalorder %s75, %s91
      %p93 = scmp.eq.s32.totalorder %s18, 0
      %p94 = por %p92, %p93
      %s95 = ssub.s32 %s20, %s34
      %p96 = scmp.eq.s32.totalorder %s95, 0
      %s98 = sadd.s32 %s97, 1
      %s99 = scalar_select %p96, %s97, %s98
      %p102 = pneg %p96
      %p103 = scmp.eq.s32.totalorder %s12, 1
      %p104 = por %p102, %p103
      %p105 = scmp.ne.s32.totalorder %s97, %s100
      %p106 = scmp.eq.s32.totalorder %s12, 0
      %p107 = por %p105, %p106
      %p108 = scmp.ne.s32.totalorder %s97, %s100
      %p109 = scmp.eq.s32.totalorder %s17, 1
      %p110 = por %p108, %p109
      %p111 = scmp.ne.s32.totalorder %s100, %s101
      %p112 = scmp.eq.s32.totalorder %s17, 0
      %p113 = por %p111, %p112
      %p114 = scmp.ne.s32.totalorder %s100, %s101
      %p115 = scmp.eq.s32.totalorder %s18, 1
      %p116 = por %p114, %p115
      %p118 = scmp.ne.s32.totalorder %s101, %s117
      %p119 = scmp.eq.s32.totalorder %s18, 0
      %p120 = por %p118, %p119
      %s121 = ssub.s32 %s19, %s38
      %s122 = ssub.s32 %s20, %s34
      %s123 = sor.u32 %s121, %s122
      %p124 = scmp.eq.s32.totalorder %s123, 0
      %s126 = sadd.s32 %s125, 1
      %s127 = scalar_select %p124, %s125, %s126
      %p130 = pneg %p124
      %p131 = scmp.eq.s32.totalorder %s12, 1
      %p132 = por %p130, %p131
      %p133 = scmp.ne.s32.totalorder %s125, %s128
      %p134 = scmp.eq.s32.totalorder %s12, 0
      %p135 = por %p133, %p134
      %p136 = scmp.ne.s32.totalorder %s125, %s128
      %p137 = scmp.eq.s32.totalorder %s17, 1
      %p138 = por %p136, %p137
      %p139 = scmp.ne.s32.totalorder %s128, %s129
      %p140 = scmp.eq.s32.totalorder %s17, 0
      %p141 = por %p139, %p140
      %p142 = scmp.ne.s32.totalorder %s128, %s129
      %p143 = scmp.eq.s32.totalorder %s18, 1
      %p144 = por %p142, %p143
      %p146 = scmp.ne.s32.totalorder %s129, %s145
      %p147 = scmp.eq.s32.totalorder %s18, 0
      %p148 = por %p146, %p147
      %s150 = sadd.s32 %s149, 1
      %p153 = scmp.eq.s32.totalorder %s12, 1
      %p154 = scmp.ne.s32.totalorder %s149, %s151
      %p155 = scmp.eq.s32.totalorder %s12, 0
      %p156 = por %p154, %p155
      %p157 = scmp.ne.s32.totalorder %s149, %s151
      %p158 = scmp.eq.s32.totalorder %s17, 1
      %p159 = por %p157, %p158
      %p160 = scmp.ne.s32.totalorder %s151, %s152
      %p161 = scmp.eq.s32.totalorder %s17, 0
      %p162 = por %p160, %p161
      %p163 = scmp.ne.s32.totalorder %s151, %s152
      %p164 = scmp.eq.s32.totalorder %s18, 1
      %p165 = por %p163, %p164
      %p167 = scmp.ne.s32.totalorder %s152, %s166
      %p168 = scmp.eq.s32.totalorder %s18, 0
      %p169 = por %p167, %p168
      %s170 = ssub.s32 %s19, %s38
      %s171 = ssub.s32 %s20, %s34
      %s172 = sor.u32 %s170, %s171
      %p173 = scmp.eq.s32.totalorder %s172, 0
      %s175 = sadd.s32 %s174, 1
      %s176 = scalar_select %p173, %s174, %s175
      %p179 = pneg %p173
      %p180 = scmp.eq.s32.totalorder %s12, 1
      %p181 = por %p179, %p180
      %p182 = scmp.ne.s32.totalorder %s174, %s177
      %p183 = scmp.eq.s32.totalorder %s12, 0
      %p184 = por %p182, %p183
      %p185 = scmp.ne.s32.totalorder %s174, %s177
      %p186 = scmp.eq.s32.totalorder %s17, 1
      %p187 = por %p185, %p186
      %p188 = scmp.ne.s32.totalorder %s177, %s178
      %p189 = scmp.eq.s32.totalorder %s17, 0
      %p190 = por %p188, %p189
      %p191 = scmp.ne.s32.totalorder %s177, %s178
      %p192 = scmp.eq.s32.totalorder %s18, 1
      %p193 = por %p191, %p192
      %p195 = scmp.ne.s32.totalorder %s178, %s194
      %p196 = scmp.eq.s32.totalorder %s18, 0
      %p197 = por %p195, %p196
      %p198 = scmp.le.s32.totalorder 1, %s12
      %p199 = scmp.lt.s32.totalorder %s12, 3
      %p200 = pnand %p198, %p199
      %p201 = pneg %p200
      // Predicated region
      $region9: #{mllama_vision_forward.32} parent=5 // pred_check
        _
      $region10: #{mllama_vision_forward.32} parent=5 // pred_check_branch
        %203 = sbr.rel (%p200) target = $region12
      $region11: #{mllama_vision_forward.32} parent=5 // pred_region
        %s204 = ssub.s32 %s12, 1
        // Predicated region
        $region13: #{mllama_vision_forward.32} parent=11 // pred_check
          %p205 = pneg %p113
        $region14: #{mllama_vision_forward.32} parent=11 // pred_check_branch
          %207 = sbr.rel (%p205) target = $region16
        $region15: #{mllama_vision_forward.32} parent=11 // pred_region
          %s208 = smul.u32 2, %s23
          %p209 = scmp.lt.s32.totalorder %s208, 1
          %s210 = scalar_select %p209, %s208, 1
          %s211 = scalar_lea.vmem %s2, %s210
          %s212 = smul.u32 2, %s23
        $region16: #{mllama_vision_forward.32} parent=11 // pred_fallthru
          _
        // Predicated region
        $region17: #{mllama_vision_forward.32} parent=11 // pred_check
          %p213 = pneg %p141
        $region18: #{mllama_vision_forward.32} parent=11 // pred_check_branch
          %215 = sbr.rel (%p213) target = $region20
        $region19: #{mllama_vision_forward.32} parent=11 // pred_region
          %s216 = smul.u32 6, %s22
          %s217 = smul.u32 2, %s23
          %p218 = scmp.lt.s32.totalorder %s216, 5
          %s219 = scalar_select %p218, %s216, 5
          %p220 = scmp.lt.s32.totalorder %s217, 1
          %s221 = scalar_select %p220, %s217, 1
          %s222 = smul.addr %s219, 2
          %s223 = sadd.s32 %s221, %s222
          %s224 = smul.addr %s223, 4
          %s225 = scalar_lea.vmem %s3, %s224
          %s226 = smul.u32 6, %s22
          %s227 = smul.u32 2, %s23
        $region20: #{mllama_vision_forward.32} parent=11 // pred_fallthru
          _
        // Predicated region
        $region21: #{mllama_vision_forward.32} parent=11 // pred_check
          %p228 = pneg %p162
        $region22: #{mllama_vision_forward.32} parent=11 // pred_check_branch
          %230 = sbr.rel (%p228) target = $region24
        $region23: #{mllama_vision_forward.32} parent=11 // pred_region
          _
        $region24: #{mllama_vision_forward.32} parent=11 // pred_fallthru
          _
      $region12: #{mllama_vision_forward.32} parent=5 // pred_fallthru
        _
      %p231 = scmp.lt.s32.totalorder %s12, 2
      // Predicated region
      $region25: #{mllama_vision_forward.32} parent=5 // pred_check
        %p232 = pneg %p231
      $region26: #{mllama_vision_forward.32} parent=5 // pred_check_branch
        %234 = sbr.rel (%p232) target = $region28
      $region27: #{mllama_vision_forward.32} parent=5 // pred_region
        // Predicated region
        $region29: #{mllama_vision_forward.32} parent=27 // pred_check
          %p235 = pneg %p53
        $region30: #{mllama_vision_forward.32} parent=27 // pred_check_branch
          %237 = sbr.rel (%p235) target = $region32
        $region31: #{mllama_vision_forward.32} parent=27 // pred_region
          %s238 = sand.u32 %s43, 1
          %s239 = sand.u32 %s43, 1
          %s240 = smul.addr %s239, 48
          %s241 = scalar_lea.vmem [#allocation4], %s240
          %s242 = smul.u32 6, %s19
          %s243 = smul.u32 2, %s21
          %s244 = smul.addr %s242, 4
          %s245 = sadd.s32 %s243, %s244
          %s246 = smul.addr %s245, 4
          %s247 = scalar_lea.vmem %s0, %s246
          // Predicated region
          $region33: #{mllama_vision_forward.32} parent=31 // pred_check
            _
          $region34: #{mllama_vision_forward.32} parent=31 // pred_check_branch
            %249 = sbr.rel (0) target = $region36
          $region35: #{mllama_vision_forward.32} parent=31 // pred_region
            // Predicated region
            $region37: #{mllama_vision_forward.32} parent=35 // pred_check
              _
            $region38: #{mllama_vision_forward.32} parent=35 // pred_check_branch
              %251 = sbr.rel (0) target = $region40
            $region39: #{mllama_vision_forward.32} parent=35 // pred_region
              // Predicated region
              $region52: #{mllama_vision_forward.32} parent=39 // pred_check
                _
              $region53: #{mllama_vision_forward.32} parent=39 // pred_check_branch
                %276 = sbr.rel (0) target = $region55
              $region54: #{mllama_vision_forward.32} parent=39 // pred_region
                loop: start=0, step=1, limit=1
                $region56: #{mllama_vision_forward.32} parent=54 // loop_pre_header
                  _
                $region57: #{mllama_vision_forward.32} parent=54 // loop_header
                  %s278 = sphi 0, %s282
                  %p279 = scmp.ge.s32.totalorder %s278, 1
                  %s283 = sphi %s247, %s247
                  %s284 = sphi %s241, %s241
                $region58: #{mllama_vision_forward.32} parent=54 // loop_header_branch
                  %281 = sbr.rel (%p279) target = $region62
                $region59: #{mllama_vision_forward.32} parent=54 // loop_body
                  %v285 = vld [vmem:[%s283] sm:$0xff]
                  %286 = vst [vmem:[%s284] sm:$0xff] %v285
                  %v287 = vld [vmem:[%s283 + $0x10] sm:$0xff]
                  %288 = vst [vmem:[%s284 + $0x8] sm:$0xff] %v287
                  %v289 = vld [vmem:[%s283 + $0x20] sm:$0xff]
                  %290 = vst [vmem:[%s284 + $0x10] sm:$0xff] %v289
                  %v291 = vld [vmem:[%s283 + $0x30] sm:$0xff]
                  %292 = vst [vmem:[%s284 + $0x18] sm:$0xff] %v291
                  %v293 = vld [vmem:[%s283 + $0x40] sm:$0xff]
                  %294 = vst [vmem:[%s284 + $0x20] sm:$0xff] %v293
                  %v295 = vld [vmem:[%s283 + $0x50] sm:$0xff]
                  %296 = vst [vmem:[%s284 + $0x28] sm:$0xff] %v295
                $region60: #{mllama_vision_forward.32} parent=54 // loop_footer
                  %s282 = sadd.s32 1, %s278
                $region61: #{mllama_vision_forward.32} parent=54 // loop_footer_branch
                  %277 = sbr.rel target = $region57
                $region62: #{mllama_vision_forward.32} parent=54 // loop_exit
                  _
              $region55: #{mllama_vision_forward.32} parent=39 // pred_fallthru
                _
              // Predicated region
              $region63: #{mllama_vision_forward.32} parent=39 // pred_check
                _
              $region64: #{mllama_vision_forward.32} parent=39 // pred_check_branch
                %298 = sbr.rel target = $region66
              $region65: #{mllama_vision_forward.32} parent=39 // pred_region
                _
              $region66: #{mllama_vision_forward.32} parent=39 // pred_fallthru
                _
            $region40: #{mllama_vision_forward.32} parent=35 // pred_fallthru
              _
            // Predicated region
            $region41: #{mllama_vision_forward.32} parent=35 // pred_check
              _
            $region42: #{mllama_vision_forward.32} parent=35 // pred_check_branch
              %253 = sbr.rel target = $region44
            $region43: #{mllama_vision_forward.32} parent=35 // pred_region
              loop: start=0, step=1, limit=1
              $region45: #{mllama_vision_forward.32} parent=43 // loop_pre_header
                _
              $region46: #{mllama_vision_forward.32} parent=43 // loop_header
                %s256 = sphi 0, %s260
                %p257 = scmp.ge.s32.totalorder %s256, 1
                %s261 = sphi %s247, %s247
                %s262 = sphi %s241, %s241
              $region47: #{mllama_vision_forward.32} parent=43 // loop_header_branch
                %259 = sbr.rel (%p257) target = $region51
              $region48: #{mllama_vision_forward.32} parent=43 // loop_body
                %v263 = vld [vmem:[%s261] sm:$0xff]
                %264 = vst [vmem:[%s262] sm:$0xff] %v263
                %v265 = vld [vmem:[%s261 + $0x10] sm:$0xff]
                %266 = vst [vmem:[%s262 + $0x8] sm:$0xff] %v265
                %v267 = vld [vmem:[%s261 + $0x20] sm:$0xff]
                %268 = vst [vmem:[%s262 + $0x10] sm:$0xff] %v267
                %v269 = vld [vmem:[%s261 + $0x30] sm:$0xff]
                %270 = vst [vmem:[%s262 + $0x18] sm:$0xff] %v269
                %v271 = vld [vmem:[%s261 + $0x40] sm:$0xff]
                %272 = vst [vmem:[%s262 + $0x20] sm:$0xff] %v271
                %v273 = vld [vmem:[%s261 + $0x50] sm:$0xff]
                %274 = vst [vmem:[%s262 + $0x28] sm:$0xff] %v273
              $region49: #{mllama_vision_forward.32} parent=43 // loop_footer
                %s260 = sadd.s32 1, %s256
              $region50: #{mllama_vision_forward.32} parent=43 // loop_footer_branch
                %255 = sbr.rel target = $region46
              $region51: #{mllama_vision_forward.32} parent=43 // loop_exit
                _
            $region44: #{mllama_vision_forward.32} parent=35 // pred_fallthru
              _
          $region36: #{mllama_vision_forward.32} parent=31 // pred_fallthru
            _
          %299 = vnop
        $region32: #{mllama_vision_forward.32} parent=27 // pred_fallthru
          _
        // Predicated region
        $region67: #{mllama_vision_forward.32} parent=27 // pred_check
          %p300 = pneg %p81
        $region68: #{mllama_vision_forward.32} parent=27 // pred_check_branch
          %302 = sbr.rel (%p300) target = $region70
        $region69: #{mllama_vision_forward.32} parent=27 // pred_region
          %s303 = smul.u32 32, %s21
          %s304 = smul.u32 2, %s20
          %p305 = scmp.lt.s32.totalorder %s303, 63
          %s306 = scalar_select %p305, %s303, 63
          %p307 = scmp.lt.s32.totalorder %s304, 1
          %s308 = scalar_select %p307, %s304, 1
          %s309 = smul.addr %s306, 2
          %s310 = sadd.s32 %s308, %s309
          %s311 = smul.addr %s310, 4
          %s312 = scalar_lea.vmem %s1, %s311
          %s313 = smul.u32 32, %s21
          %s314 = smul.u32 2, %s20
        $region70: #{mllama_vision_forward.32} parent=27 // pred_fallthru
          _
      $region28: #{mllama_vision_forward.32} parent=5 // pred_fallthru
        _
      %p315 = scmp.le.s32.totalorder 1, %s12
      %p316 = scmp.lt.s32.totalorder %s12, 3
      %p317 = pnand %p315, %p316
      %p318 = pneg %p317
      // Predicated region
      $region71: #{mllama_vision_forward.32} parent=5 // pred_check
        _
      $region72: #{mllama_vision_forward.32} parent=5 // pred_check_branch
        %320 = sbr.rel (%p317) target = $region74
      $region73: #{mllama_vision_forward.32} parent=5 // pred_region
        %s321 = ssub.s32 %s12, 1
        %s322 = sand.u32 %s46, 1
        %s323 = sand.u32 %s46, 1
        %s324 = smul.addr %s323, 48
        %s325 = scalar_lea.vmem [#allocation4], %s324
        // Predicated region
        $region75: #{mllama_vision_forward.32} parent=73 // pred_check
          %p326 = pneg %p59
        $region76: #{mllama_vision_forward.32} parent=73 // pred_check_branch
          %328 = sbr.rel (%p326) target = $region78
        $region77: #{mllama_vision_forward.32} parent=73 // pred_region
          _
        $region78: #{mllama_vision_forward.32} parent=73 // pred_fallthru
          _
        %s329 = sand.u32 %s46, 1
        %s330 = sand.u32 %s46, 1
        %s331 = smul.addr %s330, 48
        %s332 = scalar_lea.vmem [#allocation4], %s331
        %p333 = pneg %p59
        %p334 = pneg %p56
        %s335 = smul.u32 32, %s24
        %s336 = smul.u32 2, %s23
        %p337 = scmp.lt.s32.totalorder %s335, 63
        %s338 = scalar_select %p337, %s335, 63
        %p339 = scmp.lt.s32.totalorder %s336, 1
        %s340 = scalar_select %p339, %s336, 1
        %s341 = smul.addr %s338, 2
        %s342 = sadd.s32 %s340, %s341
        %s343 = smul.addr %s342, 4
        %s344 = scalar_lea.vmem %s1, %s343
        %p345 = pneg %p87
        %p346 = pneg %p84
        %s347 = smul.u32 2, %s23
        %p348 = scmp.lt.s32.totalorder %s347, 1
        %s349 = scalar_select %p348, %s347, 1
        %s350 = scalar_lea.vmem %s2, %s349
        %p351 = pneg %p113
        %p352 = pneg %p110
        %s353 = smul.u32 6, %s22
        %s354 = smul.u32 2, %s23
        %p355 = scmp.lt.s32.totalorder %s353, 5
        %s356 = scalar_select %p355, %s353, 5
        %p357 = scmp.lt.s32.totalorder %s354, 1
        %s358 = scalar_select %p357, %s354, 1
        %s359 = smul.addr %s356, 2
        %s360 = sadd.s32 %s358, %s359
        %s361 = smul.addr %s360, 4
        %s362 = scalar_lea.vmem %s3, %s361
        %p363 = pneg %p141
        %p364 = pneg %p138
        %p365 = pneg %p162
        %p366 = pneg %p159
        %p367 = pneg %p190
        %p368 = pneg %p187
        %s369 = smul.u32 6, %s22
        %s370 = smul.u32 2, %s23
        %p371 = scmp.lt.s32.totalorder %s369, 5
        %s372 = scalar_select %p371, %s369, 5
        %p373 = scmp.lt.s32.totalorder %s370, 1
        %s374 = scalar_select %p373, %s370, 1
        %s375 = smul.addr %s372, 2
        %s376 = sadd.s32 %s374, %s375
        %s377 = smul.addr %s376, 4
        %s378 = scalar_lea.vmem %s5, %s377
        %s379 = smul.u32 6, %s22
        %s380 = smul.u32 2, %s24
        %s381 = smul.u32 32, %s24
        %s382 = smul.u32 2, %s23
        %p383 = scmp.lt.s32.totalorder %s381, 63
        %s384 = scalar_select %p383, %s381, 63
        %p385 = scmp.lt.s32.totalorder %s382, 1
        %s386 = scalar_select %p385, %s382, 1
        %s387 = smul.addr %s384, 2
        %s388 = sadd.s32 %s386, %s387
        %s389 = smul.addr %s388, 4
        %s390 = scalar_lea.vmem %s1, %s389
        %s391 = smul.u32 32, %s24
        %s392 = smul.u32 2, %s23
        %s393 = smul.u32 2, %s23
        %p394 = scmp.lt.s32.totalorder %s393, 1
        %s395 = scalar_select %p394, %s393, 1
        %s396 = scalar_lea.vmem %s2, %s395
        %s397 = smul.u32 2, %s23
        %s398 = smul.u32 6, %s22
        %s399 = smul.u32 2, %s23
        %p400 = scmp.lt.s32.totalorder %s398, 5
        %s401 = scalar_select %p400, %s398, 5
        %p402 = scmp.lt.s32.totalorder %s399, 1
        %s403 = scalar_select %p402, %s399, 1
        %s404 = smul.addr %s401, 2
        %s405 = sadd.s32 %s403, %s404
        %s406 = smul.addr %s405, 4
        %s407 = scalar_lea.vmem %s3, %s406
        %s408 = smul.u32 6, %s22
        %s409 = smul.u32 2, %s23
        %s410 = smul.u32 6, %s22
        %s411 = smul.u32 2, %s23
        %p412 = scmp.lt.s32.totalorder %s410, 5
        %s413 = scalar_select %p412, %s410, 5
        %p414 = scmp.lt.s32.totalorder %s411, 1
        %s415 = scalar_select %p414, %s411, 1
        %s416 = smul.addr %s413, 2
        %s417 = sadd.s32 %s415, %s416
        %s418 = smul.addr %s417, 4
        %s419 = scalar_lea.vmem %s5, %s418
        %s420 = smul.u32 6, %s22
        %s421 = smul.u32 2, %s23
        %p422 = scmp.eq.s32.totalorder %s24, 0
        // Predicated region
        $region79: #{mllama_vision_forward.32} parent=73 // pred_check
          %p423 = pneg %p422
        $region80: #{mllama_vision_forward.32} parent=73 // pred_check_branch
          %425 = sbr.rel (%p423) target = $region82
        $region81: #{mllama_vision_forward.32} parent=73 // pred_region
          %426 = vst [vmem:[#allocation2] sm:$0xff] 0.0
          %427 = vst [vmem:[#allocation2 + $0x8] sm:$0xff] 0.0
          %428 = vst [vmem:[#allocation2 + $0x10] sm:$0xff] 0.0
          %429 = vst [vmem:[#allocation2 + $0x18] sm:$0xff] 0.0
          %430 = vst [vmem:[#allocation2 + $0x20] sm:$0xff] 0.0
          %431 = vst [vmem:[#allocation2 + $0x28] sm:$0xff] 0.0
          %432 = vst [vmem:[#allocation2 + $0x30] sm:$0xff] 0.0
          %433 = vst [vmem:[#allocation2 + $0x38] sm:$0xff] 0.0
          %434 = vst [vmem:[#allocation2 + $0x40] sm:$0xff] 0.0
          %435 = vst [vmem:[#allocation2 + $0x48] sm:$0xff] 0.0
          %436 = vst [vmem:[#allocation2 + $0x50] sm:$0xff] 0.0
          %437 = vst [vmem:[#allocation2 + $0x58] sm:$0xff] 0.0
        $region82: #{mllama_vision_forward.32} parent=73 // pred_fallthru
          _
        %v438 = vld [vmem:[#allocation2] sm:$0xff]
        %v439 = vld [vmem:[#allocation2 + $0x8] sm:$0xff]
        %v440 = vld [vmem:[#allocation2 + $0x10] sm:$0xff]
        %v441 = vld [vmem:[#allocation2 + $0x18] sm:$0xff]
        %v442 = vld [vmem:[#allocation2 + $0x20] sm:$0xff]
        %v443 = vld [vmem:[#allocation2 + $0x28] sm:$0xff]
        %v444 = vld [vmem:[#allocation2 + $0x30] sm:$0xff]
        %v445 = vld [vmem:[#allocation2 + $0x38] sm:$0xff]
        %v446 = vld [vmem:[#allocation2 + $0x40] sm:$0xff]
        %v447 = vld [vmem:[#allocation2 + $0x48] sm:$0xff]
        %v448 = vld [vmem:[#allocation2 + $0x50] sm:$0xff]
        %v449 = vld [vmem:[#allocation2 + $0x58] sm:$0xff]
        %v450 = vld [vmem:[%s325] sm:$0xff]
        %v451 = vld [vmem:[%s325 + $0x8] sm:$0xff]
        %v452 = vld [vmem:[%s325 + $0x10] sm:$0xff]
        %v453 = vld [vmem:[%s325 + $0x18] sm:$0xff]
        %v454 = vld [vmem:[%s325 + $0x20] sm:$0xff]
        %v455 = vld [vmem:[%s325 + $0x28] sm:$0xff]
        %v456 = vld [vmem:[%s390] sm:$0xff]
        %v457 = vld [vmem:[%s390 + $0x8] sm:$0xff]
        %v458 = vld [vmem:[%s390 + $0x10] sm:$0xff]
        %v459 = vld [vmem:[%s390 + $0x18] sm:$0xff]
        %v460 = vld [vmem:[%s390 + $0x20] sm:$0xff]
        %v461 = vld [vmem:[%s390 + $0x28] sm:$0xff]
        %v462 = vld [vmem:[%s390 + $0x30] sm:$0xff]
        %v463 = vld [vmem:[%s390 + $0x38] sm:$0xff]
        %v464 = vld [vmem:[%s390 + $0x40] sm:$0xff]
        %v465 = vld [vmem:[%s390 + $0x48] sm:$0xff]
        %v466 = vld [vmem:[%s390 + $0x50] sm:$0xff]
        %v467 = vld [vmem:[%s390 + $0x58] sm:$0xff]
        %v468 = vld [vmem:[%s390 + $0x60] sm:$0xff]
        %v469 = vld [vmem:[%s390 + $0x68] sm:$0xff]
        %v470 = vld [vmem:[%s390 + $0x70] sm:$0xff]
        %v471 = vld [vmem:[%s390 + $0x78] sm:$0xff]
        %v472 = vld [vmem:[%s390 + $0x80] sm:$0xff]
        %v473 = vld [vmem:[%s390 + $0x88] sm:$0xff]
        %v474 = vld [vmem:[%s390 + $0x90] sm:$0xff]
        %v475 = vld [vmem:[%s390 + $0x98] sm:$0xff]
        %v476 = vld [vmem:[%s390 + $0xa0] sm:$0xff]
        %v477 = vld [vmem:[%s390 + $0xa8] sm:$0xff]
        %v478 = vld [vmem:[%s390 + $0xb0] sm:$0xff]
        %v479 = vld [vmem:[%s390 + $0xb8] sm:$0xff]
        %v480 = vld [vmem:[%s390 + $0xc0] sm:$0xff]
        %v481 = vld [vmem:[%s390 + $0xc8] sm:$0xff]
        %v482 = vld [vmem:[%s390 + $0xd0] sm:$0xff]
        %v483 = vld [vmem:[%s390 + $0xd8] sm:$0xff]
        %v484 = vld [vmem:[%s390 + $0xe0] sm:$0xff]
        %v485 = vld [vmem:[%s390 + $0xe8] sm:$0xff]
        %v486 = vld [vmem:[%s390 + $0xf0] sm:$0xff]
        %v487 = vld [vmem:[%s390 + $0xf8] sm:$0xff]
        %v494 = vunpack.c.l.b16 %v450
        %v495 = vunpack.c.h.b16 %v450
        %v496 = vunpack.c.l.b16 %v451
        %v497 = vunpack.c.h.b16 %v451
        %v498 = vunpack.c.l.b16 %v452
        %v499 = vunpack.c.h.b16 %v452
        %v500 = vunpack.c.l.b16 %v453
        %v501 = vunpack.c.h.b16 %v453
        %v502 = vunpack.c.l.b16 %v454
        %v503 = vunpack.c.h.b16 %v454
        %v504 = vunpack.c.l.b16 %v455
        %v505 = vunpack.c.h.b16 %v455
        %v506 = vpack.c.b16 %v496, %v494
        %v507 = vpack.c.b16 %v497, %v495
        %v508 = vpack.c.b16 %v500, %v498
        %v509 = vpack.c.b16 %v501, %v499
        %v510 = vpack.c.b16 %v504, %v502
        %v511 = vpack.c.b16 %v505, %v503
        %v550 = vunpack.c.l.b16 %v456
        %v551 = vunpack.c.h.b16 %v456
        %v552 = vunpack.c.l.b16 %v457
        %v553 = vunpack.c.h.b16 %v457
        %v554 = vunpack.c.l.b16 %v458
        %v555 = vunpack.c.h.b16 %v458
        %v556 = vunpack.c.l.b16 %v459
        %v557 = vunpack.c.h.b16 %v459
        %v558 = vunpack.c.l.b16 %v460
        %v559 = vunpack.c.h.b16 %v460
        %v560 = vunpack.c.l.b16 %v461
        %v561 = vunpack.c.h.b16 %v461
        %v562 = vunpack.c.l.b16 %v462
        %v563 = vunpack.c.h.b16 %v462
        %v564 = vunpack.c.l.b16 %v463
        %v565 = vunpack.c.h.b16 %v463
        %v566 = vunpack.c.l.b16 %v464
        %v567 = vunpack.c.h.b16 %v464
        %v568 = vunpack.c.l.b16 %v465
        %v569 = vunpack.c.h.b16 %v465
        %v570 = vunpack.c.l.b16 %v466
        %v571 = vunpack.c.h.b16 %v466
        %v572 = vunpack.c.l.b16 %v467
        %v573 = vunpack.c.h.b16 %v467
        %v574 = vunpack.c.l.b16 %v468
        %v575 = vunpack.c.h.b16 %v468
        %v576 = vunpack.c.l.b16 %v469
        %v577 = vunpack.c.h.b16 %v469
        %v578 = vunpack.c.l.b16 %v470
        %v579 = vunpack.c.h.b16 %v470
        %v580 = vunpack.c.l.b16 %v471
        %v581 = vunpack.c.h.b16 %v471
        %v582 = vunpack.c.l.b16 %v472
        %v583 = vunpack.c.h.b16 %v472
        %v584 = vunpack.c.l.b16 %v473
        %v585 = vunpack.c.h.b16 %v473
        %v586 = vunpack.c.l.b16 %v474
        %v587 = vunpack.c.h.b16 %v474
        %v588 = vunpack.c.l.b16 %v475
        %v589 = vunpack.c.h.b16 %v475
        %v590 = vunpack.c.l.b16 %v476
        %v591 = vunpack.c.h.b16 %v476
        %v592 = vunpack.c.l.b16 %v477
        %v593 = vunpack.c.h.b16 %v477
        %v594 = vunpack.c.l.b16 %v478
        %v595 = vunpack.c.h.b16 %v478
        %v596 = vunpack.c.l.b16 %v479
        %v597 = vunpack.c.h.b16 %v479
        %v598 = vunpack.c.l.b16 %v480
        %v599 = vunpack.c.h.b16 %v480
        %v600 = vunpack.c.l.b16 %v481
        %v601 = vunpack.c.h.b16 %v481
        %v602 = vunpack.c.l.b16 %v482
        %v603 = vunpack.c.h.b16 %v482
        %v604 = vunpack.c.l.b16 %v483
        %v605 = vunpack.c.h.b16 %v483
        %v606 = vunpack.c.l.b16 %v484
        %v607 = vunpack.c.h.b16 %v484
        %v608 = vunpack.c.l.b16 %v485
        %v609 = vunpack.c.h.b16 %v485
        %v610 = vunpack.c.l.b16 %v486
        %v611 = vunpack.c.h.b16 %v486
        %v612 = vunpack.c.l.b16 %v487
        %v613 = vunpack.c.h.b16 %v487
        %v614 = vpack.c.b16 %v552, %v550
        %v615 = vpack.c.b16 %v553, %v551
        %v616 = vpack.c.b16 %v556, %v554
        %v617 = vpack.c.b16 %v557, %v555
        %v618 = vpack.c.b16 %v560, %v558
        %v619 = vpack.c.b16 %v561, %v559
        %v620 = vpack.c.b16 %v564, %v562
        %v621 = vpack.c.b16 %v565, %v563
        %v622 = vpack.c.b16 %v568, %v566
        %v623 = vpack.c.b16 %v569, %v567
        %v624 = vpack.c.b16 %v572, %v570
        %v625 = vpack.c.b16 %v573, %v571
        %v626 = vpack.c.b16 %v576, %v574
        %v627 = vpack.c.b16 %v577, %v575
        %v628 = vpack.c.b16 %v580, %v578
        %v629 = vpack.c.b16 %v581, %v579
        %v630 = vpack.c.b16 %v584, %v582
        %v631 = vpack.c.b16 %v585, %v583
        %v632 = vpack.c.b16 %v588, %v586
        %v633 = vpack.c.b16 %v589, %v587
        %v634 = vpack.c.b16 %v592, %v590
        %v635 = vpack.c.b16 %v593, %v591
        %v636 = vpack.c.b16 %v596, %v594
        %v637 = vpack.c.b16 %v597, %v595
        %v638 = vpack.c.b16 %v600, %v598
        %v639 = vpack.c.b16 %v601, %v599
        %v640 = vpack.c.b16 %v604, %v602
        %v641 = vpack.c.b16 %v605, %v603
        %v642 = vpack.c.b16 %v608, %v606
        %v643 = vpack.c.b16 %v609, %v607
        %v644 = vpack.c.b16 %v612, %v610
        %v645 = vpack.c.b16 %v613, %v611
        %678 = vmatprep.subr.bf16.mxu0 %v615
        %679 = vmatpush1.bf16.msra.mxu0 %v614
        %680 = vmatprep.subr.bf16.mxu0 %v617
        %681 = vmatpush1.bf16.msra.mxu0 %v616
        %682 = vmatprep.subr.bf16.mxu0 %v619
        %683 = vmatpush1.bf16.msra.mxu0 %v618
        %684 = vmatprep.subr.bf16.mxu0 %v621
        %685 = vmatpush1.bf16.msra.mxu0 %v620
        %686 = vmatprep.subr.bf16.mxu0 %v623
        %687 = vmatpush1.bf16.msra.mxu0 %v622
        %688 = vmatprep.subr.bf16.mxu0 %v625
        %689 = vmatpush1.bf16.msra.mxu0 %v624
        %690 = vmatprep.subr.bf16.mxu0 %v627
        %691 = vmatpush1.bf16.msra.mxu0 %v626
        %692 = vmatprep.subr.bf16.mxu0 %v629
        %693 = vmatpush1.bf16.msra.mxu0 %v628
        %694 = vmatprep.subr.bf16.mxu0 %v631
        %695 = vmatpush1.bf16.msra.mxu0 %v630
        %696 = vmatprep.subr.bf16.mxu0 %v633
        %697 = vmatpush1.bf16.msra.mxu0 %v632
        %698 = vmatprep.subr.bf16.mxu0 %v635
        %699 = vmatpush1.bf16.msra.mxu0 %v634
        %700 = vmatprep.subr.bf16.mxu0 %v637
        %701 = vmatpush1.bf16.msra.mxu0 %v636
        %702 = vmatprep.subr.bf16.mxu0 %v639
        %703 = vmatpush1.bf16.msra.mxu0 %v638
        %704 = vmatprep.subr.bf16.mxu0 %v641
        %705 = vmatpush1.bf16.msra.mxu0 %v640
        %706 = vmatprep.subr.bf16.mxu0 %v643
        %707 = vmatpush1.bf16.msra.mxu0 %v642
        %708 = vmatprep.subr.bf16.mxu0 %v645
        %709 = vmatpush1.bf16.msra.mxu0 %v644
        %710 = vmatprep.mubr.bf16.mxu0 %v507
        %711 = vmatmul.mubr.bf16.gmra.mrb[0].mxu0 %v506
        %v712 = vpop.f32.mrb[0].mxu0
        %v713 = vadd.f32 0.0, %v712
        %v714 = vpop.f32.mrb[0].mxu0
        %v715 = vadd.f32 0.0, %v714
        %v716 = vpop.f32.mrb[0].mxu0
        %v717 = vadd.f32 0.0, %v716
        %v718 = vpop.f32.mrb[0].mxu0
        %v719 = vadd.f32 0.0, %v718
        %720 = vmatprep.mubr.bf16.mxu0 %v509
        %721 = vmatmul.mubr.bf16.gmra.mrb[0].mxu0 %v508
        %v722 = vpop.f32.mrb[0].mxu0
        %v723 = vadd.f32 0.0, %v722
        %v724 = vpop.f32.mrb[0].mxu0
        %v725 = vadd.f32 0.0, %v724
        %v726 = vpop.f32.mrb[0].mxu0
        %v727 = vadd.f32 0.0, %v726
        %v728 = vpop.f32.mrb[0].mxu0
        %v729 = vadd.f32 0.0, %v728
        %730 = vmatprep.mubr.bf16.mxu0 %v511
        %731 = vmatmul.mubr.bf16.gmra.mrb[0].mxu0 %v510
        %v732 = vpop.f32.mrb[0].mxu0
        %v733 = vadd.f32 0.0, %v732
        %v734 = vpop.f32.mrb[0].mxu0
        %v735 = vadd.f32 0.0, %v734
        %v736 = vpop.f32.mrb[0].mxu0
        %v737 = vadd.f32 0.0, %v736
        %v738 = vpop.f32.mrb[0].mxu0
        %v739 = vadd.f32 0.0, %v738
        %740 = vdwg.mxu0
        %v741 = vadd.f32 %v438, %v713
        %v742 = vadd.f32 %v439, %v715
        %v743 = vadd.f32 %v440, %v717
        %v744 = vadd.f32 %v441, %v719
        %v745 = vadd.f32 %v442, %v723
        %v746 = vadd.f32 %v443, %v725
        %v747 = vadd.f32 %v444, %v727
        %v748 = vadd.f32 %v445, %v729
        %v749 = vadd.f32 %v446, %v733
        %v750 = vadd.f32 %v447, %v735
        %v751 = vadd.f32 %v448, %v737
        %v752 = vadd.f32 %v449, %v739
        %753 = vst [vmem:[#allocation2] sm:$0xff] %v741
        %754 = vst [vmem:[#allocation2 + $0x8] sm:$0xff] %v742
        %755 = vst [vmem:[#allocation2 + $0x10] sm:$0xff] %v743
        %756 = vst [vmem:[#allocation2 + $0x18] sm:$0xff] %v744
        %757 = vst [vmem:[#allocation2 + $0x20] sm:$0xff] %v745
        %758 = vst [vmem:[#allocation2 + $0x28] sm:$0xff] %v746
        %759 = vst [vmem:[#allocation2 + $0x30] sm:$0xff] %v747
        %760 = vst [vmem:[#allocation2 + $0x38] sm:$0xff] %v748
        %761 = vst [vmem:[#allocation2 + $0x40] sm:$0xff] %v749
        %762 = vst [vmem:[#allocation2 + $0x48] sm:$0xff] %v750
        %763 = vst [vmem:[#allocation2 + $0x50] sm:$0xff] %v751
        %764 = vst [vmem:[#allocation2 + $0x58] sm:$0xff] %v752
        %p765 = scmp.eq.s32.totalorder %s24, 1
        // Predicated region
        $region83: #{mllama_vision_forward.32} parent=73 // pred_check
          %p766 = pneg %p765
        $region84: #{mllama_vision_forward.32} parent=73 // pred_check_branch
          %768 = sbr.rel (%p766) target = $region86
        $region85: #{mllama_vision_forward.32} parent=73 // pred_region
          %v769 = vld [vmem:[#allocation2] sm:$0xff]
          %v770 = vld [vmem:[#allocation2 + $0x8] sm:$0xff]
          %v771 = vld [vmem:[#allocation2 + $0x10] sm:$0xff]
          %v772 = vld [vmem:[#allocation2 + $0x18] sm:$0xff]
          %v773 = vld [vmem:[#allocation2 + $0x20] sm:$0xff]
          %v774 = vld [vmem:[#allocation2 + $0x28] sm:$0xff]
          %v775 = vld [vmem:[#allocation2 + $0x30] sm:$0xff]
          %v776 = vld [vmem:[#allocation2 + $0x38] sm:$0xff]
          %v777 = vld [vmem:[#allocation2 + $0x40] sm:$0xff]
          %v778 = vld [vmem:[#allocation2 + $0x48] sm:$0xff]
          %v779 = vld [vmem:[#allocation2 + $0x50] sm:$0xff]
          %v780 = vld [vmem:[#allocation2 + $0x58] sm:$0xff]
          %v781 = vld [vmem:[%s396] sm:$0x3]
          %v783 = vlaneseq
          %v784 = vshrl.u32 %v783, 7
          %v785 = vsub.s32 0, %v784
          %v786 = vrot.slane %v781, %v785
          %v787 = vlaneseq
          %v788 = vshrl.u32 %v787, 7
          %v789 = vsub.s32 1, %v788
          %v790 = vrot.slane %v781, %v789
          %v793 = vadd.f32 %v769, %v786
          %v794 = vadd.f32 %v770, %v790
          %v795 = vadd.f32 %v771, %v786
          %v796 = vadd.f32 %v772, %v790
          %v797 = vadd.f32 %v773, %v786
          %v798 = vadd.f32 %v774, %v790
          %v799 = vadd.f32 %v775, %v786
          %v800 = vadd.f32 %v776, %v790
          %v801 = vadd.f32 %v777, %v786
          %v802 = vadd.f32 %v778, %v790
          %v803 = vadd.f32 %v779, %v786
          %v804 = vadd.f32 %v780, %v790
          %v805 = vld [vmem:[%s407] sm:$0xff]
          %v806 = vld [vmem:[%s407 + $0x8] sm:$0xff]
          %v807 = vld [vmem:[%s407 + $0x10] sm:$0xff]
          %v808 = vld [vmem:[%s407 + $0x18] sm:$0xff]
          %v809 = vld [vmem:[%s407 + $0x20] sm:$0xff]
          %v810 = vld [vmem:[%s407 + $0x28] sm:$0xff]
          %v811 = vunpack.c.l.bf16 %v805
          %v812 = vunpack.c.h.bf16 %v805
          %v813 = vunpack.c.l.bf16 %v806
          %v814 = vunpack.c.h.bf16 %v806
          %v815 = vunpack.c.l.bf16 %v807
          %v816 = vunpack.c.h.bf16 %v807
          %v817 = vunpack.c.l.bf16 %v808
          %v818 = vunpack.c.h.bf16 %v808
          %v819 = vunpack.c.l.bf16 %v809
          %v820 = vunpack.c.h.bf16 %v809
          %v821 = vunpack.c.l.bf16 %v810
          %v822 = vunpack.c.h.bf16 %v810
          %s823 = sld [smem:[#allocation3]]
          %v824 = vstv %s823
          %v825 = vmul.f32 %v824, %v793
          %v826 = vmul.f32 %v824, %v794
          %v827 = vmul.f32 %v824, %v795
          %v828 = vmul.f32 %v824, %v796
          %v829 = vmul.f32 %v824, %v797
          %v830 = vmul.f32 %v824, %v798
          %v831 = vmul.f32 %v824, %v799
          %v832 = vmul.f32 %v824, %v800
          %v833 = vmul.f32 %v824, %v801
          %v834 = vmul.f32 %v824, %v802
          %v835 = vmul.f32 %v824, %v803
          %v836 = vmul.f32 %v824, %v804
          %v837 = vadd.f32 %v811, %v825
          %v838 = vadd.f32 %v812, %v826
          %v839 = vadd.f32 %v813, %v827
          %v840 = vadd.f32 %v814, %v828
          %v841 = vadd.f32 %v815, %v829
          %v842 = vadd.f32 %v816, %v830
          %v843 = vadd.f32 %v817, %v831
          %v844 = vadd.f32 %v818, %v832
          %v845 = vadd.f32 %v819, %v833
          %v846 = vadd.f32 %v820, %v834
          %v847 = vadd.f32 %v821, %v835
          %v848 = vadd.f32 %v822, %v836
          %v849 = vpack.c.bf16 %v839, %v837
          %v850 = vpack.c.bf16 %v840, %v838
          %v851 = vpack.c.bf16 %v843, %v841
          %v852 = vpack.c.bf16 %v844, %v842
          %v853 = vpack.c.bf16 %v847, %v845
          %v854 = vpack.c.bf16 %v848, %v846
          %v861 = vunpack.c.l.b16 %v849
          %v862 = vunpack.c.l.b16 %v850
          %v863 = vunpack.c.h.b16 %v849
          %v864 = vunpack.c.h.b16 %v850
          %v865 = vunpack.c.l.b16 %v851
          %v866 = vunpack.c.l.b16 %v852
          %v867 = vunpack.c.h.b16 %v851
          %v868 = vunpack.c.h.b16 %v852
          %v869 = vunpack.c.l.b16 %v853
          %v870 = vunpack.c.l.b16 %v854
          %v871 = vunpack.c.h.b16 %v853
          %v872 = vunpack.c.h.b16 %v854
          %v873 = vpack.c.b16 %v862, %v861
          %v874 = vpack.c.b16 %v864, %v863
          %v875 = vpack.c.b16 %v866, %v865
          %v876 = vpack.c.b16 %v868, %v867
          %v877 = vpack.c.b16 %v870, %v869
          %v878 = vpack.c.b16 %v872, %v871
          %885 = vst [vmem:[%s419] sm:$0xff] %v873
          %886 = vst [vmem:[%s419 + $0x8] sm:$0xff] %v874
          %887 = vst [vmem:[%s419 + $0x10] sm:$0xff] %v875
          %888 = vst [vmem:[%s419 + $0x18] sm:$0xff] %v876
          %889 = vst [vmem:[%s419 + $0x20] sm:$0xff] %v877
          %890 = vst [vmem:[%s419 + $0x28] sm:$0xff] %v878
        $region86: #{mllama_vision_forward.32} parent=73 // pred_fallthru
          _
        %s891 = smul.u32 6, %s22
        %s892 = smul.u32 2, %s23
        %p893 = scmp.lt.s32.totalorder %s891, 5
        %s894 = scalar_select %p893, %s891, 5
        %p895 = scmp.lt.s32.totalorder %s892, 1
        %s896 = scalar_select %p895, %s892, 1
        %s897 = smul.addr %s894, 2
        %s898 = sadd.s32 %s896, %s897
        %s899 = smul.addr %s898, 4
        %s900 = scalar_lea.vmem %s5, %s899
        // Predicated region
        $region87: #{mllama_vision_forward.32} parent=73 // pred_check
          %p901 = pneg %p187
        $region88: #{mllama_vision_forward.32} parent=73 // pred_check_branch
          %903 = sbr.rel (%p901) target = $region90
        $region89: #{mllama_vision_forward.32} parent=73 // pred_region
          %s904 = smul.u32 6, %s22
          %s905 = smul.u32 2, %s23
        $region90: #{mllama_vision_forward.32} parent=73 // pred_fallthru
          _
        // Predicated region
        $region91: #{mllama_vision_forward.32} parent=73 // pred_check
          %p906 = pneg %p187
        $region92: #{mllama_vision_forward.32} parent=73 // pred_check_branch
          %908 = sbr.rel (%p906) target = $region94
        $region93: #{mllama_vision_forward.32} parent=73 // pred_region
          %s909 = smul.u32 6, %s22
          %s910 = smul.u32 2, %s23
          %p911 = scmp.lt.s32.totalorder %s909, 5
          %s912 = scalar_select %p911, %s909, 5
          %p913 = scmp.lt.s32.totalorder %s910, 1
          %s914 = scalar_select %p913, %s910, 1
          %s915 = smul.addr %s912, 2
          %s916 = sadd.s32 %s914, %s915
          %s917 = smul.addr %s916, 4
          %s918 = scalar_lea.vmem %s5, %s917
        $region94: #{mllama_vision_forward.32} parent=73 // pred_fallthru
          _
      $region74: #{mllama_vision_forward.32} parent=5 // pred_fallthru
        _
      %p919 = scmp.le.s32.totalorder 2, %s12
      // Predicated region
      $region95: #{mllama_vision_forward.32} parent=5 // pred_check
        %p920 = pneg %p919
      $region96: #{mllama_vision_forward.32} parent=5 // pred_check_branch
        %922 = sbr.rel (%p920) target = $region98
      $region97: #{mllama_vision_forward.32} parent=5 // pred_region
        %s923 = ssub.s32 %s12, 2
      $region98: #{mllama_vision_forward.32} parent=5 // pred_fallthru
        _
    $region6: #{mllama_vision_forward.32} parent=1 // loop_footer
      %s16 = sadd.s32 1, %s12
    $region7: #{mllama_vision_forward.32} parent=1 // loop_footer_branch
      %11 = sbr.rel target = $region3
    $region8: #{mllama_vision_forward.32} parent=1 // loop_exit
      _

</llo_original>
